<compile_context>
chip_gen: v7x
topology: tpu7x:2x2x1
jax: 0.10.0
libtpu: 0.0.40
codegen_flags: <defaults>
</compile_context>

<pallas_src>
import functools

import jax
import jax.numpy as jnp
import numpy as np
from jax.experimental import pallas as pl
from jax.experimental.pallas import tpu as pltpu


def _round_up(x, m):
    return ((x + m - 1) // m) * m


def _vq_kernel(za_ref, et_ref, e_ref, zq_ref, idx_ref, smin_ref):
    """One grid step processes `tile` flattened spatial positions.

    za_ref   : VMEM f32[tile, Daug]  rows = [z_raw(D), 1, 0...]  (NHWC order)
    et_ref   : VMEM f32[Daug, K]     [-(z_scale/sr)*e^T ; 0.5*||e||^2 ; 0]
    e_ref    : VMEM f32[K, D]        codebook pre-scaled by scaled_ratio
    zq_ref   : VMEM f32[tile, D]     quantized output rows (already * sr)
    idx_ref  : VMEM i32[1, 1, tile]  argmin codebook indices (lane-dense)
    smin_ref : VMEM f32[1, 1, tile]  per-row min score (lane-dense), used by
                                     the wrapper to reconstruct the diff term
    """
    K = et_ref.shape[1]

    # score[n,k] = 0.5*||e_k||^2 - (z_scale/sr) * z[n].e_k   (bias + scale
    # folded into the augmented contraction; single MXU matmul, no VPU pass)
    score = jnp.dot(za_ref[...], et_ref[...],
                    preferred_element_type=jnp.float32)          # (tile, K)

    # first-occurrence argmin along the codebook axis (lowering-safe form);
    # smin is needed anyway for the diff identity.
    smin = jnp.min(score, axis=1, keepdims=True)                 # (tile, 1)
    col = jax.lax.broadcasted_iota(jnp.int32, (1, K), 1)         # (1, K)
    idx = jnp.min(jnp.where(score == smin, col, K), axis=1)      # (tile,)

    # embedding lookup via one-hot matmul (MXU); codebook already * sr
    onehot = (col == idx[:, None]).astype(jnp.float32)           # (tile, K)
    zq_ref[...] = jnp.dot(onehot, e_ref[...],
                          preferred_element_type=jnp.float32).astype(zq_ref.dtype)

    idx_ref[0, 0, :] = idx
    smin_ref[0, 0, :] = smin[:, 0]


@functools.partial(jax.jit, static_argnames=("beta", "fix_len_l2norm", "tile_n"))
def ema_vq_forward(z_nchw, embedding, *, beta=0.25, fix_len_l2norm=30.0,
                   tile_n=2048):
    """Eval-mode forward of EMAVectorQuantizer.

    Returns (z_q [B,C,H,W], diff scalar, min_encoding_indices [B*H*W]).
    """
    B, C, H, W = z_nchw.shape
    K, D = embedding.shape
    assert D == C, "codebook dim must equal channel dim"

    z_nchw = z_nchw.astype(jnp.float32)
    embedding = embedding.astype(jnp.float32)

    # --- one fused pass over z: per-position ||z||^2 feeds both pre_len and
    #     the total squared norm used in the diff identity.
    zsq_pos = jnp.sum(z_nchw * z_nchw, axis=1)                   # (B, H, W)
    pre_len = jnp.mean(jnp.sqrt(zsq_pos))
    total_zsq = jnp.sum(zsq_pos)

    # conditional rescale: if pre_len >= fix_len -> z * fix_len / pre_len
    z_scale = jnp.where(pre_len >= fix_len_l2norm,
                        fix_len_l2norm / pre_len, jnp.float32(1.0))
    # norm_type != 'rela_llm' (no llm codebook) -> scaled_ratio = fix_len_l2norm
    sr = jnp.float32(fix_len_l2norm)
    c = z_scale / sr

    # --- codebook-side hoists (tiny, once per call): scalars baked in so the
    #     kernel has no bias subtract and no per-element scalar multiplies.
    esq_half = 0.5 * jnp.sum(embedding * embedding, axis=1)       # (K,)
    Daug = _round_up(D + 1, 8)
    et_aug = jnp.concatenate(
        [-c * embedding.T,                                        # (D, K)
         esq_half[None, :],                                       # (1, K)
         jnp.zeros((Daug - D - 1, K), jnp.float32)], axis=0)      # (Daug, K)
    e_scaled = sr * embedding                                     # (K, D)

    # --- tiling: amortize ~0.35us/step overhead with big tiles, but keep
    #     >= 2 roughly balanced grid steps for v7x megacore when N allows.
    N = B * H * W
    nt_min = 2 if N > 128 else 1
    nt = max(pl.cdiv(N, _round_up(tile_n, 128)), nt_min)
    tile = _round_up(pl.cdiv(N, nt), 128)
    n_pad = _round_up(N, tile)
    num_tiles = n_pad // tile

    # NCHW -> NHWC -> flatten, augment with a ones column (+ zero pad to Daug),
    # pad row count to a multiple of the tile (single fused materialization).
    z_flat = jnp.transpose(z_nchw, (0, 2, 3, 1)).reshape(N, D)
    z_aug = jnp.concatenate(
        [z_flat, jnp.ones((N, 1), jnp.float32),
         jnp.zeros((N, Daug - D - 1), jnp.float32)], axis=1)      # (N, Daug)
    if n_pad != N:
        z_aug = jnp.pad(z_aug, ((0, n_pad - N), (0, 0)))

    zq_flat, idx3d, smin3d = pl.pallas_call(
        _vq_kernel,
        grid=(num_tiles,),
        in_specs=[
            pl.BlockSpec((tile, Daug), lambda i: (i, 0)),   # z tile (augmented)
            pl.BlockSpec((Daug, K), lambda i: (0, 0)),      # folded codebook^T
            pl.BlockSpec((K, D), lambda i: (0, 0)),         # sr * codebook
        ],
        out_specs=[
            pl.BlockSpec((tile, D), lambda i: (i, 0)),          # z_q tile
            pl.BlockSpec((1, 1, tile), lambda i: (i, 0, 0)),    # indices
            pl.BlockSpec((1, 1, tile), lambda i: (i, 0, 0)),    # per-row smin
        ],
        out_shape=(
            jax.ShapeDtypeStruct((n_pad, D), jnp.float32),
            jax.ShapeDtypeStruct((num_tiles, 1, tile), jnp.int32),
            jax.ShapeDtypeStruct((num_tiles, 1, tile), jnp.float32),
        ),
        compiler_params=pltpu.CompilerParams(
            dimension_semantics=("parallel",),      # outputs blocked per step
            vmem_limit_bytes=48 * 1024 * 1024),     # > v5e default, < v7x phys
    )(z_aug, et_aug, e_scaled)

    # diff = beta * mean((z_q - z)^2) with sum_D (z_q - z)^2 per row equal to
    #        sr^2 * (2*smin + ||zf||^2)  and  sr^2*||zf||^2 = z_scale^2*||z||^2
    smin_rows = smin3d.reshape(-1)[:N]
    diff = beta * (2.0 * sr * sr * jnp.sum(smin_rows)
                   + z_scale * z_scale * total_zsq) / (N * D)

    # forward value of the straight-through estimator is just z_q
    z_q = jnp.transpose(zq_flat[:N].reshape(B, H, W, C), (0, 3, 1, 2))
    min_encoding_indices = idx3d.reshape(-1)[:N]
    return z_q, diff, min_encoding_indices


def _reference_forward(z_nchw, embedding, *, beta=0.25, fix_len_l2norm=30.0):
    """Pure-JAX reference mirroring the PyTorch eval forward (also returns d)."""
    B, C, H, W = z_nchw.shape
    pre_len = jnp.mean(jnp.sqrt(jnp.sum(z_nchw ** 2, axis=1)))
    z = jnp.transpose(z_nchw, (0, 2, 3, 1))
    z = jnp.where(pre_len >= fix_len_l2norm, z / pre_len * fix_len_l2norm, z)
    sr = fix_len_l2norm
    zf = z.reshape(-1, C) / sr
    d = (jnp.sum(zf ** 2, axis=1, keepdims=True)
         + jnp.sum(embedding ** 2, axis=1)[None, :]
         - 2.0 * zf @ embedding.T)
    idx = jnp.argmin(d, axis=1)
    z_q = embedding[idx].reshape(z.shape) * sr
    diff = beta * jnp.mean((z_q - z) ** 2)
    z_q = jnp.transpose(z_q, (0, 3, 1, 2))
    return z_q, diff, idx, d


def _check_one(z, embedding, beta, fix_len, dim):
    z_q, diff, codes = ema_vq_forward(z, embedding, beta=beta,
                                      fix_len_l2norm=fix_len, tile_n=2048)
    jax.block_until_ready((z_q, diff, codes))

    z_q_ref, diff_ref, codes_ref, d_ref = _reference_forward(
        z, embedding, beta=beta, fix_len_l2norm=fix_len)

    codes_np = np.asarray(codes)
    ref_np = np.asarray(codes_ref)
    neq = codes_np != ref_np
    if neq.any():
        # any disagreement must be a numerical near-tie in the true distance
        r = np.nonzero(neq)[0]
        d_np = np.asarray(d_ref)
        tie_gap = np.abs(d_np[r, codes_np[r]] - d_np[r, ref_np[r]])
        np.testing.assert_array_less(tie_gap, 1e-4)

    agree = ~neq
    zq_rows = np.asarray(jnp.transpose(z_q, (0, 2, 3, 1)).reshape(-1, dim))
    zq_ref_rows = np.asarray(jnp.transpose(z_q_ref, (0, 2, 3, 1)).reshape(-1, dim))
    np.testing.assert_allclose(zq_rows[agree], zq_ref_rows[agree],
                               rtol=1e-4, atol=1e-4)
    np.testing.assert_allclose(float(diff), float(diff_ref),
                               rtol=1e-3, atol=1e-4)
    return z_q, codes


if __name__ == "__main__":
    # Module hyper-params (synthetic, deterministic init)
    dim = 32          # channels C
    n_embed = 256     # codebook size
    beta = 0.25

    B, H, W = 2, 16, 16

    key = jax.random.PRNGKey(0)
    k_z, k_e = jax.random.split(key)
    z = jax.random.normal(k_z, (B, dim, H, W), dtype=jnp.float32)          # NCHW
    embedding = jax.random.normal(k_e, (n_embed, dim), dtype=jnp.float32)  # torch.randn(n_embed, dim)

    # default config: pre_len < fix_len  -> no rescale branch
    z_q, codes = _check_one(z, embedding, beta, 30.0, dim)
    # small fix_len_l2norm: exercises the pre_len >= fix_len rescale branch
    _check_one(z, embedding, beta, 4.0, dim)

    assert z_q.shape == (B, dim, H, W)
    assert codes.shape == (B * H * W,)
    print("KERNEL_OK")
</pallas_src>

<mosaic_0001>
module attributes {stable_mosaic.version = 11 : i64} {
  func.func @_vq_kernel(%arg0: i32, %arg1: memref<256x40xf32, #tpu.memory_space<vmem>>, %arg2: memref<40x256xf32, #tpu.memory_space<vmem>>, %arg3: memref<256x32xf32, #tpu.memory_space<vmem>>, %arg4: memref<256x32xf32, #tpu.memory_space<vmem>>, %arg5: memref<1x1x256xi32, #tpu.memory_space<vmem>>, %arg6: memref<1x1x256xf32, #tpu.memory_space<vmem>>) attributes {dimension_semantics = [#tpu.dimension_semantics<parallel>], iteration_bounds = array<i64: 2>, scalar_prefetch = 0 : i64, scratch_operands = 0 : i64, tpu.core_type = #tpu.core_type<tc>, window_params = [{transform_indices = @transform_0, window_bounds = array<i64: 256, 40>}, {pipeline_mode = #tpu.pipeline_mode<synchronous>, transform_indices = @transform_1, window_bounds = array<i64: 40, 256>}, {pipeline_mode = #tpu.pipeline_mode<synchronous>, transform_indices = @transform_2, window_bounds = array<i64: 256, 32>}, {transform_indices = @transform_3, window_bounds = array<i64: 256, 32>}, {transform_indices = @transform_4, window_bounds = array<i64: 1, 1, 256>}, {transform_indices = @transform_5, window_bounds = array<i64: 1, 1, 256>}]} {
    %c0 = arith.constant 0 : index
    %c0_0 = arith.constant 0 : index
    %0 = vector.load %arg1[%c0, %c0_0] : memref<256x40xf32, #tpu.memory_space<vmem>>, vector<256x40xf32>
    %c0_1 = arith.constant 0 : index
    %c0_2 = arith.constant 0 : index
    %1 = vector.load %arg2[%c0_1, %c0_2] : memref<40x256xf32, #tpu.memory_space<vmem>>, vector<40x256xf32>
    %cst = arith.constant dense<0.000000e+00> : vector<256x256xf32>
    %2 = tpu.matmul %0, %1, %cst {dimension_numbers = #tpu.dot_dimension_numbers<[1], [0], [0], [1], [0, 0, 1, 1], [], []>} : vector<256x40xf32>, vector<40x256xf32>, vector<256x256xf32> -> vector<256x256xf32>
    %cst_3 = arith.constant dense<0x7F800000> : vector<256xf32>
    %3 = vector.multi_reduction <minimumf>, %2, %cst_3 [1] : vector<256x256xf32> to vector<256xf32>
    %4 = vector.shape_cast %3 : vector<256xf32> to vector<256x1xf32>
    %5 = tpu.iota {dimensions = array<i32: 1>} : vector<1x256xi32>
    %6 = vector.broadcast %4 : vector<256x1xf32> to vector<256x256xf32>
    %7 = arith.cmpf oeq, %2, %6 : vector<256x256xf32>
    %c256_i32 = arith.constant 256 : i32
    %8 = vector.shape_cast %5 : vector<1x256xi32> to vector<1x256xi32>
    %9 = vector.broadcast %8 : vector<1x256xi32> to vector<256x256xi32>
    %10 = vector.broadcast %c256_i32 : i32 to vector<256x256xi32>
    %11 = arith.select %7, %9, %10 : vector<256x256xi1>, vector<256x256xi32>
    %cst_4 = arith.constant dense<2147483647> : vector<256xi32>
    %12 = vector.multi_reduction <minsi>, %11, %cst_4 [1] : vector<256x256xi32> to vector<256xi32>
    %13 = vector.shape_cast %12 : vector<256xi32> to vector<256x1xi32>
    %14 = vector.broadcast %5 : vector<1x256xi32> to vector<256x256xi32>
    %15 = vector.broadcast %13 : vector<256x1xi32> to vector<256x256xi32>
    %16 = arith.cmpi eq, %14, %15 : vector<256x256xi32>
    %17 = arith.extui %16 : vector<256x256xi1> to vector<256x256xi32>
    %18 = arith.sitofp %17 : vector<256x256xi32> to vector<256x256xf32>
    %c0_5 = arith.constant 0 : index
    %c0_6 = arith.constant 0 : index
    %19 = vector.load %arg3[%c0_5, %c0_6] : memref<256x32xf32, #tpu.memory_space<vmem>>, vector<256x32xf32>
    %cst_7 = arith.constant dense<0.000000e+00> : vector<256x32xf32>
    %20 = tpu.matmul %18, %19, %cst_7 {dimension_numbers = #tpu.dot_dimension_numbers<[1], [0], [0], [1], [0, 0, 1, 1], [], []>} : vector<256x256xf32>, vector<256x32xf32>, vector<256x32xf32> -> vector<256x32xf32>
    %c0_8 = arith.constant 0 : index
    %c0_9 = arith.constant 0 : index
    %21 = vector.load %arg4[%c0_8, %c0_9] : memref<256x32xf32, #tpu.memory_space<vmem>>, vector<256x32xf32>
    tpu.vector_store %arg4[%c0_8, %c0_9], %20 {strides = array<i32>} : memref<256x32xf32, #tpu.memory_space<vmem>>, vector<256x32xf32>,
    %c0_10 = arith.constant 0 : index
    %c0_11 = arith.constant 0 : index
    %c0_12 = arith.constant 0 : index
    %22 = vector.load %arg5[%c0_10, %c0_11, %c0_12] : memref<1x1x256xi32, #tpu.memory_space<vmem>>, vector<1x1x256xi32>
    %23 = vector.shape_cast %22 : vector<1x1x256xi32> to vector<256xi32>
    %24 = vector.shape_cast %12 : vector<256xi32> to vector<1x1x256xi32>
    tpu.vector_store %arg5[%c0_10, %c0_11, %c0_12], %24 {strides = array<i32>} : memref<1x1x256xi32, #tpu.memory_space<vmem>>, vector<1x1x256xi32>,
    %25 = vector.shape_cast %4 : vector<256x1xf32> to vector<256xf32>
    %c0_13 = arith.constant 0 : index
    %c0_14 = arith.constant 0 : index
    %c0_15 = arith.constant 0 : index
    %26 = vector.load %arg6[%c0_13, %c0_14, %c0_15] : memref<1x1x256xf32, #tpu.memory_space<vmem>>, vector<1x1x256xf32>
    %27 = vector.shape_cast %26 : vector<1x1x256xf32> to vector<256xf32>
    %28 = vector.shape_cast %25 : vector<256xf32> to vector<1x1x256xf32>
    tpu.vector_store %arg6[%c0_13, %c0_14, %c0_15], %28 {strides = array<i32>} : memref<1x1x256xf32, #tpu.memory_space<vmem>>, vector<1x1x256xf32>,
    return
  }
  func.func @transform_0(%arg0: i32) -> (i32, i32) {
    %c0_i32 = arith.constant 0 : i32
    %c0_i32_0 = arith.constant 0 : i32
    return %arg0, %c0_i32 : i32, i32
  }
  func.func @transform_1(%arg0: i32) -> (i32, i32) {
    %c0_i32 = arith.constant 0 : i32
    %c0_i32_0 = arith.constant 0 : i32
    %c0_i32_1 = arith.constant 0 : i32
    return %c0_i32, %c0_i32_0 : i32, i32
  }
  func.func @transform_2(%arg0: i32) -> (i32, i32) {
    %c0_i32 = arith.constant 0 : i32
    %c0_i32_0 = arith.constant 0 : i32
    %c0_i32_1 = arith.constant 0 : i32
    return %c0_i32, %c0_i32_0 : i32, i32
  }
  func.func @transform_3(%arg0: i32) -> (i32, i32) {
    %c0_i32 = arith.constant 0 : i32
    %c0_i32_0 = arith.constant 0 : i32
    return %arg0, %c0_i32 : i32, i32
  }
  func.func @transform_4(%arg0: i32) -> (i32, i32, i32) {
    %c0_i32 = arith.constant 0 : i32
    %c0_i32_0 = arith.constant 0 : i32
    %c0_i32_1 = arith.constant 0 : i32
    return %arg0, %c0_i32, %c0_i32_0 : i32, i32, i32
  }
  func.func @transform_5(%arg0: i32) -> (i32, i32, i32) {
    %c0_i32 = arith.constant 0 : i32
    %c0_i32_0 = arith.constant 0 : i32
    %c0_i32_1 = arith.constant 0 : i32
    return %arg0, %c0_i32, %c0_i32_0 : i32, i32, i32
  }
}

</mosaic_0001>

<llo_original>
// kernel: ema_vq_forward.1
$region0: #{ema_vq_forward.1}
  #allocation0 [shape = 'u32[]', space=smem, size = 0x4, offset = 0x4, fixed_abs, tag = 'smem constant byte address 0x4 - core index']
  #allocation1 [shape = 'u32[144,128]{1,0:T(1,128)}', space=vmem, size = 0x12000, scoped, tag = 'internal scratch']
  %s0 = inlined_call_operand.vmem [shape: f32[512,40], index: 0, kind: input, shape index: {}]
  %s1 = inlined_call_operand.vmem [shape: f32[40,256], index: 1, kind: input, shape index: {}]
  %s2 = inlined_call_operand.vmem [shape: f32[256,32], index: 2, kind: input, shape index: {}]
  %s3 = inlined_call_operand.hbm [shape: f32[512,32], index: 3, kind: output, shape index: {0}]
  %s4 = inlined_call_operand.hbm [shape: s32[2,1,256], index: 4, kind: output, shape index: {1}]
  %s5 = inlined_call_operand.vmem [shape: f32[2,1,256], index: 5, kind: output, shape index: {2}]
  %6 = xla_tuple %s3, %s4, %s5
  %s7 = sld [smem:[#allocation0]]
  $region61: #{ema_vq_forward.1} parent=0
    _
  %s9 = ssub.s32 1, %s7
  %s10 = scalar_select 0, %s9, %s7
  $region1: #{ema_vq_forward.1} parent=0
    #allocation2 [shape = 'u8[262144]{0}', space=vmem, size = 0x40000, scoped, tag = 'output window, operand 0']
    #allocation3 [shape = 's32[2]{0}', space=sflag, size = 0x8, scoped, tag = 'scoped memory for ema_vq_forward.1']
    #allocation4 [shape = 'u8[2048]{0}', space=vmem, size = 0x800, scoped, tag = 'output window, operand 1']
    #allocation5 [shape = 's32[2]{0}', space=sflag, size = 0x8, scoped, tag = 'scoped memory for ema_vq_forward.1']
    %11 = vsyncpa [#allocation3], 0
    %s12 = scalar_lea.sflag [#allocation3], 1
    %13 = vsyncpa %s12, 0
    %14 = vsyncpa [#allocation5], 0
    %s15 = scalar_lea.sflag [#allocation5], 1
    %16 = vsyncpa %s15, 0
    loop: start=0, step=1, limit=4
    $region2: #{ema_vq_forward.1} parent=1 // loop_pre_header
      _
    $region3: #{ema_vq_forward.1} parent=1 // loop_header
      %s18 = sphi 0, %s22
      %p19 = scmp.ge.s32.totalorder %s18, 4
      %s28 = sphi 0, %s30
      %s31 = sphi 0, %s28
      %s32 = sphi 0, %s31
      %s48 = sphi 0, %s32
      %s52 = sphi 0, %s52
      %s54 = sphi 0, %s52
      %s55 = sphi 0, %s54
      %s69 = sphi 0, %s55
      %s73 = sphi 0, %s73
      %s75 = sphi 0, %s73
      %s76 = sphi 0, %s75
      %s90 = sphi 0, %s76
      %s96 = sphi 0, %s98
      %s99 = sphi 0, %s96
      %s100 = sphi 0, %s99
      %s116 = sphi 0, %s100
      %s122 = sphi 0, %s124
      %s125 = sphi 0, %s122
      %s126 = sphi 0, %s125
      %s142 = sphi 0, %s126
      %s148 = sphi 0, %s150
      %s151 = sphi 0, %s148
      %s152 = sphi 0, %s151
      %s168 = sphi 0, %s152
    $region4: #{ema_vq_forward.1} parent=1 // loop_header_branch
      %21 = sbr.rel (%p19) target = $region8
    $region5: #{ema_vq_forward.1} parent=1 // loop_body
      %s23 = ssub.s32 %s18, 1
      %s24 = ssub.s32 %s18, 2
      %s25 = sadd.s32 %s18, 1
      %s26 = ssub.s32 %s18, %s25
      %p27 = scmp.eq.s32.totalorder %s26, 0
      %s29 = sadd.s32 %s28, 1
      %s30 = scalar_select %p27, %s28, %s29
      %p33 = pneg %p27
      %p34 = scmp.eq.s32.totalorder %s18, 1
      %p35 = por %p33, %p34
      %p36 = scmp.ne.s32.totalorder %s28, %s31
      %p37 = scmp.eq.s32.totalorder %s18, 0
      %p38 = por %p36, %p37
      %p39 = scmp.ne.s32.totalorder %s28, %s31
      %p40 = scmp.eq.s32.totalorder %s23, 1
      %p41 = por %p39, %p40
      %p42 = scmp.ne.s32.totalorder %s31, %s32
      %p43 = scmp.eq.s32.totalorder %s23, 0
      %p44 = por %p42, %p43
      %p45 = scmp.ne.s32.totalorder %s31, %s32
      %p46 = scmp.eq.s32.totalorder %s24, 1
      %p47 = por %p45, %p46
      %p49 = scmp.ne.s32.totalorder %s32, %s48
      %p50 = scmp.eq.s32.totalorder %s24, 0
      %p51 = por %p49, %p50
      %s53 = sadd.s32 %s52, 1
      %p56 = scmp.eq.s32.totalorder %s18, 1
      %p57 = scmp.ne.s32.totalorder %s52, %s54
      %p58 = scmp.eq.s32.totalorder %s18, 0
      %p59 = por %p57, %p58
      %p60 = scmp.ne.s32.totalorder %s52, %s54
      %p61 = scmp.eq.s32.totalorder %s23, 1
      %p62 = por %p60, %p61
      %p63 = scmp.ne.s32.totalorder %s54, %s55
      %p64 = scmp.eq.s32.totalorder %s23, 0
      %p65 = por %p63, %p64
      %p66 = scmp.ne.s32.totalorder %s54, %s55
      %p67 = scmp.eq.s32.totalorder %s24, 1
      %p68 = por %p66, %p67
      %p70 = scmp.ne.s32.totalorder %s55, %s69
      %p71 = scmp.eq.s32.totalorder %s24, 0
      %p72 = por %p70, %p71
      %s74 = sadd.s32 %s73, 1
      %p77 = scmp.eq.s32.totalorder %s18, 1
      %p78 = scmp.ne.s32.totalorder %s73, %s75
      %p79 = scmp.eq.s32.totalorder %s18, 0
      %p80 = por %p78, %p79
      %p81 = scmp.ne.s32.totalorder %s73, %s75
      %p82 = scmp.eq.s32.totalorder %s23, 1
      %p83 = por %p81, %p82
      %p84 = scmp.ne.s32.totalorder %s75, %s76
      %p85 = scmp.eq.s32.totalorder %s23, 0
      %p86 = por %p84, %p85
      %p87 = scmp.ne.s32.totalorder %s75, %s76
      %p88 = scmp.eq.s32.totalorder %s24, 1
      %p89 = por %p87, %p88
      %p91 = scmp.ne.s32.totalorder %s76, %s90
      %p92 = scmp.eq.s32.totalorder %s24, 0
      %p93 = por %p91, %p92
      %s94 = ssub.s32 %s18, %s25
      %p95 = scmp.eq.s32.totalorder %s94, 0
      %s97 = sadd.s32 %s96, 1
      %s98 = scalar_select %p95, %s96, %s97
      %p101 = pneg %p95
      %p102 = scmp.eq.s32.totalorder %s18, 1
      %p103 = por %p101, %p102
      %p104 = scmp.ne.s32.totalorder %s96, %s99
      %p105 = scmp.eq.s32.totalorder %s18, 0
      %p106 = por %p104, %p105
      %p107 = scmp.ne.s32.totalorder %s96, %s99
      %p108 = scmp.eq.s32.totalorder %s23, 1
      %p109 = por %p107, %p108
      %p110 = scmp.ne.s32.totalorder %s99, %s100
      %p111 = scmp.eq.s32.totalorder %s23, 0
      %p112 = por %p110, %p111
      %p113 = scmp.ne.s32.totalorder %s99, %s100
      %p114 = scmp.eq.s32.totalorder %s24, 1
      %p115 = por %p113, %p114
      %p117 = scmp.ne.s32.totalorder %s100, %s116
      %p118 = scmp.eq.s32.totalorder %s24, 0
      %p119 = por %p117, %p118
      %s120 = ssub.s32 %s18, %s25
      %p121 = scmp.eq.s32.totalorder %s120, 0
      %s123 = sadd.s32 %s122, 1
      %s124 = scalar_select %p121, %s122, %s123
      %p127 = pneg %p121
      %p128 = scmp.eq.s32.totalorder %s18, 1
      %p129 = por %p127, %p128
      %p130 = scmp.ne.s32.totalorder %s122, %s125
      %p131 = scmp.eq.s32.totalorder %s18, 0
      %p132 = por %p130, %p131
      %p133 = scmp.ne.s32.totalorder %s122, %s125
      %p134 = scmp.eq.s32.totalorder %s23, 1
      %p135 = por %p133, %p134
      %p136 = scmp.ne.s32.totalorder %s125, %s126
      %p137 = scmp.eq.s32.totalorder %s23, 0
      %p138 = por %p136, %p137
      %p139 = scmp.ne.s32.totalorder %s125, %s126
      %p140 = scmp.eq.s32.totalorder %s24, 1
      %p141 = por %p139, %p140
      %p143 = scmp.ne.s32.totalorder %s126, %s142
      %p144 = scmp.eq.s32.totalorder %s24, 0
      %p145 = por %p143, %p144
      %s146 = ssub.s32 %s18, %s25
      %p147 = scmp.eq.s32.totalorder %s146, 0
      %s149 = sadd.s32 %s148, 1
      %s150 = scalar_select %p147, %s148, %s149
      %p153 = pneg %p147
      %p154 = scmp.eq.s32.totalorder %s18, 1
      %p155 = por %p153, %p154
      %p156 = scmp.ne.s32.totalorder %s148, %s151
      %p157 = scmp.eq.s32.totalorder %s18, 0
      %p158 = por %p156, %p157
      %p159 = scmp.ne.s32.totalorder %s148, %s151
      %p160 = scmp.eq.s32.totalorder %s23, 1
      %p161 = por %p159, %p160
      %p162 = scmp.ne.s32.totalorder %s151, %s152
      %p163 = scmp.eq.s32.totalorder %s23, 0
      %p164 = por %p162, %p163
      %p165 = scmp.ne.s32.totalorder %s151, %s152
      %p166 = scmp.eq.s32.totalorder %s24, 1
      %p167 = por %p165, %p166
      %p169 = scmp.ne.s32.totalorder %s152, %s168
      %p170 = scmp.eq.s32.totalorder %s24, 0
      %p171 = por %p169, %p170
      %p172 = scmp.le.s32.totalorder 1, %s18
      %p173 = scmp.lt.s32.totalorder %s18, 3
      %p174 = pnand %p172, %p173
      %p175 = pneg %p174
      // Predicated region
      $region9: #{ema_vq_forward.1} parent=5 // pred_check
        _
      $region10: #{ema_vq_forward.1} parent=5 // pred_check_branch
        %177 = sbr.rel (%p174) target = $region12
      $region11: #{ema_vq_forward.1} parent=5 // pred_region
        %s178 = ssub.s32 %s18, 1
        // Predicated region
        $region13: #{ema_vq_forward.1} parent=11 // pred_check
          %p179 = pneg %p65
        $region14: #{ema_vq_forward.1} parent=11 // pred_check_branch
          %181 = sbr.rel (%p179) target = $region16
        $region15: #{ema_vq_forward.1} parent=11 // pred_region
          _
        $region16: #{ema_vq_forward.1} parent=11 // pred_fallthru
          _
        // Predicated region
        $region17: #{ema_vq_forward.1} parent=11 // pred_check
          %p182 = pneg %p86
        $region18: #{ema_vq_forward.1} parent=11 // pred_check_branch
          %184 = sbr.rel (%p182) target = $region20
        $region19: #{ema_vq_forward.1} parent=11 // pred_region
          _
        $region20: #{ema_vq_forward.1} parent=11 // pred_fallthru
          _
      $region12: #{ema_vq_forward.1} parent=5 // pred_fallthru
        _
      %p185 = scmp.lt.s32.totalorder %s18, 2
      // Predicated region
      $region21: #{ema_vq_forward.1} parent=5 // pred_check
        %p186 = pneg %p185
      $region22: #{ema_vq_forward.1} parent=5 // pred_check_branch
        %188 = sbr.rel (%p186) target = $region24
      $region23: #{ema_vq_forward.1} parent=5 // pred_region
        // Predicated region
        $region25: #{ema_vq_forward.1} parent=23 // pred_check
          %p189 = pneg %p38
        $region26: #{ema_vq_forward.1} parent=23 // pred_check_branch
          %191 = sbr.rel (%p189) target = $region28
        $region27: #{ema_vq_forward.1} parent=23 // pred_region
          %s192 = smul.u32 32, %s18
          %p193 = scmp.lt.s32.totalorder %s192, 63
          %s194 = scalar_select %p193, %s192, 63
          %s195 = smul.addr %s194, 8
          %s196 = scalar_lea.vmem %s0, %s195
          %s197 = smul.u32 32, %s18
        $region28: #{ema_vq_forward.1} parent=23 // pred_fallthru
          _
      $region24: #{ema_vq_forward.1} parent=5 // pred_fallthru
        _
      %p198 = scmp.le.s32.totalorder 1, %s18
      %p199 = scmp.lt.s32.totalorder %s18, 3
      %p200 = pnand %p198, %p199
      %p201 = pneg %p200
      // Predicated region
      $region29: #{ema_vq_forward.1} parent=5 // pred_check
        _
      $region30: #{ema_vq_forward.1} parent=5 // pred_check_branch
        %203 = sbr.rel (%p200) target = $region32
      $region31: #{ema_vq_forward.1} parent=5 // pred_region
        %s204 = ssub.s32 %s18, 1
        %s205 = smul.u32 32, %s23
        %p206 = scmp.lt.s32.totalorder %s205, 63
        %s207 = scalar_select %p206, %s205, 63
        %s208 = smul.addr %s207, 8
        %s209 = scalar_lea.vmem %s0, %s208
        %p210 = pneg %p44
        %p211 = pneg %p41
        %p212 = pneg %p65
        %p213 = pneg %p62
        %p214 = pneg %p86
        %p215 = pneg %p83
        %p216 = pneg %p112
        %p217 = pneg %p109
        %s218 = sand.u32 %s99, 1
        %s219 = scalar_lea.sflag [#allocation3], %s218
        %s220 = sand.u32 %s99, 1
        %s221 = smul.addr %s220, 256
        %s222 = scalar_lea.vmem [#allocation2], %s221
        %p223 = pneg %p138
        %p224 = pneg %p135
        %s225 = sand.u32 %s125, 1
        %s226 = scalar_lea.sflag [#allocation5], %s225
        %s227 = sand.u32 %s125, 1
        %s228 = smul.addr %s227, 2
        %s229 = scalar_lea.vmem [#allocation4], %s228
        %p230 = pneg %p164
        %p231 = pneg %p161
        %p232 = scmp.lt.s32.totalorder %s23, 1
        %s233 = scalar_select %p232, %s23, 1
        %s234 = smul.addr %s233, 2
        %s235 = scalar_lea.vmem %s5, %s234
        %s236 = smul.u32 32, %s23
        %p237 = scmp.lt.s32.totalorder %s236, 63
        %s238 = scalar_select %p237, %s236, 63
        %s239 = smul.addr %s238, 8
        %s240 = scalar_lea.vmem %s0, %s239
        %s241 = smul.u32 32, %s23
        %s242 = smul.u32 32, %s23
        %p243 = scmp.lt.s32.totalorder %s23, 1
        %s244 = scalar_select %p243, %s23, 1
        %s245 = smul.addr %s244, 2
        %s246 = scalar_lea.vmem %s5, %s245
        %v247 = vld [vmem:[%s240] sm:$0xff]
        %v248 = vld [vmem:[%s240 + $0x8] sm:$0xff]
        %v249 = vld [vmem:[%s240 + $0x10] sm:$0xff]
        %v250 = vld [vmem:[%s240 + $0x18] sm:$0xff]
        %v251 = vld [vmem:[%s240 + $0x20] sm:$0xff]
        %v252 = vld [vmem:[%s240 + $0x28] sm:$0xff]
        %v253 = vld [vmem:[%s240 + $0x30] sm:$0xff]
        %v254 = vld [vmem:[%s240 + $0x38] sm:$0xff]
        %v255 = vld [vmem:[%s240 + $0x40] sm:$0xff]
        %v256 = vld [vmem:[%s240 + $0x48] sm:$0xff]
        %v257 = vld [vmem:[%s240 + $0x50] sm:$0xff]
        %v258 = vld [vmem:[%s240 + $0x58] sm:$0xff]
        %v259 = vld [vmem:[%s240 + $0x60] sm:$0xff]
        %v260 = vld [vmem:[%s240 + $0x68] sm:$0xff]
        %v261 = vld [vmem:[%s240 + $0x70] sm:$0xff]
        %v262 = vld [vmem:[%s240 + $0x78] sm:$0xff]
        %v263 = vld [vmem:[%s240 + $0x80] sm:$0xff]
        %v264 = vld [vmem:[%s240 + $0x88] sm:$0xff]
        %v265 = vld [vmem:[%s240 + $0x90] sm:$0xff]
        %v266 = vld [vmem:[%s240 + $0x98] sm:$0xff]
        %v267 = vld [vmem:[%s240 + $0xa0] sm:$0xff]
        %v268 = vld [vmem:[%s240 + $0xa8] sm:$0xff]
        %v269 = vld [vmem:[%s240 + $0xb0] sm:$0xff]
        %v270 = vld [vmem:[%s240 + $0xb8] sm:$0xff]
        %v271 = vld [vmem:[%s240 + $0xc0] sm:$0xff]
        %v272 = vld [vmem:[%s240 + $0xc8] sm:$0xff]
        %v273 = vld [vmem:[%s240 + $0xd0] sm:$0xff]
        %v274 = vld [vmem:[%s240 + $0xd8] sm:$0xff]
        %v275 = vld [vmem:[%s240 + $0xe0] sm:$0xff]
        %v276 = vld [vmem:[%s240 + $0xe8] sm:$0xff]
        %v277 = vld [vmem:[%s240 + $0xf0] sm:$0xff]
        %v278 = vld [vmem:[%s240 + $0xf8] sm:$0xff]
        %v279 = vld [vmem:[%s1] sm:$0xff]
        %v280 = vld [vmem:[%s1 + $0x8] sm:$0xff]
        %v281 = vld [vmem:[%s1 + $0x10] sm:$0xff]
        %v282 = vld [vmem:[%s1 + $0x18] sm:$0xff]
        %v283 = vld [vmem:[%s1 + $0x20] sm:$0xff]
        %v284 = vld [vmem:[%s1 + $0x28] sm:$0xff]
        %v285 = vld [vmem:[%s1 + $0x30] sm:$0xff]
        %v286 = vld [vmem:[%s1 + $0x38] sm:$0xff]
        %v287 = vld [vmem:[%s1 + $0x40] sm:$0xff]
        %v288 = vld [vmem:[%s1 + $0x48] sm:$0xff]
        %vm289 = vcmask 326656
        %v291 = vsel %vm289, %v247, 0
        %v294 = vsel %vm289, %v248, 0
        %v297 = vsel %vm289, %v249, 0
        %v300 = vsel %vm289, %v250, 0
        %v303 = vsel %vm289, %v251, 0
        %v306 = vsel %vm289, %v252, 0
        %v309 = vsel %vm289, %v253, 0
        %v312 = vsel %vm289, %v254, 0
        %v315 = vsel %vm289, %v255, 0
        %v318 = vsel %vm289, %v256, 0
        %v321 = vsel %vm289, %v257, 0
        %v324 = vsel %vm289, %v258, 0
        %v327 = vsel %vm289, %v259, 0
        %v330 = vsel %vm289, %v260, 0
        %v333 = vsel %vm289, %v261, 0
        %v336 = vsel %vm289, %v262, 0
        %v339 = vsel %vm289, %v263, 0
        %v342 = vsel %vm289, %v264, 0
        %v345 = vsel %vm289, %v265, 0
        %v348 = vsel %vm289, %v266, 0
        %v351 = vsel %vm289, %v267, 0
        %v354 = vsel %vm289, %v268, 0
        %v357 = vsel %vm289, %v269, 0
        %v360 = vsel %vm289, %v270, 0
        %v363 = vsel %vm289, %v271, 0
        %v366 = vsel %vm289, %v272, 0
        %v369 = vsel %vm289, %v273, 0
        %v372 = vsel %vm289, %v274, 0
        %v375 = vsel %vm289, %v275, 0
        %v378 = vsel %vm289, %v276, 0
        %v381 = vsel %vm289, %v277, 0
        %v384 = vsel %vm289, %v278, 0
        %386 = vmatprep.subr.mxu0 %v280
        %387 = vmatpush1.msra.mxu0 %v279
        %388 = vmatprep.subr.mxu0 %v282
        %389 = vmatpush1.msra.mxu0 %v281
        %390 = vmatprep.subr.mxu0 %v284
        %391 = vmatpush1.msra.mxu0 %v283
        %392 = vmatprep.subr.mxu0 %v286
        %393 = vmatpush1.msra.mxu0 %v285
        %394 = vmatprep.subr.mxu0 %v288
        %395 = vmatpush1.msra.mxu0 %v287
        %396 = vmatprep.subr.mxu0 0.0
        %397 = vmatpush1.msra.mxu0 0.0
        %398 = vmatprep.subr.mxu0 0.0
        %399 = vmatpush1.msra.mxu0 0.0
        %400 = vmatprep.subr.mxu0 0.0
        %401 = vmatpush1.msra.mxu0 0.0
        %402 = vmatprep.subr.mxu0 0.0
        %403 = vmatpush1.msra.mxu0 0.0
        %404 = vmatprep.subr.mxu0 0.0
        %405 = vmatpush1.msra.mxu0 0.0
        %406 = vmatprep.subr.mxu0 0.0
        %407 = vmatpush1.msra.mxu0 0.0
        %408 = vmatprep.subr.mxu0 0.0
        %409 = vmatpush1.msra.mxu0 0.0
        %410 = vmatprep.subr.mxu0 0.0
        %411 = vmatpush1.msra.mxu0 0.0
        %412 = vmatprep.subr.mxu0 0.0
        %413 = vmatpush1.msra.mxu0 0.0
        %414 = vmatprep.subr.mxu0 0.0
        %415 = vmatpush1.msra.mxu0 0.0
        %416 = vmatprep.subr.mxu0 0.0
        %417 = vmatpush1.msra.mxu0 0.0
        %418 = vmatprep.subr.mxu0 0.0
        %419 = vmatpush1.msra.mxu0 0.0
        %420 = vmatprep.subr.mxu0 0.0
        %421 = vmatpush1.msra.mxu0 0.0
        %422 = vmatprep.subr.mxu0 0.0
        %423 = vmatpush1.msra.mxu0 0.0
        %424 = vmatprep.subr.mxu0 0.0
        %425 = vmatpush1.msra.mxu0 0.0
        %426 = vmatprep.subr.mxu0 0.0
        %427 = vmatpush1.msra.mxu0 0.0
        %428 = vmatprep.subr.mxu0 0.0
        %429 = vmatpush1.msra.mxu0 0.0
        %430 = vmatprep.subr.mxu0 0.0
        %431 = vmatpush1.msra.mxu0 0.0
        %432 = vmatprep.subr.mxu0 0.0
        %433 = vmatpush1.msra.mxu0 0.0
        %434 = vmatprep.subr.mxu0 0.0
        %435 = vmatpush1.msra.mxu0 0.0
        %436 = vmatprep.subr.mxu0 0.0
        %437 = vmatpush1.msra.mxu0 0.0
        %438 = vmatprep.subr.mxu0 0.0
        %439 = vmatpush1.msra.mxu0 0.0
        %440 = vmatprep.subr.mxu0 0.0
        %441 = vmatpush1.msra.mxu0 0.0
        %442 = vmatprep.subr.mxu0 0.0
        %443 = vmatpush1.msra.mxu0 0.0
        %444 = vmatprep.subr.mxu0 0.0
        %445 = vmatpush1.msra.mxu0 0.0
        %446 = vmatprep.subr.mxu0 0.0
        %447 = vmatpush1.msra.mxu0 0.0
        %448 = vmatprep.subr.mxu0 0.0
        %449 = vmatpush1.msra.mxu0 0.0
        %450 = vmatprep.mubr.f32.mxu0 0.0
        %451 = vmatmul.mubr.f32.gmra.mrb[0].mxu0 %v291
        %v452 = vpop.f32.mrb[0].mxu0
        %v453 = vadd.f32 0.0, %v452
        %v454 = vpop.f32.mrb[0].mxu0
        %v455 = vadd.f32 0.0, %v454
        %456 = vmatprep.mubr.f32.mxu0 0.0
        %457 = vmatmul.mubr.f32.gmra.mrb[0].mxu0 %v294
        %v458 = vpop.f32.mrb[0].mxu0
        %v459 = vadd.f32 0.0, %v458
        %v460 = vpop.f32.mrb[0].mxu0
        %v461 = vadd.f32 0.0, %v460
        %462 = vmatprep.mubr.f32.mxu0 0.0
        %463 = vmatmul.mubr.f32.gmra.mrb[0].mxu0 %v297
        %v464 = vpop.f32.mrb[0].mxu0
        %v465 = vadd.f32 0.0, %v464
        %v466 = vpop.f32.mrb[0].mxu0
        %v467 = vadd.f32 0.0, %v466
        %468 = vmatprep.mubr.f32.mxu0 0.0
        %469 = vmatmul.mubr.f32.gmra.mrb[0].mxu0 %v300
        %v470 = vpop.f32.mrb[0].mxu0
        %v471 = vadd.f32 0.0, %v470
        %v472 = vpop.f32.mrb[0].mxu0
        %v473 = vadd.f32 0.0, %v472
        %474 = vmatprep.mubr.f32.mxu0 0.0
        %475 = vmatmul.mubr.f32.gmra.mrb[0].mxu0 %v303
        %v476 = vpop.f32.mrb[0].mxu0
        %v477 = vadd.f32 0.0, %v476
        %v478 = vpop.f32.mrb[0].mxu0
        %v479 = vadd.f32 0.0, %v478
        %480 = vmatprep.mubr.f32.mxu0 0.0
        %481 = vmatmul.mubr.f32.gmra.mrb[0].mxu0 %v306
        %v482 = vpop.f32.mrb[0].mxu0
        %v483 = vadd.f32 0.0, %v482
        %v484 = vpop.f32.mrb[0].mxu0
        %v485 = vadd.f32 0.0, %v484
        %486 = vmatprep.mubr.f32.mxu0 0.0
        %487 = vmatmul.mubr.f32.gmra.mrb[0].mxu0 %v309
        %v488 = vpop.f32.mrb[0].mxu0
        %v489 = vadd.f32 0.0, %v488
        %v490 = vpop.f32.mrb[0].mxu0
        %v491 = vadd.f32 0.0, %v490
        %492 = vmatprep.mubr.f32.mxu0 0.0
        %493 = vmatmul.mubr.f32.gmra.mrb[0].mxu0 %v312
        %v494 = vpop.f32.mrb[0].mxu0
        %v495 = vadd.f32 0.0, %v494
        %v496 = vpop.f32.mrb[0].mxu0
        %v497 = vadd.f32 0.0, %v496
        %498 = vmatprep.mubr.f32.mxu0 0.0
        %499 = vmatmul.mubr.f32.gmra.mrb[0].mxu0 %v315
        %v500 = vpop.f32.mrb[0].mxu0
        %v501 = vadd.f32 0.0, %v500
        %v502 = vpop.f32.mrb[0].mxu0
        %v503 = vadd.f32 0.0, %v502
        %504 = vmatprep.mubr.f32.mxu0 0.0
        %505 = vmatmul.mubr.f32.gmra.mrb[0].mxu0 %v318
        %v506 = vpop.f32.mrb[0].mxu0
        %v507 = vadd.f32 0.0, %v506
        %v508 = vpop.f32.mrb[0].mxu0
        %v509 = vadd.f32 0.0, %v508
        %510 = vmatprep.mubr.f32.mxu0 0.0
        %511 = vmatmul.mubr.f32.gmra.mrb[0].mxu0 %v321
        %v512 = vpop.f32.mrb[0].mxu0
        %v513 = vadd.f32 0.0, %v512
        %v514 = vpop.f32.mrb[0].mxu0
        %v515 = vadd.f32 0.0, %v514
        %516 = vmatprep.mubr.f32.mxu0 0.0
        %517 = vmatmul.mubr.f32.gmra.mrb[0].mxu0 %v324
        %v518 = vpop.f32.mrb[0].mxu0
        %v519 = vadd.f32 0.0, %v518
        %v520 = vpop.f32.mrb[0].mxu0
        %v521 = vadd.f32 0.0, %v520
        %522 = vmatprep.mubr.f32.mxu0 0.0
        %523 = vmatmul.mubr.f32.gmra.mrb[0].mxu0 %v327
        %v524 = vpop.f32.mrb[0].mxu0
        %v525 = vadd.f32 0.0, %v524
        %v526 = vpop.f32.mrb[0].mxu0
        %v527 = vadd.f32 0.0, %v526
        %528 = vmatprep.mubr.f32.mxu0 0.0
        %529 = vmatmul.mubr.f32.gmra.mrb[0].mxu0 %v330
        %v530 = vpop.f32.mrb[0].mxu0
        %v531 = vadd.f32 0.0, %v530
        %v532 = vpop.f32.mrb[0].mxu0
        %v533 = vadd.f32 0.0, %v532
        %534 = vmatprep.mubr.f32.mxu0 0.0
        %535 = vmatmul.mubr.f32.gmra.mrb[0].mxu0 %v333
        %v536 = vpop.f32.mrb[0].mxu0
        %v537 = vadd.f32 0.0, %v536
        %v538 = vpop.f32.mrb[0].mxu0
        %v539 = vadd.f32 0.0, %v538
        %540 = vmatprep.mubr.f32.mxu0 0.0
        %541 = vmatmul.mubr.f32.gmra.mrb[0].mxu0 %v336
        %v542 = vpop.f32.mrb[0].mxu0
        %v543 = vadd.f32 0.0, %v542
        %v544 = vpop.f32.mrb[0].mxu0
        %v545 = vadd.f32 0.0, %v544
        %546 = vmatprep.mubr.f32.mxu0 0.0
        %547 = vmatmul.mubr.f32.gmra.mrb[0].mxu0 %v339
        %v548 = vpop.f32.mrb[0].mxu0
        %v549 = vadd.f32 0.0, %v548
        %v550 = vpop.f32.mrb[0].mxu0
        %v551 = vadd.f32 0.0, %v550
        %552 = vmatprep.mubr.f32.mxu0 0.0
        %553 = vmatmul.mubr.f32.gmra.mrb[0].mxu0 %v342
        %v554 = vpop.f32.mrb[0].mxu0
        %v555 = vadd.f32 0.0, %v554
        %v556 = vpop.f32.mrb[0].mxu0
        %v557 = vadd.f32 0.0, %v556
        %558 = vmatprep.mubr.f32.mxu0 0.0
        %559 = vmatmul.mubr.f32.gmra.mrb[0].mxu0 %v345
        %v560 = vpop.f32.mrb[0].mxu0
        %v561 = vadd.f32 0.0, %v560
        %v562 = vpop.f32.mrb[0].mxu0
        %v563 = vadd.f32 0.0, %v562
        %564 = vmatprep.mubr.f32.mxu0 0.0
        %565 = vmatmul.mubr.f32.gmra.mrb[0].mxu0 %v348
        %v566 = vpop.f32.mrb[0].mxu0
        %v567 = vadd.f32 0.0, %v566
        %v568 = vpop.f32.mrb[0].mxu0
        %v569 = vadd.f32 0.0, %v568
        %570 = vmatprep.mubr.f32.mxu0 0.0
        %571 = vmatmul.mubr.f32.gmra.mrb[0].mxu0 %v351
        %v572 = vpop.f32.mrb[0].mxu0
        %v573 = vadd.f32 0.0, %v572
        %v574 = vpop.f32.mrb[0].mxu0
        %v575 = vadd.f32 0.0, %v574
        %576 = vmatprep.mubr.f32.mxu0 0.0
        %577 = vmatmul.mubr.f32.gmra.mrb[0].mxu0 %v354
        %v578 = vpop.f32.mrb[0].mxu0
        %v579 = vadd.f32 0.0, %v578
        %v580 = vpop.f32.mrb[0].mxu0
        %v581 = vadd.f32 0.0, %v580
        %582 = vmatprep.mubr.f32.mxu0 0.0
        %583 = vmatmul.mubr.f32.gmra.mrb[0].mxu0 %v357
        %v584 = vpop.f32.mrb[0].mxu0
        %v585 = vadd.f32 0.0, %v584
        %v586 = vpop.f32.mrb[0].mxu0
        %v587 = vadd.f32 0.0, %v586
        %588 = vmatprep.mubr.f32.mxu0 0.0
        %589 = vmatmul.mubr.f32.gmra.mrb[0].mxu0 %v360
        %v590 = vpop.f32.mrb[0].mxu0
        %v591 = vadd.f32 0.0, %v590
        %v592 = vpop.f32.mrb[0].mxu0
        %v593 = vadd.f32 0.0, %v592
        %594 = vmatprep.mubr.f32.mxu0 0.0
        %595 = vmatmul.mubr.f32.gmra.mrb[0].mxu0 %v363
        %v596 = vpop.f32.mrb[0].mxu0
        %v597 = vadd.f32 0.0, %v596
        %v598 = vpop.f32.mrb[0].mxu0
        %v599 = vadd.f32 0.0, %v598
        %600 = vmatprep.mubr.f32.mxu0 0.0
        %601 = vmatmul.mubr.f32.gmra.mrb[0].mxu0 %v366
        %v602 = vpop.f32.mrb[0].mxu0
        %v603 = vadd.f32 0.0, %v602
        %v604 = vpop.f32.mrb[0].mxu0
        %v605 = vadd.f32 0.0, %v604
        %606 = vmatprep.mubr.f32.mxu0 0.0
        %607 = vmatmul.mubr.f32.gmra.mrb[0].mxu0 %v369
        %v608 = vpop.f32.mrb[0].mxu0
        %v609 = vadd.f32 0.0, %v608
        %v610 = vpop.f32.mrb[0].mxu0
        %v611 = vadd.f32 0.0, %v610
        %612 = vmatprep.mubr.f32.mxu0 0.0
        %613 = vmatmul.mubr.f32.gmra.mrb[0].mxu0 %v372
        %v614 = vpop.f32.mrb[0].mxu0
        %v615 = vadd.f32 0.0, %v614
        %v616 = vpop.f32.mrb[0].mxu0
        %v617 = vadd.f32 0.0, %v616
        %618 = vmatprep.mubr.f32.mxu0 0.0
        %619 = vmatmul.mubr.f32.gmra.mrb[0].mxu0 %v375
        %v620 = vpop.f32.mrb[0].mxu0
        %v621 = vadd.f32 0.0, %v620
        %v622 = vpop.f32.mrb[0].mxu0
        %v623 = vadd.f32 0.0, %v622
        %624 = vmatprep.mubr.f32.mxu0 0.0
        %625 = vmatmul.mubr.f32.gmra.mrb[0].mxu0 %v378
        %v626 = vpop.f32.mrb[0].mxu0
        %v627 = vadd.f32 0.0, %v626
        %v628 = vpop.f32.mrb[0].mxu0
        %v629 = vadd.f32 0.0, %v628
        %630 = vmatprep.mubr.f32.mxu0 0.0
        %631 = vmatmul.mubr.f32.gmra.mrb[0].mxu0 %v381
        %v632 = vpop.f32.mrb[0].mxu0
        %v633 = vadd.f32 0.0, %v632
        %v634 = vpop.f32.mrb[0].mxu0
        %v635 = vadd.f32 0.0, %v634
        %636 = vmatprep.mubr.f32.mxu0 0.0
        %637 = vmatmul.mubr.f32.gmra.mrb[0].mxu0 %v384
        %v638 = vpop.f32.mrb[0].mxu0
        %v639 = vadd.f32 0.0, %v638
        %v640 = vpop.f32.mrb[0].mxu0
        %v641 = vadd.f32 0.0, %v640
        %642 = vdwg.mxu0
        %v643 = vmin.f32 %v453, %v455
        %644 = vmin.xlane.f32.xlu0 %v643
        %v645 = vpop.xlane.xlu0 %644
        %v646 = vmin.f32 %v459, %v461
        %647 = vmin.xlane.f32.xlu0 %v646
        %v648 = vpop.xlane.xlu0 %647
        %v649 = vmin.f32 %v465, %v467
        %650 = vmin.xlane.f32.xlu0 %v649
        %v651 = vpop.xlane.xlu0 %650
        %v652 = vmin.f32 %v471, %v473
        %653 = vmin.xlane.f32.xlu0 %v652
        %v654 = vpop.xlane.xlu0 %653
        %v655 = vmin.f32 %v477, %v479
        %656 = vmin.xlane.f32.xlu0 %v655
        %v657 = vpop.xlane.xlu0 %656
        %v658 = vmin.f32 %v483, %v485
        %659 = vmin.xlane.f32.xlu0 %v658
        %v660 = vpop.xlane.xlu0 %659
        %v661 = vmin.f32 %v489, %v491
        %662 = vmin.xlane.f32.xlu0 %v661
        %v663 = vpop.xlane.xlu0 %662
        %v664 = vmin.f32 %v495, %v497
        %665 = vmin.xlane.f32.xlu0 %v664
        %v666 = vpop.xlane.xlu0 %665
        %v667 = vmin.f32 %v501, %v503
        %668 = vmin.xlane.f32.xlu0 %v667
        %v669 = vpop.xlane.xlu0 %668
        %v670 = vmin.f32 %v507, %v509
        %671 = vmin.xlane.f32.xlu0 %v670
        %v672 = vpop.xlane.xlu0 %671
        %v673 = vmin.f32 %v513, %v515
        %674 = vmin.xlane.f32.xlu0 %v673
        %v675 = vpop.xlane.xlu0 %674
        %v676 = vmin.f32 %v519, %v521
        %677 = vmin.xlane.f32.xlu0 %v676
        %v678 = vpop.xlane.xlu0 %677
        %v679 = vmin.f32 %v525, %v527
        %680 = vmin.xlane.f32.xlu0 %v679
        %v681 = vpop.xlane.xlu0 %680
        %v682 = vmin.f32 %v531, %v533
        %683 = vmin.xlane.f32.xlu0 %v682
        %v684 = vpop.xlane.xlu0 %683
        %v685 = vmin.f32 %v537, %v539
        %686 = vmin.xlane.f32.xlu0 %v685
        %v687 = vpop.xlane.xlu0 %686
        %v688 = vmin.f32 %v543, %v545
        %689 = vmin.xlane.f32.xlu0 %v688
        %v690 = vpop.xlane.xlu0 %689
        %v691 = vmin.f32 %v549, %v551
        %692 = vmin.xlane.f32.xlu0 %v691
        %v693 = vpop.xlane.xlu0 %692
        %v694 = vmin.f32 %v555, %v557
        %695 = vmin.xlane.f32.xlu0 %v694
        %v696 = vpop.xlane.xlu0 %695
        %v697 = vmin.f32 %v561, %v563
        %698 = vmin.xlane.f32.xlu0 %v697
        %v699 = vpop.xlane.xlu0 %698
        %v700 = vmin.f32 %v567, %v569
        %701 = vmin.xlane.f32.xlu0 %v700
        %v702 = vpop.xlane.xlu0 %701
        %v703 = vmin.f32 %v573, %v575
        %704 = vmin.xlane.f32.xlu0 %v703
        %v705 = vpop.xlane.xlu0 %704
        %v706 = vmin.f32 %v579, %v581
        %707 = vmin.xlane.f32.xlu0 %v706
        %v708 = vpop.xlane.xlu0 %707
        %v709 = vmin.f32 %v585, %v587
        %710 = vmin.xlane.f32.xlu0 %v709
        %v711 = vpop.xlane.xlu0 %710
        %v712 = vmin.f32 %v591, %v593
        %713 = vmin.xlane.f32.xlu0 %v712
        %v714 = vpop.xlane.xlu0 %713
        %v715 = vmin.f32 %v597, %v599
        %716 = vmin.xlane.f32.xlu0 %v715
        %v717 = vpop.xlane.xlu0 %716
        %v718 = vmin.f32 %v603, %v605
        %719 = vmin.xlane.f32.xlu0 %v718
        %v720 = vpop.xlane.xlu0 %719
        %v721 = vmin.f32 %v609, %v611
        %722 = vmin.xlane.f32.xlu0 %v721
        %v723 = vpop.xlane.xlu0 %722
        %v724 = vmin.f32 %v615, %v617
        %725 = vmin.xlane.f32.xlu0 %v724
        %v726 = vpop.xlane.xlu0 %725
        %v727 = vmin.f32 %v621, %v623
        %728 = vmin.xlane.f32.xlu0 %v727
        %v729 = vpop.xlane.xlu0 %728
        %v730 = vmin.f32 %v627, %v629
        %731 = vmin.xlane.f32.xlu0 %v730
        %v732 = vpop.xlane.xlu0 %731
        %v733 = vmin.f32 %v633, %v635
        %734 = vmin.xlane.f32.xlu0 %v733
        %v735 = vpop.xlane.xlu0 %734
        %v736 = vmin.f32 %v639, %v641
        %737 = vmin.xlane.f32.xlu0 %v736
        %v738 = vpop.xlane.xlu0 %737
        %v739 = vlaneseq
        %v740 = vand.u32 %v739, 127
        %v741 = vadd.s32 %v740, 128
        %vm742 = vcmp.eq.f32.partialorder %v453, %v645
        %vm743 = vcmp.eq.f32.partialorder %v455, %v645
        %vm744 = vcmp.eq.f32.partialorder %v459, %v648
        %vm745 = vcmp.eq.f32.partialorder %v461, %v648
        %vm746 = vcmp.eq.f32.partialorder %v465, %v651
        %vm747 = vcmp.eq.f32.partialorder %v467, %v651
        %vm748 = vcmp.eq.f32.partialorder %v471, %v654
        %vm749 = vcmp.eq.f32.partialorder %v473, %v654
        %vm750 = vcmp.eq.f32.partialorder %v477, %v657
        %vm751 = vcmp.eq.f32.partialorder %v479, %v657
        %vm752 = vcmp.eq.f32.partialorder %v483, %v660
        %vm753 = vcmp.eq.f32.partialorder %v485, %v660
        %vm754 = vcmp.eq.f32.partialorder %v489, %v663
        %vm755 = vcmp.eq.f32.partialorder %v491, %v663
        %vm756 = vcmp.eq.f32.partialorder %v495, %v666
        %vm757 = vcmp.eq.f32.partialorder %v497, %v666
        %vm758 = vcmp.eq.f32.partialorder %v501, %v669
        %vm759 = vcmp.eq.f32.partialorder %v503, %v669
        %vm760 = vcmp.eq.f32.partialorder %v507, %v672
        %vm761 = vcmp.eq.f32.partialorder %v509, %v672
        %vm762 = vcmp.eq.f32.partialorder %v513, %v675
        %vm763 = vcmp.eq.f32.partialorder %v515, %v675
        %vm764 = vcmp.eq.f32.partialorder %v519, %v678
        %vm765 = vcmp.eq.f32.partialorder %v521, %v678
        %vm766 = vcmp.eq.f32.partialorder %v525, %v681
        %vm767 = vcmp.eq.f32.partialorder %v527, %v681
        %vm768 = vcmp.eq.f32.partialorder %v531, %v684
        %vm769 = vcmp.eq.f32.partialorder %v533, %v684
        %vm770 = vcmp.eq.f32.partialorder %v537, %v687
        %vm771 = vcmp.eq.f32.partialorder %v539, %v687
        %vm772 = vcmp.eq.f32.partialorder %v543, %v690
        %vm773 = vcmp.eq.f32.partialorder %v545, %v690
        %vm774 = vcmp.eq.f32.partialorder %v549, %v693
        %vm775 = vcmp.eq.f32.partialorder %v551, %v693
        %vm776 = vcmp.eq.f32.partialorder %v555, %v696
        %vm777 = vcmp.eq.f32.partialorder %v557, %v696
        %vm778 = vcmp.eq.f32.partialorder %v561, %v699
        %vm779 = vcmp.eq.f32.partialorder %v563, %v699
        %vm780 = vcmp.eq.f32.partialorder %v567, %v702
        %vm781 = vcmp.eq.f32.partialorder %v569, %v702
        %vm782 = vcmp.eq.f32.partialorder %v573, %v705
        %vm783 = vcmp.eq.f32.partialorder %v575, %v705
        %vm784 = vcmp.eq.f32.partialorder %v579, %v708
        %vm785 = vcmp.eq.f32.partialorder %v581, %v708
        %vm786 = vcmp.eq.f32.partialorder %v585, %v711
        %vm787 = vcmp.eq.f32.partialorder %v587, %v711
        %vm788 = vcmp.eq.f32.partialorder %v591, %v714
        %vm789 = vcmp.eq.f32.partialorder %v593, %v714
        %vm790 = vcmp.eq.f32.partialorder %v597, %v717
        %vm791 = vcmp.eq.f32.partialorder %v599, %v717
        %vm792 = vcmp.eq.f32.partialorder %v603, %v720
        %vm793 = vcmp.eq.f32.partialorder %v605, %v720
        %vm794 = vcmp.eq.f32.partialorder %v609, %v723
        %vm795 = vcmp.eq.f32.partialorder %v611, %v723
        %vm796 = vcmp.eq.f32.partialorder %v615, %v726
        %vm797 = vcmp.eq.f32.partialorder %v617, %v726
        %vm798 = vcmp.eq.f32.partialorder %v621, %v729
        %vm799 = vcmp.eq.f32.partialorder %v623, %v729
        %vm800 = vcmp.eq.f32.partialorder %v627, %v732
        %vm801 = vcmp.eq.f32.partialorder %v629, %v732
        %vm802 = vcmp.eq.f32.partialorder %v633, %v735
        %vm803 = vcmp.eq.f32.partialorder %v635, %v735
        %vm804 = vcmp.eq.f32.partialorder %v639, %v738
        %vm805 = vcmp.eq.f32.partialorder %v641, %v738
        %v806 = vsel %vm742, %v740, 256
        %v807 = vsel %vm743, %v741, 256
        %v808 = vsel %vm744, %v740, 256
        %v809 = vsel %vm745, %v741, 256
        %v810 = vsel %vm746, %v740, 256
        %v811 = vsel %vm747, %v741, 256
        %v812 = vsel %vm748, %v740, 256
        %v813 = vsel %vm749, %v741, 256
        %v814 = vsel %vm750, %v740, 256
        %v815 = vsel %vm751, %v741, 256
        %v816 = vsel %vm752, %v740, 256
        %v817 = vsel %vm753, %v741, 256
        %v818 = vsel %vm754, %v740, 256
        %v819 = vsel %vm755, %v741, 256
        %v820 = vsel %vm756, %v740, 256
        %v821 = vsel %vm757, %v741, 256
        %v822 = vsel %vm758, %v740, 256
        %v823 = vsel %vm759, %v741, 256
        %v824 = vsel %vm760, %v740, 256
        %v825 = vsel %vm761, %v741, 256
        %v826 = vsel %vm762, %v740, 256
        %v827 = vsel %vm763, %v741, 256
        %v828 = vsel %vm764, %v740, 256
        %v829 = vsel %vm765, %v741, 256
        %v830 = vsel %vm766, %v740, 256
        %v831 = vsel %vm767, %v741, 256
        %v832 = vsel %vm768, %v740, 256
        %v833 = vsel %vm769, %v741, 256
        %v834 = vsel %vm770, %v740, 256
        %v835 = vsel %vm771, %v741, 256
        %v836 = vsel %vm772, %v740, 256
        %v837 = vsel %vm773, %v741, 256
        %v838 = vsel %vm774, %v740, 256
        %v839 = vsel %vm775, %v741, 256
        %v840 = vsel %vm776, %v740, 256
        %v841 = vsel %vm777, %v741, 256
        %v842 = vsel %vm778, %v740, 256
        %v843 = vsel %vm779, %v741, 256
        %v844 = vsel %vm780, %v740, 256
        %v845 = vsel %vm781, %v741, 256
        %v846 = vsel %vm782, %v740, 256
        %v847 = vsel %vm783, %v741, 256
        %v848 = vsel %vm784, %v740, 256
        %v849 = vsel %vm785, %v741, 256
        %v850 = vsel %vm786, %v740, 256
        %v851 = vsel %vm787, %v741, 256
        %v852 = vsel %vm788, %v740, 256
        %v853 = vsel %vm789, %v741, 256
        %v854 = vsel %vm790, %v740, 256
        %v855 = vsel %vm791, %v741, 256
        %v856 = vsel %vm792, %v740, 256
        %v857 = vsel %vm793, %v741, 256
        %v858 = vsel %vm794, %v740, 256
        %v859 = vsel %vm795, %v741, 256
        %v860 = vsel %vm796, %v740, 256
        %v861 = vsel %vm797, %v741, 256
        %v862 = vsel %vm798, %v740, 256
        %v863 = vsel %vm799, %v741, 256
        %v864 = vsel %vm800, %v740, 256
        %v865 = vsel %vm801, %v741, 256
        %v866 = vsel %vm802, %v740, 256
        %v867 = vsel %vm803, %v741, 256
        %v868 = vsel %vm804, %v740, 256
        %v869 = vsel %vm805, %v741, 256
        %vm870 = vcmp.lt.s32.totalorder %v806, %v807
        %v871 = vsel %vm870, %v806, %v807
        %v872 = vand.u32 %v871, 65535
        %v873 = vshra.s32 %v871, 16
        %v874 = vcvt.s32.f32 %v872
        %v875 = vcvt.s32.f32 %v873
        %876 = vmin.xlane.f32.xlu0 %v875
        %v877 = vpop.xlane.xlu0 %876
        %vm878 = vcmp.eq.f32.partialorder %v875, %v877
        %v879 = vsel %vm878, %v874, inf
        %880 = vmin.xlane.f32.xlu0 %v879
        %v881 = vpop.xlane.xlu0 %880
        %v882 = vcvt.f32.s32 %v881
        %v883 = vcvt.f32.s32 %v877
        %v884 = vshll.u32 %v883, 16
        %v885 = vadd.s32 %v884, %v882
        %vm886 = vcmp.lt.s32.totalorder %v808, %v809
        %v887 = vsel %vm886, %v808, %v809
        %v888 = vand.u32 %v887, 65535
        %v889 = vshra.s32 %v887, 16
        %v890 = vcvt.s32.f32 %v888
        %v891 = vcvt.s32.f32 %v889
        %892 = vmin.xlane.f32.xlu0 %v891
        %v893 = vpop.xlane.xlu0 %892
        %vm894 = vcmp.eq.f32.partialorder %v891, %v893
        %v895 = vsel %vm894, %v890, inf
        %896 = vmin.xlane.f32.xlu0 %v895
        %v897 = vpop.xlane.xlu0 %896
        %v898 = vcvt.f32.s32 %v897
        %v899 = vcvt.f32.s32 %v893
        %v900 = vshll.u32 %v899, 16
        %v901 = vadd.s32 %v900, %v898
        %vm902 = vcmp.lt.s32.totalorder %v810, %v811
        %v903 = vsel %vm902, %v810, %v811
        %v904 = vand.u32 %v903, 65535
        %v905 = vshra.s32 %v903, 16
        %v906 = vcvt.s32.f32 %v904
        %v907 = vcvt.s32.f32 %v905
        %908 = vmin.xlane.f32.xlu0 %v907
        %v909 = vpop.xlane.xlu0 %908
        %vm910 = vcmp.eq.f32.partialorder %v907, %v909
        %v911 = vsel %vm910, %v906, inf
        %912 = vmin.xlane.f32.xlu0 %v911
        %v913 = vpop.xlane.xlu0 %912
        %v914 = vcvt.f32.s32 %v913
        %v915 = vcvt.f32.s32 %v909
        %v916 = vshll.u32 %v915, 16
        %v917 = vadd.s32 %v916, %v914
        %vm918 = vcmp.lt.s32.totalorder %v812, %v813
        %v919 = vsel %vm918, %v812, %v813
        %v920 = vand.u32 %v919, 65535
        %v921 = vshra.s32 %v919, 16
        %v922 = vcvt.s32.f32 %v920
        %v923 = vcvt.s32.f32 %v921
        %924 = vmin.xlane.f32.xlu0 %v923
        %v925 = vpop.xlane.xlu0 %924
        %vm926 = vcmp.eq.f32.partialorder %v923, %v925
        %v927 = vsel %vm926, %v922, inf
        %928 = vmin.xlane.f32.xlu0 %v927
        %v929 = vpop.xlane.xlu0 %928
        %v930 = vcvt.f32.s32 %v929
        %v931 = vcvt.f32.s32 %v925
        %v932 = vshll.u32 %v931, 16
        %v933 = vadd.s32 %v932, %v930
        %vm934 = vcmp.lt.s32.totalorder %v814, %v815
        %v935 = vsel %vm934, %v814, %v815
        %v936 = vand.u32 %v935, 65535
        %v937 = vshra.s32 %v935, 16
        %v938 = vcvt.s32.f32 %v936
        %v939 = vcvt.s32.f32 %v937
        %940 = vmin.xlane.f32.xlu0 %v939
        %v941 = vpop.xlane.xlu0 %940
        %vm942 = vcmp.eq.f32.partialorder %v939, %v941
        %v943 = vsel %vm942, %v938, inf
        %944 = vmin.xlane.f32.xlu0 %v943
        %v945 = vpop.xlane.xlu0 %944
        %v946 = vcvt.f32.s32 %v945
        %v947 = vcvt.f32.s32 %v941
        %v948 = vshll.u32 %v947, 16
        %v949 = vadd.s32 %v948, %v946
        %vm950 = vcmp.lt.s32.totalorder %v816, %v817
        %v951 = vsel %vm950, %v816, %v817
        %v952 = vand.u32 %v951, 65535
        %v953 = vshra.s32 %v951, 16
        %v954 = vcvt.s32.f32 %v952
        %v955 = vcvt.s32.f32 %v953
        %956 = vmin.xlane.f32.xlu0 %v955
        %v957 = vpop.xlane.xlu0 %956
        %vm958 = vcmp.eq.f32.partialorder %v955, %v957
        %v959 = vsel %vm958, %v954, inf
        %960 = vmin.xlane.f32.xlu0 %v959
        %v961 = vpop.xlane.xlu0 %960
        %v962 = vcvt.f32.s32 %v961
        %v963 = vcvt.f32.s32 %v957
        %v964 = vshll.u32 %v963, 16
        %v965 = vadd.s32 %v964, %v962
        %vm966 = vcmp.lt.s32.totalorder %v818, %v819
        %v967 = vsel %vm966, %v818, %v819
        %v968 = vand.u32 %v967, 65535
        %v969 = vshra.s32 %v967, 16
        %v970 = vcvt.s32.f32 %v968
        %v971 = vcvt.s32.f32 %v969
        %972 = vmin.xlane.f32.xlu0 %v971
        %v973 = vpop.xlane.xlu0 %972
        %vm974 = vcmp.eq.f32.partialorder %v971, %v973
        %v975 = vsel %vm974, %v970, inf
        %976 = vmin.xlane.f32.xlu0 %v975
        %v977 = vpop.xlane.xlu0 %976
        %v978 = vcvt.f32.s32 %v977
        %v979 = vcvt.f32.s32 %v973
        %v980 = vshll.u32 %v979, 16
        %v981 = vadd.s32 %v980, %v978
        %vm982 = vcmp.lt.s32.totalorder %v820, %v821
        %v983 = vsel %vm982, %v820, %v821
        %v984 = vand.u32 %v983, 65535
        %v985 = vshra.s32 %v983, 16
        %v986 = vcvt.s32.f32 %v984
        %v987 = vcvt.s32.f32 %v985
        %988 = vmin.xlane.f32.xlu0 %v987
        %v989 = vpop.xlane.xlu0 %988
        %vm990 = vcmp.eq.f32.partialorder %v987, %v989
        %v991 = vsel %vm990, %v986, inf
        %992 = vmin.xlane.f32.xlu0 %v991
        %v993 = vpop.xlane.xlu0 %992
        %v994 = vcvt.f32.s32 %v993
        %v995 = vcvt.f32.s32 %v989
        %v996 = vshll.u32 %v995, 16
        %v997 = vadd.s32 %v996, %v994
        %vm998 = vcmp.lt.s32.totalorder %v822, %v823
        %v999 = vsel %vm998, %v822, %v823
        %v1000 = vand.u32 %v999, 65535
        %v1001 = vshra.s32 %v999, 16
        %v1002 = vcvt.s32.f32 %v1000
        %v1003 = vcvt.s32.f32 %v1001
        %1004 = vmin.xlane.f32.xlu0 %v1003
        %v1005 = vpop.xlane.xlu0 %1004
        %vm1006 = vcmp.eq.f32.partialorder %v1003, %v1005
        %v1007 = vsel %vm1006, %v1002, inf
        %1008 = vmin.xlane.f32.xlu0 %v1007
        %v1009 = vpop.xlane.xlu0 %1008
        %v1010 = vcvt.f32.s32 %v1009
        %v1011 = vcvt.f32.s32 %v1005
        %v1012 = vshll.u32 %v1011, 16
        %v1013 = vadd.s32 %v1012, %v1010
        %vm1014 = vcmp.lt.s32.totalorder %v824, %v825
        %v1015 = vsel %vm1014, %v824, %v825
        %v1016 = vand.u32 %v1015, 65535
        %v1017 = vshra.s32 %v1015, 16
        %v1018 = vcvt.s32.f32 %v1016
        %v1019 = vcvt.s32.f32 %v1017
        %1020 = vmin.xlane.f32.xlu0 %v1019
        %v1021 = vpop.xlane.xlu0 %1020
        %vm1022 = vcmp.eq.f32.partialorder %v1019, %v1021
        %v1023 = vsel %vm1022, %v1018, inf
        %1024 = vmin.xlane.f32.xlu0 %v1023
        %v1025 = vpop.xlane.xlu0 %1024
        %v1026 = vcvt.f32.s32 %v1025
        %v1027 = vcvt.f32.s32 %v1021
        %v1028 = vshll.u32 %v1027, 16
        %v1029 = vadd.s32 %v1028, %v1026
        %vm1030 = vcmp.lt.s32.totalorder %v826, %v827
        %v1031 = vsel %vm1030, %v826, %v827
        %v1032 = vand.u32 %v1031, 65535
        %v1033 = vshra.s32 %v1031, 16
        %v1034 = vcvt.s32.f32 %v1032
        %v1035 = vcvt.s32.f32 %v1033
        %1036 = vmin.xlane.f32.xlu0 %v1035
        %v1037 = vpop.xlane.xlu0 %1036
        %vm1038 = vcmp.eq.f32.partialorder %v1035, %v1037
        %v1039 = vsel %vm1038, %v1034, inf
        %1040 = vmin.xlane.f32.xlu0 %v1039
        %v1041 = vpop.xlane.xlu0 %1040
        %v1042 = vcvt.f32.s32 %v1041
        %v1043 = vcvt.f32.s32 %v1037
        %v1044 = vshll.u32 %v1043, 16
        %v1045 = vadd.s32 %v1044, %v1042
        %vm1046 = vcmp.lt.s32.totalorder %v828, %v829
        %v1047 = vsel %vm1046, %v828, %v829
        %v1048 = vand.u32 %v1047, 65535
        %v1049 = vshra.s32 %v1047, 16
        %v1050 = vcvt.s32.f32 %v1048
        %v1051 = vcvt.s32.f32 %v1049
        %1052 = vmin.xlane.f32.xlu0 %v1051
        %v1053 = vpop.xlane.xlu0 %1052
        %vm1054 = vcmp.eq.f32.partialorder %v1051, %v1053
        %v1055 = vsel %vm1054, %v1050, inf
        %1056 = vmin.xlane.f32.xlu0 %v1055
        %v1057 = vpop.xlane.xlu0 %1056
        %v1058 = vcvt.f32.s32 %v1057
        %v1059 = vcvt.f32.s32 %v1053
        %v1060 = vshll.u32 %v1059, 16
        %v1061 = vadd.s32 %v1060, %v1058
        %vm1062 = vcmp.lt.s32.totalorder %v830, %v831
        %v1063 = vsel %vm1062, %v830, %v831
        %v1064 = vand.u32 %v1063, 65535
        %v1065 = vshra.s32 %v1063, 16
        %v1066 = vcvt.s32.f32 %v1064
        %v1067 = vcvt.s32.f32 %v1065
        %1068 = vmin.xlane.f32.xlu0 %v1067
        %v1069 = vpop.xlane.xlu0 %1068
        %vm1070 = vcmp.eq.f32.partialorder %v1067, %v1069
        %v1071 = vsel %vm1070, %v1066, inf
        %1072 = vmin.xlane.f32.xlu0 %v1071
        %v1073 = vpop.xlane.xlu0 %1072
        %v1074 = vcvt.f32.s32 %v1073
        %v1075 = vcvt.f32.s32 %v1069
        %v1076 = vshll.u32 %v1075, 16
        %v1077 = vadd.s32 %v1076, %v1074
        %vm1078 = vcmp.lt.s32.totalorder %v832, %v833
        %v1079 = vsel %vm1078, %v832, %v833
        %v1080 = vand.u32 %v1079, 65535
        %v1081 = vshra.s32 %v1079, 16
        %v1082 = vcvt.s32.f32 %v1080
        %v1083 = vcvt.s32.f32 %v1081
        %1084 = vmin.xlane.f32.xlu0 %v1083
        %v1085 = vpop.xlane.xlu0 %1084
        %vm1086 = vcmp.eq.f32.partialorder %v1083, %v1085
        %v1087 = vsel %vm1086, %v1082, inf
        %1088 = vmin.xlane.f32.xlu0 %v1087
        %v1089 = vpop.xlane.xlu0 %1088
        %v1090 = vcvt.f32.s32 %v1089
        %v1091 = vcvt.f32.s32 %v1085
        %v1092 = vshll.u32 %v1091, 16
        %v1093 = vadd.s32 %v1092, %v1090
        %vm1094 = vcmp.lt.s32.totalorder %v834, %v835
        %v1095 = vsel %vm1094, %v834, %v835
        %v1096 = vand.u32 %v1095, 65535
        %v1097 = vshra.s32 %v1095, 16
        %v1098 = vcvt.s32.f32 %v1096
        %v1099 = vcvt.s32.f32 %v1097
        %1100 = vmin.xlane.f32.xlu0 %v1099
        %v1101 = vpop.xlane.xlu0 %1100
        %vm1102 = vcmp.eq.f32.partialorder %v1099, %v1101
        %v1103 = vsel %vm1102, %v1098, inf
        %1104 = vmin.xlane.f32.xlu0 %v1103
        %v1105 = vpop.xlane.xlu0 %1104
        %v1106 = vcvt.f32.s32 %v1105
        %v1107 = vcvt.f32.s32 %v1101
        %v1108 = vshll.u32 %v1107, 16
        %v1109 = vadd.s32 %v1108, %v1106
        %vm1110 = vcmp.lt.s32.totalorder %v836, %v837
        %v1111 = vsel %vm1110, %v836, %v837
        %v1112 = vand.u32 %v1111, 65535
        %v1113 = vshra.s32 %v1111, 16
        %v1114 = vcvt.s32.f32 %v1112
        %v1115 = vcvt.s32.f32 %v1113
        %1116 = vmin.xlane.f32.xlu0 %v1115
        %v1117 = vpop.xlane.xlu0 %1116
        %vm1118 = vcmp.eq.f32.partialorder %v1115, %v1117
        %v1119 = vsel %vm1118, %v1114, inf
        %1120 = vmin.xlane.f32.xlu0 %v1119
        %v1121 = vpop.xlane.xlu0 %1120
        %v1122 = vcvt.f32.s32 %v1121
        %v1123 = vcvt.f32.s32 %v1117
        %v1124 = vshll.u32 %v1123, 16
        %v1125 = vadd.s32 %v1124, %v1122
        %vm1126 = vcmp.lt.s32.totalorder %v838, %v839
        %v1127 = vsel %vm1126, %v838, %v839
        %v1128 = vand.u32 %v1127, 65535
        %v1129 = vshra.s32 %v1127, 16
        %v1130 = vcvt.s32.f32 %v1128
        %v1131 = vcvt.s32.f32 %v1129
        %1132 = vmin.xlane.f32.xlu0 %v1131
        %v1133 = vpop.xlane.xlu0 %1132
        %vm1134 = vcmp.eq.f32.partialorder %v1131, %v1133
        %v1135 = vsel %vm1134, %v1130, inf
        %1136 = vmin.xlane.f32.xlu0 %v1135
        %v1137 = vpop.xlane.xlu0 %1136
        %v1138 = vcvt.f32.s32 %v1137
        %v1139 = vcvt.f32.s32 %v1133
        %v1140 = vshll.u32 %v1139, 16
        %v1141 = vadd.s32 %v1140, %v1138
        %vm1142 = vcmp.lt.s32.totalorder %v840, %v841
        %v1143 = vsel %vm1142, %v840, %v841
        %v1144 = vand.u32 %v1143, 65535
        %v1145 = vshra.s32 %v1143, 16
        %v1146 = vcvt.s32.f32 %v1144
        %v1147 = vcvt.s32.f32 %v1145
        %1148 = vmin.xlane.f32.xlu0 %v1147
        %v1149 = vpop.xlane.xlu0 %1148
        %vm1150 = vcmp.eq.f32.partialorder %v1147, %v1149
        %v1151 = vsel %vm1150, %v1146, inf
        %1152 = vmin.xlane.f32.xlu0 %v1151
        %v1153 = vpop.xlane.xlu0 %1152
        %v1154 = vcvt.f32.s32 %v1153
        %v1155 = vcvt.f32.s32 %v1149
        %v1156 = vshll.u32 %v1155, 16
        %v1157 = vadd.s32 %v1156, %v1154
        %vm1158 = vcmp.lt.s32.totalorder %v842, %v843
        %v1159 = vsel %vm1158, %v842, %v843
        %v1160 = vand.u32 %v1159, 65535
        %v1161 = vshra.s32 %v1159, 16
        %v1162 = vcvt.s32.f32 %v1160
        %v1163 = vcvt.s32.f32 %v1161
        %1164 = vmin.xlane.f32.xlu0 %v1163
        %v1165 = vpop.xlane.xlu0 %1164
        %vm1166 = vcmp.eq.f32.partialorder %v1163, %v1165
        %v1167 = vsel %vm1166, %v1162, inf
        %1168 = vmin.xlane.f32.xlu0 %v1167
        %v1169 = vpop.xlane.xlu0 %1168
        %v1170 = vcvt.f32.s32 %v1169
        %v1171 = vcvt.f32.s32 %v1165
        %v1172 = vshll.u32 %v1171, 16
        %v1173 = vadd.s32 %v1172, %v1170
        %vm1174 = vcmp.lt.s32.totalorder %v844, %v845
        %v1175 = vsel %vm1174, %v844, %v845
        %v1176 = vand.u32 %v1175, 65535
        %v1177 = vshra.s32 %v1175, 16
        %v1178 = vcvt.s32.f32 %v1176
        %v1179 = vcvt.s32.f32 %v1177
        %1180 = vmin.xlane.f32.xlu0 %v1179
        %v1181 = vpop.xlane.xlu0 %1180
        %vm1182 = vcmp.eq.f32.partialorder %v1179, %v1181
        %v1183 = vsel %vm1182, %v1178, inf
        %1184 = vmin.xlane.f32.xlu0 %v1183
        %v1185 = vpop.xlane.xlu0 %1184
        %v1186 = vcvt.f32.s32 %v1185
        %v1187 = vcvt.f32.s32 %v1181
        %v1188 = vshll.u32 %v1187, 16
        %v1189 = vadd.s32 %v1188, %v1186
        %vm1190 = vcmp.lt.s32.totalorder %v846, %v847
        %v1191 = vsel %vm1190, %v846, %v847
        %v1192 = vand.u32 %v1191, 65535
        %v1193 = vshra.s32 %v1191, 16
        %v1194 = vcvt.s32.f32 %v1192
        %v1195 = vcvt.s32.f32 %v1193
        %1196 = vmin.xlane.f32.xlu0 %v1195
        %v1197 = vpop.xlane.xlu0 %1196
        %vm1198 = vcmp.eq.f32.partialorder %v1195, %v1197
        %v1199 = vsel %vm1198, %v1194, inf
        %1200 = vmin.xlane.f32.xlu0 %v1199
        %v1201 = vpop.xlane.xlu0 %1200
        %v1202 = vcvt.f32.s32 %v1201
        %v1203 = vcvt.f32.s32 %v1197
        %v1204 = vshll.u32 %v1203, 16
        %v1205 = vadd.s32 %v1204, %v1202
        %vm1206 = vcmp.lt.s32.totalorder %v848, %v849
        %v1207 = vsel %vm1206, %v848, %v849
        %v1208 = vand.u32 %v1207, 65535
        %v1209 = vshra.s32 %v1207, 16
        %v1210 = vcvt.s32.f32 %v1208
        %v1211 = vcvt.s32.f32 %v1209
        %1212 = vmin.xlane.f32.xlu0 %v1211
        %v1213 = vpop.xlane.xlu0 %1212
        %vm1214 = vcmp.eq.f32.partialorder %v1211, %v1213
        %v1215 = vsel %vm1214, %v1210, inf
        %1216 = vmin.xlane.f32.xlu0 %v1215
        %v1217 = vpop.xlane.xlu0 %1216
        %v1218 = vcvt.f32.s32 %v1217
        %v1219 = vcvt.f32.s32 %v1213
        %v1220 = vshll.u32 %v1219, 16
        %v1221 = vadd.s32 %v1220, %v1218
        %vm1222 = vcmp.lt.s32.totalorder %v850, %v851
        %v1223 = vsel %vm1222, %v850, %v851
        %v1224 = vand.u32 %v1223, 65535
        %v1225 = vshra.s32 %v1223, 16
        %v1226 = vcvt.s32.f32 %v1224
        %v1227 = vcvt.s32.f32 %v1225
        %1228 = vmin.xlane.f32.xlu0 %v1227
        %v1229 = vpop.xlane.xlu0 %1228
        %vm1230 = vcmp.eq.f32.partialorder %v1227, %v1229
        %v1231 = vsel %vm1230, %v1226, inf
        %1232 = vmin.xlane.f32.xlu0 %v1231
        %v1233 = vpop.xlane.xlu0 %1232
        %v1234 = vcvt.f32.s32 %v1233
        %v1235 = vcvt.f32.s32 %v1229
        %v1236 = vshll.u32 %v1235, 16
        %v1237 = vadd.s32 %v1236, %v1234
        %vm1238 = vcmp.lt.s32.totalorder %v852, %v853
        %v1239 = vsel %vm1238, %v852, %v853
        %v1240 = vand.u32 %v1239, 65535
        %v1241 = vshra.s32 %v1239, 16
        %v1242 = vcvt.s32.f32 %v1240
        %v1243 = vcvt.s32.f32 %v1241
        %1244 = vmin.xlane.f32.xlu0 %v1243
        %v1245 = vpop.xlane.xlu0 %1244
        %vm1246 = vcmp.eq.f32.partialorder %v1243, %v1245
        %v1247 = vsel %vm1246, %v1242, inf
        %1248 = vmin.xlane.f32.xlu0 %v1247
        %v1249 = vpop.xlane.xlu0 %1248
        %v1250 = vcvt.f32.s32 %v1249
        %v1251 = vcvt.f32.s32 %v1245
        %v1252 = vshll.u32 %v1251, 16
        %v1253 = vadd.s32 %v1252, %v1250
        %vm1254 = vcmp.lt.s32.totalorder %v854, %v855
        %v1255 = vsel %vm1254, %v854, %v855
        %v1256 = vand.u32 %v1255, 65535
        %v1257 = vshra.s32 %v1255, 16
        %v1258 = vcvt.s32.f32 %v1256
        %v1259 = vcvt.s32.f32 %v1257
        %1260 = vmin.xlane.f32.xlu0 %v1259
        %v1261 = vpop.xlane.xlu0 %1260
        %vm1262 = vcmp.eq.f32.partialorder %v1259, %v1261
        %v1263 = vsel %vm1262, %v1258, inf
        %1264 = vmin.xlane.f32.xlu0 %v1263
        %v1265 = vpop.xlane.xlu0 %1264
        %v1266 = vcvt.f32.s32 %v1265
        %v1267 = vcvt.f32.s32 %v1261
        %v1268 = vshll.u32 %v1267, 16
        %v1269 = vadd.s32 %v1268, %v1266
        %vm1270 = vcmp.lt.s32.totalorder %v856, %v857
        %v1271 = vsel %vm1270, %v856, %v857
        %v1272 = vand.u32 %v1271, 65535
        %v1273 = vshra.s32 %v1271, 16
        %v1274 = vcvt.s32.f32 %v1272
        %v1275 = vcvt.s32.f32 %v1273
        %1276 = vmin.xlane.f32.xlu0 %v1275
        %v1277 = vpop.xlane.xlu0 %1276
        %vm1278 = vcmp.eq.f32.partialorder %v1275, %v1277
        %v1279 = vsel %vm1278, %v1274, inf
        %1280 = vmin.xlane.f32.xlu0 %v1279
        %v1281 = vpop.xlane.xlu0 %1280
        %v1282 = vcvt.f32.s32 %v1281
        %v1283 = vcvt.f32.s32 %v1277
        %v1284 = vshll.u32 %v1283, 16
        %v1285 = vadd.s32 %v1284, %v1282
        %vm1286 = vcmp.lt.s32.totalorder %v858, %v859
        %v1287 = vsel %vm1286, %v858, %v859
        %v1288 = vand.u32 %v1287, 65535
        %v1289 = vshra.s32 %v1287, 16
        %v1290 = vcvt.s32.f32 %v1288
        %v1291 = vcvt.s32.f32 %v1289
        %1292 = vmin.xlane.f32.xlu0 %v1291
        %v1293 = vpop.xlane.xlu0 %1292
        %vm1294 = vcmp.eq.f32.partialorder %v1291, %v1293
        %v1295 = vsel %vm1294, %v1290, inf
        %1296 = vmin.xlane.f32.xlu0 %v1295
        %v1297 = vpop.xlane.xlu0 %1296
        %v1298 = vcvt.f32.s32 %v1297
        %v1299 = vcvt.f32.s32 %v1293
        %v1300 = vshll.u32 %v1299, 16
        %v1301 = vadd.s32 %v1300, %v1298
        %vm1302 = vcmp.lt.s32.totalorder %v860, %v861
        %v1303 = vsel %vm1302, %v860, %v861
        %v1304 = vand.u32 %v1303, 65535
        %v1305 = vshra.s32 %v1303, 16
        %v1306 = vcvt.s32.f32 %v1304
        %v1307 = vcvt.s32.f32 %v1305
        %1308 = vmin.xlane.f32.xlu0 %v1307
        %v1309 = vpop.xlane.xlu0 %1308
        %vm1310 = vcmp.eq.f32.partialorder %v1307, %v1309
        %v1311 = vsel %vm1310, %v1306, inf
        %1312 = vmin.xlane.f32.xlu0 %v1311
        %v1313 = vpop.xlane.xlu0 %1312
        %v1314 = vcvt.f32.s32 %v1313
        %v1315 = vcvt.f32.s32 %v1309
        %v1316 = vshll.u32 %v1315, 16
        %v1317 = vadd.s32 %v1316, %v1314
        %vm1318 = vcmp.lt.s32.totalorder %v862, %v863
        %v1319 = vsel %vm1318, %v862, %v863
        %v1320 = vand.u32 %v1319, 65535
        %v1321 = vshra.s32 %v1319, 16
        %v1322 = vcvt.s32.f32 %v1320
        %v1323 = vcvt.s32.f32 %v1321
        %1324 = vmin.xlane.f32.xlu0 %v1323
        %v1325 = vpop.xlane.xlu0 %1324
        %vm1326 = vcmp.eq.f32.partialorder %v1323, %v1325
        %v1327 = vsel %vm1326, %v1322, inf
        %1328 = vmin.xlane.f32.xlu0 %v1327
        %v1329 = vpop.xlane.xlu0 %1328
        %v1330 = vcvt.f32.s32 %v1329
        %v1331 = vcvt.f32.s32 %v1325
        %v1332 = vshll.u32 %v1331, 16
        %v1333 = vadd.s32 %v1332, %v1330
        %vm1334 = vcmp.lt.s32.totalorder %v864, %v865
        %v1335 = vsel %vm1334, %v864, %v865
        %v1336 = vand.u32 %v1335, 65535
        %v1337 = vshra.s32 %v1335, 16
        %v1338 = vcvt.s32.f32 %v1336
        %v1339 = vcvt.s32.f32 %v1337
        %1340 = vmin.xlane.f32.xlu0 %v1339
        %v1341 = vpop.xlane.xlu0 %1340
        %vm1342 = vcmp.eq.f32.partialorder %v1339, %v1341
        %v1343 = vsel %vm1342, %v1338, inf
        %1344 = vmin.xlane.f32.xlu0 %v1343
        %v1345 = vpop.xlane.xlu0 %1344
        %v1346 = vcvt.f32.s32 %v1345
        %v1347 = vcvt.f32.s32 %v1341
        %v1348 = vshll.u32 %v1347, 16
        %v1349 = vadd.s32 %v1348, %v1346
        %vm1350 = vcmp.lt.s32.totalorder %v866, %v867
        %v1351 = vsel %vm1350, %v866, %v867
        %v1352 = vand.u32 %v1351, 65535
        %v1353 = vshra.s32 %v1351, 16
        %v1354 = vcvt.s32.f32 %v1352
        %v1355 = vcvt.s32.f32 %v1353
        %1356 = vmin.xlane.f32.xlu0 %v1355
        %v1357 = vpop.xlane.xlu0 %1356
        %vm1358 = vcmp.eq.f32.partialorder %v1355, %v1357
        %v1359 = vsel %vm1358, %v1354, inf
        %1360 = vmin.xlane.f32.xlu0 %v1359
        %v1361 = vpop.xlane.xlu0 %1360
        %v1362 = vcvt.f32.s32 %v1361
        %v1363 = vcvt.f32.s32 %v1357
        %v1364 = vshll.u32 %v1363, 16
        %v1365 = vadd.s32 %v1364, %v1362
        %vm1366 = vcmp.lt.s32.totalorder %v868, %v869
        %v1367 = vsel %vm1366, %v868, %v869
        %v1368 = vand.u32 %v1367, 65535
        %v1369 = vshra.s32 %v1367, 16
        %v1370 = vcvt.s32.f32 %v1368
        %v1371 = vcvt.s32.f32 %v1369
        %1372 = vmin.xlane.f32.xlu0 %v1371
        %v1373 = vpop.xlane.xlu0 %1372
        %vm1374 = vcmp.eq.f32.partialorder %v1371, %v1373
        %v1375 = vsel %vm1374, %v1370, inf
        %1376 = vmin.xlane.f32.xlu0 %v1375
        %v1377 = vpop.xlane.xlu0 %1376
        %v1378 = vcvt.f32.s32 %v1377
        %v1379 = vcvt.f32.s32 %v1373
        %v1380 = vshll.u32 %v1379, 16
        %v1381 = vadd.s32 %v1380, %v1378
        %vm1382 = vcmp.eq.s32.totalorder %v740, %v885
        %vm1383 = vcmp.eq.s32.totalorder %v741, %v885
        %vm1384 = vcmp.eq.s32.totalorder %v740, %v901
        %vm1385 = vcmp.eq.s32.totalorder %v741, %v901
        %vm1386 = vcmp.eq.s32.totalorder %v740, %v917
        %vm1387 = vcmp.eq.s32.totalorder %v741, %v917
        %vm1388 = vcmp.eq.s32.totalorder %v740, %v933
        %vm1389 = vcmp.eq.s32.totalorder %v741, %v933
        %vm1390 = vcmp.eq.s32.totalorder %v740, %v949
        %vm1391 = vcmp.eq.s32.totalorder %v741, %v949
        %vm1392 = vcmp.eq.s32.totalorder %v740, %v965
        %vm1393 = vcmp.eq.s32.totalorder %v741, %v965
        %vm1394 = vcmp.eq.s32.totalorder %v740, %v981
        %vm1395 = vcmp.eq.s32.totalorder %v741, %v981
        %vm1396 = vcmp.eq.s32.totalorder %v740, %v997
        %vm1397 = vcmp.eq.s32.totalorder %v741, %v997
        %vm1398 = vcmp.eq.s32.totalorder %v740, %v1013
        %vm1399 = vcmp.eq.s32.totalorder %v741, %v1013
        %vm1400 = vcmp.eq.s32.totalorder %v740, %v1029
        %vm1401 = vcmp.eq.s32.totalorder %v741, %v1029
        %vm1402 = vcmp.eq.s32.totalorder %v740, %v1045
        %vm1403 = vcmp.eq.s32.totalorder %v741, %v1045
        %vm1404 = vcmp.eq.s32.totalorder %v740, %v1061
        %vm1405 = vcmp.eq.s32.totalorder %v741, %v1061
        %vm1406 = vcmp.eq.s32.totalorder %v740, %v1077
        %vm1407 = vcmp.eq.s32.totalorder %v741, %v1077
        %vm1408 = vcmp.eq.s32.totalorder %v740, %v1093
        %vm1409 = vcmp.eq.s32.totalorder %v741, %v1093
        %vm1410 = vcmp.eq.s32.totalorder %v740, %v1109
        %vm1411 = vcmp.eq.s32.totalorder %v741, %v1109
        %vm1412 = vcmp.eq.s32.totalorder %v740, %v1125
        %vm1413 = vcmp.eq.s32.totalorder %v741, %v1125
        %vm1414 = vcmp.eq.s32.totalorder %v740, %v1141
        %vm1415 = vcmp.eq.s32.totalorder %v741, %v1141
        %vm1416 = vcmp.eq.s32.totalorder %v740, %v1157
        %vm1417 = vcmp.eq.s32.totalorder %v741, %v1157
        %vm1418 = vcmp.eq.s32.totalorder %v740, %v1173
        %vm1419 = vcmp.eq.s32.totalorder %v741, %v1173
        %vm1420 = vcmp.eq.s32.totalorder %v740, %v1189
        %vm1421 = vcmp.eq.s32.totalorder %v741, %v1189
        %vm1422 = vcmp.eq.s32.totalorder %v740, %v1205
        %vm1423 = vcmp.eq.s32.totalorder %v741, %v1205
        %vm1424 = vcmp.eq.s32.totalorder %v740, %v1221
        %vm1425 = vcmp.eq.s32.totalorder %v741, %v1221
        %vm1426 = vcmp.eq.s32.totalorder %v740, %v1237
        %vm1427 = vcmp.eq.s32.totalorder %v741, %v1237
        %vm1428 = vcmp.eq.s32.totalorder %v740, %v1253
        %vm1429 = vcmp.eq.s32.totalorder %v741, %v1253
        %vm1430 = vcmp.eq.s32.totalorder %v740, %v1269
        %vm1431 = vcmp.eq.s32.totalorder %v741, %v1269
        %vm1432 = vcmp.eq.s32.totalorder %v740, %v1285
        %vm1433 = vcmp.eq.s32.totalorder %v741, %v1285
        %vm1434 = vcmp.eq.s32.totalorder %v740, %v1301
        %vm1435 = vcmp.eq.s32.totalorder %v741, %v1301
        %vm1436 = vcmp.eq.s32.totalorder %v740, %v1317
        %vm1437 = vcmp.eq.s32.totalorder %v741, %v1317
        %vm1438 = vcmp.eq.s32.totalorder %v740, %v1333
        %vm1439 = vcmp.eq.s32.totalorder %v741, %v1333
        %vm1440 = vcmp.eq.s32.totalorder %v740, %v1349
        %vm1441 = vcmp.eq.s32.totalorder %v741, %v1349
        %vm1442 = vcmp.eq.s32.totalorder %v740, %v1365
        %vm1443 = vcmp.eq.s32.totalorder %v741, %v1365
        %vm1444 = vcmp.eq.s32.totalorder %v740, %v1381
        %vm1445 = vcmp.eq.s32.totalorder %v741, %v1381
        %v1446 = vsel %vm1382, 1, 0
        %v1447 = vsel %vm1383, 1, 0
        %v1448 = vsel %vm1384, 1, 0
        %v1449 = vsel %vm1385, 1, 0
        %v1450 = vsel %vm1386, 1, 0
        %v1451 = vsel %vm1387, 1, 0
        %v1452 = vsel %vm1388, 1, 0
        %v1453 = vsel %vm1389, 1, 0
        %v1454 = vsel %vm1390, 1, 0
        %v1455 = vsel %vm1391, 1, 0
        %v1456 = vsel %vm1392, 1, 0
        %v1457 = vsel %vm1393, 1, 0
        %v1458 = vsel %vm1394, 1, 0
        %v1459 = vsel %vm1395, 1, 0
        %v1460 = vsel %vm1396, 1, 0
        %v1461 = vsel %vm1397, 1, 0
        %v1462 = vsel %vm1398, 1, 0
        %v1463 = vsel %vm1399, 1, 0
        %v1464 = vsel %vm1400, 1, 0
        %v1465 = vsel %vm1401, 1, 0
        %v1466 = vsel %vm1402, 1, 0
        %v1467 = vsel %vm1403, 1, 0
        %v1468 = vsel %vm1404, 1, 0
        %v1469 = vsel %vm1405, 1, 0
        %v1470 = vsel %vm1406, 1, 0
        %v1471 = vsel %vm1407, 1, 0
        %v1472 = vsel %vm1408, 1, 0
        %v1473 = vsel %vm1409, 1, 0
        %v1474 = vsel %vm1410, 1, 0
        %v1475 = vsel %vm1411, 1, 0
        %v1476 = vsel %vm1412, 1, 0
        %v1477 = vsel %vm1413, 1, 0
        %v1478 = vsel %vm1414, 1, 0
        %v1479 = vsel %vm1415, 1, 0
        %v1480 = vsel %vm1416, 1, 0
        %v1481 = vsel %vm1417, 1, 0
        %v1482 = vsel %vm1418, 1, 0
        %v1483 = vsel %vm1419, 1, 0
        %v1484 = vsel %vm1420, 1, 0
        %v1485 = vsel %vm1421, 1, 0
        %v1486 = vsel %vm1422, 1, 0
        %v1487 = vsel %vm1423, 1, 0
        %v1488 = vsel %vm1424, 1, 0
        %v1489 = vsel %vm1425, 1, 0
        %v1490 = vsel %vm1426, 1, 0
        %v1491 = vsel %vm1427, 1, 0
        %v1492 = vsel %vm1428, 1, 0
        %v1493 = vsel %vm1429, 1, 0
        %v1494 = vsel %vm1430, 1, 0
        %v1495 = vsel %vm1431, 1, 0
        %v1496 = vsel %vm1432, 1, 0
        %v1497 = vsel %vm1433, 1, 0
        %v1498 = vsel %vm1434, 1, 0
        %v1499 = vsel %vm1435, 1, 0
        %v1500 = vsel %vm1436, 1, 0
        %v1501 = vsel %vm1437, 1, 0
        %v1502 = vsel %vm1438, 1, 0
        %v1503 = vsel %vm1439, 1, 0
        %v1504 = vsel %vm1440, 1, 0
        %v1505 = vsel %vm1441, 1, 0
        %v1506 = vsel %vm1442, 1, 0
        %v1507 = vsel %vm1443, 1, 0
        %v1508 = vsel %vm1444, 1, 0
        %v1509 = vsel %vm1445, 1, 0
        %v1510 = vcvt.s32.f32 %v1446
        %v1511 = vcvt.s32.f32 %v1447
        %v1512 = vcvt.s32.f32 %v1448
        %v1513 = vcvt.s32.f32 %v1449
        %v1514 = vcvt.s32.f32 %v1450
        %v1515 = vcvt.s32.f32 %v1451
        %v1516 = vcvt.s32.f32 %v1452
        %v1517 = vcvt.s32.f32 %v1453
        %v1518 = vcvt.s32.f32 %v1454
        %v1519 = vcvt.s32.f32 %v1455
        %v1520 = vcvt.s32.f32 %v1456
        %v1521 = vcvt.s32.f32 %v1457
        %v1522 = vcvt.s32.f32 %v1458
        %v1523 = vcvt.s32.f32 %v1459
        %v1524 = vcvt.s32.f32 %v1460
        %v1525 = vcvt.s32.f32 %v1461
        %v1526 = vcvt.s32.f32 %v1462
        %v1527 = vcvt.s32.f32 %v1463
        %v1528 = vcvt.s32.f32 %v1464
        %v1529 = vcvt.s32.f32 %v1465
        %v1530 = vcvt.s32.f32 %v1466
        %v1531 = vcvt.s32.f32 %v1467
        %v1532 = vcvt.s32.f32 %v1468
        %v1533 = vcvt.s32.f32 %v1469
        %v1534 = vcvt.s32.f32 %v1470
        %v1535 = vcvt.s32.f32 %v1471
        %v1536 = vcvt.s32.f32 %v1472
        %v1537 = vcvt.s32.f32 %v1473
        %v1538 = vcvt.s32.f32 %v1474
        %v1539 = vcvt.s32.f32 %v1475
        %v1540 = vcvt.s32.f32 %v1476
        %v1541 = vcvt.s32.f32 %v1477
        %v1542 = vcvt.s32.f32 %v1478
        %v1543 = vcvt.s32.f32 %v1479
        %v1544 = vcvt.s32.f32 %v1480
        %v1545 = vcvt.s32.f32 %v1481
        %v1546 = vcvt.s32.f32 %v1482
        %v1547 = vcvt.s32.f32 %v1483
        %v1548 = vcvt.s32.f32 %v1484
        %v1549 = vcvt.s32.f32 %v1485
        %v1550 = vcvt.s32.f32 %v1486
        %v1551 = vcvt.s32.f32 %v1487
        %v1552 = vcvt.s32.f32 %v1488
        %v1553 = vcvt.s32.f32 %v1489
        %v1554 = vcvt.s32.f32 %v1490
        %v1555 = vcvt.s32.f32 %v1491
        %v1556 = vcvt.s32.f32 %v1492
        %v1557 = vcvt.s32.f32 %v1493
        %v1558 = vcvt.s32.f32 %v1494
        %v1559 = vcvt.s32.f32 %v1495
        %v1560 = vcvt.s32.f32 %v1496
        %v1561 = vcvt.s32.f32 %v1497
        %v1562 = vcvt.s32.f32 %v1498
        %v1563 = vcvt.s32.f32 %v1499
        %v1564 = vcvt.s32.f32 %v1500
        %v1565 = vcvt.s32.f32 %v1501
        %v1566 = vcvt.s32.f32 %v1502
        %v1567 = vcvt.s32.f32 %v1503
        %v1568 = vcvt.s32.f32 %v1504
        %v1569 = vcvt.s32.f32 %v1505
        %v1570 = vcvt.s32.f32 %v1506
        %v1571 = vcvt.s32.f32 %v1507
        %v1572 = vcvt.s32.f32 %v1508
        %v1573 = vcvt.s32.f32 %v1509
        %v1574 = vld [vmem:[%s2] sm:$0xff]
        %v1575 = vld [vmem:[%s2 + $0x8] sm:$0xff]
        %v1576 = vld [vmem:[%s2 + $0x10] sm:$0xff]
        %v1577 = vld [vmem:[%s2 + $0x18] sm:$0xff]
        %v1578 = vld [vmem:[%s2 + $0x20] sm:$0xff]
        %v1579 = vld [vmem:[%s2 + $0x28] sm:$0xff]
        %v1580 = vld [vmem:[%s2 + $0x30] sm:$0xff]
        %v1581 = vld [vmem:[%s2 + $0x38] sm:$0xff]
        %v1582 = vld [vmem:[%s2 + $0x40] sm:$0xff]
        %v1583 = vld [vmem:[%s2 + $0x48] sm:$0xff]
        %v1584 = vld [vmem:[%s2 + $0x50] sm:$0xff]
        %v1585 = vld [vmem:[%s2 + $0x58] sm:$0xff]
        %v1586 = vld [vmem:[%s2 + $0x60] sm:$0xff]
        %v1587 = vld [vmem:[%s2 + $0x68] sm:$0xff]
        %v1588 = vld [vmem:[%s2 + $0x70] sm:$0xff]
        %v1589 = vld [vmem:[%s2 + $0x78] sm:$0xff]
        %v1590 = vld [vmem:[%s2 + $0x80] sm:$0xff]
        %v1591 = vld [vmem:[%s2 + $0x88] sm:$0xff]
        %v1592 = vld [vmem:[%s2 + $0x90] sm:$0xff]
        %v1593 = vld [vmem:[%s2 + $0x98] sm:$0xff]
        %v1594 = vld [vmem:[%s2 + $0xa0] sm:$0xff]
        %v1595 = vld [vmem:[%s2 + $0xa8] sm:$0xff]
        %v1596 = vld [vmem:[%s2 + $0xb0] sm:$0xff]
        %v1597 = vld [vmem:[%s2 + $0xb8] sm:$0xff]
        %v1598 = vld [vmem:[%s2 + $0xc0] sm:$0xff]
        %v1599 = vld [vmem:[%s2 + $0xc8] sm:$0xff]
        %v1600 = vld [vmem:[%s2 + $0xd0] sm:$0xff]
        %v1601 = vld [vmem:[%s2 + $0xd8] sm:$0xff]
        %v1602 = vld [vmem:[%s2 + $0xe0] sm:$0xff]
        %v1603 = vld [vmem:[%s2 + $0xe8] sm:$0xff]
        %v1604 = vld [vmem:[%s2 + $0xf0] sm:$0xff]
        %v1605 = vld [vmem:[%s2 + $0xf8] sm:$0xff]
        %1606 = vmatprep.subr.mxu0 0.0
        %1607 = vmatpush1.msra.mxu0 %v1574
        %1608 = vmatprep.subr.mxu0 0.0
        %1609 = vmatpush1.msra.mxu0 %v1575
        %1610 = vmatprep.subr.mxu0 0.0
        %1611 = vmatpush1.msra.mxu0 %v1576
        %1612 = vmatprep.subr.mxu0 0.0
        %1613 = vmatpush1.msra.mxu0 %v1577
        %1614 = vmatprep.subr.mxu0 0.0
        %1615 = vmatpush1.msra.mxu0 %v1578
        %1616 = vmatprep.subr.mxu0 0.0
        %1617 = vmatpush1.msra.mxu0 %v1579
        %1618 = vmatprep.subr.mxu0 0.0
        %1619 = vmatpush1.msra.mxu0 %v1580
        %1620 = vmatprep.subr.mxu0 0.0
        %1621 = vmatpush1.msra.mxu0 %v1581
        %1622 = vmatprep.subr.mxu0 0.0
        %1623 = vmatpush1.msra.mxu0 %v1582
        %1624 = vmatprep.subr.mxu0 0.0
        %1625 = vmatpush1.msra.mxu0 %v1583
        %1626 = vmatprep.subr.mxu0 0.0
        %1627 = vmatpush1.msra.mxu0 %v1584
        %1628 = vmatprep.subr.mxu0 0.0
        %1629 = vmatpush1.msra.mxu0 %v1585
        %1630 = vmatprep.subr.mxu0 0.0
        %1631 = vmatpush1.msra.mxu0 %v1586
        %1632 = vmatprep.subr.mxu0 0.0
        %1633 = vmatpush1.msra.mxu0 %v1587
        %1634 = vmatprep.subr.mxu0 0.0
        %1635 = vmatpush1.msra.mxu0 %v1588
        %1636 = vmatprep.subr.mxu0 0.0
        %1637 = vmatpush1.msra.mxu0 %v1589
        %1638 = vmatprep.subr.mxu0 0.0
        %1639 = vmatpush1.msra.mxu0 %v1590
        %1640 = vmatprep.subr.mxu0 0.0
        %1641 = vmatpush1.msra.mxu0 %v1591
        %1642 = vmatprep.subr.mxu0 0.0
        %1643 = vmatpush1.msra.mxu0 %v1592
        %1644 = vmatprep.subr.mxu0 0.0
        %1645 = vmatpush1.msra.mxu0 %v1593
        %1646 = vmatprep.subr.mxu0 0.0
        %1647 = vmatpush1.msra.mxu0 %v1594
        %1648 = vmatprep.subr.mxu0 0.0
        %1649 = vmatpush1.msra.mxu0 %v1595
        %1650 = vmatprep.subr.mxu0 0.0
        %1651 = vmatpush1.msra.mxu0 %v1596
        %1652 = vmatprep.subr.mxu0 0.0
        %1653 = vmatpush1.msra.mxu0 %v1597
        %1654 = vmatprep.subr.mxu0 0.0
        %1655 = vmatpush1.msra.mxu0 %v1598
        %1656 = vmatprep.subr.mxu0 0.0
        %1657 = vmatpush1.msra.mxu0 %v1599
        %1658 = vmatprep.subr.mxu0 0.0
        %1659 = vmatpush1.msra.mxu0 %v1600
        %1660 = vmatprep.subr.mxu0 0.0
        %1661 = vmatpush1.msra.mxu0 %v1601
        %1662 = vmatprep.subr.mxu0 0.0
        %1663 = vmatpush1.msra.mxu0 %v1602
        %1664 = vmatprep.subr.mxu0 0.0
        %1665 = vmatpush1.msra.mxu0 %v1603
        %1666 = vmatprep.subr.mxu0 0.0
        %1667 = vmatpush1.msra.mxu0 %v1604
        %1668 = vmatprep.subr.mxu0 0.0
        %1669 = vmatpush1.msra.mxu0 %v1605
        %1670 = vmatprep.mubr.f32.mxu0 %v1511
        %1671 = vmatmul.mubr.f32.gmra.mrb[0].mxu0 %v1510
        %v1672 = vpop.f32.mrb[0].mxu0
        %v1673 = vadd.f32 0.0, %v1672
        %v1674 = vpop.f32.mrb[0].mxu0
        %1675 = vmatprep.mubr.f32.mxu0 %v1513
        %1676 = vmatmul.mubr.f32.gmra.mrb[0].mxu0 %v1512
        %v1677 = vpop.f32.mrb[0].mxu0
        %v1678 = vadd.f32 0.0, %v1677
        %v1679 = vpop.f32.mrb[0].mxu0
        %1680 = vmatprep.mubr.f32.mxu0 %v1515
        %1681 = vmatmul.mubr.f32.gmra.mrb[0].mxu0 %v1514
        %v1682 = vpop.f32.mrb[0].mxu0
        %v1683 = vadd.f32 0.0, %v1682
        %v1684 = vpop.f32.mrb[0].mxu0
        %1685 = vmatprep.mubr.f32.mxu0 %v1517
        %1686 = vmatmul.mubr.f32.gmra.mrb[0].mxu0 %v1516
        %v1687 = vpop.f32.mrb[0].mxu0
        %v1688 = vadd.f32 0.0, %v1687
        %v1689 = vpop.f32.mrb[0].mxu0
        %1690 = vmatprep.mubr.f32.mxu0 %v1519
        %1691 = vmatmul.mubr.f32.gmra.mrb[0].mxu0 %v1518
        %v1692 = vpop.f32.mrb[0].mxu0
        %v1693 = vadd.f32 0.0, %v1692
        %v1694 = vpop.f32.mrb[0].mxu0
        %1695 = vmatprep.mubr.f32.mxu0 %v1521
        %1696 = vmatmul.mubr.f32.gmra.mrb[0].mxu0 %v1520
        %v1697 = vpop.f32.mrb[0].mxu0
        %v1698 = vadd.f32 0.0, %v1697
        %v1699 = vpop.f32.mrb[0].mxu0
        %1700 = vmatprep.mubr.f32.mxu0 %v1523
        %1701 = vmatmul.mubr.f32.gmra.mrb[0].mxu0 %v1522
        %v1702 = vpop.f32.mrb[0].mxu0
        %v1703 = vadd.f32 0.0, %v1702
        %v1704 = vpop.f32.mrb[0].mxu0
        %1705 = vmatprep.mubr.f32.mxu0 %v1525
        %1706 = vmatmul.mubr.f32.gmra.mrb[0].mxu0 %v1524
        %v1707 = vpop.f32.mrb[0].mxu0
        %v1708 = vadd.f32 0.0, %v1707
        %v1709 = vpop.f32.mrb[0].mxu0
        %1710 = vmatprep.mubr.f32.mxu0 %v1527
        %1711 = vmatmul.mubr.f32.gmra.mrb[0].mxu0 %v1526
        %v1712 = vpop.f32.mrb[0].mxu0
        %v1713 = vadd.f32 0.0, %v1712
        %v1714 = vpop.f32.mrb[0].mxu0
        %1715 = vmatprep.mubr.f32.mxu0 %v1529
        %1716 = vmatmul.mubr.f32.gmra.mrb[0].mxu0 %v1528
        %v1717 = vpop.f32.mrb[0].mxu0
        %v1718 = vadd.f32 0.0, %v1717
        %v1719 = vpop.f32.mrb[0].mxu0
        %1720 = vmatprep.mubr.f32.mxu0 %v1531
        %1721 = vmatmul.mubr.f32.gmra.mrb[0].mxu0 %v1530
        %v1722 = vpop.f32.mrb[0].mxu0
        %v1723 = vadd.f32 0.0, %v1722
        %v1724 = vpop.f32.mrb[0].mxu0
        %1725 = vmatprep.mubr.f32.mxu0 %v1533
        %1726 = vmatmul.mubr.f32.gmra.mrb[0].mxu0 %v1532
        %v1727 = vpop.f32.mrb[0].mxu0
        %v1728 = vadd.f32 0.0, %v1727
        %v1729 = vpop.f32.mrb[0].mxu0
        %1730 = vmatprep.mubr.f32.mxu0 %v1535
        %1731 = vmatmul.mubr.f32.gmra.mrb[0].mxu0 %v1534
        %v1732 = vpop.f32.mrb[0].mxu0
        %v1733 = vadd.f32 0.0, %v1732
        %v1734 = vpop.f32.mrb[0].mxu0
        %1735 = vmatprep.mubr.f32.mxu0 %v1537
        %1736 = vmatmul.mubr.f32.gmra.mrb[0].mxu0 %v1536
        %v1737 = vpop.f32.mrb[0].mxu0
        %v1738 = vadd.f32 0.0, %v1737
        %v1739 = vpop.f32.mrb[0].mxu0
        %1740 = vmatprep.mubr.f32.mxu0 %v1539
        %1741 = vmatmul.mubr.f32.gmra.mrb[0].mxu0 %v1538
        %v1742 = vpop.f32.mrb[0].mxu0
        %v1743 = vadd.f32 0.0, %v1742
        %v1744 = vpop.f32.mrb[0].mxu0
        %1745 = vmatprep.mubr.f32.mxu0 %v1541
        %1746 = vmatmul.mubr.f32.gmra.mrb[0].mxu0 %v1540
        %v1747 = vpop.f32.mrb[0].mxu0
        %v1748 = vadd.f32 0.0, %v1747
        %v1749 = vpop.f32.mrb[0].mxu0
        %1750 = vmatprep.mubr.f32.mxu0 %v1543
        %1751 = vmatmul.mubr.f32.gmra.mrb[0].mxu0 %v1542
        %v1752 = vpop.f32.mrb[0].mxu0
        %v1753 = vadd.f32 0.0, %v1752
        %v1754 = vpop.f32.mrb[0].mxu0
        %1755 = vmatprep.mubr.f32.mxu0 %v1545
        %1756 = vmatmul.mubr.f32.gmra.mrb[0].mxu0 %v1544
        %v1757 = vpop.f32.mrb[0].mxu0
        %v1758 = vadd.f32 0.0, %v1757
        %v1759 = vpop.f32.mrb[0].mxu0
        %1760 = vmatprep.mubr.f32.mxu0 %v1547
        %1761 = vmatmul.mubr.f32.gmra.mrb[0].mxu0 %v1546
        %v1762 = vpop.f32.mrb[0].mxu0
        %v1763 = vadd.f32 0.0, %v1762
        %v1764 = vpop.f32.mrb[0].mxu0
        %1765 = vmatprep.mubr.f32.mxu0 %v1549
        %1766 = vmatmul.mubr.f32.gmra.mrb[0].mxu0 %v1548
        %v1767 = vpop.f32.mrb[0].mxu0
        %v1768 = vadd.f32 0.0, %v1767
        %v1769 = vpop.f32.mrb[0].mxu0
        %1770 = vmatprep.mubr.f32.mxu0 %v1551
        %1771 = vmatmul.mubr.f32.gmra.mrb[0].mxu0 %v1550
        %v1772 = vpop.f32.mrb[0].mxu0
        %v1773 = vadd.f32 0.0, %v1772
        %v1774 = vpop.f32.mrb[0].mxu0
        %1775 = vmatprep.mubr.f32.mxu0 %v1553
        %1776 = vmatmul.mubr.f32.gmra.mrb[0].mxu0 %v1552
        %v1777 = vpop.f32.mrb[0].mxu0
        %v1778 = vadd.f32 0.0, %v1777
        %v1779 = vpop.f32.mrb[0].mxu0
        %1780 = vmatprep.mubr.f32.mxu0 %v1555
        %1781 = vmatmul.mubr.f32.gmra.mrb[0].mxu0 %v1554
        %v1782 = vpop.f32.mrb[0].mxu0
        %v1783 = vadd.f32 0.0, %v1782
        %v1784 = vpop.f32.mrb[0].mxu0
        %1785 = vmatprep.mubr.f32.mxu0 %v1557
        %1786 = vmatmul.mubr.f32.gmra.mrb[0].mxu0 %v1556
        %v1787 = vpop.f32.mrb[0].mxu0
        %v1788 = vadd.f32 0.0, %v1787
        %v1789 = vpop.f32.mrb[0].mxu0
        %1790 = vmatprep.mubr.f32.mxu0 %v1559
        %1791 = vmatmul.mubr.f32.gmra.mrb[0].mxu0 %v1558
        %v1792 = vpop.f32.mrb[0].mxu0
        %v1793 = vadd.f32 0.0, %v1792
        %v1794 = vpop.f32.mrb[0].mxu0
        %1795 = vmatprep.mubr.f32.mxu0 %v1561
        %1796 = vmatmul.mubr.f32.gmra.mrb[0].mxu0 %v1560
        %v1797 = vpop.f32.mrb[0].mxu0
        %v1798 = vadd.f32 0.0, %v1797
        %v1799 = vpop.f32.mrb[0].mxu0
        %1800 = vmatprep.mubr.f32.mxu0 %v1563
        %1801 = vmatmul.mubr.f32.gmra.mrb[0].mxu0 %v1562
        %v1802 = vpop.f32.mrb[0].mxu0
        %v1803 = vadd.f32 0.0, %v1802
        %v1804 = vpop.f32.mrb[0].mxu0
        %1805 = vmatprep.mubr.f32.mxu0 %v1565
        %1806 = vmatmul.mubr.f32.gmra.mrb[0].mxu0 %v1564
        %v1807 = vpop.f32.mrb[0].mxu0
        %v1808 = vadd.f32 0.0, %v1807
        %v1809 = vpop.f32.mrb[0].mxu0
        %1810 = vmatprep.mubr.f32.mxu0 %v1567
        %1811 = vmatmul.mubr.f32.gmra.mrb[0].mxu0 %v1566
        %v1812 = vpop.f32.mrb[0].mxu0
        %v1813 = vadd.f32 0.0, %v1812
        %v1814 = vpop.f32.mrb[0].mxu0
        %1815 = vmatprep.mubr.f32.mxu0 %v1569
        %1816 = vmatmul.mubr.f32.gmra.mrb[0].mxu0 %v1568
        %v1817 = vpop.f32.mrb[0].mxu0
        %v1818 = vadd.f32 0.0, %v1817
        %v1819 = vpop.f32.mrb[0].mxu0
        %1820 = vmatprep.mubr.f32.mxu0 %v1571
        %1821 = vmatmul.mubr.f32.gmra.mrb[0].mxu0 %v1570
        %v1822 = vpop.f32.mrb[0].mxu0
        %v1823 = vadd.f32 0.0, %v1822
        %v1824 = vpop.f32.mrb[0].mxu0
        %1825 = vmatprep.mubr.f32.mxu0 %v1573
        %1826 = vmatmul.mubr.f32.gmra.mrb[0].mxu0 %v1572
        %v1827 = vpop.f32.mrb[0].mxu0
        %v1828 = vadd.f32 0.0, %v1827
        %v1829 = vpop.f32.mrb[0].mxu0
        %1830 = vdwg.mxu0
        %vm1831 = vcmask 261120
        %1832 = vst.msk [vmem:[%s222] sm:$0xff] %vm1831, %v1673
        %1833 = vst.msk [vmem:[%s222 + $0x8] sm:$0xff] %vm1831, %v1678
        %1834 = vst.msk [vmem:[%s222 + $0x10] sm:$0xff] %vm1831, %v1683
        %1835 = vst.msk [vmem:[%s222 + $0x18] sm:$0xff] %vm1831, %v1688
        %1836 = vst.msk [vmem:[%s222 + $0x20] sm:$0xff] %vm1831, %v1693
        %1837 = vst.msk [vmem:[%s222 + $0x28] sm:$0xff] %vm1831, %v1698
        %1838 = vst.msk [vmem:[%s222 + $0x30] sm:$0xff] %vm1831, %v1703
        %1839 = vst.msk [vmem:[%s222 + $0x38] sm:$0xff] %vm1831, %v1708
        %1840 = vst.msk [vmem:[%s222 + $0x40] sm:$0xff] %vm1831, %v1713
        %1841 = vst.msk [vmem:[%s222 + $0x48] sm:$0xff] %vm1831, %v1718
        %1842 = vst.msk [vmem:[%s222 + $0x50] sm:$0xff] %vm1831, %v1723
        %1843 = vst.msk [vmem:[%s222 + $0x58] sm:$0xff] %vm1831, %v1728
        %1844 = vst.msk [vmem:[%s222 + $0x60] sm:$0xff] %vm1831, %v1733
        %1845 = vst.msk [vmem:[%s222 + $0x68] sm:$0xff] %vm1831, %v1738
        %1846 = vst.msk [vmem:[%s222 + $0x70] sm:$0xff] %vm1831, %v1743
        %1847 = vst.msk [vmem:[%s222 + $0x78] sm:$0xff] %vm1831, %v1748
        %1848 = vst.msk [vmem:[%s222 + $0x80] sm:$0xff] %vm1831, %v1753
        %1849 = vst.msk [vmem:[%s222 + $0x88] sm:$0xff] %vm1831, %v1758
        %1850 = vst.msk [vmem:[%s222 + $0x90] sm:$0xff] %vm1831, %v1763
        %1851 = vst.msk [vmem:[%s222 + $0x98] sm:$0xff] %vm1831, %v1768
        %1852 = vst.msk [vmem:[%s222 + $0xa0] sm:$0xff] %vm1831, %v1773
        %1853 = vst.msk [vmem:[%s222 + $0xa8] sm:$0xff] %vm1831, %v1778
        %1854 = vst.msk [vmem:[%s222 + $0xb0] sm:$0xff] %vm1831, %v1783
        %1855 = vst.msk [vmem:[%s222 + $0xb8] sm:$0xff] %vm1831, %v1788
        %1856 = vst.msk [vmem:[%s222 + $0xc0] sm:$0xff] %vm1831, %v1793
        %1857 = vst.msk [vmem:[%s222 + $0xc8] sm:$0xff] %vm1831, %v1798
        %1858 = vst.msk [vmem:[%s222 + $0xd0] sm:$0xff] %vm1831, %v1803
        %1859 = vst.msk [vmem:[%s222 + $0xd8] sm:$0xff] %vm1831, %v1808
        %1860 = vst.msk [vmem:[%s222 + $0xe0] sm:$0xff] %vm1831, %v1813
        %1861 = vst.msk [vmem:[%s222 + $0xe8] sm:$0xff] %vm1831, %v1818
        %1862 = vst.msk [vmem:[%s222 + $0xf0] sm:$0xff] %vm1831, %v1823
        %1863 = vst.msk [vmem:[%s222 + $0xf8] sm:$0xff] %vm1831, %v1828
        %v1864 = vlaneseq
        %v1865 = vshrl.u32 %v1864, 7
        %v1866 = vsub.s32 0, %v1865
        %v1867 = vrot.slane %v885, %v1866
        %v1868 = vlaneseq
        %v1869 = vshrl.u32 %v1868, 7
        %v1870 = vsub.s32 1, %v1869
        %v1871 = vrot.slane %v885, %v1870
        %v1872 = vlaneseq
        %v1873 = vshrl.u32 %v1872, 7
        %v1874 = vsub.s32 2, %v1873
        %v1875 = vrot.slane %v885, %v1874
        %v1876 = vlaneseq
        %v1877 = vshrl.u32 %v1876, 7
        %v1878 = vsub.s32 3, %v1877
        %v1879 = vrot.slane %v885, %v1878
        %v1880 = vlaneseq
        %v1881 = vshrl.u32 %v1880, 7
        %v1882 = vsub.s32 4, %v1881
        %v1883 = vrot.slane %v885, %v1882
        %v1884 = vlaneseq
        %v1885 = vshrl.u32 %v1884, 7
        %v1886 = vsub.s32 5, %v1885
        %v1887 = vrot.slane %v885, %v1886
        %v1888 = vlaneseq
        %v1889 = vshrl.u32 %v1888, 7
        %v1890 = vsub.s32 6, %v1889
        %v1891 = vrot.slane %v885, %v1890
        %v1892 = vlaneseq
        %v1893 = vshrl.u32 %v1892, 7
        %v1894 = vsub.s32 7, %v1893
        %v1895 = vrot.slane %v885, %v1894
        %v1896 = vlaneseq
        %v1897 = vshrl.u32 %v1896, 7
        %v1898 = vsub.s32 0, %v1897
        %v1899 = vrot.slane %v901, %v1898
        %v1900 = vlaneseq
        %v1901 = vshrl.u32 %v1900, 7
        %v1902 = vsub.s32 1, %v1901
        %v1903 = vrot.slane %v901, %v1902
        %v1904 = vlaneseq
        %v1905 = vshrl.u32 %v1904, 7
        %v1906 = vsub.s32 2, %v1905
        %v1907 = vrot.slane %v901, %v1906
        %v1908 = vlaneseq
        %v1909 = vshrl.u32 %v1908, 7
        %v1910 = vsub.s32 3, %v1909
        %v1911 = vrot.slane %v901, %v1910
        %v1912 = vlaneseq
        %v1913 = vshrl.u32 %v1912, 7
        %v1914 = vsub.s32 4, %v1913
        %v1915 = vrot.slane %v901, %v1914
        %v1916 = vlaneseq
        %v1917 = vshrl.u32 %v1916, 7
        %v1918 = vsub.s32 5, %v1917
        %v1919 = vrot.slane %v901, %v1918
        %v1920 = vlaneseq
        %v1921 = vshrl.u32 %v1920, 7
        %v1922 = vsub.s32 6, %v1921
        %v1923 = vrot.slane %v901, %v1922
        %v1924 = vlaneseq
        %v1925 = vshrl.u32 %v1924, 7
        %v1926 = vsub.s32 7, %v1925
        %v1927 = vrot.slane %v901, %v1926
        %v1928 = vlaneseq
        %v1929 = vshrl.u32 %v1928, 7
        %v1930 = vsub.s32 0, %v1929
        %v1931 = vrot.slane %v917, %v1930
        %v1932 = vlaneseq
        %v1933 = vshrl.u32 %v1932, 7
        %v1934 = vsub.s32 1, %v1933
        %v1935 = vrot.slane %v917, %v1934
        %v1936 = vlaneseq
        %v1937 = vshrl.u32 %v1936, 7
        %v1938 = vsub.s32 2, %v1937
        %v1939 = vrot.slane %v917, %v1938
        %v1940 = vlaneseq
        %v1941 = vshrl.u32 %v1940, 7
        %v1942 = vsub.s32 3, %v1941
        %v1943 = vrot.slane %v917, %v1942
        %v1944 = vlaneseq
        %v1945 = vshrl.u32 %v1944, 7
        %v1946 = vsub.s32 4, %v1945
        %v1947 = vrot.slane %v917, %v1946
        %v1948 = vlaneseq
        %v1949 = vshrl.u32 %v1948, 7
        %v1950 = vsub.s32 5, %v1949
        %v1951 = vrot.slane %v917, %v1950
        %v1952 = vlaneseq
        %v1953 = vshrl.u32 %v1952, 7
        %v1954 = vsub.s32 6, %v1953
        %v1955 = vrot.slane %v917, %v1954
        %v1956 = vlaneseq
        %v1957 = vshrl.u32 %v1956, 7
        %v1958 = vsub.s32 7, %v1957
        %v1959 = vrot.slane %v917, %v1958
        %v1960 = vlaneseq
        %v1961 = vshrl.u32 %v1960, 7
        %v1962 = vsub.s32 0, %v1961
        %v1963 = vrot.slane %v933, %v1962
        %v1964 = vlaneseq
        %v1965 = vshrl.u32 %v1964, 7
        %v1966 = vsub.s32 1, %v1965
        %v1967 = vrot.slane %v933, %v1966
        %v1968 = vlaneseq
        %v1969 = vshrl.u32 %v1968, 7
        %v1970 = vsub.s32 2, %v1969
        %v1971 = vrot.slane %v933, %v1970
        %v1972 = vlaneseq
        %v1973 = vshrl.u32 %v1972, 7
        %v1974 = vsub.s32 3, %v1973
        %v1975 = vrot.slane %v933, %v1974
        %v1976 = vlaneseq
        %v1977 = vshrl.u32 %v1976, 7
        %v1978 = vsub.s32 4, %v1977
        %v1979 = vrot.slane %v933, %v1978
        %v1980 = vlaneseq
        %v1981 = vshrl.u32 %v1980, 7
        %v1982 = vsub.s32 5, %v1981
        %v1983 = vrot.slane %v933, %v1982
        %v1984 = vlaneseq
        %v1985 = vshrl.u32 %v1984, 7
        %v1986 = vsub.s32 6, %v1985
        %v1987 = vrot.slane %v933, %v1986
        %v1988 = vlaneseq
        %v1989 = vshrl.u32 %v1988, 7
        %v1990 = vsub.s32 7, %v1989
        %v1991 = vrot.slane %v933, %v1990
        %v1992 = vlaneseq
        %v1993 = vshrl.u32 %v1992, 7
        %v1994 = vsub.s32 0, %v1993
        %v1995 = vrot.slane %v949, %v1994
        %v1996 = vlaneseq
        %v1997 = vshrl.u32 %v1996, 7
        %v1998 = vsub.s32 1, %v1997
        %v1999 = vrot.slane %v949, %v1998
        %v2000 = vlaneseq
        %v2001 = vshrl.u32 %v2000, 7
        %v2002 = vsub.s32 2, %v2001
        %v2003 = vrot.slane %v949, %v2002
        %v2004 = vlaneseq
        %v2005 = vshrl.u32 %v2004, 7
        %v2006 = vsub.s32 3, %v2005
        %v2007 = vrot.slane %v949, %v2006
        %v2008 = vlaneseq
        %v2009 = vshrl.u32 %v2008, 7
        %v2010 = vsub.s32 4, %v2009
        %v2011 = vrot.slane %v949, %v2010
        %v2012 = vlaneseq
        %v2013 = vshrl.u32 %v2012, 7
        %v2014 = vsub.s32 5, %v2013
        %v2015 = vrot.slane %v949, %v2014
        %v2016 = vlaneseq
        %v2017 = vshrl.u32 %v2016, 7
        %v2018 = vsub.s32 6, %v2017
        %v2019 = vrot.slane %v949, %v2018
        %v2020 = vlaneseq
        %v2021 = vshrl.u32 %v2020, 7
        %v2022 = vsub.s32 7, %v2021
        %v2023 = vrot.slane %v949, %v2022
        %v2024 = vlaneseq
        %v2025 = vshrl.u32 %v2024, 7
        %v2026 = vsub.s32 0, %v2025
        %v2027 = vrot.slane %v965, %v2026
        %v2028 = vlaneseq
        %v2029 = vshrl.u32 %v2028, 7
        %v2030 = vsub.s32 1, %v2029
        %v2031 = vrot.slane %v965, %v2030
        %v2032 = vlaneseq
        %v2033 = vshrl.u32 %v2032, 7
        %v2034 = vsub.s32 2, %v2033
        %v2035 = vrot.slane %v965, %v2034
        %v2036 = vlaneseq
        %v2037 = vshrl.u32 %v2036, 7
        %v2038 = vsub.s32 3, %v2037
        %v2039 = vrot.slane %v965, %v2038
        %v2040 = vlaneseq
        %v2041 = vshrl.u32 %v2040, 7
        %v2042 = vsub.s32 4, %v2041
        %v2043 = vrot.slane %v965, %v2042
        %v2044 = vlaneseq
        %v2045 = vshrl.u32 %v2044, 7
        %v2046 = vsub.s32 5, %v2045
        %v2047 = vrot.slane %v965, %v2046
        %v2048 = vlaneseq
        %v2049 = vshrl.u32 %v2048, 7
        %v2050 = vsub.s32 6, %v2049
        %v2051 = vrot.slane %v965, %v2050
        %v2052 = vlaneseq
        %v2053 = vshrl.u32 %v2052, 7
        %v2054 = vsub.s32 7, %v2053
        %v2055 = vrot.slane %v965, %v2054
        %v2056 = vlaneseq
        %v2057 = vshrl.u32 %v2056, 7
        %v2058 = vsub.s32 0, %v2057
        %v2059 = vrot.slane %v981, %v2058
        %v2060 = vlaneseq
        %v2061 = vshrl.u32 %v2060, 7
        %v2062 = vsub.s32 1, %v2061
        %v2063 = vrot.slane %v981, %v2062
        %v2064 = vlaneseq
        %v2065 = vshrl.u32 %v2064, 7
        %v2066 = vsub.s32 2, %v2065
        %v2067 = vrot.slane %v981, %v2066
        %v2068 = vlaneseq
        %v2069 = vshrl.u32 %v2068, 7
        %v2070 = vsub.s32 3, %v2069
        %v2071 = vrot.slane %v981, %v2070
        %v2072 = vlaneseq
        %v2073 = vshrl.u32 %v2072, 7
        %v2074 = vsub.s32 4, %v2073
        %v2075 = vrot.slane %v981, %v2074
        %v2076 = vlaneseq
        %v2077 = vshrl.u32 %v2076, 7
        %v2078 = vsub.s32 5, %v2077
        %v2079 = vrot.slane %v981, %v2078
        %v2080 = vlaneseq
        %v2081 = vshrl.u32 %v2080, 7
        %v2082 = vsub.s32 6, %v2081
        %v2083 = vrot.slane %v981, %v2082
        %v2084 = vlaneseq
        %v2085 = vshrl.u32 %v2084, 7
        %v2086 = vsub.s32 7, %v2085
        %v2087 = vrot.slane %v981, %v2086
        %v2088 = vlaneseq
        %v2089 = vshrl.u32 %v2088, 7
        %v2090 = vsub.s32 0, %v2089
        %v2091 = vrot.slane %v997, %v2090
        %v2092 = vlaneseq
        %v2093 = vshrl.u32 %v2092, 7
        %v2094 = vsub.s32 1, %v2093
        %v2095 = vrot.slane %v997, %v2094
        %v2096 = vlaneseq
        %v2097 = vshrl.u32 %v2096, 7
        %v2098 = vsub.s32 2, %v2097
        %v2099 = vrot.slane %v997, %v2098
        %v2100 = vlaneseq
        %v2101 = vshrl.u32 %v2100, 7
        %v2102 = vsub.s32 3, %v2101
        %v2103 = vrot.slane %v997, %v2102
        %v2104 = vlaneseq
        %v2105 = vshrl.u32 %v2104, 7
        %v2106 = vsub.s32 4, %v2105
        %v2107 = vrot.slane %v997, %v2106
        %v2108 = vlaneseq
        %v2109 = vshrl.u32 %v2108, 7
        %v2110 = vsub.s32 5, %v2109
        %v2111 = vrot.slane %v997, %v2110
        %v2112 = vlaneseq
        %v2113 = vshrl.u32 %v2112, 7
        %v2114 = vsub.s32 6, %v2113
        %v2115 = vrot.slane %v997, %v2114
        %v2116 = vlaneseq
        %v2117 = vshrl.u32 %v2116, 7
        %v2118 = vsub.s32 7, %v2117
        %v2119 = vrot.slane %v997, %v2118
        %v2120 = vlaneseq
        %v2121 = vshrl.u32 %v2120, 7
        %v2122 = vsub.s32 0, %v2121
        %v2123 = vrot.slane %v1013, %v2122
        %v2124 = vlaneseq
        %v2125 = vshrl.u32 %v2124, 7
        %v2126 = vsub.s32 1, %v2125
        %v2127 = vrot.slane %v1013, %v2126
        %v2128 = vlaneseq
        %v2129 = vshrl.u32 %v2128, 7
        %v2130 = vsub.s32 2, %v2129
        %v2131 = vrot.slane %v1013, %v2130
        %v2132 = vlaneseq
        %v2133 = vshrl.u32 %v2132, 7
        %v2134 = vsub.s32 3, %v2133
        %v2135 = vrot.slane %v1013, %v2134
        %v2136 = vlaneseq
        %v2137 = vshrl.u32 %v2136, 7
        %v2138 = vsub.s32 4, %v2137
        %v2139 = vrot.slane %v1013, %v2138
        %v2140 = vlaneseq
        %v2141 = vshrl.u32 %v2140, 7
        %v2142 = vsub.s32 5, %v2141
        %v2143 = vrot.slane %v1013, %v2142
        %v2144 = vlaneseq
        %v2145 = vshrl.u32 %v2144, 7
        %v2146 = vsub.s32 6, %v2145
        %v2147 = vrot.slane %v1013, %v2146
        %v2148 = vlaneseq
        %v2149 = vshrl.u32 %v2148, 7
        %v2150 = vsub.s32 7, %v2149
        %v2151 = vrot.slane %v1013, %v2150
        %v2152 = vlaneseq
        %v2153 = vshrl.u32 %v2152, 7
        %v2154 = vsub.s32 0, %v2153
        %v2155 = vrot.slane %v1029, %v2154
        %v2156 = vlaneseq
        %v2157 = vshrl.u32 %v2156, 7
        %v2158 = vsub.s32 1, %v2157
        %v2159 = vrot.slane %v1029, %v2158
        %v2160 = vlaneseq
        %v2161 = vshrl.u32 %v2160, 7
        %v2162 = vsub.s32 2, %v2161
        %v2163 = vrot.slane %v1029, %v2162
        %v2164 = vlaneseq
        %v2165 = vshrl.u32 %v2164, 7
        %v2166 = vsub.s32 3, %v2165
        %v2167 = vrot.slane %v1029, %v2166
        %v2168 = vlaneseq
        %v2169 = vshrl.u32 %v2168, 7
        %v2170 = vsub.s32 4, %v2169
        %v2171 = vrot.slane %v1029, %v2170
        %v2172 = vlaneseq
        %v2173 = vshrl.u32 %v2172, 7
        %v2174 = vsub.s32 5, %v2173
        %v2175 = vrot.slane %v1029, %v2174
        %v2176 = vlaneseq
        %v2177 = vshrl.u32 %v2176, 7
        %v2178 = vsub.s32 6, %v2177
        %v2179 = vrot.slane %v1029, %v2178
        %v2180 = vlaneseq
        %v2181 = vshrl.u32 %v2180, 7
        %v2182 = vsub.s32 7, %v2181
        %v2183 = vrot.slane %v1029, %v2182
        %v2184 = vlaneseq
        %v2185 = vshrl.u32 %v2184, 7
        %v2186 = vsub.s32 0, %v2185
        %v2187 = vrot.slane %v1045, %v2186
        %v2188 = vlaneseq
        %v2189 = vshrl.u32 %v2188, 7
        %v2190 = vsub.s32 1, %v2189
        %v2191 = vrot.slane %v1045, %v2190
        %v2192 = vlaneseq
        %v2193 = vshrl.u32 %v2192, 7
        %v2194 = vsub.s32 2, %v2193
        %v2195 = vrot.slane %v1045, %v2194
        %v2196 = vlaneseq
        %v2197 = vshrl.u32 %v2196, 7
        %v2198 = vsub.s32 3, %v2197
        %v2199 = vrot.slane %v1045, %v2198
        %v2200 = vlaneseq
        %v2201 = vshrl.u32 %v2200, 7
        %v2202 = vsub.s32 4, %v2201
        %v2203 = vrot.slane %v1045, %v2202
        %v2204 = vlaneseq
        %v2205 = vshrl.u32 %v2204, 7
        %v2206 = vsub.s32 5, %v2205
        %v2207 = vrot.slane %v1045, %v2206
        %v2208 = vlaneseq
        %v2209 = vshrl.u32 %v2208, 7
        %v2210 = vsub.s32 6, %v2209
        %v2211 = vrot.slane %v1045, %v2210
        %v2212 = vlaneseq
        %v2213 = vshrl.u32 %v2212, 7
        %v2214 = vsub.s32 7, %v2213
        %v2215 = vrot.slane %v1045, %v2214
        %v2216 = vlaneseq
        %v2217 = vshrl.u32 %v2216, 7
        %v2218 = vsub.s32 0, %v2217
        %v2219 = vrot.slane %v1061, %v2218
        %v2220 = vlaneseq
        %v2221 = vshrl.u32 %v2220, 7
        %v2222 = vsub.s32 1, %v2221
        %v2223 = vrot.slane %v1061, %v2222
        %v2224 = vlaneseq
        %v2225 = vshrl.u32 %v2224, 7
        %v2226 = vsub.s32 2, %v2225
        %v2227 = vrot.slane %v1061, %v2226
        %v2228 = vlaneseq
        %v2229 = vshrl.u32 %v2228, 7
        %v2230 = vsub.s32 3, %v2229
        %v2231 = vrot.slane %v1061, %v2230
        %v2232 = vlaneseq
        %v2233 = vshrl.u32 %v2232, 7
        %v2234 = vsub.s32 4, %v2233
        %v2235 = vrot.slane %v1061, %v2234
        %v2236 = vlaneseq
        %v2237 = vshrl.u32 %v2236, 7
        %v2238 = vsub.s32 5, %v2237
        %v2239 = vrot.slane %v1061, %v2238
        %v2240 = vlaneseq
        %v2241 = vshrl.u32 %v2240, 7
        %v2242 = vsub.s32 6, %v2241
        %v2243 = vrot.slane %v1061, %v2242
        %v2244 = vlaneseq
        %v2245 = vshrl.u32 %v2244, 7
        %v2246 = vsub.s32 7, %v2245
        %v2247 = vrot.slane %v1061, %v2246
        %v2248 = vlaneseq
        %v2249 = vshrl.u32 %v2248, 7
        %v2250 = vsub.s32 0, %v2249
        %v2251 = vrot.slane %v1077, %v2250
        %v2252 = vlaneseq
        %v2253 = vshrl.u32 %v2252, 7
        %v2254 = vsub.s32 1, %v2253
        %v2255 = vrot.slane %v1077, %v2254
        %v2256 = vlaneseq
        %v2257 = vshrl.u32 %v2256, 7
        %v2258 = vsub.s32 2, %v2257
        %v2259 = vrot.slane %v1077, %v2258
        %v2260 = vlaneseq
        %v2261 = vshrl.u32 %v2260, 7
        %v2262 = vsub.s32 3, %v2261
        %v2263 = vrot.slane %v1077, %v2262
        %v2264 = vlaneseq
        %v2265 = vshrl.u32 %v2264, 7
        %v2266 = vsub.s32 4, %v2265
        %v2267 = vrot.slane %v1077, %v2266
        %v2268 = vlaneseq
        %v2269 = vshrl.u32 %v2268, 7
        %v2270 = vsub.s32 5, %v2269
        %v2271 = vrot.slane %v1077, %v2270
        %v2272 = vlaneseq
        %v2273 = vshrl.u32 %v2272, 7
        %v2274 = vsub.s32 6, %v2273
        %v2275 = vrot.slane %v1077, %v2274
        %v2276 = vlaneseq
        %v2277 = vshrl.u32 %v2276, 7
        %v2278 = vsub.s32 7, %v2277
        %v2279 = vrot.slane %v1077, %v2278
        %v2280 = vlaneseq
        %v2281 = vshrl.u32 %v2280, 7
        %v2282 = vsub.s32 0, %v2281
        %v2283 = vrot.slane %v1093, %v2282
        %v2284 = vlaneseq
        %v2285 = vshrl.u32 %v2284, 7
        %v2286 = vsub.s32 1, %v2285
        %v2287 = vrot.slane %v1093, %v2286
        %v2288 = vlaneseq
        %v2289 = vshrl.u32 %v2288, 7
        %v2290 = vsub.s32 2, %v2289
        %v2291 = vrot.slane %v1093, %v2290
        %v2292 = vlaneseq
        %v2293 = vshrl.u32 %v2292, 7
        %v2294 = vsub.s32 3, %v2293
        %v2295 = vrot.slane %v1093, %v2294
        %v2296 = vlaneseq
        %v2297 = vshrl.u32 %v2296, 7
        %v2298 = vsub.s32 4, %v2297
        %v2299 = vrot.slane %v1093, %v2298
        %v2300 = vlaneseq
        %v2301 = vshrl.u32 %v2300, 7
        %v2302 = vsub.s32 5, %v2301
        %v2303 = vrot.slane %v1093, %v2302
        %v2304 = vlaneseq
        %v2305 = vshrl.u32 %v2304, 7
        %v2306 = vsub.s32 6, %v2305
        %v2307 = vrot.slane %v1093, %v2306
        %v2308 = vlaneseq
        %v2309 = vshrl.u32 %v2308, 7
        %v2310 = vsub.s32 7, %v2309
        %v2311 = vrot.slane %v1093, %v2310
        %v2312 = vlaneseq
        %v2313 = vshrl.u32 %v2312, 7
        %v2314 = vsub.s32 0, %v2313
        %v2315 = vrot.slane %v1109, %v2314
        %v2316 = vlaneseq
        %v2317 = vshrl.u32 %v2316, 7
        %v2318 = vsub.s32 1, %v2317
        %v2319 = vrot.slane %v1109, %v2318
        %v2320 = vlaneseq
        %v2321 = vshrl.u32 %v2320, 7
        %v2322 = vsub.s32 2, %v2321
        %v2323 = vrot.slane %v1109, %v2322
        %v2324 = vlaneseq
        %v2325 = vshrl.u32 %v2324, 7
        %v2326 = vsub.s32 3, %v2325
        %v2327 = vrot.slane %v1109, %v2326
        %v2328 = vlaneseq
        %v2329 = vshrl.u32 %v2328, 7
        %v2330 = vsub.s32 4, %v2329
        %v2331 = vrot.slane %v1109, %v2330
        %v2332 = vlaneseq
        %v2333 = vshrl.u32 %v2332, 7
        %v2334 = vsub.s32 5, %v2333
        %v2335 = vrot.slane %v1109, %v2334
        %v2336 = vlaneseq
        %v2337 = vshrl.u32 %v2336, 7
        %v2338 = vsub.s32 6, %v2337
        %v2339 = vrot.slane %v1109, %v2338
        %v2340 = vlaneseq
        %v2341 = vshrl.u32 %v2340, 7
        %v2342 = vsub.s32 7, %v2341
        %v2343 = vrot.slane %v1109, %v2342
        %v2344 = vlaneseq
        %v2345 = vshrl.u32 %v2344, 7
        %v2346 = vsub.s32 0, %v2345
        %v2347 = vrot.slane %v1125, %v2346
        %v2348 = vlaneseq
        %v2349 = vshrl.u32 %v2348, 7
        %v2350 = vsub.s32 1, %v2349
        %v2351 = vrot.slane %v1125, %v2350
        %v2352 = vlaneseq
        %v2353 = vshrl.u32 %v2352, 7
        %v2354 = vsub.s32 2, %v2353
        %v2355 = vrot.slane %v1125, %v2354
        %v2356 = vlaneseq
        %v2357 = vshrl.u32 %v2356, 7
        %v2358 = vsub.s32 3, %v2357
        %v2359 = vrot.slane %v1125, %v2358
        %v2360 = vlaneseq
        %v2361 = vshrl.u32 %v2360, 7
        %v2362 = vsub.s32 4, %v2361
        %v2363 = vrot.slane %v1125, %v2362
        %v2364 = vlaneseq
        %v2365 = vshrl.u32 %v2364, 7
        %v2366 = vsub.s32 5, %v2365
        %v2367 = vrot.slane %v1125, %v2366
        %v2368 = vlaneseq
        %v2369 = vshrl.u32 %v2368, 7
        %v2370 = vsub.s32 6, %v2369
        %v2371 = vrot.slane %v1125, %v2370
        %v2372 = vlaneseq
        %v2373 = vshrl.u32 %v2372, 7
        %v2374 = vsub.s32 7, %v2373
        %v2375 = vrot.slane %v1125, %v2374
        %v2376 = vlaneseq
        %v2377 = vshrl.u32 %v2376, 7
        %v2378 = vsub.s32 0, %v2377
        %v2379 = vrot.slane %v1141, %v2378
        %v2380 = vlaneseq
        %v2381 = vshrl.u32 %v2380, 7
        %v2382 = vsub.s32 1, %v2381
        %v2383 = vrot.slane %v1141, %v2382
        %v2384 = vlaneseq
        %v2385 = vshrl.u32 %v2384, 7
        %v2386 = vsub.s32 2, %v2385
        %v2387 = vrot.slane %v1141, %v2386
        %v2388 = vlaneseq
        %v2389 = vshrl.u32 %v2388, 7
        %v2390 = vsub.s32 3, %v2389
        %v2391 = vrot.slane %v1141, %v2390
        %v2392 = vlaneseq
        %v2393 = vshrl.u32 %v2392, 7
        %v2394 = vsub.s32 4, %v2393
        %v2395 = vrot.slane %v1141, %v2394
        %v2396 = vlaneseq
        %v2397 = vshrl.u32 %v2396, 7
        %v2398 = vsub.s32 5, %v2397
        %v2399 = vrot.slane %v1141, %v2398
        %v2400 = vlaneseq
        %v2401 = vshrl.u32 %v2400, 7
        %v2402 = vsub.s32 6, %v2401
        %v2403 = vrot.slane %v1141, %v2402
        %v2404 = vlaneseq
        %v2405 = vshrl.u32 %v2404, 7
        %v2406 = vsub.s32 7, %v2405
        %v2407 = vrot.slane %v1141, %v2406
        %v2408 = vlaneseq
        %v2409 = vshrl.u32 %v2408, 7
        %v2410 = vsub.s32 0, %v2409
        %v2411 = vrot.slane %v1157, %v2410
        %v2412 = vlaneseq
        %v2413 = vshrl.u32 %v2412, 7
        %v2414 = vsub.s32 1, %v2413
        %v2415 = vrot.slane %v1157, %v2414
        %v2416 = vlaneseq
        %v2417 = vshrl.u32 %v2416, 7
        %v2418 = vsub.s32 2, %v2417
        %v2419 = vrot.slane %v1157, %v2418
        %v2420 = vlaneseq
        %v2421 = vshrl.u32 %v2420, 7
        %v2422 = vsub.s32 3, %v2421
        %v2423 = vrot.slane %v1157, %v2422
        %v2424 = vlaneseq
        %v2425 = vshrl.u32 %v2424, 7
        %v2426 = vsub.s32 4, %v2425
        %v2427 = vrot.slane %v1157, %v2426
        %v2428 = vlaneseq
        %v2429 = vshrl.u32 %v2428, 7
        %v2430 = vsub.s32 5, %v2429
        %v2431 = vrot.slane %v1157, %v2430
        %v2432 = vlaneseq
        %v2433 = vshrl.u32 %v2432, 7
        %v2434 = vsub.s32 6, %v2433
        %v2435 = vrot.slane %v1157, %v2434
        %v2436 = vlaneseq
        %v2437 = vshrl.u32 %v2436, 7
        %v2438 = vsub.s32 7, %v2437
        %v2439 = vrot.slane %v1157, %v2438
        %v2440 = vlaneseq
        %v2441 = vshrl.u32 %v2440, 7
        %v2442 = vsub.s32 0, %v2441
        %v2443 = vrot.slane %v1173, %v2442
        %v2444 = vlaneseq
        %v2445 = vshrl.u32 %v2444, 7
        %v2446 = vsub.s32 1, %v2445
        %v2447 = vrot.slane %v1173, %v2446
        %v2448 = vlaneseq
        %v2449 = vshrl.u32 %v2448, 7
        %v2450 = vsub.s32 2, %v2449
        %v2451 = vrot.slane %v1173, %v2450
        %v2452 = vlaneseq
        %v2453 = vshrl.u32 %v2452, 7
        %v2454 = vsub.s32 3, %v2453
        %v2455 = vrot.slane %v1173, %v2454
        %v2456 = vlaneseq
        %v2457 = vshrl.u32 %v2456, 7
        %v2458 = vsub.s32 4, %v2457
        %v2459 = vrot.slane %v1173, %v2458
        %v2460 = vlaneseq
        %v2461 = vshrl.u32 %v2460, 7
        %v2462 = vsub.s32 5, %v2461
        %v2463 = vrot.slane %v1173, %v2462
        %v2464 = vlaneseq
        %v2465 = vshrl.u32 %v2464, 7
        %v2466 = vsub.s32 6, %v2465
        %v2467 = vrot.slane %v1173, %v2466
        %v2468 = vlaneseq
        %v2469 = vshrl.u32 %v2468, 7
        %v2470 = vsub.s32 7, %v2469
        %v2471 = vrot.slane %v1173, %v2470
        %v2472 = vlaneseq
        %v2473 = vshrl.u32 %v2472, 7
        %v2474 = vsub.s32 0, %v2473
        %v2475 = vrot.slane %v1189, %v2474
        %v2476 = vlaneseq
        %v2477 = vshrl.u32 %v2476, 7
        %v2478 = vsub.s32 1, %v2477
        %v2479 = vrot.slane %v1189, %v2478
        %v2480 = vlaneseq
        %v2481 = vshrl.u32 %v2480, 7
        %v2482 = vsub.s32 2, %v2481
        %v2483 = vrot.slane %v1189, %v2482
        %v2484 = vlaneseq
        %v2485 = vshrl.u32 %v2484, 7
        %v2486 = vsub.s32 3, %v2485
        %v2487 = vrot.slane %v1189, %v2486
        %v2488 = vlaneseq
        %v2489 = vshrl.u32 %v2488, 7
        %v2490 = vsub.s32 4, %v2489
        %v2491 = vrot.slane %v1189, %v2490
        %v2492 = vlaneseq
        %v2493 = vshrl.u32 %v2492, 7
        %v2494 = vsub.s32 5, %v2493
        %v2495 = vrot.slane %v1189, %v2494
        %v2496 = vlaneseq
        %v2497 = vshrl.u32 %v2496, 7
        %v2498 = vsub.s32 6, %v2497
        %v2499 = vrot.slane %v1189, %v2498
        %v2500 = vlaneseq
        %v2501 = vshrl.u32 %v2500, 7
        %v2502 = vsub.s32 7, %v2501
        %v2503 = vrot.slane %v1189, %v2502
        %v2504 = vlaneseq
        %v2505 = vshrl.u32 %v2504, 7
        %v2506 = vsub.s32 0, %v2505
        %v2507 = vrot.slane %v1205, %v2506
        %v2508 = vlaneseq
        %v2509 = vshrl.u32 %v2508, 7
        %v2510 = vsub.s32 1, %v2509
        %v2511 = vrot.slane %v1205, %v2510
        %v2512 = vlaneseq
        %v2513 = vshrl.u32 %v2512, 7
        %v2514 = vsub.s32 2, %v2513
        %v2515 = vrot.slane %v1205, %v2514
        %v2516 = vlaneseq
        %v2517 = vshrl.u32 %v2516, 7
        %v2518 = vsub.s32 3, %v2517
        %v2519 = vrot.slane %v1205, %v2518
        %v2520 = vlaneseq
        %v2521 = vshrl.u32 %v2520, 7
        %v2522 = vsub.s32 4, %v2521
        %v2523 = vrot.slane %v1205, %v2522
        %v2524 = vlaneseq
        %v2525 = vshrl.u32 %v2524, 7
        %v2526 = vsub.s32 5, %v2525
        %v2527 = vrot.slane %v1205, %v2526
        %v2528 = vlaneseq
        %v2529 = vshrl.u32 %v2528, 7
        %v2530 = vsub.s32 6, %v2529
        %v2531 = vrot.slane %v1205, %v2530
        %v2532 = vlaneseq
        %v2533 = vshrl.u32 %v2532, 7
        %v2534 = vsub.s32 7, %v2533
        %v2535 = vrot.slane %v1205, %v2534
        %v2536 = vlaneseq
        %v2537 = vshrl.u32 %v2536, 7
        %v2538 = vsub.s32 0, %v2537
        %v2539 = vrot.slane %v1221, %v2538
        %v2540 = vlaneseq
        %v2541 = vshrl.u32 %v2540, 7
        %v2542 = vsub.s32 1, %v2541
        %v2543 = vrot.slane %v1221, %v2542
        %v2544 = vlaneseq
        %v2545 = vshrl.u32 %v2544, 7
        %v2546 = vsub.s32 2, %v2545
        %v2547 = vrot.slane %v1221, %v2546
        %v2548 = vlaneseq
        %v2549 = vshrl.u32 %v2548, 7
        %v2550 = vsub.s32 3, %v2549
        %v2551 = vrot.slane %v1221, %v2550
        %v2552 = vlaneseq
        %v2553 = vshrl.u32 %v2552, 7
        %v2554 = vsub.s32 4, %v2553
        %v2555 = vrot.slane %v1221, %v2554
        %v2556 = vlaneseq
        %v2557 = vshrl.u32 %v2556, 7
        %v2558 = vsub.s32 5, %v2557
        %v2559 = vrot.slane %v1221, %v2558
        %v2560 = vlaneseq
        %v2561 = vshrl.u32 %v2560, 7
        %v2562 = vsub.s32 6, %v2561
        %v2563 = vrot.slane %v1221, %v2562
        %v2564 = vlaneseq
        %v2565 = vshrl.u32 %v2564, 7
        %v2566 = vsub.s32 7, %v2565
        %v2567 = vrot.slane %v1221, %v2566
        %v2568 = vlaneseq
        %v2569 = vshrl.u32 %v2568, 7
        %v2570 = vsub.s32 0, %v2569
        %v2571 = vrot.slane %v1237, %v2570
        %v2572 = vlaneseq
        %v2573 = vshrl.u32 %v2572, 7
        %v2574 = vsub.s32 1, %v2573
        %v2575 = vrot.slane %v1237, %v2574
        %v2576 = vlaneseq
        %v2577 = vshrl.u32 %v2576, 7
        %v2578 = vsub.s32 2, %v2577
        %v2579 = vrot.slane %v1237, %v2578
        %v2580 = vlaneseq
        %v2581 = vshrl.u32 %v2580, 7
        %v2582 = vsub.s32 3, %v2581
        %v2583 = vrot.slane %v1237, %v2582
        %v2584 = vlaneseq
        %v2585 = vshrl.u32 %v2584, 7
        %v2586 = vsub.s32 4, %v2585
        %v2587 = vrot.slane %v1237, %v2586
        %v2588 = vlaneseq
        %v2589 = vshrl.u32 %v2588, 7
        %v2590 = vsub.s32 5, %v2589
        %v2591 = vrot.slane %v1237, %v2590
        %v2592 = vlaneseq
        %v2593 = vshrl.u32 %v2592, 7
        %v2594 = vsub.s32 6, %v2593
        %v2595 = vrot.slane %v1237, %v2594
        %v2596 = vlaneseq
        %v2597 = vshrl.u32 %v2596, 7
        %v2598 = vsub.s32 7, %v2597
        %v2599 = vrot.slane %v1237, %v2598
        %v2600 = vlaneseq
        %v2601 = vshrl.u32 %v2600, 7
        %v2602 = vsub.s32 0, %v2601
        %v2603 = vrot.slane %v1253, %v2602
        %v2604 = vlaneseq
        %v2605 = vshrl.u32 %v2604, 7
        %v2606 = vsub.s32 1, %v2605
        %v2607 = vrot.slane %v1253, %v2606
        %v2608 = vlaneseq
        %v2609 = vshrl.u32 %v2608, 7
        %v2610 = vsub.s32 2, %v2609
        %v2611 = vrot.slane %v1253, %v2610
        %v2612 = vlaneseq
        %v2613 = vshrl.u32 %v2612, 7
        %v2614 = vsub.s32 3, %v2613
        %v2615 = vrot.slane %v1253, %v2614
        %v2616 = vlaneseq
        %v2617 = vshrl.u32 %v2616, 7
        %v2618 = vsub.s32 4, %v2617
        %v2619 = vrot.slane %v1253, %v2618
        %v2620 = vlaneseq
        %v2621 = vshrl.u32 %v2620, 7
        %v2622 = vsub.s32 5, %v2621
        %v2623 = vrot.slane %v1253, %v2622
        %v2624 = vlaneseq
        %v2625 = vshrl.u32 %v2624, 7
        %v2626 = vsub.s32 6, %v2625
        %v2627 = vrot.slane %v1253, %v2626
        %v2628 = vlaneseq
        %v2629 = vshrl.u32 %v2628, 7
        %v2630 = vsub.s32 7, %v2629
        %v2631 = vrot.slane %v1253, %v2630
        %v2632 = vlaneseq
        %v2633 = vshrl.u32 %v2632, 7
        %v2634 = vsub.s32 0, %v2633
        %v2635 = vrot.slane %v1269, %v2634
        %v2636 = vlaneseq
        %v2637 = vshrl.u32 %v2636, 7
        %v2638 = vsub.s32 1, %v2637
        %v2639 = vrot.slane %v1269, %v2638
        %v2640 = vlaneseq
        %v2641 = vshrl.u32 %v2640, 7
        %v2642 = vsub.s32 2, %v2641
        %v2643 = vrot.slane %v1269, %v2642
        %v2644 = vlaneseq
        %v2645 = vshrl.u32 %v2644, 7
        %v2646 = vsub.s32 3, %v2645
        %v2647 = vrot.slane %v1269, %v2646
        %v2648 = vlaneseq
        %v2649 = vshrl.u32 %v2648, 7
        %v2650 = vsub.s32 4, %v2649
        %v2651 = vrot.slane %v1269, %v2650
        %v2652 = vlaneseq
        %v2653 = vshrl.u32 %v2652, 7
        %v2654 = vsub.s32 5, %v2653
        %v2655 = vrot.slane %v1269, %v2654
        %v2656 = vlaneseq
        %v2657 = vshrl.u32 %v2656, 7
        %v2658 = vsub.s32 6, %v2657
        %v2659 = vrot.slane %v1269, %v2658
        %v2660 = vlaneseq
        %v2661 = vshrl.u32 %v2660, 7
        %v2662 = vsub.s32 7, %v2661
        %v2663 = vrot.slane %v1269, %v2662
        %v2664 = vlaneseq
        %v2665 = vshrl.u32 %v2664, 7
        %v2666 = vsub.s32 0, %v2665
        %v2667 = vrot.slane %v1285, %v2666
        %v2668 = vlaneseq
        %v2669 = vshrl.u32 %v2668, 7
        %v2670 = vsub.s32 1, %v2669
        %v2671 = vrot.slane %v1285, %v2670
        %v2672 = vlaneseq
        %v2673 = vshrl.u32 %v2672, 7
        %v2674 = vsub.s32 2, %v2673
        %v2675 = vrot.slane %v1285, %v2674
        %v2676 = vlaneseq
        %v2677 = vshrl.u32 %v2676, 7
        %v2678 = vsub.s32 3, %v2677
        %v2679 = vrot.slane %v1285, %v2678
        %v2680 = vlaneseq
        %v2681 = vshrl.u32 %v2680, 7
        %v2682 = vsub.s32 4, %v2681
        %v2683 = vrot.slane %v1285, %v2682
        %v2684 = vlaneseq
        %v2685 = vshrl.u32 %v2684, 7
        %v2686 = vsub.s32 5, %v2685
        %v2687 = vrot.slane %v1285, %v2686
        %v2688 = vlaneseq
        %v2689 = vshrl.u32 %v2688, 7
        %v2690 = vsub.s32 6, %v2689
        %v2691 = vrot.slane %v1285, %v2690
        %v2692 = vlaneseq
        %v2693 = vshrl.u32 %v2692, 7
        %v2694 = vsub.s32 7, %v2693
        %v2695 = vrot.slane %v1285, %v2694
        %v2696 = vlaneseq
        %v2697 = vshrl.u32 %v2696, 7
        %v2698 = vsub.s32 0, %v2697
        %v2699 = vrot.slane %v1301, %v2698
        %v2700 = vlaneseq
        %v2701 = vshrl.u32 %v2700, 7
        %v2702 = vsub.s32 1, %v2701
        %v2703 = vrot.slane %v1301, %v2702
        %v2704 = vlaneseq
        %v2705 = vshrl.u32 %v2704, 7
        %v2706 = vsub.s32 2, %v2705
        %v2707 = vrot.slane %v1301, %v2706
        %v2708 = vlaneseq
        %v2709 = vshrl.u32 %v2708, 7
        %v2710 = vsub.s32 3, %v2709
        %v2711 = vrot.slane %v1301, %v2710
        %v2712 = vlaneseq
        %v2713 = vshrl.u32 %v2712, 7
        %v2714 = vsub.s32 4, %v2713
        %v2715 = vrot.slane %v1301, %v2714
        %v2716 = vlaneseq
        %v2717 = vshrl.u32 %v2716, 7
        %v2718 = vsub.s32 5, %v2717
        %v2719 = vrot.slane %v1301, %v2718
        %v2720 = vlaneseq
        %v2721 = vshrl.u32 %v2720, 7
        %v2722 = vsub.s32 6, %v2721
        %v2723 = vrot.slane %v1301, %v2722
        %v2724 = vlaneseq
        %v2725 = vshrl.u32 %v2724, 7
        %v2726 = vsub.s32 7, %v2725
        %v2727 = vrot.slane %v1301, %v2726
        %v2728 = vlaneseq
        %v2729 = vshrl.u32 %v2728, 7
        %v2730 = vsub.s32 0, %v2729
        %v2731 = vrot.slane %v1317, %v2730
        %v2732 = vlaneseq
        %v2733 = vshrl.u32 %v2732, 7
        %v2734 = vsub.s32 1, %v2733
        %v2735 = vrot.slane %v1317, %v2734
        %v2736 = vlaneseq
        %v2737 = vshrl.u32 %v2736, 7
        %v2738 = vsub.s32 2, %v2737
        %v2739 = vrot.slane %v1317, %v2738
        %v2740 = vlaneseq
        %v2741 = vshrl.u32 %v2740, 7
        %v2742 = vsub.s32 3, %v2741
        %v2743 = vrot.slane %v1317, %v2742
        %v2744 = vlaneseq
        %v2745 = vshrl.u32 %v2744, 7
        %v2746 = vsub.s32 4, %v2745
        %v2747 = vrot.slane %v1317, %v2746
        %v2748 = vlaneseq
        %v2749 = vshrl.u32 %v2748, 7
        %v2750 = vsub.s32 5, %v2749
        %v2751 = vrot.slane %v1317, %v2750
        %v2752 = vlaneseq
        %v2753 = vshrl.u32 %v2752, 7
        %v2754 = vsub.s32 6, %v2753
        %v2755 = vrot.slane %v1317, %v2754
        %v2756 = vlaneseq
        %v2757 = vshrl.u32 %v2756, 7
        %v2758 = vsub.s32 7, %v2757
        %v2759 = vrot.slane %v1317, %v2758
        %v2760 = vlaneseq
        %v2761 = vshrl.u32 %v2760, 7
        %v2762 = vsub.s32 0, %v2761
        %v2763 = vrot.slane %v1333, %v2762
        %v2764 = vlaneseq
        %v2765 = vshrl.u32 %v2764, 7
        %v2766 = vsub.s32 1, %v2765
        %v2767 = vrot.slane %v1333, %v2766
        %v2768 = vlaneseq
        %v2769 = vshrl.u32 %v2768, 7
        %v2770 = vsub.s32 2, %v2769
        %v2771 = vrot.slane %v1333, %v2770
        %v2772 = vlaneseq
        %v2773 = vshrl.u32 %v2772, 7
        %v2774 = vsub.s32 3, %v2773
        %v2775 = vrot.slane %v1333, %v2774
        %v2776 = vlaneseq
        %v2777 = vshrl.u32 %v2776, 7
        %v2778 = vsub.s32 4, %v2777
        %v2779 = vrot.slane %v1333, %v2778
        %v2780 = vlaneseq
        %v2781 = vshrl.u32 %v2780, 7
        %v2782 = vsub.s32 5, %v2781
        %v2783 = vrot.slane %v1333, %v2782
        %v2784 = vlaneseq
        %v2785 = vshrl.u32 %v2784, 7
        %v2786 = vsub.s32 6, %v2785
        %v2787 = vrot.slane %v1333, %v2786
        %v2788 = vlaneseq
        %v2789 = vshrl.u32 %v2788, 7
        %v2790 = vsub.s32 7, %v2789
        %v2791 = vrot.slane %v1333, %v2790
        %v2792 = vlaneseq
        %v2793 = vshrl.u32 %v2792, 7
        %v2794 = vsub.s32 0, %v2793
        %v2795 = vrot.slane %v1349, %v2794
        %v2796 = vlaneseq
        %v2797 = vshrl.u32 %v2796, 7
        %v2798 = vsub.s32 1, %v2797
        %v2799 = vrot.slane %v1349, %v2798
        %v2800 = vlaneseq
        %v2801 = vshrl.u32 %v2800, 7
        %v2802 = vsub.s32 2, %v2801
        %v2803 = vrot.slane %v1349, %v2802
        %v2804 = vlaneseq
        %v2805 = vshrl.u32 %v2804, 7
        %v2806 = vsub.s32 3, %v2805
        %v2807 = vrot.slane %v1349, %v2806
        %v2808 = vlaneseq
        %v2809 = vshrl.u32 %v2808, 7
        %v2810 = vsub.s32 4, %v2809
        %v2811 = vrot.slane %v1349, %v2810
        %v2812 = vlaneseq
        %v2813 = vshrl.u32 %v2812, 7
        %v2814 = vsub.s32 5, %v2813
        %v2815 = vrot.slane %v1349, %v2814
        %v2816 = vlaneseq
        %v2817 = vshrl.u32 %v2816, 7
        %v2818 = vsub.s32 6, %v2817
        %v2819 = vrot.slane %v1349, %v2818
        %v2820 = vlaneseq
        %v2821 = vshrl.u32 %v2820, 7
        %v2822 = vsub.s32 7, %v2821
        %v2823 = vrot.slane %v1349, %v2822
        %v2824 = vlaneseq
        %v2825 = vshrl.u32 %v2824, 7
        %v2826 = vsub.s32 0, %v2825
        %v2827 = vrot.slane %v1365, %v2826
        %v2828 = vlaneseq
        %v2829 = vshrl.u32 %v2828, 7
        %v2830 = vsub.s32 1, %v2829
        %v2831 = vrot.slane %v1365, %v2830
        %v2832 = vlaneseq
        %v2833 = vshrl.u32 %v2832, 7
        %v2834 = vsub.s32 2, %v2833
        %v2835 = vrot.slane %v1365, %v2834
        %v2836 = vlaneseq
        %v2837 = vshrl.u32 %v2836, 7
        %v2838 = vsub.s32 3, %v2837
        %v2839 = vrot.slane %v1365, %v2838
        %v2840 = vlaneseq
        %v2841 = vshrl.u32 %v2840, 7
        %v2842 = vsub.s32 4, %v2841
        %v2843 = vrot.slane %v1365, %v2842
        %v2844 = vlaneseq
        %v2845 = vshrl.u32 %v2844, 7
        %v2846 = vsub.s32 5, %v2845
        %v2847 = vrot.slane %v1365, %v2846
        %v2848 = vlaneseq
        %v2849 = vshrl.u32 %v2848, 7
        %v2850 = vsub.s32 6, %v2849
        %v2851 = vrot.slane %v1365, %v2850
        %v2852 = vlaneseq
        %v2853 = vshrl.u32 %v2852, 7
        %v2854 = vsub.s32 7, %v2853
        %v2855 = vrot.slane %v1365, %v2854
        %v2856 = vlaneseq
        %v2857 = vshrl.u32 %v2856, 7
        %v2858 = vsub.s32 0, %v2857
        %v2859 = vrot.slane %v1381, %v2858
        %v2860 = vlaneseq
        %v2861 = vshrl.u32 %v2860, 7
        %v2862 = vsub.s32 1, %v2861
        %v2863 = vrot.slane %v1381, %v2862
        %v2864 = vlaneseq
        %v2865 = vshrl.u32 %v2864, 7
        %v2866 = vsub.s32 2, %v2865
        %v2867 = vrot.slane %v1381, %v2866
        %v2868 = vlaneseq
        %v2869 = vshrl.u32 %v2868, 7
        %v2870 = vsub.s32 3, %v2869
        %v2871 = vrot.slane %v1381, %v2870
        %v2872 = vlaneseq
        %v2873 = vshrl.u32 %v2872, 7
        %v2874 = vsub.s32 4, %v2873
        %v2875 = vrot.slane %v1381, %v2874
        %v2876 = vlaneseq
        %v2877 = vshrl.u32 %v2876, 7
        %v2878 = vsub.s32 5, %v2877
        %v2879 = vrot.slane %v1381, %v2878
        %v2880 = vlaneseq
        %v2881 = vshrl.u32 %v2880, 7
        %v2882 = vsub.s32 6, %v2881
        %v2883 = vrot.slane %v1381, %v2882
        %v2884 = vlaneseq
        %v2885 = vshrl.u32 %v2884, 7
        %v2886 = vsub.s32 7, %v2885
        %v2887 = vrot.slane %v1381, %v2886
        %v2888 = vcombine.low %v1867, %v1871
        %v2889 = vcombine.low %v1875, %v1879
        %v2890 = vcombine.low %v1883, %v1887
        %v2891 = vcombine.low %v1891, %v1895
        %v2893 = vunpack.c.l.s4 1966171168
        %v2894 = vunpack.c.0.s8 %v2893
        %v2895 = vlaneseq
        %v2896 = vshrl.u32 %v2895, 7
        %v2897 = vsub.s32 %v2894, %v2896
        %v2898 = vrot.slane %v2888, %v2897
        %v2900 = vunpack.c.l.s4 1966171168
        %v2901 = vunpack.c.0.s8 %v2900
        %v2902 = vlaneseq
        %v2903 = vshrl.u32 %v2902, 7
        %v2904 = vsub.s32 %v2901, %v2903
        %v2905 = vrot.slane %v2889, %v2904
        %v2907 = vunpack.c.l.s4 1966171168
        %v2908 = vunpack.c.0.s8 %v2907
        %v2909 = vlaneseq
        %v2910 = vshrl.u32 %v2909, 7
        %v2911 = vsub.s32 %v2908, %v2910
        %v2912 = vrot.slane %v2890, %v2911
        %v2914 = vunpack.c.l.s4 1966171168
        %v2915 = vunpack.c.0.s8 %v2914
        %v2916 = vlaneseq
        %v2917 = vshrl.u32 %v2916, 7
        %v2918 = vsub.s32 %v2915, %v2917
        %v2919 = vrot.slane %v2891, %v2918
        %v2920 = vcombine.low %v2898, %v2905
        %v2921 = vcombine.low %v2912, %v2919
        %v2923 = vunpack.c.l.s4 1966171168
        %v2924 = vunpack.c.0.s8 %v2923
        %v2925 = vlaneseq
        %v2926 = vshrl.u32 %v2925, 7
        %v2927 = vsub.s32 %v2924, %v2926
        %v2928 = vrot.slane %v2920, %v2927
        %v2930 = vunpack.c.l.s4 1966171168
        %v2931 = vunpack.c.0.s8 %v2930
        %v2932 = vlaneseq
        %v2933 = vshrl.u32 %v2932, 7
        %v2934 = vsub.s32 %v2931, %v2933
        %v2935 = vrot.slane %v2921, %v2934
        %v2936 = vcombine.low %v2928, %v2935
        %v2937 = vcombine.low %v1899, %v1903
        %v2938 = vcombine.low %v1907, %v1911
        %v2939 = vcombine.low %v1915, %v1919
        %v2940 = vcombine.low %v1923, %v1927
        %v2942 = vunpack.c.l.s4 1966171168
        %v2943 = vunpack.c.0.s8 %v2942
        %v2944 = vlaneseq
        %v2945 = vshrl.u32 %v2944, 7
        %v2946 = vsub.s32 %v2943, %v2945
        %v2947 = vrot.slane %v2937, %v2946
        %v2949 = vunpack.c.l.s4 1966171168
        %v2950 = vunpack.c.0.s8 %v2949
        %v2951 = vlaneseq
        %v2952 = vshrl.u32 %v2951, 7
        %v2953 = vsub.s32 %v2950, %v2952
        %v2954 = vrot.slane %v2938, %v2953
        %v2956 = vunpack.c.l.s4 1966171168
        %v2957 = vunpack.c.0.s8 %v2956
        %v2958 = vlaneseq
        %v2959 = vshrl.u32 %v2958, 7
        %v2960 = vsub.s32 %v2957, %v2959
        %v2961 = vrot.slane %v2939, %v2960
        %v2963 = vunpack.c.l.s4 1966171168
        %v2964 = vunpack.c.0.s8 %v2963
        %v2965 = vlaneseq
        %v2966 = vshrl.u32 %v2965, 7
        %v2967 = vsub.s32 %v2964, %v2966
        %v2968 = vrot.slane %v2940, %v2967
        %v2969 = vcombine.low %v2947, %v2954
        %v2970 = vcombine.low %v2961, %v2968
        %v2972 = vunpack.c.l.s4 1966171168
        %v2973 = vunpack.c.0.s8 %v2972
        %v2974 = vlaneseq
        %v2975 = vshrl.u32 %v2974, 7
        %v2976 = vsub.s32 %v2973, %v2975
        %v2977 = vrot.slane %v2969, %v2976
        %v2979 = vunpack.c.l.s4 1966171168
        %v2980 = vunpack.c.0.s8 %v2979
        %v2981 = vlaneseq
        %v2982 = vshrl.u32 %v2981, 7
        %v2983 = vsub.s32 %v2980, %v2982
        %v2984 = vrot.slane %v2970, %v2983
        %v2985 = vcombine.low %v2977, %v2984
        %v2986 = vcombine.low %v1931, %v1935
        %v2987 = vcombine.low %v1939, %v1943
        %v2988 = vcombine.low %v1947, %v1951
        %v2989 = vcombine.low %v1955, %v1959
        %v2991 = vunpack.c.l.s4 1966171168
        %v2992 = vunpack.c.0.s8 %v2991
        %v2993 = vlaneseq
        %v2994 = vshrl.u32 %v2993, 7
        %v2995 = vsub.s32 %v2992, %v2994
        %v2996 = vrot.slane %v2986, %v2995
        %v2998 = vunpack.c.l.s4 1966171168
        %v2999 = vunpack.c.0.s8 %v2998
        %v3000 = vlaneseq
        %v3001 = vshrl.u32 %v3000, 7
        %v3002 = vsub.s32 %v2999, %v3001
        %v3003 = vrot.slane %v2987, %v3002
        %v3005 = vunpack.c.l.s4 1966171168
        %v3006 = vunpack.c.0.s8 %v3005
        %v3007 = vlaneseq
        %v3008 = vshrl.u32 %v3007, 7
        %v3009 = vsub.s32 %v3006, %v3008
        %v3010 = vrot.slane %v2988, %v3009
        %v3012 = vunpack.c.l.s4 1966171168
        %v3013 = vunpack.c.0.s8 %v3012
        %v3014 = vlaneseq
        %v3015 = vshrl.u32 %v3014, 7
        %v3016 = vsub.s32 %v3013, %v3015
        %v3017 = vrot.slane %v2989, %v3016
        %v3018 = vcombine.low %v2996, %v3003
        %v3019 = vcombine.low %v3010, %v3017
        %v3021 = vunpack.c.l.s4 1966171168
        %v3022 = vunpack.c.0.s8 %v3021
        %v3023 = vlaneseq
        %v3024 = vshrl.u32 %v3023, 7
        %v3025 = vsub.s32 %v3022, %v3024
        %v3026 = vrot.slane %v3018, %v3025
        %v3028 = vunpack.c.l.s4 1966171168
        %v3029 = vunpack.c.0.s8 %v3028
        %v3030 = vlaneseq
        %v3031 = vshrl.u32 %v3030, 7
        %v3032 = vsub.s32 %v3029, %v3031
        %v3033 = vrot.slane %v3019, %v3032
        %v3034 = vcombine.low %v3026, %v3033
        %v3035 = vcombine.low %v1963, %v1967
        %v3036 = vcombine.low %v1971, %v1975
        %v3037 = vcombine.low %v1979, %v1983
        %v3038 = vcombine.low %v1987, %v1991
        %v3040 = vunpack.c.l.s4 1966171168
        %v3041 = vunpack.c.0.s8 %v3040
        %v3042 = vlaneseq
        %v3043 = vshrl.u32 %v3042, 7
        %v3044 = vsub.s32 %v3041, %v3043
        %v3045 = vrot.slane %v3035, %v3044
        %v3047 = vunpack.c.l.s4 1966171168
        %v3048 = vunpack.c.0.s8 %v3047
        %v3049 = vlaneseq
        %v3050 = vshrl.u32 %v3049, 7
        %v3051 = vsub.s32 %v3048, %v3050
        %v3052 = vrot.slane %v3036, %v3051
        %v3054 = vunpack.c.l.s4 1966171168
        %v3055 = vunpack.c.0.s8 %v3054
        %v3056 = vlaneseq
        %v3057 = vshrl.u32 %v3056, 7
        %v3058 = vsub.s32 %v3055, %v3057
        %v3059 = vrot.slane %v3037, %v3058
        %v3061 = vunpack.c.l.s4 1966171168
        %v3062 = vunpack.c.0.s8 %v3061
        %v3063 = vlaneseq
        %v3064 = vshrl.u32 %v3063, 7
        %v3065 = vsub.s32 %v3062, %v3064
        %v3066 = vrot.slane %v3038, %v3065
        %v3067 = vcombine.low %v3045, %v3052
        %v3068 = vcombine.low %v3059, %v3066
        %v3070 = vunpack.c.l.s4 1966171168
        %v3071 = vunpack.c.0.s8 %v3070
        %v3072 = vlaneseq
        %v3073 = vshrl.u32 %v3072, 7
        %v3074 = vsub.s32 %v3071, %v3073
        %v3075 = vrot.slane %v3067, %v3074
        %v3077 = vunpack.c.l.s4 1966171168
        %v3078 = vunpack.c.0.s8 %v3077
        %v3079 = vlaneseq
        %v3080 = vshrl.u32 %v3079, 7
        %v3081 = vsub.s32 %v3078, %v3080
        %v3082 = vrot.slane %v3068, %v3081
        %v3083 = vcombine.low %v3075, %v3082
        %v3084 = vcombine.low %v1995, %v1999
        %v3085 = vcombine.low %v2003, %v2007
        %v3086 = vcombine.low %v2011, %v2015
        %v3087 = vcombine.low %v2019, %v2023
        %v3089 = vunpack.c.l.s4 1966171168
        %v3090 = vunpack.c.0.s8 %v3089
        %v3091 = vlaneseq
        %v3092 = vshrl.u32 %v3091, 7
        %v3093 = vsub.s32 %v3090, %v3092
        %v3094 = vrot.slane %v3084, %v3093
        %v3096 = vunpack.c.l.s4 1966171168
        %v3097 = vunpack.c.0.s8 %v3096
        %v3098 = vlaneseq
        %v3099 = vshrl.u32 %v3098, 7
        %v3100 = vsub.s32 %v3097, %v3099
        %v3101 = vrot.slane %v3085, %v3100
        %v3103 = vunpack.c.l.s4 1966171168
        %v3104 = vunpack.c.0.s8 %v3103
        %v3105 = vlaneseq
        %v3106 = vshrl.u32 %v3105, 7
        %v3107 = vsub.s32 %v3104, %v3106
        %v3108 = vrot.slane %v3086, %v3107
        %v3110 = vunpack.c.l.s4 1966171168
        %v3111 = vunpack.c.0.s8 %v3110
        %v3112 = vlaneseq
        %v3113 = vshrl.u32 %v3112, 7
        %v3114 = vsub.s32 %v3111, %v3113
        %v3115 = vrot.slane %v3087, %v3114
        %v3116 = vcombine.low %v3094, %v3101
        %v3117 = vcombine.low %v3108, %v3115
        %v3119 = vunpack.c.l.s4 1966171168
        %v3120 = vunpack.c.0.s8 %v3119
        %v3121 = vlaneseq
        %v3122 = vshrl.u32 %v3121, 7
        %v3123 = vsub.s32 %v3120, %v3122
        %v3124 = vrot.slane %v3116, %v3123
        %v3126 = vunpack.c.l.s4 1966171168
        %v3127 = vunpack.c.0.s8 %v3126
        %v3128 = vlaneseq
        %v3129 = vshrl.u32 %v3128, 7
        %v3130 = vsub.s32 %v3127, %v3129
        %v3131 = vrot.slane %v3117, %v3130
        %v3132 = vcombine.low %v3124, %v3131
        %v3133 = vcombine.low %v2027, %v2031
        %v3134 = vcombine.low %v2035, %v2039
        %v3135 = vcombine.low %v2043, %v2047
        %v3136 = vcombine.low %v2051, %v2055
        %v3138 = vunpack.c.l.s4 1966171168
        %v3139 = vunpack.c.0.s8 %v3138
        %v3140 = vlaneseq
        %v3141 = vshrl.u32 %v3140, 7
        %v3142 = vsub.s32 %v3139, %v3141
        %v3143 = vrot.slane %v3133, %v3142
        %v3145 = vunpack.c.l.s4 1966171168
        %v3146 = vunpack.c.0.s8 %v3145
        %v3147 = vlaneseq
        %v3148 = vshrl.u32 %v3147, 7
        %v3149 = vsub.s32 %v3146, %v3148
        %v3150 = vrot.slane %v3134, %v3149
        %v3152 = vunpack.c.l.s4 1966171168
        %v3153 = vunpack.c.0.s8 %v3152
        %v3154 = vlaneseq
        %v3155 = vshrl.u32 %v3154, 7
        %v3156 = vsub.s32 %v3153, %v3155
        %v3157 = vrot.slane %v3135, %v3156
        %v3159 = vunpack.c.l.s4 1966171168
        %v3160 = vunpack.c.0.s8 %v3159
        %v3161 = vlaneseq
        %v3162 = vshrl.u32 %v3161, 7
        %v3163 = vsub.s32 %v3160, %v3162
        %v3164 = vrot.slane %v3136, %v3163
        %v3165 = vcombine.low %v3143, %v3150
        %v3166 = vcombine.low %v3157, %v3164
        %v3168 = vunpack.c.l.s4 1966171168
        %v3169 = vunpack.c.0.s8 %v3168
        %v3170 = vlaneseq
        %v3171 = vshrl.u32 %v3170, 7
        %v3172 = vsub.s32 %v3169, %v3171
        %v3173 = vrot.slane %v3165, %v3172
        %v3175 = vunpack.c.l.s4 1966171168
        %v3176 = vunpack.c.0.s8 %v3175
        %v3177 = vlaneseq
        %v3178 = vshrl.u32 %v3177, 7
        %v3179 = vsub.s32 %v3176, %v3178
        %v3180 = vrot.slane %v3166, %v3179
        %v3181 = vcombine.low %v3173, %v3180
        %v3182 = vcombine.low %v2059, %v2063
        %v3183 = vcombine.low %v2067, %v2071
        %v3184 = vcombine.low %v2075, %v2079
        %v3185 = vcombine.low %v2083, %v2087
        %v3187 = vunpack.c.l.s4 1966171168
        %v3188 = vunpack.c.0.s8 %v3187
        %v3189 = vlaneseq
        %v3190 = vshrl.u32 %v3189, 7
        %v3191 = vsub.s32 %v3188, %v3190
        %v3192 = vrot.slane %v3182, %v3191
        %v3194 = vunpack.c.l.s4 1966171168
        %v3195 = vunpack.c.0.s8 %v3194
        %v3196 = vlaneseq
        %v3197 = vshrl.u32 %v3196, 7
        %v3198 = vsub.s32 %v3195, %v3197
        %v3199 = vrot.slane %v3183, %v3198
        %v3201 = vunpack.c.l.s4 1966171168
        %v3202 = vunpack.c.0.s8 %v3201
        %v3203 = vlaneseq
        %v3204 = vshrl.u32 %v3203, 7
        %v3205 = vsub.s32 %v3202, %v3204
        %v3206 = vrot.slane %v3184, %v3205
        %v3208 = vunpack.c.l.s4 1966171168
        %v3209 = vunpack.c.0.s8 %v3208
        %v3210 = vlaneseq
        %v3211 = vshrl.u32 %v3210, 7
        %v3212 = vsub.s32 %v3209, %v3211
        %v3213 = vrot.slane %v3185, %v3212
        %v3214 = vcombine.low %v3192, %v3199
        %v3215 = vcombine.low %v3206, %v3213
        %v3217 = vunpack.c.l.s4 1966171168
        %v3218 = vunpack.c.0.s8 %v3217
        %v3219 = vlaneseq
        %v3220 = vshrl.u32 %v3219, 7
        %v3221 = vsub.s32 %v3218, %v3220
        %v3222 = vrot.slane %v3214, %v3221
        %v3224 = vunpack.c.l.s4 1966171168
        %v3225 = vunpack.c.0.s8 %v3224
        %v3226 = vlaneseq
        %v3227 = vshrl.u32 %v3226, 7
        %v3228 = vsub.s32 %v3225, %v3227
        %v3229 = vrot.slane %v3215, %v3228
        %v3230 = vcombine.low %v3222, %v3229
        %v3231 = vcombine.low %v2091, %v2095
        %v3232 = vcombine.low %v2099, %v2103
        %v3233 = vcombine.low %v2107, %v2111
        %v3234 = vcombine.low %v2115, %v2119
        %v3236 = vunpack.c.l.s4 1966171168
        %v3237 = vunpack.c.0.s8 %v3236
        %v3238 = vlaneseq
        %v3239 = vshrl.u32 %v3238, 7
        %v3240 = vsub.s32 %v3237, %v3239
        %v3241 = vrot.slane %v3231, %v3240
        %v3243 = vunpack.c.l.s4 1966171168
        %v3244 = vunpack.c.0.s8 %v3243
        %v3245 = vlaneseq
        %v3246 = vshrl.u32 %v3245, 7
        %v3247 = vsub.s32 %v3244, %v3246
        %v3248 = vrot.slane %v3232, %v3247
        %v3250 = vunpack.c.l.s4 1966171168
        %v3251 = vunpack.c.0.s8 %v3250
        %v3252 = vlaneseq
        %v3253 = vshrl.u32 %v3252, 7
        %v3254 = vsub.s32 %v3251, %v3253
        %v3255 = vrot.slane %v3233, %v3254
        %v3257 = vunpack.c.l.s4 1966171168
        %v3258 = vunpack.c.0.s8 %v3257
        %v3259 = vlaneseq
        %v3260 = vshrl.u32 %v3259, 7
        %v3261 = vsub.s32 %v3258, %v3260
        %v3262 = vrot.slane %v3234, %v3261
        %v3263 = vcombine.low %v3241, %v3248
        %v3264 = vcombine.low %v3255, %v3262
        %v3266 = vunpack.c.l.s4 1966171168
        %v3267 = vunpack.c.0.s8 %v3266
        %v3268 = vlaneseq
        %v3269 = vshrl.u32 %v3268, 7
        %v3270 = vsub.s32 %v3267, %v3269
        %v3271 = vrot.slane %v3263, %v3270
        %v3273 = vunpack.c.l.s4 1966171168
        %v3274 = vunpack.c.0.s8 %v3273
        %v3275 = vlaneseq
        %v3276 = vshrl.u32 %v3275, 7
        %v3277 = vsub.s32 %v3274, %v3276
        %v3278 = vrot.slane %v3264, %v3277
        %v3279 = vcombine.low %v3271, %v3278
        %v3280 = vcombine.low %v2123, %v2127
        %v3281 = vcombine.low %v2131, %v2135
        %v3282 = vcombine.low %v2139, %v2143
        %v3283 = vcombine.low %v2147, %v2151
        %v3285 = vunpack.c.l.s4 1966171168
        %v3286 = vunpack.c.0.s8 %v3285
        %v3287 = vlaneseq
        %v3288 = vshrl.u32 %v3287, 7
        %v3289 = vsub.s32 %v3286, %v3288
        %v3290 = vrot.slane %v3280, %v3289
        %v3292 = vunpack.c.l.s4 1966171168
        %v3293 = vunpack.c.0.s8 %v3292
        %v3294 = vlaneseq
        %v3295 = vshrl.u32 %v3294, 7
        %v3296 = vsub.s32 %v3293, %v3295
        %v3297 = vrot.slane %v3281, %v3296
        %v3299 = vunpack.c.l.s4 1966171168
        %v3300 = vunpack.c.0.s8 %v3299
        %v3301 = vlaneseq
        %v3302 = vshrl.u32 %v3301, 7
        %v3303 = vsub.s32 %v3300, %v3302
        %v3304 = vrot.slane %v3282, %v3303
        %v3306 = vunpack.c.l.s4 1966171168
        %v3307 = vunpack.c.0.s8 %v3306
        %v3308 = vlaneseq
        %v3309 = vshrl.u32 %v3308, 7
        %v3310 = vsub.s32 %v3307, %v3309
        %v3311 = vrot.slane %v3283, %v3310
        %v3312 = vcombine.low %v3290, %v3297
        %v3313 = vcombine.low %v3304, %v3311
        %v3315 = vunpack.c.l.s4 1966171168
        %v3316 = vunpack.c.0.s8 %v3315
        %v3317 = vlaneseq
        %v3318 = vshrl.u32 %v3317, 7
        %v3319 = vsub.s32 %v3316, %v3318
        %v3320 = vrot.slane %v3312, %v3319
        %v3322 = vunpack.c.l.s4 1966171168
        %v3323 = vunpack.c.0.s8 %v3322
        %v3324 = vlaneseq
        %v3325 = vshrl.u32 %v3324, 7
        %v3326 = vsub.s32 %v3323, %v3325
        %v3327 = vrot.slane %v3313, %v3326
        %v3328 = vcombine.low %v3320, %v3327
        %v3329 = vcombine.low %v2155, %v2159
        %v3330 = vcombine.low %v2163, %v2167
        %v3331 = vcombine.low %v2171, %v2175
        %v3332 = vcombine.low %v2179, %v2183
        %v3334 = vunpack.c.l.s4 1966171168
        %v3335 = vunpack.c.0.s8 %v3334
        %v3336 = vlaneseq
        %v3337 = vshrl.u32 %v3336, 7
        %v3338 = vsub.s32 %v3335, %v3337
        %v3339 = vrot.slane %v3329, %v3338
        %v3341 = vunpack.c.l.s4 1966171168
        %v3342 = vunpack.c.0.s8 %v3341
        %v3343 = vlaneseq
        %v3344 = vshrl.u32 %v3343, 7
        %v3345 = vsub.s32 %v3342, %v3344
        %v3346 = vrot.slane %v3330, %v3345
        %v3348 = vunpack.c.l.s4 1966171168
        %v3349 = vunpack.c.0.s8 %v3348
        %v3350 = vlaneseq
        %v3351 = vshrl.u32 %v3350, 7
        %v3352 = vsub.s32 %v3349, %v3351
        %v3353 = vrot.slane %v3331, %v3352
        %v3355 = vunpack.c.l.s4 1966171168
        %v3356 = vunpack.c.0.s8 %v3355
        %v3357 = vlaneseq
        %v3358 = vshrl.u32 %v3357, 7
        %v3359 = vsub.s32 %v3356, %v3358
        %v3360 = vrot.slane %v3332, %v3359
        %v3361 = vcombine.low %v3339, %v3346
        %v3362 = vcombine.low %v3353, %v3360
        %v3364 = vunpack.c.l.s4 1966171168
        %v3365 = vunpack.c.0.s8 %v3364
        %v3366 = vlaneseq
        %v3367 = vshrl.u32 %v3366, 7
        %v3368 = vsub.s32 %v3365, %v3367
        %v3369 = vrot.slane %v3361, %v3368
        %v3371 = vunpack.c.l.s4 1966171168
        %v3372 = vunpack.c.0.s8 %v3371
        %v3373 = vlaneseq
        %v3374 = vshrl.u32 %v3373, 7
        %v3375 = vsub.s32 %v3372, %v3374
        %v3376 = vrot.slane %v3362, %v3375
        %v3377 = vcombine.low %v3369, %v3376
        %v3378 = vcombine.low %v2187, %v2191
        %v3379 = vcombine.low %v2195, %v2199
        %v3380 = vcombine.low %v2203, %v2207
        %v3381 = vcombine.low %v2211, %v2215
        %v3383 = vunpack.c.l.s4 1966171168
        %v3384 = vunpack.c.0.s8 %v3383
        %v3385 = vlaneseq
        %v3386 = vshrl.u32 %v3385, 7
        %v3387 = vsub.s32 %v3384, %v3386
        %v3388 = vrot.slane %v3378, %v3387
        %v3390 = vunpack.c.l.s4 1966171168
        %v3391 = vunpack.c.0.s8 %v3390
        %v3392 = vlaneseq
        %v3393 = vshrl.u32 %v3392, 7
        %v3394 = vsub.s32 %v3391, %v3393
        %v3395 = vrot.slane %v3379, %v3394
        %v3397 = vunpack.c.l.s4 1966171168
        %v3398 = vunpack.c.0.s8 %v3397
        %v3399 = vlaneseq
        %v3400 = vshrl.u32 %v3399, 7
        %v3401 = vsub.s32 %v3398, %v3400
        %v3402 = vrot.slane %v3380, %v3401
        %v3404 = vunpack.c.l.s4 1966171168
        %v3405 = vunpack.c.0.s8 %v3404
        %v3406 = vlaneseq
        %v3407 = vshrl.u32 %v3406, 7
        %v3408 = vsub.s32 %v3405, %v3407
        %v3409 = vrot.slane %v3381, %v3408
        %v3410 = vcombine.low %v3388, %v3395
        %v3411 = vcombine.low %v3402, %v3409
        %v3413 = vunpack.c.l.s4 1966171168
        %v3414 = vunpack.c.0.s8 %v3413
        %v3415 = vlaneseq
        %v3416 = vshrl.u32 %v3415, 7
        %v3417 = vsub.s32 %v3414, %v3416
        %v3418 = vrot.slane %v3410, %v3417
        %v3420 = vunpack.c.l.s4 1966171168
        %v3421 = vunpack.c.0.s8 %v3420
        %v3422 = vlaneseq
        %v3423 = vshrl.u32 %v3422, 7
        %v3424 = vsub.s32 %v3421, %v3423
        %v3425 = vrot.slane %v3411, %v3424
        %v3426 = vcombine.low %v3418, %v3425
        %v3427 = vcombine.low %v2219, %v2223
        %v3428 = vcombine.low %v2227, %v2231
        %v3429 = vcombine.low %v2235, %v2239
        %v3430 = vcombine.low %v2243, %v2247
        %v3432 = vunpack.c.l.s4 1966171168
        %v3433 = vunpack.c.0.s8 %v3432
        %v3434 = vlaneseq
        %v3435 = vshrl.u32 %v3434, 7
        %v3436 = vsub.s32 %v3433, %v3435
        %v3437 = vrot.slane %v3427, %v3436
        %v3439 = vunpack.c.l.s4 1966171168
        %v3440 = vunpack.c.0.s8 %v3439
        %v3441 = vlaneseq
        %v3442 = vshrl.u32 %v3441, 7
        %v3443 = vsub.s32 %v3440, %v3442
        %v3444 = vrot.slane %v3428, %v3443
        %v3446 = vunpack.c.l.s4 1966171168
        %v3447 = vunpack.c.0.s8 %v3446
        %v3448 = vlaneseq
        %v3449 = vshrl.u32 %v3448, 7
        %v3450 = vsub.s32 %v3447, %v3449
        %v3451 = vrot.slane %v3429, %v3450
        %v3453 = vunpack.c.l.s4 1966171168
        %v3454 = vunpack.c.0.s8 %v3453
        %v3455 = vlaneseq
        %v3456 = vshrl.u32 %v3455, 7
        %v3457 = vsub.s32 %v3454, %v3456
        %v3458 = vrot.slane %v3430, %v3457
        %v3459 = vcombine.low %v3437, %v3444
        %v3460 = vcombine.low %v3451, %v3458
        %v3462 = vunpack.c.l.s4 1966171168
        %v3463 = vunpack.c.0.s8 %v3462
        %v3464 = vlaneseq
        %v3465 = vshrl.u32 %v3464, 7
        %v3466 = vsub.s32 %v3463, %v3465
        %v3467 = vrot.slane %v3459, %v3466
        %v3469 = vunpack.c.l.s4 1966171168
        %v3470 = vunpack.c.0.s8 %v3469
        %v3471 = vlaneseq
        %v3472 = vshrl.u32 %v3471, 7
        %v3473 = vsub.s32 %v3470, %v3472
        %v3474 = vrot.slane %v3460, %v3473
        %v3475 = vcombine.low %v3467, %v3474
        %v3476 = vcombine.low %v2251, %v2255
        %v3477 = vcombine.low %v2259, %v2263
        %v3478 = vcombine.low %v2267, %v2271
        %v3479 = vcombine.low %v2275, %v2279
        %v3481 = vunpack.c.l.s4 1966171168
        %v3482 = vunpack.c.0.s8 %v3481
        %v3483 = vlaneseq
        %v3484 = vshrl.u32 %v3483, 7
        %v3485 = vsub.s32 %v3482, %v3484
        %v3486 = vrot.slane %v3476, %v3485
        %v3488 = vunpack.c.l.s4 1966171168
        %v3489 = vunpack.c.0.s8 %v3488
        %v3490 = vlaneseq
        %v3491 = vshrl.u32 %v3490, 7
        %v3492 = vsub.s32 %v3489, %v3491
        %v3493 = vrot.slane %v3477, %v3492
        %v3495 = vunpack.c.l.s4 1966171168
        %v3496 = vunpack.c.0.s8 %v3495
        %v3497 = vlaneseq
        %v3498 = vshrl.u32 %v3497, 7
        %v3499 = vsub.s32 %v3496, %v3498
        %v3500 = vrot.slane %v3478, %v3499
        %v3502 = vunpack.c.l.s4 1966171168
        %v3503 = vunpack.c.0.s8 %v3502
        %v3504 = vlaneseq
        %v3505 = vshrl.u32 %v3504, 7
        %v3506 = vsub.s32 %v3503, %v3505
        %v3507 = vrot.slane %v3479, %v3506
        %v3508 = vcombine.low %v3486, %v3493
        %v3509 = vcombine.low %v3500, %v3507
        %v3511 = vunpack.c.l.s4 1966171168
        %v3512 = vunpack.c.0.s8 %v3511
        %v3513 = vlaneseq
        %v3514 = vshrl.u32 %v3513, 7
        %v3515 = vsub.s32 %v3512, %v3514
        %v3516 = vrot.slane %v3508, %v3515
        %v3518 = vunpack.c.l.s4 1966171168
        %v3519 = vunpack.c.0.s8 %v3518
        %v3520 = vlaneseq
        %v3521 = vshrl.u32 %v3520, 7
        %v3522 = vsub.s32 %v3519, %v3521
        %v3523 = vrot.slane %v3509, %v3522
        %v3524 = vcombine.low %v3516, %v3523
        %v3525 = vcombine.low %v2283, %v2287
        %v3526 = vcombine.low %v2291, %v2295
        %v3527 = vcombine.low %v2299, %v2303
        %v3528 = vcombine.low %v2307, %v2311
        %v3530 = vunpack.c.l.s4 1966171168
        %v3531 = vunpack.c.0.s8 %v3530
        %v3532 = vlaneseq
        %v3533 = vshrl.u32 %v3532, 7
        %v3534 = vsub.s32 %v3531, %v3533
        %v3535 = vrot.slane %v3525, %v3534
        %v3537 = vunpack.c.l.s4 1966171168
        %v3538 = vunpack.c.0.s8 %v3537
        %v3539 = vlaneseq
        %v3540 = vshrl.u32 %v3539, 7
        %v3541 = vsub.s32 %v3538, %v3540
        %v3542 = vrot.slane %v3526, %v3541
        %v3544 = vunpack.c.l.s4 1966171168
        %v3545 = vunpack.c.0.s8 %v3544
        %v3546 = vlaneseq
        %v3547 = vshrl.u32 %v3546, 7
        %v3548 = vsub.s32 %v3545, %v3547
        %v3549 = vrot.slane %v3527, %v3548
        %v3551 = vunpack.c.l.s4 1966171168
        %v3552 = vunpack.c.0.s8 %v3551
        %v3553 = vlaneseq
        %v3554 = vshrl.u32 %v3553, 7
        %v3555 = vsub.s32 %v3552, %v3554
        %v3556 = vrot.slane %v3528, %v3555
        %v3557 = vcombine.low %v3535, %v3542
        %v3558 = vcombine.low %v3549, %v3556
        %v3560 = vunpack.c.l.s4 1966171168
        %v3561 = vunpack.c.0.s8 %v3560
        %v3562 = vlaneseq
        %v3563 = vshrl.u32 %v3562, 7
        %v3564 = vsub.s32 %v3561, %v3563
        %v3565 = vrot.slane %v3557, %v3564
        %v3567 = vunpack.c.l.s4 1966171168
        %v3568 = vunpack.c.0.s8 %v3567
        %v3569 = vlaneseq
        %v3570 = vshrl.u32 %v3569, 7
        %v3571 = vsub.s32 %v3568, %v3570
        %v3572 = vrot.slane %v3558, %v3571
        %v3573 = vcombine.low %v3565, %v3572
        %v3574 = vcombine.low %v2315, %v2319
        %v3575 = vcombine.low %v2323, %v2327
        %v3576 = vcombine.low %v2331, %v2335
        %v3577 = vcombine.low %v2339, %v2343
        %v3579 = vunpack.c.l.s4 1966171168
        %v3580 = vunpack.c.0.s8 %v3579
        %v3581 = vlaneseq
        %v3582 = vshrl.u32 %v3581, 7
        %v3583 = vsub.s32 %v3580, %v3582
        %v3584 = vrot.slane %v3574, %v3583
        %v3586 = vunpack.c.l.s4 1966171168
        %v3587 = vunpack.c.0.s8 %v3586
        %v3588 = vlaneseq
        %v3589 = vshrl.u32 %v3588, 7
        %v3590 = vsub.s32 %v3587, %v3589
        %v3591 = vrot.slane %v3575, %v3590
        %v3593 = vunpack.c.l.s4 1966171168
        %v3594 = vunpack.c.0.s8 %v3593
        %v3595 = vlaneseq
        %v3596 = vshrl.u32 %v3595, 7
        %v3597 = vsub.s32 %v3594, %v3596
        %v3598 = vrot.slane %v3576, %v3597
        %v3600 = vunpack.c.l.s4 1966171168
        %v3601 = vunpack.c.0.s8 %v3600
        %v3602 = vlaneseq
        %v3603 = vshrl.u32 %v3602, 7
        %v3604 = vsub.s32 %v3601, %v3603
        %v3605 = vrot.slane %v3577, %v3604
        %v3606 = vcombine.low %v3584, %v3591
        %v3607 = vcombine.low %v3598, %v3605
        %v3609 = vunpack.c.l.s4 1966171168
        %v3610 = vunpack.c.0.s8 %v3609
        %v3611 = vlaneseq
        %v3612 = vshrl.u32 %v3611, 7
        %v3613 = vsub.s32 %v3610, %v3612
        %v3614 = vrot.slane %v3606, %v3613
        %v3616 = vunpack.c.l.s4 1966171168
        %v3617 = vunpack.c.0.s8 %v3616
        %v3618 = vlaneseq
        %v3619 = vshrl.u32 %v3618, 7
        %v3620 = vsub.s32 %v3617, %v3619
        %v3621 = vrot.slane %v3607, %v3620
        %v3622 = vcombine.low %v3614, %v3621
        %v3623 = vcombine.low %v2347, %v2351
        %v3624 = vcombine.low %v2355, %v2359
        %v3625 = vcombine.low %v2363, %v2367
        %v3626 = vcombine.low %v2371, %v2375
        %v3628 = vunpack.c.l.s4 1966171168
        %v3629 = vunpack.c.0.s8 %v3628
        %v3630 = vlaneseq
        %v3631 = vshrl.u32 %v3630, 7
        %v3632 = vsub.s32 %v3629, %v3631
        %v3633 = vrot.slane %v3623, %v3632
        %v3635 = vunpack.c.l.s4 1966171168
        %v3636 = vunpack.c.0.s8 %v3635
        %v3637 = vlaneseq
        %v3638 = vshrl.u32 %v3637, 7
        %v3639 = vsub.s32 %v3636, %v3638
        %v3640 = vrot.slane %v3624, %v3639
        %v3642 = vunpack.c.l.s4 1966171168
        %v3643 = vunpack.c.0.s8 %v3642
        %v3644 = vlaneseq
        %v3645 = vshrl.u32 %v3644, 7
        %v3646 = vsub.s32 %v3643, %v3645
        %v3647 = vrot.slane %v3625, %v3646
        %v3649 = vunpack.c.l.s4 1966171168
        %v3650 = vunpack.c.0.s8 %v3649
        %v3651 = vlaneseq
        %v3652 = vshrl.u32 %v3651, 7
        %v3653 = vsub.s32 %v3650, %v3652
        %v3654 = vrot.slane %v3626, %v3653
        %v3655 = vcombine.low %v3633, %v3640
        %v3656 = vcombine.low %v3647, %v3654
        %v3658 = vunpack.c.l.s4 1966171168
        %v3659 = vunpack.c.0.s8 %v3658
        %v3660 = vlaneseq
        %v3661 = vshrl.u32 %v3660, 7
        %v3662 = vsub.s32 %v3659, %v3661
        %v3663 = vrot.slane %v3655, %v3662
        %v3665 = vunpack.c.l.s4 1966171168
        %v3666 = vunpack.c.0.s8 %v3665
        %v3667 = vlaneseq
        %v3668 = vshrl.u32 %v3667, 7
        %v3669 = vsub.s32 %v3666, %v3668
        %v3670 = vrot.slane %v3656, %v3669
        %v3671 = vcombine.low %v3663, %v3670
        %v3672 = vcombine.low %v2379, %v2383
        %v3673 = vcombine.low %v2387, %v2391
        %v3674 = vcombine.low %v2395, %v2399
        %v3675 = vcombine.low %v2403, %v2407
        %v3677 = vunpack.c.l.s4 1966171168
        %v3678 = vunpack.c.0.s8 %v3677
        %v3679 = vlaneseq
        %v3680 = vshrl.u32 %v3679, 7
        %v3681 = vsub.s32 %v3678, %v3680
        %v3682 = vrot.slane %v3672, %v3681
        %v3684 = vunpack.c.l.s4 1966171168
        %v3685 = vunpack.c.0.s8 %v3684
        %v3686 = vlaneseq
        %v3687 = vshrl.u32 %v3686, 7
        %v3688 = vsub.s32 %v3685, %v3687
        %v3689 = vrot.slane %v3673, %v3688
        %v3691 = vunpack.c.l.s4 1966171168
        %v3692 = vunpack.c.0.s8 %v3691
        %v3693 = vlaneseq
        %v3694 = vshrl.u32 %v3693, 7
        %v3695 = vsub.s32 %v3692, %v3694
        %v3696 = vrot.slane %v3674, %v3695
        %v3698 = vunpack.c.l.s4 1966171168
        %v3699 = vunpack.c.0.s8 %v3698
        %v3700 = vlaneseq
        %v3701 = vshrl.u32 %v3700, 7
        %v3702 = vsub.s32 %v3699, %v3701
        %v3703 = vrot.slane %v3675, %v3702
        %v3704 = vcombine.low %v3682, %v3689
        %v3705 = vcombine.low %v3696, %v3703
        %v3707 = vunpack.c.l.s4 1966171168
        %v3708 = vunpack.c.0.s8 %v3707
        %v3709 = vlaneseq
        %v3710 = vshrl.u32 %v3709, 7
        %v3711 = vsub.s32 %v3708, %v3710
        %v3712 = vrot.slane %v3704, %v3711
        %v3714 = vunpack.c.l.s4 1966171168
        %v3715 = vunpack.c.0.s8 %v3714
        %v3716 = vlaneseq
        %v3717 = vshrl.u32 %v3716, 7
        %v3718 = vsub.s32 %v3715, %v3717
        %v3719 = vrot.slane %v3705, %v3718
        %v3720 = vcombine.low %v3712, %v3719
        %v3721 = vcombine.low %v2411, %v2415
        %v3722 = vcombine.low %v2419, %v2423
        %v3723 = vcombine.low %v2427, %v2431
        %v3724 = vcombine.low %v2435, %v2439
        %v3726 = vunpack.c.l.s4 1966171168
        %v3727 = vunpack.c.0.s8 %v3726
        %v3728 = vlaneseq
        %v3729 = vshrl.u32 %v3728, 7
        %v3730 = vsub.s32 %v3727, %v3729
        %v3731 = vrot.slane %v3721, %v3730
        %v3733 = vunpack.c.l.s4 1966171168
        %v3734 = vunpack.c.0.s8 %v3733
        %v3735 = vlaneseq
        %v3736 = vshrl.u32 %v3735, 7
        %v3737 = vsub.s32 %v3734, %v3736
        %v3738 = vrot.slane %v3722, %v3737
        %v3740 = vunpack.c.l.s4 1966171168
        %v3741 = vunpack.c.0.s8 %v3740
        %v3742 = vlaneseq
        %v3743 = vshrl.u32 %v3742, 7
        %v3744 = vsub.s32 %v3741, %v3743
        %v3745 = vrot.slane %v3723, %v3744
        %v3747 = vunpack.c.l.s4 1966171168
        %v3748 = vunpack.c.0.s8 %v3747
        %v3749 = vlaneseq
        %v3750 = vshrl.u32 %v3749, 7
        %v3751 = vsub.s32 %v3748, %v3750
        %v3752 = vrot.slane %v3724, %v3751
        %v3753 = vcombine.low %v3731, %v3738
        %v3754 = vcombine.low %v3745, %v3752
        %v3756 = vunpack.c.l.s4 1966171168
        %v3757 = vunpack.c.0.s8 %v3756
        %v3758 = vlaneseq
        %v3759 = vshrl.u32 %v3758, 7
        %v3760 = vsub.s32 %v3757, %v3759
        %v3761 = vrot.slane %v3753, %v3760
        %v3763 = vunpack.c.l.s4 1966171168
        %v3764 = vunpack.c.0.s8 %v3763
        %v3765 = vlaneseq
        %v3766 = vshrl.u32 %v3765, 7
        %v3767 = vsub.s32 %v3764, %v3766
        %v3768 = vrot.slane %v3754, %v3767
        %v3769 = vcombine.low %v3761, %v3768
        %v3770 = vcombine.low %v2443, %v2447
        %v3771 = vcombine.low %v2451, %v2455
        %v3772 = vcombine.low %v2459, %v2463
        %v3773 = vcombine.low %v2467, %v2471
        %v3775 = vunpack.c.l.s4 1966171168
        %v3776 = vunpack.c.0.s8 %v3775
        %v3777 = vlaneseq
        %v3778 = vshrl.u32 %v3777, 7
        %v3779 = vsub.s32 %v3776, %v3778
        %v3780 = vrot.slane %v3770, %v3779
        %v3782 = vunpack.c.l.s4 1966171168
        %v3783 = vunpack.c.0.s8 %v3782
        %v3784 = vlaneseq
        %v3785 = vshrl.u32 %v3784, 7
        %v3786 = vsub.s32 %v3783, %v3785
        %v3787 = vrot.slane %v3771, %v3786
        %v3789 = vunpack.c.l.s4 1966171168
        %v3790 = vunpack.c.0.s8 %v3789
        %v3791 = vlaneseq
        %v3792 = vshrl.u32 %v3791, 7
        %v3793 = vsub.s32 %v3790, %v3792
        %v3794 = vrot.slane %v3772, %v3793
        %v3796 = vunpack.c.l.s4 1966171168
        %v3797 = vunpack.c.0.s8 %v3796
        %v3798 = vlaneseq
        %v3799 = vshrl.u32 %v3798, 7
        %v3800 = vsub.s32 %v3797, %v3799
        %v3801 = vrot.slane %v3773, %v3800
        %v3802 = vcombine.low %v3780, %v3787
        %v3803 = vcombine.low %v3794, %v3801
        %v3805 = vunpack.c.l.s4 1966171168
        %v3806 = vunpack.c.0.s8 %v3805
        %v3807 = vlaneseq
        %v3808 = vshrl.u32 %v3807, 7
        %v3809 = vsub.s32 %v3806, %v3808
        %v3810 = vrot.slane %v3802, %v3809
        %v3812 = vunpack.c.l.s4 1966171168
        %v3813 = vunpack.c.0.s8 %v3812
        %v3814 = vlaneseq
        %v3815 = vshrl.u32 %v3814, 7
        %v3816 = vsub.s32 %v3813, %v3815
        %v3817 = vrot.slane %v3803, %v3816
        %v3818 = vcombine.low %v3810, %v3817
        %v3819 = vcombine.low %v2475, %v2479
        %v3820 = vcombine.low %v2483, %v2487
        %v3821 = vcombine.low %v2491, %v2495
        %v3822 = vcombine.low %v2499, %v2503
        %v3824 = vunpack.c.l.s4 1966171168
        %v3825 = vunpack.c.0.s8 %v3824
        %v3826 = vlaneseq
        %v3827 = vshrl.u32 %v3826, 7
        %v3828 = vsub.s32 %v3825, %v3827
        %v3829 = vrot.slane %v3819, %v3828
        %v3831 = vunpack.c.l.s4 1966171168
        %v3832 = vunpack.c.0.s8 %v3831
        %v3833 = vlaneseq
        %v3834 = vshrl.u32 %v3833, 7
        %v3835 = vsub.s32 %v3832, %v3834
        %v3836 = vrot.slane %v3820, %v3835
        %v3838 = vunpack.c.l.s4 1966171168
        %v3839 = vunpack.c.0.s8 %v3838
        %v3840 = vlaneseq
        %v3841 = vshrl.u32 %v3840, 7
        %v3842 = vsub.s32 %v3839, %v3841
        %v3843 = vrot.slane %v3821, %v3842
        %v3845 = vunpack.c.l.s4 1966171168
        %v3846 = vunpack.c.0.s8 %v3845
        %v3847 = vlaneseq
        %v3848 = vshrl.u32 %v3847, 7
        %v3849 = vsub.s32 %v3846, %v3848
        %v3850 = vrot.slane %v3822, %v3849
        %v3851 = vcombine.low %v3829, %v3836
        %v3852 = vcombine.low %v3843, %v3850
        %v3854 = vunpack.c.l.s4 1966171168
        %v3855 = vunpack.c.0.s8 %v3854
        %v3856 = vlaneseq
        %v3857 = vshrl.u32 %v3856, 7
        %v3858 = vsub.s32 %v3855, %v3857
        %v3859 = vrot.slane %v3851, %v3858
        %v3861 = vunpack.c.l.s4 1966171168
        %v3862 = vunpack.c.0.s8 %v3861
        %v3863 = vlaneseq
        %v3864 = vshrl.u32 %v3863, 7
        %v3865 = vsub.s32 %v3862, %v3864
        %v3866 = vrot.slane %v3852, %v3865
        %v3867 = vcombine.low %v3859, %v3866
        %v3868 = vcombine.low %v2507, %v2511
        %v3869 = vcombine.low %v2515, %v2519
        %v3870 = vcombine.low %v2523, %v2527
        %v3871 = vcombine.low %v2531, %v2535
        %v3873 = vunpack.c.l.s4 1966171168
        %v3874 = vunpack.c.0.s8 %v3873
        %v3875 = vlaneseq
        %v3876 = vshrl.u32 %v3875, 7
        %v3877 = vsub.s32 %v3874, %v3876
        %v3878 = vrot.slane %v3868, %v3877
        %v3880 = vunpack.c.l.s4 1966171168
        %v3881 = vunpack.c.0.s8 %v3880
        %v3882 = vlaneseq
        %v3883 = vshrl.u32 %v3882, 7
        %v3884 = vsub.s32 %v3881, %v3883
        %v3885 = vrot.slane %v3869, %v3884
        %v3887 = vunpack.c.l.s4 1966171168
        %v3888 = vunpack.c.0.s8 %v3887
        %v3889 = vlaneseq
        %v3890 = vshrl.u32 %v3889, 7
        %v3891 = vsub.s32 %v3888, %v3890
        %v3892 = vrot.slane %v3870, %v3891
        %v3894 = vunpack.c.l.s4 1966171168
        %v3895 = vunpack.c.0.s8 %v3894
        %v3896 = vlaneseq
        %v3897 = vshrl.u32 %v3896, 7
        %v3898 = vsub.s32 %v3895, %v3897
        %v3899 = vrot.slane %v3871, %v3898
        %v3900 = vcombine.low %v3878, %v3885
        %v3901 = vcombine.low %v3892, %v3899
        %v3903 = vunpack.c.l.s4 1966171168
        %v3904 = vunpack.c.0.s8 %v3903
        %v3905 = vlaneseq
        %v3906 = vshrl.u32 %v3905, 7
        %v3907 = vsub.s32 %v3904, %v3906
        %v3908 = vrot.slane %v3900, %v3907
        %v3910 = vunpack.c.l.s4 1966171168
        %v3911 = vunpack.c.0.s8 %v3910
        %v3912 = vlaneseq
        %v3913 = vshrl.u32 %v3912, 7
        %v3914 = vsub.s32 %v3911, %v3913
        %v3915 = vrot.slane %v3901, %v3914
        %v3916 = vcombine.low %v3908, %v3915
        %v3917 = vcombine.low %v2539, %v2543
        %v3918 = vcombine.low %v2547, %v2551
        %v3919 = vcombine.low %v2555, %v2559
        %v3920 = vcombine.low %v2563, %v2567
        %v3922 = vunpack.c.l.s4 1966171168
        %v3923 = vunpack.c.0.s8 %v3922
        %v3924 = vlaneseq
        %v3925 = vshrl.u32 %v3924, 7
        %v3926 = vsub.s32 %v3923, %v3925
        %v3927 = vrot.slane %v3917, %v3926
        %v3929 = vunpack.c.l.s4 1966171168
        %v3930 = vunpack.c.0.s8 %v3929
        %v3931 = vlaneseq
        %v3932 = vshrl.u32 %v3931, 7
        %v3933 = vsub.s32 %v3930, %v3932
        %v3934 = vrot.slane %v3918, %v3933
        %v3936 = vunpack.c.l.s4 1966171168
        %v3937 = vunpack.c.0.s8 %v3936
        %v3938 = vlaneseq
        %v3939 = vshrl.u32 %v3938, 7
        %v3940 = vsub.s32 %v3937, %v3939
        %v3941 = vrot.slane %v3919, %v3940
        %v3943 = vunpack.c.l.s4 1966171168
        %v3944 = vunpack.c.0.s8 %v3943
        %v3945 = vlaneseq
        %v3946 = vshrl.u32 %v3945, 7
        %v3947 = vsub.s32 %v3944, %v3946
        %v3948 = vrot.slane %v3920, %v3947
        %v3949 = vcombine.low %v3927, %v3934
        %v3950 = vcombine.low %v3941, %v3948
        %v3952 = vunpack.c.l.s4 1966171168
        %v3953 = vunpack.c.0.s8 %v3952
        %v3954 = vlaneseq
        %v3955 = vshrl.u32 %v3954, 7
        %v3956 = vsub.s32 %v3953, %v3955
        %v3957 = vrot.slane %v3949, %v3956
        %v3959 = vunpack.c.l.s4 1966171168
        %v3960 = vunpack.c.0.s8 %v3959
        %v3961 = vlaneseq
        %v3962 = vshrl.u32 %v3961, 7
        %v3963 = vsub.s32 %v3960, %v3962
        %v3964 = vrot.slane %v3950, %v3963
        %v3965 = vcombine.low %v3957, %v3964
        %v3966 = vcombine.low %v2571, %v2575
        %v3967 = vcombine.low %v2579, %v2583
        %v3968 = vcombine.low %v2587, %v2591
        %v3969 = vcombine.low %v2595, %v2599
        %v3971 = vunpack.c.l.s4 1966171168
        %v3972 = vunpack.c.0.s8 %v3971
        %v3973 = vlaneseq
        %v3974 = vshrl.u32 %v3973, 7
        %v3975 = vsub.s32 %v3972, %v3974
        %v3976 = vrot.slane %v3966, %v3975
        %v3978 = vunpack.c.l.s4 1966171168
        %v3979 = vunpack.c.0.s8 %v3978
        %v3980 = vlaneseq
        %v3981 = vshrl.u32 %v3980, 7
        %v3982 = vsub.s32 %v3979, %v3981
        %v3983 = vrot.slane %v3967, %v3982
        %v3985 = vunpack.c.l.s4 1966171168
        %v3986 = vunpack.c.0.s8 %v3985
        %v3987 = vlaneseq
        %v3988 = vshrl.u32 %v3987, 7
        %v3989 = vsub.s32 %v3986, %v3988
        %v3990 = vrot.slane %v3968, %v3989
        %v3992 = vunpack.c.l.s4 1966171168
        %v3993 = vunpack.c.0.s8 %v3992
        %v3994 = vlaneseq
        %v3995 = vshrl.u32 %v3994, 7
        %v3996 = vsub.s32 %v3993, %v3995
        %v3997 = vrot.slane %v3969, %v3996
        %v3998 = vcombine.low %v3976, %v3983
        %v3999 = vcombine.low %v3990, %v3997
        %v4001 = vunpack.c.l.s4 1966171168
        %v4002 = vunpack.c.0.s8 %v4001
        %v4003 = vlaneseq
        %v4004 = vshrl.u32 %v4003, 7
        %v4005 = vsub.s32 %v4002, %v4004
        %v4006 = vrot.slane %v3998, %v4005
        %v4008 = vunpack.c.l.s4 1966171168
        %v4009 = vunpack.c.0.s8 %v4008
        %v4010 = vlaneseq
        %v4011 = vshrl.u32 %v4010, 7
        %v4012 = vsub.s32 %v4009, %v4011
        %v4013 = vrot.slane %v3999, %v4012
        %v4014 = vcombine.low %v4006, %v4013
        %v4015 = vcombine.low %v2603, %v2607
        %v4016 = vcombine.low %v2611, %v2615
        %v4017 = vcombine.low %v2619, %v2623
        %v4018 = vcombine.low %v2627, %v2631
        %v4020 = vunpack.c.l.s4 1966171168
        %v4021 = vunpack.c.0.s8 %v4020
        %v4022 = vlaneseq
        %v4023 = vshrl.u32 %v4022, 7
        %v4024 = vsub.s32 %v4021, %v4023
        %v4025 = vrot.slane %v4015, %v4024
        %v4027 = vunpack.c.l.s4 1966171168
        %v4028 = vunpack.c.0.s8 %v4027
        %v4029 = vlaneseq
        %v4030 = vshrl.u32 %v4029, 7
        %v4031 = vsub.s32 %v4028, %v4030
        %v4032 = vrot.slane %v4016, %v4031
        %v4034 = vunpack.c.l.s4 1966171168
        %v4035 = vunpack.c.0.s8 %v4034
        %v4036 = vlaneseq
        %v4037 = vshrl.u32 %v4036, 7
        %v4038 = vsub.s32 %v4035, %v4037
        %v4039 = vrot.slane %v4017, %v4038
        %v4041 = vunpack.c.l.s4 1966171168
        %v4042 = vunpack.c.0.s8 %v4041
        %v4043 = vlaneseq
        %v4044 = vshrl.u32 %v4043, 7
        %v4045 = vsub.s32 %v4042, %v4044
        %v4046 = vrot.slane %v4018, %v4045
        %v4047 = vcombine.low %v4025, %v4032
        %v4048 = vcombine.low %v4039, %v4046
        %v4050 = vunpack.c.l.s4 1966171168
        %v4051 = vunpack.c.0.s8 %v4050
        %v4052 = vlaneseq
        %v4053 = vshrl.u32 %v4052, 7
        %v4054 = vsub.s32 %v4051, %v4053
        %v4055 = vrot.slane %v4047, %v4054
        %v4057 = vunpack.c.l.s4 1966171168
        %v4058 = vunpack.c.0.s8 %v4057
        %v4059 = vlaneseq
        %v4060 = vshrl.u32 %v4059, 7
        %v4061 = vsub.s32 %v4058, %v4060
        %v4062 = vrot.slane %v4048, %v4061
        %v4063 = vcombine.low %v4055, %v4062
        %v4064 = vcombine.low %v2635, %v2639
        %v4065 = vcombine.low %v2643, %v2647
        %v4066 = vcombine.low %v2651, %v2655
        %v4067 = vcombine.low %v2659, %v2663
        %v4069 = vunpack.c.l.s4 1966171168
        %v4070 = vunpack.c.0.s8 %v4069
        %v4071 = vlaneseq
        %v4072 = vshrl.u32 %v4071, 7
        %v4073 = vsub.s32 %v4070, %v4072
        %v4074 = vrot.slane %v4064, %v4073
        %v4076 = vunpack.c.l.s4 1966171168
        %v4077 = vunpack.c.0.s8 %v4076
        %v4078 = vlaneseq
        %v4079 = vshrl.u32 %v4078, 7
        %v4080 = vsub.s32 %v4077, %v4079
        %v4081 = vrot.slane %v4065, %v4080
        %v4083 = vunpack.c.l.s4 1966171168
        %v4084 = vunpack.c.0.s8 %v4083
        %v4085 = vlaneseq
        %v4086 = vshrl.u32 %v4085, 7
        %v4087 = vsub.s32 %v4084, %v4086
        %v4088 = vrot.slane %v4066, %v4087
        %v4090 = vunpack.c.l.s4 1966171168
        %v4091 = vunpack.c.0.s8 %v4090
        %v4092 = vlaneseq
        %v4093 = vshrl.u32 %v4092, 7
        %v4094 = vsub.s32 %v4091, %v4093
        %v4095 = vrot.slane %v4067, %v4094
        %v4096 = vcombine.low %v4074, %v4081
        %v4097 = vcombine.low %v4088, %v4095
        %v4099 = vunpack.c.l.s4 1966171168
        %v4100 = vunpack.c.0.s8 %v4099
        %v4101 = vlaneseq
        %v4102 = vshrl.u32 %v4101, 7
        %v4103 = vsub.s32 %v4100, %v4102
        %v4104 = vrot.slane %v4096, %v4103
        %v4106 = vunpack.c.l.s4 1966171168
        %v4107 = vunpack.c.0.s8 %v4106
        %v4108 = vlaneseq
        %v4109 = vshrl.u32 %v4108, 7
        %v4110 = vsub.s32 %v4107, %v4109
        %v4111 = vrot.slane %v4097, %v4110
        %v4112 = vcombine.low %v4104, %v4111
        %v4113 = vcombine.low %v2667, %v2671
        %v4114 = vcombine.low %v2675, %v2679
        %v4115 = vcombine.low %v2683, %v2687
        %v4116 = vcombine.low %v2691, %v2695
        %v4118 = vunpack.c.l.s4 1966171168
        %v4119 = vunpack.c.0.s8 %v4118
        %v4120 = vlaneseq
        %v4121 = vshrl.u32 %v4120, 7
        %v4122 = vsub.s32 %v4119, %v4121
        %v4123 = vrot.slane %v4113, %v4122
        %v4125 = vunpack.c.l.s4 1966171168
        %v4126 = vunpack.c.0.s8 %v4125
        %v4127 = vlaneseq
        %v4128 = vshrl.u32 %v4127, 7
        %v4129 = vsub.s32 %v4126, %v4128
        %v4130 = vrot.slane %v4114, %v4129
        %v4132 = vunpack.c.l.s4 1966171168
        %v4133 = vunpack.c.0.s8 %v4132
        %v4134 = vlaneseq
        %v4135 = vshrl.u32 %v4134, 7
        %v4136 = vsub.s32 %v4133, %v4135
        %v4137 = vrot.slane %v4115, %v4136
        %v4139 = vunpack.c.l.s4 1966171168
        %v4140 = vunpack.c.0.s8 %v4139
        %v4141 = vlaneseq
        %v4142 = vshrl.u32 %v4141, 7
        %v4143 = vsub.s32 %v4140, %v4142
        %v4144 = vrot.slane %v4116, %v4143
        %v4145 = vcombine.low %v4123, %v4130
        %v4146 = vcombine.low %v4137, %v4144
        %v4148 = vunpack.c.l.s4 1966171168
        %v4149 = vunpack.c.0.s8 %v4148
        %v4150 = vlaneseq
        %v4151 = vshrl.u32 %v4150, 7
        %v4152 = vsub.s32 %v4149, %v4151
        %v4153 = vrot.slane %v4145, %v4152
        %v4155 = vunpack.c.l.s4 1966171168
        %v4156 = vunpack.c.0.s8 %v4155
        %v4157 = vlaneseq
        %v4158 = vshrl.u32 %v4157, 7
        %v4159 = vsub.s32 %v4156, %v4158
        %v4160 = vrot.slane %v4146, %v4159
        %v4161 = vcombine.low %v4153, %v4160
        %v4162 = vcombine.low %v2699, %v2703
        %v4163 = vcombine.low %v2707, %v2711
        %v4164 = vcombine.low %v2715, %v2719
        %v4165 = vcombine.low %v2723, %v2727
        %v4167 = vunpack.c.l.s4 1966171168
        %v4168 = vunpack.c.0.s8 %v4167
        %v4169 = vlaneseq
        %v4170 = vshrl.u32 %v4169, 7
        %v4171 = vsub.s32 %v4168, %v4170
        %v4172 = vrot.slane %v4162, %v4171
        %v4174 = vunpack.c.l.s4 1966171168
        %v4175 = vunpack.c.0.s8 %v4174
        %v4176 = vlaneseq
        %v4177 = vshrl.u32 %v4176, 7
        %v4178 = vsub.s32 %v4175, %v4177
        %v4179 = vrot.slane %v4163, %v4178
        %v4181 = vunpack.c.l.s4 1966171168
        %v4182 = vunpack.c.0.s8 %v4181
        %v4183 = vlaneseq
        %v4184 = vshrl.u32 %v4183, 7
        %v4185 = vsub.s32 %v4182, %v4184
        %v4186 = vrot.slane %v4164, %v4185
        %v4188 = vunpack.c.l.s4 1966171168
        %v4189 = vunpack.c.0.s8 %v4188
        %v4190 = vlaneseq
        %v4191 = vshrl.u32 %v4190, 7
        %v4192 = vsub.s32 %v4189, %v4191
        %v4193 = vrot.slane %v4165, %v4192
        %v4194 = vcombine.low %v4172, %v4179
        %v4195 = vcombine.low %v4186, %v4193
        %v4197 = vunpack.c.l.s4 1966171168
        %v4198 = vunpack.c.0.s8 %v4197
        %v4199 = vlaneseq
        %v4200 = vshrl.u32 %v4199, 7
        %v4201 = vsub.s32 %v4198, %v4200
        %v4202 = vrot.slane %v4194, %v4201
        %v4204 = vunpack.c.l.s4 1966171168
        %v4205 = vunpack.c.0.s8 %v4204
        %v4206 = vlaneseq
        %v4207 = vshrl.u32 %v4206, 7
        %v4208 = vsub.s32 %v4205, %v4207
        %v4209 = vrot.slane %v4195, %v4208
        %v4210 = vcombine.low %v4202, %v4209
        %v4211 = vcombine.low %v2731, %v2735
        %v4212 = vcombine.low %v2739, %v2743
        %v4213 = vcombine.low %v2747, %v2751
        %v4214 = vcombine.low %v2755, %v2759
        %v4216 = vunpack.c.l.s4 1966171168
        %v4217 = vunpack.c.0.s8 %v4216
        %v4218 = vlaneseq
        %v4219 = vshrl.u32 %v4218, 7
        %v4220 = vsub.s32 %v4217, %v4219
        %v4221 = vrot.slane %v4211, %v4220
        %v4223 = vunpack.c.l.s4 1966171168
        %v4224 = vunpack.c.0.s8 %v4223
        %v4225 = vlaneseq
        %v4226 = vshrl.u32 %v4225, 7
        %v4227 = vsub.s32 %v4224, %v4226
        %v4228 = vrot.slane %v4212, %v4227
        %v4230 = vunpack.c.l.s4 1966171168
        %v4231 = vunpack.c.0.s8 %v4230
        %v4232 = vlaneseq
        %v4233 = vshrl.u32 %v4232, 7
        %v4234 = vsub.s32 %v4231, %v4233
        %v4235 = vrot.slane %v4213, %v4234
        %v4237 = vunpack.c.l.s4 1966171168
        %v4238 = vunpack.c.0.s8 %v4237
        %v4239 = vlaneseq
        %v4240 = vshrl.u32 %v4239, 7
        %v4241 = vsub.s32 %v4238, %v4240
        %v4242 = vrot.slane %v4214, %v4241
        %v4243 = vcombine.low %v4221, %v4228
        %v4244 = vcombine.low %v4235, %v4242
        %v4246 = vunpack.c.l.s4 1966171168
        %v4247 = vunpack.c.0.s8 %v4246
        %v4248 = vlaneseq
        %v4249 = vshrl.u32 %v4248, 7
        %v4250 = vsub.s32 %v4247, %v4249
        %v4251 = vrot.slane %v4243, %v4250
        %v4253 = vunpack.c.l.s4 1966171168
        %v4254 = vunpack.c.0.s8 %v4253
        %v4255 = vlaneseq
        %v4256 = vshrl.u32 %v4255, 7
        %v4257 = vsub.s32 %v4254, %v4256
        %v4258 = vrot.slane %v4244, %v4257
        %v4259 = vcombine.low %v4251, %v4258
        %v4260 = vcombine.low %v2763, %v2767
        %v4261 = vcombine.low %v2771, %v2775
        %v4262 = vcombine.low %v2779, %v2783
        %v4263 = vcombine.low %v2787, %v2791
        %v4265 = vunpack.c.l.s4 1966171168
        %v4266 = vunpack.c.0.s8 %v4265
        %v4267 = vlaneseq
        %v4268 = vshrl.u32 %v4267, 7
        %v4269 = vsub.s32 %v4266, %v4268
        %v4270 = vrot.slane %v4260, %v4269
        %v4272 = vunpack.c.l.s4 1966171168
        %v4273 = vunpack.c.0.s8 %v4272
        %v4274 = vlaneseq
        %v4275 = vshrl.u32 %v4274, 7
        %v4276 = vsub.s32 %v4273, %v4275
        %v4277 = vrot.slane %v4261, %v4276
        %v4279 = vunpack.c.l.s4 1966171168
        %v4280 = vunpack.c.0.s8 %v4279
        %v4281 = vlaneseq
        %v4282 = vshrl.u32 %v4281, 7
        %v4283 = vsub.s32 %v4280, %v4282
        %v4284 = vrot.slane %v4262, %v4283
        %v4286 = vunpack.c.l.s4 1966171168
        %v4287 = vunpack.c.0.s8 %v4286
        %v4288 = vlaneseq
        %v4289 = vshrl.u32 %v4288, 7
        %v4290 = vsub.s32 %v4287, %v4289
        %v4291 = vrot.slane %v4263, %v4290
        %v4292 = vcombine.low %v4270, %v4277
        %v4293 = vcombine.low %v4284, %v4291
        %v4295 = vunpack.c.l.s4 1966171168
        %v4296 = vunpack.c.0.s8 %v4295
        %v4297 = vlaneseq
        %v4298 = vshrl.u32 %v4297, 7
        %v4299 = vsub.s32 %v4296, %v4298
        %v4300 = vrot.slane %v4292, %v4299
        %v4302 = vunpack.c.l.s4 1966171168
        %v4303 = vunpack.c.0.s8 %v4302
        %v4304 = vlaneseq
        %v4305 = vshrl.u32 %v4304, 7
        %v4306 = vsub.s32 %v4303, %v4305
        %v4307 = vrot.slane %v4293, %v4306
        %v4308 = vcombine.low %v4300, %v4307
        %v4309 = vcombine.low %v2795, %v2799
        %v4310 = vcombine.low %v2803, %v2807
        %v4311 = vcombine.low %v2811, %v2815
        %v4312 = vcombine.low %v2819, %v2823
        %v4314 = vunpack.c.l.s4 1966171168
        %v4315 = vunpack.c.0.s8 %v4314
        %v4316 = vlaneseq
        %v4317 = vshrl.u32 %v4316, 7
        %v4318 = vsub.s32 %v4315, %v4317
        %v4319 = vrot.slane %v4309, %v4318
        %v4321 = vunpack.c.l.s4 1966171168
        %v4322 = vunpack.c.0.s8 %v4321
        %v4323 = vlaneseq
        %v4324 = vshrl.u32 %v4323, 7
        %v4325 = vsub.s32 %v4322, %v4324
        %v4326 = vrot.slane %v4310, %v4325
        %v4328 = vunpack.c.l.s4 1966171168
        %v4329 = vunpack.c.0.s8 %v4328
        %v4330 = vlaneseq
        %v4331 = vshrl.u32 %v4330, 7
        %v4332 = vsub.s32 %v4329, %v4331
        %v4333 = vrot.slane %v4311, %v4332
        %v4335 = vunpack.c.l.s4 1966171168
        %v4336 = vunpack.c.0.s8 %v4335
        %v4337 = vlaneseq
        %v4338 = vshrl.u32 %v4337, 7
        %v4339 = vsub.s32 %v4336, %v4338
        %v4340 = vrot.slane %v4312, %v4339
        %v4341 = vcombine.low %v4319, %v4326
        %v4342 = vcombine.low %v4333, %v4340
        %v4344 = vunpack.c.l.s4 1966171168
        %v4345 = vunpack.c.0.s8 %v4344
        %v4346 = vlaneseq
        %v4347 = vshrl.u32 %v4346, 7
        %v4348 = vsub.s32 %v4345, %v4347
        %v4349 = vrot.slane %v4341, %v4348
        %v4351 = vunpack.c.l.s4 1966171168
        %v4352 = vunpack.c.0.s8 %v4351
        %v4353 = vlaneseq
        %v4354 = vshrl.u32 %v4353, 7
        %v4355 = vsub.s32 %v4352, %v4354
        %v4356 = vrot.slane %v4342, %v4355
        %v4357 = vcombine.low %v4349, %v4356
        %v4358 = vcombine.low %v2827, %v2831
        %v4359 = vcombine.low %v2835, %v2839
        %v4360 = vcombine.low %v2843, %v2847
        %v4361 = vcombine.low %v2851, %v2855
        %v4363 = vunpack.c.l.s4 1966171168
        %v4364 = vunpack.c.0.s8 %v4363
        %v4365 = vlaneseq
        %v4366 = vshrl.u32 %v4365, 7
        %v4367 = vsub.s32 %v4364, %v4366
        %v4368 = vrot.slane %v4358, %v4367
        %v4370 = vunpack.c.l.s4 1966171168
        %v4371 = vunpack.c.0.s8 %v4370
        %v4372 = vlaneseq
        %v4373 = vshrl.u32 %v4372, 7
        %v4374 = vsub.s32 %v4371, %v4373
        %v4375 = vrot.slane %v4359, %v4374
        %v4377 = vunpack.c.l.s4 1966171168
        %v4378 = vunpack.c.0.s8 %v4377
        %v4379 = vlaneseq
        %v4380 = vshrl.u32 %v4379, 7
        %v4381 = vsub.s32 %v4378, %v4380
        %v4382 = vrot.slane %v4360, %v4381
        %v4384 = vunpack.c.l.s4 1966171168
        %v4385 = vunpack.c.0.s8 %v4384
        %v4386 = vlaneseq
        %v4387 = vshrl.u32 %v4386, 7
        %v4388 = vsub.s32 %v4385, %v4387
        %v4389 = vrot.slane %v4361, %v4388
        %v4390 = vcombine.low %v4368, %v4375
        %v4391 = vcombine.low %v4382, %v4389
        %v4393 = vunpack.c.l.s4 1966171168
        %v4394 = vunpack.c.0.s8 %v4393
        %v4395 = vlaneseq
        %v4396 = vshrl.u32 %v4395, 7
        %v4397 = vsub.s32 %v4394, %v4396
        %v4398 = vrot.slane %v4390, %v4397
        %v4400 = vunpack.c.l.s4 1966171168
        %v4401 = vunpack.c.0.s8 %v4400
        %v4402 = vlaneseq
        %v4403 = vshrl.u32 %v4402, 7
        %v4404 = vsub.s32 %v4401, %v4403
        %v4405 = vrot.slane %v4391, %v4404
        %v4406 = vcombine.low %v4398, %v4405
        %v4407 = vcombine.low %v2859, %v2863
        %v4408 = vcombine.low %v2867, %v2871
        %v4409 = vcombine.low %v2875, %v2879
        %v4410 = vcombine.low %v2883, %v2887
        %v4412 = vunpack.c.l.s4 1966171168
        %v4413 = vunpack.c.0.s8 %v4412
        %v4414 = vlaneseq
        %v4415 = vshrl.u32 %v4414, 7
        %v4416 = vsub.s32 %v4413, %v4415
        %v4417 = vrot.slane %v4407, %v4416
        %v4419 = vunpack.c.l.s4 1966171168
        %v4420 = vunpack.c.0.s8 %v4419
        %v4421 = vlaneseq
        %v4422 = vshrl.u32 %v4421, 7
        %v4423 = vsub.s32 %v4420, %v4422
        %v4424 = vrot.slane %v4408, %v4423
        %v4426 = vunpack.c.l.s4 1966171168
        %v4427 = vunpack.c.0.s8 %v4426
        %v4428 = vlaneseq
        %v4429 = vshrl.u32 %v4428, 7
        %v4430 = vsub.s32 %v4427, %v4429
        %v4431 = vrot.slane %v4409, %v4430
        %v4433 = vunpack.c.l.s4 1966171168
        %v4434 = vunpack.c.0.s8 %v4433
        %v4435 = vlaneseq
        %v4436 = vshrl.u32 %v4435, 7
        %v4437 = vsub.s32 %v4434, %v4436
        %v4438 = vrot.slane %v4410, %v4437
        %v4439 = vcombine.low %v4417, %v4424
        %v4440 = vcombine.low %v4431, %v4438
        %v4442 = vunpack.c.l.s4 1966171168
        %v4443 = vunpack.c.0.s8 %v4442
        %v4444 = vlaneseq
        %v4445 = vshrl.u32 %v4444, 7
        %v4446 = vsub.s32 %v4443, %v4445
        %v4447 = vrot.slane %v4439, %v4446
        %v4449 = vunpack.c.l.s4 1966171168
        %v4450 = vunpack.c.0.s8 %v4449
        %v4451 = vlaneseq
        %v4452 = vshrl.u32 %v4451, 7
        %v4453 = vsub.s32 %v4450, %v4452
        %v4454 = vrot.slane %v4440, %v4453
        %v4455 = vcombine.low %v4447, %v4454
        %4456 = vset.pattern.permute.xlu0 0
        %4457 = vperm.xlu0 %4456, %v2936
        %v4458 = vpop.permute.xlu0 %4457
        %4459 = vset.pattern.permute.xlu0 0
        %4460 = vperm.xlu0 %4459, %v2985
        %v4461 = vpop.permute.xlu0 %4460
        %4462 = vset.pattern.permute.xlu0 0
        %4463 = vperm.xlu0 %4462, %v3034
        %v4464 = vpop.permute.xlu0 %4463
        %4465 = vset.pattern.permute.xlu0 0
        %4466 = vperm.xlu0 %4465, %v3083
        %v4467 = vpop.permute.xlu0 %4466
        %4468 = vset.pattern.permute.xlu0 0
        %4469 = vperm.xlu0 %4468, %v3132
        %v4470 = vpop.permute.xlu0 %4469
        %4471 = vset.pattern.permute.xlu0 0
        %4472 = vperm.xlu0 %4471, %v3181
        %v4473 = vpop.permute.xlu0 %4472
        %4474 = vset.pattern.permute.xlu0 0
        %4475 = vperm.xlu0 %4474, %v3230
        %v4476 = vpop.permute.xlu0 %4475
        %4477 = vset.pattern.permute.xlu0 0
        %4478 = vperm.xlu0 %4477, %v3279
        %v4479 = vpop.permute.xlu0 %4478
        %4480 = vset.pattern.permute.xlu0 0
        %4481 = vperm.xlu0 %4480, %v3328
        %v4482 = vpop.permute.xlu0 %4481
        %4483 = vset.pattern.permute.xlu0 0
        %4484 = vperm.xlu0 %4483, %v3377
        %v4485 = vpop.permute.xlu0 %4484
        %4486 = vset.pattern.permute.xlu0 0
        %4487 = vperm.xlu0 %4486, %v3426
        %v4488 = vpop.permute.xlu0 %4487
        %4489 = vset.pattern.permute.xlu0 0
        %4490 = vperm.xlu0 %4489, %v3475
        %v4491 = vpop.permute.xlu0 %4490
        %4492 = vset.pattern.permute.xlu0 0
        %4493 = vperm.xlu0 %4492, %v3524
        %v4494 = vpop.permute.xlu0 %4493
        %4495 = vset.pattern.permute.xlu0 0
        %4496 = vperm.xlu0 %4495, %v3573
        %v4497 = vpop.permute.xlu0 %4496
        %4498 = vset.pattern.permute.xlu0 0
        %4499 = vperm.xlu0 %4498, %v3622
        %v4500 = vpop.permute.xlu0 %4499
        %4501 = vset.pattern.permute.xlu0 0
        %4502 = vperm.xlu0 %4501, %v3671
        %v4503 = vpop.permute.xlu0 %4502
        %4504 = vset.pattern.permute.xlu0 0
        %4505 = vperm.xlu0 %4504, %v3720
        %v4506 = vpop.permute.xlu0 %4505
        %4507 = vset.pattern.permute.xlu0 0
        %4508 = vperm.xlu0 %4507, %v3769
        %v4509 = vpop.permute.xlu0 %4508
        %4510 = vset.pattern.permute.xlu0 0
        %4511 = vperm.xlu0 %4510, %v3818
        %v4512 = vpop.permute.xlu0 %4511
        %4513 = vset.pattern.permute.xlu0 0
        %4514 = vperm.xlu0 %4513, %v3867
        %v4515 = vpop.permute.xlu0 %4514
        %4516 = vset.pattern.permute.xlu0 0
        %4517 = vperm.xlu0 %4516, %v3916
        %v4518 = vpop.permute.xlu0 %4517
        %4519 = vset.pattern.permute.xlu0 0
        %4520 = vperm.xlu0 %4519, %v3965
        %v4521 = vpop.permute.xlu0 %4520
        %4522 = vset.pattern.permute.xlu0 0
        %4523 = vperm.xlu0 %4522, %v4014
        %v4524 = vpop.permute.xlu0 %4523
        %4525 = vset.pattern.permute.xlu0 0
        %4526 = vperm.xlu0 %4525, %v4063
        %v4527 = vpop.permute.xlu0 %4526
        %4528 = vset.pattern.permute.xlu0 0
        %4529 = vperm.xlu0 %4528, %v4112
        %v4530 = vpop.permute.xlu0 %4529
        %4531 = vset.pattern.permute.xlu0 0
        %4532 = vperm.xlu0 %4531, %v4161
        %v4533 = vpop.permute.xlu0 %4532
        %4534 = vset.pattern.permute.xlu0 0
        %4535 = vperm.xlu0 %4534, %v4210
        %v4536 = vpop.permute.xlu0 %4535
        %4537 = vset.pattern.permute.xlu0 0
        %4538 = vperm.xlu0 %4537, %v4259
        %v4539 = vpop.permute.xlu0 %4538
        %4540 = vset.pattern.permute.xlu0 0
        %4541 = vperm.xlu0 %4540, %v4308
        %v4542 = vpop.permute.xlu0 %4541
        %4543 = vset.pattern.permute.xlu0 0
        %4544 = vperm.xlu0 %4543, %v4357
        %v4545 = vpop.permute.xlu0 %4544
        %4546 = vset.pattern.permute.xlu0 0
        %4547 = vperm.xlu0 %4546, %v4406
        %v4548 = vpop.permute.xlu0 %4547
        %4549 = vset.pattern.permute.xlu0 0
        %4550 = vperm.xlu0 %4549, %v4455
        %v4551 = vpop.permute.xlu0 %4550
        %v4552 = vlaneseq
        %v4553 = vshrl.u32 %v4552, 7
        %v4554 = vsub.s32 %v740, %v4553
        %v4555 = vrot.slane %v4458, %v4554
        %v4556 = vadd.s32 %v740, 4294967288
        %v4557 = vlaneseq
        %v4558 = vshrl.u32 %v4557, 7
        %v4559 = vsub.s32 %v4556, %v4558
        %v4560 = vrot.slane %v4461, %v4559
        %vm4561 = vcmask 130112
        %v4562 = vsel %vm4561, %v4560, %v4555
        %v4563 = vadd.s32 %v740, 4294967280
        %v4564 = vlaneseq
        %v4565 = vshrl.u32 %v4564, 7
        %v4566 = vsub.s32 %v4563, %v4565
        %v4567 = vrot.slane %v4464, %v4566
        %vm4568 = vcmask 195712
        %v4569 = vsel %vm4568, %v4567, %v4562
        %v4570 = vadd.s32 %v740, 4294967272
        %v4571 = vlaneseq
        %v4572 = vshrl.u32 %v4571, 7
        %v4573 = vsub.s32 %v4570, %v4572
        %v4574 = vrot.slane %v4467, %v4573
        %vm4575 = vcmask 261312
        %v4576 = vsel %vm4575, %v4574, %v4569
        %v4577 = vadd.s32 %v740, 4294967264
        %v4578 = vlaneseq
        %v4579 = vshrl.u32 %v4578, 7
        %v4580 = vsub.s32 %v4577, %v4579
        %v4581 = vrot.slane %v4470, %v4580
        %vm4582 = vcmask 326912
        %v4583 = vsel %vm4582, %v4581, %v4576
        %v4584 = vadd.s32 %v740, 4294967256
        %v4585 = vlaneseq
        %v4586 = vshrl.u32 %v4585, 7
        %v4587 = vsub.s32 %v4584, %v4586
        %v4588 = vrot.slane %v4473, %v4587
        %vm4589 = vcmask 392512
        %v4590 = vsel %vm4589, %v4588, %v4583
        %v4591 = vadd.s32 %v740, 4294967248
        %v4592 = vlaneseq
        %v4593 = vshrl.u32 %v4592, 7
        %v4594 = vsub.s32 %v4591, %v4593
        %v4595 = vrot.slane %v4476, %v4594
        %vm4596 = vcmask 458112
        %v4597 = vsel %vm4596, %v4595, %v4590
        %v4598 = vadd.s32 %v740, 4294967240
        %v4599 = vlaneseq
        %v4600 = vshrl.u32 %v4599, 7
        %v4601 = vsub.s32 %v4598, %v4600
        %v4602 = vrot.slane %v4479, %v4601
        %vm4603 = vcmask 523712
        %v4604 = vsel %vm4603, %v4602, %v4597
        %v4605 = vadd.s32 %v740, 4294967232
        %v4606 = vlaneseq
        %v4607 = vshrl.u32 %v4606, 7
        %v4608 = vsub.s32 %v4605, %v4607
        %v4609 = vrot.slane %v4482, %v4608
        %vm4610 = vcmask 589312
        %v4611 = vsel %vm4610, %v4609, %v4604
        %v4612 = vadd.s32 %v740, 4294967224
        %v4613 = vlaneseq
        %v4614 = vshrl.u32 %v4613, 7
        %v4615 = vsub.s32 %v4612, %v4614
        %v4616 = vrot.slane %v4485, %v4615
        %vm4617 = vcmask 654912
        %v4618 = vsel %vm4617, %v4616, %v4611
        %v4619 = vadd.s32 %v740, 4294967216
        %v4620 = vlaneseq
        %v4621 = vshrl.u32 %v4620, 7
        %v4622 = vsub.s32 %v4619, %v4621
        %v4623 = vrot.slane %v4488, %v4622
        %vm4624 = vcmask 720512
        %v4625 = vsel %vm4624, %v4623, %v4618
        %v4626 = vadd.s32 %v740, 4294967208
        %v4627 = vlaneseq
        %v4628 = vshrl.u32 %v4627, 7
        %v4629 = vsub.s32 %v4626, %v4628
        %v4630 = vrot.slane %v4491, %v4629
        %vm4631 = vcmask 786112
        %v4632 = vsel %vm4631, %v4630, %v4625
        %v4633 = vadd.s32 %v740, 4294967200
        %v4634 = vlaneseq
        %v4635 = vshrl.u32 %v4634, 7
        %v4636 = vsub.s32 %v4633, %v4635
        %v4637 = vrot.slane %v4494, %v4636
        %vm4638 = vcmask 851712
        %v4639 = vsel %vm4638, %v4637, %v4632
        %v4640 = vadd.s32 %v740, 4294967192
        %v4641 = vlaneseq
        %v4642 = vshrl.u32 %v4641, 7
        %v4643 = vsub.s32 %v4640, %v4642
        %v4644 = vrot.slane %v4497, %v4643
        %vm4645 = vcmask 917312
        %v4646 = vsel %vm4645, %v4644, %v4639
        %v4647 = vadd.s32 %v740, 4294967184
        %v4648 = vlaneseq
        %v4649 = vshrl.u32 %v4648, 7
        %v4650 = vsub.s32 %v4647, %v4649
        %v4651 = vrot.slane %v4500, %v4650
        %vm4652 = vcmask 982912
        %v4653 = vsel %vm4652, %v4651, %v4646
        %v4654 = vadd.s32 %v740, 4294967176
        %v4655 = vlaneseq
        %v4656 = vshrl.u32 %v4655, 7
        %v4657 = vsub.s32 %v4654, %v4656
        %v4658 = vrot.slane %v4503, %v4657
        %vm4659 = vcmask 1048512
        %v4660 = vsel %vm4659, %v4658, %v4653
        %v4661 = vlaneseq
        %v4662 = vshrl.u32 %v4661, 7
        %v4663 = vsub.s32 %v740, %v4662
        %v4664 = vrot.slane %v4506, %v4663
        %v4665 = vlaneseq
        %v4666 = vshrl.u32 %v4665, 7
        %v4667 = vsub.s32 %v4556, %v4666
        %v4668 = vrot.slane %v4509, %v4667
        %v4669 = vsel %vm4561, %v4668, %v4664
        %v4670 = vlaneseq
        %v4671 = vshrl.u32 %v4670, 7
        %v4672 = vsub.s32 %v4563, %v4671
        %v4673 = vrot.slane %v4512, %v4672
        %v4674 = vsel %vm4568, %v4673, %v4669
        %v4675 = vlaneseq
        %v4676 = vshrl.u32 %v4675, 7
        %v4677 = vsub.s32 %v4570, %v4676
        %v4678 = vrot.slane %v4515, %v4677
        %v4679 = vsel %vm4575, %v4678, %v4674
        %v4680 = vlaneseq
        %v4681 = vshrl.u32 %v4680, 7
        %v4682 = vsub.s32 %v4577, %v4681
        %v4683 = vrot.slane %v4518, %v4682
        %v4684 = vsel %vm4582, %v4683, %v4679
        %v4685 = vlaneseq
        %v4686 = vshrl.u32 %v4685, 7
        %v4687 = vsub.s32 %v4584, %v4686
        %v4688 = vrot.slane %v4521, %v4687
        %v4689 = vsel %vm4589, %v4688, %v4684
        %v4690 = vlaneseq
        %v4691 = vshrl.u32 %v4690, 7
        %v4692 = vsub.s32 %v4591, %v4691
        %v4693 = vrot.slane %v4524, %v4692
        %v4694 = vsel %vm4596, %v4693, %v4689
        %v4695 = vlaneseq
        %v4696 = vshrl.u32 %v4695, 7
        %v4697 = vsub.s32 %v4598, %v4696
        %v4698 = vrot.slane %v4527, %v4697
        %v4699 = vsel %vm4603, %v4698, %v4694
        %v4700 = vlaneseq
        %v4701 = vshrl.u32 %v4700, 7
        %v4702 = vsub.s32 %v4605, %v4701
        %v4703 = vrot.slane %v4530, %v4702
        %v4704 = vsel %vm4610, %v4703, %v4699
        %v4705 = vlaneseq
        %v4706 = vshrl.u32 %v4705, 7
        %v4707 = vsub.s32 %v4612, %v4706
        %v4708 = vrot.slane %v4533, %v4707
        %v4709 = vsel %vm4617, %v4708, %v4704
        %v4710 = vlaneseq
        %v4711 = vshrl.u32 %v4710, 7
        %v4712 = vsub.s32 %v4619, %v4711
        %v4713 = vrot.slane %v4536, %v4712
        %v4714 = vsel %vm4624, %v4713, %v4709
        %v4715 = vlaneseq
        %v4716 = vshrl.u32 %v4715, 7
        %v4717 = vsub.s32 %v4626, %v4716
        %v4718 = vrot.slane %v4539, %v4717
        %v4719 = vsel %vm4631, %v4718, %v4714
        %v4720 = vlaneseq
        %v4721 = vshrl.u32 %v4720, 7
        %v4722 = vsub.s32 %v4633, %v4721
        %v4723 = vrot.slane %v4542, %v4722
        %v4724 = vsel %vm4638, %v4723, %v4719
        %v4725 = vlaneseq
        %v4726 = vshrl.u32 %v4725, 7
        %v4727 = vsub.s32 %v4640, %v4726
        %v4728 = vrot.slane %v4545, %v4727
        %v4729 = vsel %vm4645, %v4728, %v4724
        %v4730 = vlaneseq
        %v4731 = vshrl.u32 %v4730, 7
        %v4732 = vsub.s32 %v4647, %v4731
        %v4733 = vrot.slane %v4548, %v4732
        %v4734 = vsel %vm4652, %v4733, %v4729
        %v4735 = vlaneseq
        %v4736 = vshrl.u32 %v4735, 7
        %v4737 = vsub.s32 %v4654, %v4736
        %v4738 = vrot.slane %v4551, %v4737
        %v4739 = vsel %vm4659, %v4738, %v4734
        %v4740 = vcombine.low %v4660, %v4739
        %v4742 = vunpack.c.l.s4 1966171168
        %v4743 = vunpack.c.0.s8 %v4742
        %v4744 = vlaneseq
        %v4745 = vshrl.u32 %v4744, 7
        %v4746 = vsub.s32 %v4743, %v4745
        %v4747 = vrot.slane %v4740, %v4746
        %v4749 = vunpack.c.l.s4 1966171168
        %v4750 = vunpack.c.0.s8 %v4749
        %v4751 = vlaneseq
        %v4752 = vshrl.u32 %v4751, 7
        %v4753 = vsub.s32 %v4750, %v4752
        %v4754 = vrot.slane %v4747, %v4753
        %v4755 = vlaneseq
        %vm4756 = vcmp.ge.s32.totalorder %v4755, 0
        %vm4757 = vcmp.lt.s32.totalorder %v4755, 256
        %vm4758 = vmand %vm4756, %vm4757
        %4759 = vst.msk [vmem:[%s229] sm:$0x3] %vm4758, %v4754
        %v4792 = vlaneseq
        %v4793 = vshrl.u32 %v4792, 7
        %v4794 = vsub.s32 0, %v4793
        %v4795 = vrot.slane %v645, %v4794
        %v4796 = vlaneseq
        %v4797 = vshrl.u32 %v4796, 7
        %v4798 = vsub.s32 1, %v4797
        %v4799 = vrot.slane %v645, %v4798
        %v4800 = vlaneseq
        %v4801 = vshrl.u32 %v4800, 7
        %v4802 = vsub.s32 2, %v4801
        %v4803 = vrot.slane %v645, %v4802
        %v4804 = vlaneseq
        %v4805 = vshrl.u32 %v4804, 7
        %v4806 = vsub.s32 3, %v4805
        %v4807 = vrot.slane %v645, %v4806
        %v4808 = vlaneseq
        %v4809 = vshrl.u32 %v4808, 7
        %v4810 = vsub.s32 4, %v4809
        %v4811 = vrot.slane %v645, %v4810
        %v4812 = vlaneseq
        %v4813 = vshrl.u32 %v4812, 7
        %v4814 = vsub.s32 5, %v4813
        %v4815 = vrot.slane %v645, %v4814
        %v4816 = vlaneseq
        %v4817 = vshrl.u32 %v4816, 7
        %v4818 = vsub.s32 6, %v4817
        %v4819 = vrot.slane %v645, %v4818
        %v4820 = vlaneseq
        %v4821 = vshrl.u32 %v4820, 7
        %v4822 = vsub.s32 7, %v4821
        %v4823 = vrot.slane %v645, %v4822
        %v4824 = vlaneseq
        %v4825 = vshrl.u32 %v4824, 7
        %v4826 = vsub.s32 0, %v4825
        %v4827 = vrot.slane %v648, %v4826
        %v4828 = vlaneseq
        %v4829 = vshrl.u32 %v4828, 7
        %v4830 = vsub.s32 1, %v4829
        %v4831 = vrot.slane %v648, %v4830
        %v4832 = vlaneseq
        %v4833 = vshrl.u32 %v4832, 7
        %v4834 = vsub.s32 2, %v4833
        %v4835 = vrot.slane %v648, %v4834
        %v4836 = vlaneseq
        %v4837 = vshrl.u32 %v4836, 7
        %v4838 = vsub.s32 3, %v4837
        %v4839 = vrot.slane %v648, %v4838
        %v4840 = vlaneseq
        %v4841 = vshrl.u32 %v4840, 7
        %v4842 = vsub.s32 4, %v4841
        %v4843 = vrot.slane %v648, %v4842
        %v4844 = vlaneseq
        %v4845 = vshrl.u32 %v4844, 7
        %v4846 = vsub.s32 5, %v4845
        %v4847 = vrot.slane %v648, %v4846
        %v4848 = vlaneseq
        %v4849 = vshrl.u32 %v4848, 7
        %v4850 = vsub.s32 6, %v4849
        %v4851 = vrot.slane %v648, %v4850
        %v4852 = vlaneseq
        %v4853 = vshrl.u32 %v4852, 7
        %v4854 = vsub.s32 7, %v4853
        %v4855 = vrot.slane %v648, %v4854
        %v4856 = vlaneseq
        %v4857 = vshrl.u32 %v4856, 7
        %v4858 = vsub.s32 0, %v4857
        %v4859 = vrot.slane %v651, %v4858
        %v4860 = vlaneseq
        %v4861 = vshrl.u32 %v4860, 7
        %v4862 = vsub.s32 1, %v4861
        %v4863 = vrot.slane %v651, %v4862
        %v4864 = vlaneseq
        %v4865 = vshrl.u32 %v4864, 7
        %v4866 = vsub.s32 2, %v4865
        %v4867 = vrot.slane %v651, %v4866
        %v4868 = vlaneseq
        %v4869 = vshrl.u32 %v4868, 7
        %v4870 = vsub.s32 3, %v4869
        %v4871 = vrot.slane %v651, %v4870
        %v4872 = vlaneseq
        %v4873 = vshrl.u32 %v4872, 7
        %v4874 = vsub.s32 4, %v4873
        %v4875 = vrot.slane %v651, %v4874
        %v4876 = vlaneseq
        %v4877 = vshrl.u32 %v4876, 7
        %v4878 = vsub.s32 5, %v4877
        %v4879 = vrot.slane %v651, %v4878
        %v4880 = vlaneseq
        %v4881 = vshrl.u32 %v4880, 7
        %v4882 = vsub.s32 6, %v4881
        %v4883 = vrot.slane %v651, %v4882
        %v4884 = vlaneseq
        %v4885 = vshrl.u32 %v4884, 7
        %v4886 = vsub.s32 7, %v4885
        %v4887 = vrot.slane %v651, %v4886
        %v4888 = vlaneseq
        %v4889 = vshrl.u32 %v4888, 7
        %v4890 = vsub.s32 0, %v4889
        %v4891 = vrot.slane %v654, %v4890
        %v4892 = vlaneseq
        %v4893 = vshrl.u32 %v4892, 7
        %v4894 = vsub.s32 1, %v4893
        %v4895 = vrot.slane %v654, %v4894
        %v4896 = vlaneseq
        %v4897 = vshrl.u32 %v4896, 7
        %v4898 = vsub.s32 2, %v4897
        %v4899 = vrot.slane %v654, %v4898
        %v4900 = vlaneseq
        %v4901 = vshrl.u32 %v4900, 7
        %v4902 = vsub.s32 3, %v4901
        %v4903 = vrot.slane %v654, %v4902
        %v4904 = vlaneseq
        %v4905 = vshrl.u32 %v4904, 7
        %v4906 = vsub.s32 4, %v4905
        %v4907 = vrot.slane %v654, %v4906
        %v4908 = vlaneseq
        %v4909 = vshrl.u32 %v4908, 7
        %v4910 = vsub.s32 5, %v4909
        %v4911 = vrot.slane %v654, %v4910
        %v4912 = vlaneseq
        %v4913 = vshrl.u32 %v4912, 7
        %v4914 = vsub.s32 6, %v4913
        %v4915 = vrot.slane %v654, %v4914
        %v4916 = vlaneseq
        %v4917 = vshrl.u32 %v4916, 7
        %v4918 = vsub.s32 7, %v4917
        %v4919 = vrot.slane %v654, %v4918
        %v4920 = vlaneseq
        %v4921 = vshrl.u32 %v4920, 7
        %v4922 = vsub.s32 0, %v4921
        %v4923 = vrot.slane %v657, %v4922
        %v4924 = vlaneseq
        %v4925 = vshrl.u32 %v4924, 7
        %v4926 = vsub.s32 1, %v4925
        %v4927 = vrot.slane %v657, %v4926
        %v4928 = vlaneseq
        %v4929 = vshrl.u32 %v4928, 7
        %v4930 = vsub.s32 2, %v4929
        %v4931 = vrot.slane %v657, %v4930
        %v4932 = vlaneseq
        %v4933 = vshrl.u32 %v4932, 7
        %v4934 = vsub.s32 3, %v4933
        %v4935 = vrot.slane %v657, %v4934
        %v4936 = vlaneseq
        %v4937 = vshrl.u32 %v4936, 7
        %v4938 = vsub.s32 4, %v4937
        %v4939 = vrot.slane %v657, %v4938
        %v4940 = vlaneseq
        %v4941 = vshrl.u32 %v4940, 7
        %v4942 = vsub.s32 5, %v4941
        %v4943 = vrot.slane %v657, %v4942
        %v4944 = vlaneseq
        %v4945 = vshrl.u32 %v4944, 7
        %v4946 = vsub.s32 6, %v4945
        %v4947 = vrot.slane %v657, %v4946
        %v4948 = vlaneseq
        %v4949 = vshrl.u32 %v4948, 7
        %v4950 = vsub.s32 7, %v4949
        %v4951 = vrot.slane %v657, %v4950
        %v4952 = vlaneseq
        %v4953 = vshrl.u32 %v4952, 7
        %v4954 = vsub.s32 0, %v4953
        %v4955 = vrot.slane %v660, %v4954
        %v4956 = vlaneseq
        %v4957 = vshrl.u32 %v4956, 7
        %v4958 = vsub.s32 1, %v4957
        %v4959 = vrot.slane %v660, %v4958
        %v4960 = vlaneseq
        %v4961 = vshrl.u32 %v4960, 7
        %v4962 = vsub.s32 2, %v4961
        %v4963 = vrot.slane %v660, %v4962
        %v4964 = vlaneseq
        %v4965 = vshrl.u32 %v4964, 7
        %v4966 = vsub.s32 3, %v4965
        %v4967 = vrot.slane %v660, %v4966
        %v4968 = vlaneseq
        %v4969 = vshrl.u32 %v4968, 7
        %v4970 = vsub.s32 4, %v4969
        %v4971 = vrot.slane %v660, %v4970
        %v4972 = vlaneseq
        %v4973 = vshrl.u32 %v4972, 7
        %v4974 = vsub.s32 5, %v4973
        %v4975 = vrot.slane %v660, %v4974
        %v4976 = vlaneseq
        %v4977 = vshrl.u32 %v4976, 7
        %v4978 = vsub.s32 6, %v4977
        %v4979 = vrot.slane %v660, %v4978
        %v4980 = vlaneseq
        %v4981 = vshrl.u32 %v4980, 7
        %v4982 = vsub.s32 7, %v4981
        %v4983 = vrot.slane %v660, %v4982
        %v4984 = vlaneseq
        %v4985 = vshrl.u32 %v4984, 7
        %v4986 = vsub.s32 0, %v4985
        %v4987 = vrot.slane %v663, %v4986
        %v4988 = vlaneseq
        %v4989 = vshrl.u32 %v4988, 7
        %v4990 = vsub.s32 1, %v4989
        %v4991 = vrot.slane %v663, %v4990
        %v4992 = vlaneseq
        %v4993 = vshrl.u32 %v4992, 7
        %v4994 = vsub.s32 2, %v4993
        %v4995 = vrot.slane %v663, %v4994
        %v4996 = vlaneseq
        %v4997 = vshrl.u32 %v4996, 7
        %v4998 = vsub.s32 3, %v4997
        %v4999 = vrot.slane %v663, %v4998
        %v5000 = vlaneseq
        %v5001 = vshrl.u32 %v5000, 7
        %v5002 = vsub.s32 4, %v5001
        %v5003 = vrot.slane %v663, %v5002
        %v5004 = vlaneseq
        %v5005 = vshrl.u32 %v5004, 7
        %v5006 = vsub.s32 5, %v5005
        %v5007 = vrot.slane %v663, %v5006
        %v5008 = vlaneseq
        %v5009 = vshrl.u32 %v5008, 7
        %v5010 = vsub.s32 6, %v5009
        %v5011 = vrot.slane %v663, %v5010
        %v5012 = vlaneseq
        %v5013 = vshrl.u32 %v5012, 7
        %v5014 = vsub.s32 7, %v5013
        %v5015 = vrot.slane %v663, %v5014
        %v5016 = vlaneseq
        %v5017 = vshrl.u32 %v5016, 7
        %v5018 = vsub.s32 0, %v5017
        %v5019 = vrot.slane %v666, %v5018
        %v5020 = vlaneseq
        %v5021 = vshrl.u32 %v5020, 7
        %v5022 = vsub.s32 1, %v5021
        %v5023 = vrot.slane %v666, %v5022
        %v5024 = vlaneseq
        %v5025 = vshrl.u32 %v5024, 7
        %v5026 = vsub.s32 2, %v5025
        %v5027 = vrot.slane %v666, %v5026
        %v5028 = vlaneseq
        %v5029 = vshrl.u32 %v5028, 7
        %v5030 = vsub.s32 3, %v5029
        %v5031 = vrot.slane %v666, %v5030
        %v5032 = vlaneseq
        %v5033 = vshrl.u32 %v5032, 7
        %v5034 = vsub.s32 4, %v5033
        %v5035 = vrot.slane %v666, %v5034
        %v5036 = vlaneseq
        %v5037 = vshrl.u32 %v5036, 7
        %v5038 = vsub.s32 5, %v5037
        %v5039 = vrot.slane %v666, %v5038
        %v5040 = vlaneseq
        %v5041 = vshrl.u32 %v5040, 7
        %v5042 = vsub.s32 6, %v5041
        %v5043 = vrot.slane %v666, %v5042
        %v5044 = vlaneseq
        %v5045 = vshrl.u32 %v5044, 7
        %v5046 = vsub.s32 7, %v5045
        %v5047 = vrot.slane %v666, %v5046
        %v5048 = vlaneseq
        %v5049 = vshrl.u32 %v5048, 7
        %v5050 = vsub.s32 0, %v5049
        %v5051 = vrot.slane %v669, %v5050
        %v5052 = vlaneseq
        %v5053 = vshrl.u32 %v5052, 7
        %v5054 = vsub.s32 1, %v5053
        %v5055 = vrot.slane %v669, %v5054
        %v5056 = vlaneseq
        %v5057 = vshrl.u32 %v5056, 7
        %v5058 = vsub.s32 2, %v5057
        %v5059 = vrot.slane %v669, %v5058
        %v5060 = vlaneseq
        %v5061 = vshrl.u32 %v5060, 7
        %v5062 = vsub.s32 3, %v5061
        %v5063 = vrot.slane %v669, %v5062
        %v5064 = vlaneseq
        %v5065 = vshrl.u32 %v5064, 7
        %v5066 = vsub.s32 4, %v5065
        %v5067 = vrot.slane %v669, %v5066
        %v5068 = vlaneseq
        %v5069 = vshrl.u32 %v5068, 7
        %v5070 = vsub.s32 5, %v5069
        %v5071 = vrot.slane %v669, %v5070
        %v5072 = vlaneseq
        %v5073 = vshrl.u32 %v5072, 7
        %v5074 = vsub.s32 6, %v5073
        %v5075 = vrot.slane %v669, %v5074
        %v5076 = vlaneseq
        %v5077 = vshrl.u32 %v5076, 7
        %v5078 = vsub.s32 7, %v5077
        %v5079 = vrot.slane %v669, %v5078
        %v5080 = vlaneseq
        %v5081 = vshrl.u32 %v5080, 7
        %v5082 = vsub.s32 0, %v5081
        %v5083 = vrot.slane %v672, %v5082
        %v5084 = vlaneseq
        %v5085 = vshrl.u32 %v5084, 7
        %v5086 = vsub.s32 1, %v5085
        %v5087 = vrot.slane %v672, %v5086
        %v5088 = vlaneseq
        %v5089 = vshrl.u32 %v5088, 7
        %v5090 = vsub.s32 2, %v5089
        %v5091 = vrot.slane %v672, %v5090
        %v5092 = vlaneseq
        %v5093 = vshrl.u32 %v5092, 7
        %v5094 = vsub.s32 3, %v5093
        %v5095 = vrot.slane %v672, %v5094
        %v5096 = vlaneseq
        %v5097 = vshrl.u32 %v5096, 7
        %v5098 = vsub.s32 4, %v5097
        %v5099 = vrot.slane %v672, %v5098
        %v5100 = vlaneseq
        %v5101 = vshrl.u32 %v5100, 7
        %v5102 = vsub.s32 5, %v5101
        %v5103 = vrot.slane %v672, %v5102
        %v5104 = vlaneseq
        %v5105 = vshrl.u32 %v5104, 7
        %v5106 = vsub.s32 6, %v5105
        %v5107 = vrot.slane %v672, %v5106
        %v5108 = vlaneseq
        %v5109 = vshrl.u32 %v5108, 7
        %v5110 = vsub.s32 7, %v5109
        %v5111 = vrot.slane %v672, %v5110
        %v5112 = vlaneseq
        %v5113 = vshrl.u32 %v5112, 7
        %v5114 = vsub.s32 0, %v5113
        %v5115 = vrot.slane %v675, %v5114
        %v5116 = vlaneseq
        %v5117 = vshrl.u32 %v5116, 7
        %v5118 = vsub.s32 1, %v5117
        %v5119 = vrot.slane %v675, %v5118
        %v5120 = vlaneseq
        %v5121 = vshrl.u32 %v5120, 7
        %v5122 = vsub.s32 2, %v5121
        %v5123 = vrot.slane %v675, %v5122
        %v5124 = vlaneseq
        %v5125 = vshrl.u32 %v5124, 7
        %v5126 = vsub.s32 3, %v5125
        %v5127 = vrot.slane %v675, %v5126
        %v5128 = vlaneseq
        %v5129 = vshrl.u32 %v5128, 7
        %v5130 = vsub.s32 4, %v5129
        %v5131 = vrot.slane %v675, %v5130
        %v5132 = vlaneseq
        %v5133 = vshrl.u32 %v5132, 7
        %v5134 = vsub.s32 5, %v5133
        %v5135 = vrot.slane %v675, %v5134
        %v5136 = vlaneseq
        %v5137 = vshrl.u32 %v5136, 7
        %v5138 = vsub.s32 6, %v5137
        %v5139 = vrot.slane %v675, %v5138
        %v5140 = vlaneseq
        %v5141 = vshrl.u32 %v5140, 7
        %v5142 = vsub.s32 7, %v5141
        %v5143 = vrot.slane %v675, %v5142
        %v5144 = vlaneseq
        %v5145 = vshrl.u32 %v5144, 7
        %v5146 = vsub.s32 0, %v5145
        %v5147 = vrot.slane %v678, %v5146
        %v5148 = vlaneseq
        %v5149 = vshrl.u32 %v5148, 7
        %v5150 = vsub.s32 1, %v5149
        %v5151 = vrot.slane %v678, %v5150
        %v5152 = vlaneseq
        %v5153 = vshrl.u32 %v5152, 7
        %v5154 = vsub.s32 2, %v5153
        %v5155 = vrot.slane %v678, %v5154
        %v5156 = vlaneseq
        %v5157 = vshrl.u32 %v5156, 7
        %v5158 = vsub.s32 3, %v5157
        %v5159 = vrot.slane %v678, %v5158
        %v5160 = vlaneseq
        %v5161 = vshrl.u32 %v5160, 7
        %v5162 = vsub.s32 4, %v5161
        %v5163 = vrot.slane %v678, %v5162
        %v5164 = vlaneseq
        %v5165 = vshrl.u32 %v5164, 7
        %v5166 = vsub.s32 5, %v5165
        %v5167 = vrot.slane %v678, %v5166
        %v5168 = vlaneseq
        %v5169 = vshrl.u32 %v5168, 7
        %v5170 = vsub.s32 6, %v5169
        %v5171 = vrot.slane %v678, %v5170
        %v5172 = vlaneseq
        %v5173 = vshrl.u32 %v5172, 7
        %v5174 = vsub.s32 7, %v5173
        %v5175 = vrot.slane %v678, %v5174
        %v5176 = vlaneseq
        %v5177 = vshrl.u32 %v5176, 7
        %v5178 = vsub.s32 0, %v5177
        %v5179 = vrot.slane %v681, %v5178
        %v5180 = vlaneseq
        %v5181 = vshrl.u32 %v5180, 7
        %v5182 = vsub.s32 1, %v5181
        %v5183 = vrot.slane %v681, %v5182
        %v5184 = vlaneseq
        %v5185 = vshrl.u32 %v5184, 7
        %v5186 = vsub.s32 2, %v5185
        %v5187 = vrot.slane %v681, %v5186
        %v5188 = vlaneseq
        %v5189 = vshrl.u32 %v5188, 7
        %v5190 = vsub.s32 3, %v5189
        %v5191 = vrot.slane %v681, %v5190
        %v5192 = vlaneseq
        %v5193 = vshrl.u32 %v5192, 7
        %v5194 = vsub.s32 4, %v5193
        %v5195 = vrot.slane %v681, %v5194
        %v5196 = vlaneseq
        %v5197 = vshrl.u32 %v5196, 7
        %v5198 = vsub.s32 5, %v5197
        %v5199 = vrot.slane %v681, %v5198
        %v5200 = vlaneseq
        %v5201 = vshrl.u32 %v5200, 7
        %v5202 = vsub.s32 6, %v5201
        %v5203 = vrot.slane %v681, %v5202
        %v5204 = vlaneseq
        %v5205 = vshrl.u32 %v5204, 7
        %v5206 = vsub.s32 7, %v5205
        %v5207 = vrot.slane %v681, %v5206
        %v5208 = vlaneseq
        %v5209 = vshrl.u32 %v5208, 7
        %v5210 = vsub.s32 0, %v5209
        %v5211 = vrot.slane %v684, %v5210
        %v5212 = vlaneseq
        %v5213 = vshrl.u32 %v5212, 7
        %v5214 = vsub.s32 1, %v5213
        %v5215 = vrot.slane %v684, %v5214
        %v5216 = vlaneseq
        %v5217 = vshrl.u32 %v5216, 7
        %v5218 = vsub.s32 2, %v5217
        %v5219 = vrot.slane %v684, %v5218
        %v5220 = vlaneseq
        %v5221 = vshrl.u32 %v5220, 7
        %v5222 = vsub.s32 3, %v5221
        %v5223 = vrot.slane %v684, %v5222
        %v5224 = vlaneseq
        %v5225 = vshrl.u32 %v5224, 7
        %v5226 = vsub.s32 4, %v5225
        %v5227 = vrot.slane %v684, %v5226
        %v5228 = vlaneseq
        %v5229 = vshrl.u32 %v5228, 7
        %v5230 = vsub.s32 5, %v5229
        %v5231 = vrot.slane %v684, %v5230
        %v5232 = vlaneseq
        %v5233 = vshrl.u32 %v5232, 7
        %v5234 = vsub.s32 6, %v5233
        %v5235 = vrot.slane %v684, %v5234
        %v5236 = vlaneseq
        %v5237 = vshrl.u32 %v5236, 7
        %v5238 = vsub.s32 7, %v5237
        %v5239 = vrot.slane %v684, %v5238
        %v5240 = vlaneseq
        %v5241 = vshrl.u32 %v5240, 7
        %v5242 = vsub.s32 0, %v5241
        %v5243 = vrot.slane %v687, %v5242
        %v5244 = vlaneseq
        %v5245 = vshrl.u32 %v5244, 7
        %v5246 = vsub.s32 1, %v5245
        %v5247 = vrot.slane %v687, %v5246
        %v5248 = vlaneseq
        %v5249 = vshrl.u32 %v5248, 7
        %v5250 = vsub.s32 2, %v5249
        %v5251 = vrot.slane %v687, %v5250
        %v5252 = vlaneseq
        %v5253 = vshrl.u32 %v5252, 7
        %v5254 = vsub.s32 3, %v5253
        %v5255 = vrot.slane %v687, %v5254
        %v5256 = vlaneseq
        %v5257 = vshrl.u32 %v5256, 7
        %v5258 = vsub.s32 4, %v5257
        %v5259 = vrot.slane %v687, %v5258
        %v5260 = vlaneseq
        %v5261 = vshrl.u32 %v5260, 7
        %v5262 = vsub.s32 5, %v5261
        %v5263 = vrot.slane %v687, %v5262
        %v5264 = vlaneseq
        %v5265 = vshrl.u32 %v5264, 7
        %v5266 = vsub.s32 6, %v5265
        %v5267 = vrot.slane %v687, %v5266
        %v5268 = vlaneseq
        %v5269 = vshrl.u32 %v5268, 7
        %v5270 = vsub.s32 7, %v5269
        %v5271 = vrot.slane %v687, %v5270
        %v5272 = vlaneseq
        %v5273 = vshrl.u32 %v5272, 7
        %v5274 = vsub.s32 0, %v5273
        %v5275 = vrot.slane %v690, %v5274
        %v5276 = vlaneseq
        %v5277 = vshrl.u32 %v5276, 7
        %v5278 = vsub.s32 1, %v5277
        %v5279 = vrot.slane %v690, %v5278
        %v5280 = vlaneseq
        %v5281 = vshrl.u32 %v5280, 7
        %v5282 = vsub.s32 2, %v5281
        %v5283 = vrot.slane %v690, %v5282
        %v5284 = vlaneseq
        %v5285 = vshrl.u32 %v5284, 7
        %v5286 = vsub.s32 3, %v5285
        %v5287 = vrot.slane %v690, %v5286
        %v5288 = vlaneseq
        %v5289 = vshrl.u32 %v5288, 7
        %v5290 = vsub.s32 4, %v5289
        %v5291 = vrot.slane %v690, %v5290
        %v5292 = vlaneseq
        %v5293 = vshrl.u32 %v5292, 7
        %v5294 = vsub.s32 5, %v5293
        %v5295 = vrot.slane %v690, %v5294
        %v5296 = vlaneseq
        %v5297 = vshrl.u32 %v5296, 7
        %v5298 = vsub.s32 6, %v5297
        %v5299 = vrot.slane %v690, %v5298
        %v5300 = vlaneseq
        %v5301 = vshrl.u32 %v5300, 7
        %v5302 = vsub.s32 7, %v5301
        %v5303 = vrot.slane %v690, %v5302
        %v5304 = vlaneseq
        %v5305 = vshrl.u32 %v5304, 7
        %v5306 = vsub.s32 0, %v5305
        %v5307 = vrot.slane %v693, %v5306
        %v5308 = vlaneseq
        %v5309 = vshrl.u32 %v5308, 7
        %v5310 = vsub.s32 1, %v5309
        %v5311 = vrot.slane %v693, %v5310
        %v5312 = vlaneseq
        %v5313 = vshrl.u32 %v5312, 7
        %v5314 = vsub.s32 2, %v5313
        %v5315 = vrot.slane %v693, %v5314
        %v5316 = vlaneseq
        %v5317 = vshrl.u32 %v5316, 7
        %v5318 = vsub.s32 3, %v5317
        %v5319 = vrot.slane %v693, %v5318
        %v5320 = vlaneseq
        %v5321 = vshrl.u32 %v5320, 7
        %v5322 = vsub.s32 4, %v5321
        %v5323 = vrot.slane %v693, %v5322
        %v5324 = vlaneseq
        %v5325 = vshrl.u32 %v5324, 7
        %v5326 = vsub.s32 5, %v5325
        %v5327 = vrot.slane %v693, %v5326
        %v5328 = vlaneseq
        %v5329 = vshrl.u32 %v5328, 7
        %v5330 = vsub.s32 6, %v5329
        %v5331 = vrot.slane %v693, %v5330
        %v5332 = vlaneseq
        %v5333 = vshrl.u32 %v5332, 7
        %v5334 = vsub.s32 7, %v5333
        %v5335 = vrot.slane %v693, %v5334
        %v5336 = vlaneseq
        %v5337 = vshrl.u32 %v5336, 7
        %v5338 = vsub.s32 0, %v5337
        %v5339 = vrot.slane %v696, %v5338
        %v5340 = vlaneseq
        %v5341 = vshrl.u32 %v5340, 7
        %v5342 = vsub.s32 1, %v5341
        %v5343 = vrot.slane %v696, %v5342
        %v5344 = vlaneseq
        %v5345 = vshrl.u32 %v5344, 7
        %v5346 = vsub.s32 2, %v5345
        %v5347 = vrot.slane %v696, %v5346
        %v5348 = vlaneseq
        %v5349 = vshrl.u32 %v5348, 7
        %v5350 = vsub.s32 3, %v5349
        %v5351 = vrot.slane %v696, %v5350
        %v5352 = vlaneseq
        %v5353 = vshrl.u32 %v5352, 7
        %v5354 = vsub.s32 4, %v5353
        %v5355 = vrot.slane %v696, %v5354
        %v5356 = vlaneseq
        %v5357 = vshrl.u32 %v5356, 7
        %v5358 = vsub.s32 5, %v5357
        %v5359 = vrot.slane %v696, %v5358
        %v5360 = vlaneseq
        %v5361 = vshrl.u32 %v5360, 7
        %v5362 = vsub.s32 6, %v5361
        %v5363 = vrot.slane %v696, %v5362
        %v5364 = vlaneseq
        %v5365 = vshrl.u32 %v5364, 7
        %v5366 = vsub.s32 7, %v5365
        %v5367 = vrot.slane %v696, %v5366
        %v5368 = vlaneseq
        %v5369 = vshrl.u32 %v5368, 7
        %v5370 = vsub.s32 0, %v5369
        %v5371 = vrot.slane %v699, %v5370
        %v5372 = vlaneseq
        %v5373 = vshrl.u32 %v5372, 7
        %v5374 = vsub.s32 1, %v5373
        %v5375 = vrot.slane %v699, %v5374
        %v5376 = vlaneseq
        %v5377 = vshrl.u32 %v5376, 7
        %v5378 = vsub.s32 2, %v5377
        %v5379 = vrot.slane %v699, %v5378
        %v5380 = vlaneseq
        %v5381 = vshrl.u32 %v5380, 7
        %v5382 = vsub.s32 3, %v5381
        %v5383 = vrot.slane %v699, %v5382
        %v5384 = vlaneseq
        %v5385 = vshrl.u32 %v5384, 7
        %v5386 = vsub.s32 4, %v5385
        %v5387 = vrot.slane %v699, %v5386
        %v5388 = vlaneseq
        %v5389 = vshrl.u32 %v5388, 7
        %v5390 = vsub.s32 5, %v5389
        %v5391 = vrot.slane %v699, %v5390
        %v5392 = vlaneseq
        %v5393 = vshrl.u32 %v5392, 7
        %v5394 = vsub.s32 6, %v5393
        %v5395 = vrot.slane %v699, %v5394
        %v5396 = vlaneseq
        %v5397 = vshrl.u32 %v5396, 7
        %v5398 = vsub.s32 7, %v5397
        %v5399 = vrot.slane %v699, %v5398
        %v5400 = vlaneseq
        %v5401 = vshrl.u32 %v5400, 7
        %v5402 = vsub.s32 0, %v5401
        %v5403 = vrot.slane %v702, %v5402
        %v5404 = vlaneseq
        %v5405 = vshrl.u32 %v5404, 7
        %v5406 = vsub.s32 1, %v5405
        %v5407 = vrot.slane %v702, %v5406
        %v5408 = vlaneseq
        %v5409 = vshrl.u32 %v5408, 7
        %v5410 = vsub.s32 2, %v5409
        %v5411 = vrot.slane %v702, %v5410
        %v5412 = vlaneseq
        %v5413 = vshrl.u32 %v5412, 7
        %v5414 = vsub.s32 3, %v5413
        %v5415 = vrot.slane %v702, %v5414
        %v5416 = vlaneseq
        %v5417 = vshrl.u32 %v5416, 7
        %v5418 = vsub.s32 4, %v5417
        %v5419 = vrot.slane %v702, %v5418
        %v5420 = vlaneseq
        %v5421 = vshrl.u32 %v5420, 7
        %v5422 = vsub.s32 5, %v5421
        %v5423 = vrot.slane %v702, %v5422
        %v5424 = vlaneseq
        %v5425 = vshrl.u32 %v5424, 7
        %v5426 = vsub.s32 6, %v5425
        %v5427 = vrot.slane %v702, %v5426
        %v5428 = vlaneseq
        %v5429 = vshrl.u32 %v5428, 7
        %v5430 = vsub.s32 7, %v5429
        %v5431 = vrot.slane %v702, %v5430
        %v5432 = vlaneseq
        %v5433 = vshrl.u32 %v5432, 7
        %v5434 = vsub.s32 0, %v5433
        %v5435 = vrot.slane %v705, %v5434
        %v5436 = vlaneseq
        %v5437 = vshrl.u32 %v5436, 7
        %v5438 = vsub.s32 1, %v5437
        %v5439 = vrot.slane %v705, %v5438
        %v5440 = vlaneseq
        %v5441 = vshrl.u32 %v5440, 7
        %v5442 = vsub.s32 2, %v5441
        %v5443 = vrot.slane %v705, %v5442
        %v5444 = vlaneseq
        %v5445 = vshrl.u32 %v5444, 7
        %v5446 = vsub.s32 3, %v5445
        %v5447 = vrot.slane %v705, %v5446
        %v5448 = vlaneseq
        %v5449 = vshrl.u32 %v5448, 7
        %v5450 = vsub.s32 4, %v5449
        %v5451 = vrot.slane %v705, %v5450
        %v5452 = vlaneseq
        %v5453 = vshrl.u32 %v5452, 7
        %v5454 = vsub.s32 5, %v5453
        %v5455 = vrot.slane %v705, %v5454
        %v5456 = vlaneseq
        %v5457 = vshrl.u32 %v5456, 7
        %v5458 = vsub.s32 6, %v5457
        %v5459 = vrot.slane %v705, %v5458
        %v5460 = vlaneseq
        %v5461 = vshrl.u32 %v5460, 7
        %v5462 = vsub.s32 7, %v5461
        %v5463 = vrot.slane %v705, %v5462
        %v5464 = vlaneseq
        %v5465 = vshrl.u32 %v5464, 7
        %v5466 = vsub.s32 0, %v5465
        %v5467 = vrot.slane %v708, %v5466
        %v5468 = vlaneseq
        %v5469 = vshrl.u32 %v5468, 7
        %v5470 = vsub.s32 1, %v5469
        %v5471 = vrot.slane %v708, %v5470
        %v5472 = vlaneseq
        %v5473 = vshrl.u32 %v5472, 7
        %v5474 = vsub.s32 2, %v5473
        %v5475 = vrot.slane %v708, %v5474
        %v5476 = vlaneseq
        %v5477 = vshrl.u32 %v5476, 7
        %v5478 = vsub.s32 3, %v5477
        %v5479 = vrot.slane %v708, %v5478
        %v5480 = vlaneseq
        %v5481 = vshrl.u32 %v5480, 7
        %v5482 = vsub.s32 4, %v5481
        %v5483 = vrot.slane %v708, %v5482
        %v5484 = vlaneseq
        %v5485 = vshrl.u32 %v5484, 7
        %v5486 = vsub.s32 5, %v5485
        %v5487 = vrot.slane %v708, %v5486
        %v5488 = vlaneseq
        %v5489 = vshrl.u32 %v5488, 7
        %v5490 = vsub.s32 6, %v5489
        %v5491 = vrot.slane %v708, %v5490
        %v5492 = vlaneseq
        %v5493 = vshrl.u32 %v5492, 7
        %v5494 = vsub.s32 7, %v5493
        %v5495 = vrot.slane %v708, %v5494
        %v5496 = vlaneseq
        %v5497 = vshrl.u32 %v5496, 7
        %v5498 = vsub.s32 0, %v5497
        %v5499 = vrot.slane %v711, %v5498
        %v5500 = vlaneseq
        %v5501 = vshrl.u32 %v5500, 7
        %v5502 = vsub.s32 1, %v5501
        %v5503 = vrot.slane %v711, %v5502
        %v5504 = vlaneseq
        %v5505 = vshrl.u32 %v5504, 7
        %v5506 = vsub.s32 2, %v5505
        %v5507 = vrot.slane %v711, %v5506
        %v5508 = vlaneseq
        %v5509 = vshrl.u32 %v5508, 7
        %v5510 = vsub.s32 3, %v5509
        %v5511 = vrot.slane %v711, %v5510
        %v5512 = vlaneseq
        %v5513 = vshrl.u32 %v5512, 7
        %v5514 = vsub.s32 4, %v5513
        %v5515 = vrot.slane %v711, %v5514
        %v5516 = vlaneseq
        %v5517 = vshrl.u32 %v5516, 7
        %v5518 = vsub.s32 5, %v5517
        %v5519 = vrot.slane %v711, %v5518
        %v5520 = vlaneseq
        %v5521 = vshrl.u32 %v5520, 7
        %v5522 = vsub.s32 6, %v5521
        %v5523 = vrot.slane %v711, %v5522
        %v5524 = vlaneseq
        %v5525 = vshrl.u32 %v5524, 7
        %v5526 = vsub.s32 7, %v5525
        %v5527 = vrot.slane %v711, %v5526
        %v5528 = vlaneseq
        %v5529 = vshrl.u32 %v5528, 7
        %v5530 = vsub.s32 0, %v5529
        %v5531 = vrot.slane %v714, %v5530
        %v5532 = vlaneseq
        %v5533 = vshrl.u32 %v5532, 7
        %v5534 = vsub.s32 1, %v5533
        %v5535 = vrot.slane %v714, %v5534
        %v5536 = vlaneseq
        %v5537 = vshrl.u32 %v5536, 7
        %v5538 = vsub.s32 2, %v5537
        %v5539 = vrot.slane %v714, %v5538
        %v5540 = vlaneseq
        %v5541 = vshrl.u32 %v5540, 7
        %v5542 = vsub.s32 3, %v5541
        %v5543 = vrot.slane %v714, %v5542
        %v5544 = vlaneseq
        %v5545 = vshrl.u32 %v5544, 7
        %v5546 = vsub.s32 4, %v5545
        %v5547 = vrot.slane %v714, %v5546
        %v5548 = vlaneseq
        %v5549 = vshrl.u32 %v5548, 7
        %v5550 = vsub.s32 5, %v5549
        %v5551 = vrot.slane %v714, %v5550
        %v5552 = vlaneseq
        %v5553 = vshrl.u32 %v5552, 7
        %v5554 = vsub.s32 6, %v5553
        %v5555 = vrot.slane %v714, %v5554
        %v5556 = vlaneseq
        %v5557 = vshrl.u32 %v5556, 7
        %v5558 = vsub.s32 7, %v5557
        %v5559 = vrot.slane %v714, %v5558
        %v5560 = vlaneseq
        %v5561 = vshrl.u32 %v5560, 7
        %v5562 = vsub.s32 0, %v5561
        %v5563 = vrot.slane %v717, %v5562
        %v5564 = vlaneseq
        %v5565 = vshrl.u32 %v5564, 7
        %v5566 = vsub.s32 1, %v5565
        %v5567 = vrot.slane %v717, %v5566
        %v5568 = vlaneseq
        %v5569 = vshrl.u32 %v5568, 7
        %v5570 = vsub.s32 2, %v5569
        %v5571 = vrot.slane %v717, %v5570
        %v5572 = vlaneseq
        %v5573 = vshrl.u32 %v5572, 7
        %v5574 = vsub.s32 3, %v5573
        %v5575 = vrot.slane %v717, %v5574
        %v5576 = vlaneseq
        %v5577 = vshrl.u32 %v5576, 7
        %v5578 = vsub.s32 4, %v5577
        %v5579 = vrot.slane %v717, %v5578
        %v5580 = vlaneseq
        %v5581 = vshrl.u32 %v5580, 7
        %v5582 = vsub.s32 5, %v5581
        %v5583 = vrot.slane %v717, %v5582
        %v5584 = vlaneseq
        %v5585 = vshrl.u32 %v5584, 7
        %v5586 = vsub.s32 6, %v5585
        %v5587 = vrot.slane %v717, %v5586
        %v5588 = vlaneseq
        %v5589 = vshrl.u32 %v5588, 7
        %v5590 = vsub.s32 7, %v5589
        %v5591 = vrot.slane %v717, %v5590
        %v5592 = vlaneseq
        %v5593 = vshrl.u32 %v5592, 7
        %v5594 = vsub.s32 0, %v5593
        %v5595 = vrot.slane %v720, %v5594
        %v5596 = vlaneseq
        %v5597 = vshrl.u32 %v5596, 7
        %v5598 = vsub.s32 1, %v5597
        %v5599 = vrot.slane %v720, %v5598
        %v5600 = vlaneseq
        %v5601 = vshrl.u32 %v5600, 7
        %v5602 = vsub.s32 2, %v5601
        %v5603 = vrot.slane %v720, %v5602
        %v5604 = vlaneseq
        %v5605 = vshrl.u32 %v5604, 7
        %v5606 = vsub.s32 3, %v5605
        %v5607 = vrot.slane %v720, %v5606
        %v5608 = vlaneseq
        %v5609 = vshrl.u32 %v5608, 7
        %v5610 = vsub.s32 4, %v5609
        %v5611 = vrot.slane %v720, %v5610
        %v5612 = vlaneseq
        %v5613 = vshrl.u32 %v5612, 7
        %v5614 = vsub.s32 5, %v5613
        %v5615 = vrot.slane %v720, %v5614
        %v5616 = vlaneseq
        %v5617 = vshrl.u32 %v5616, 7
        %v5618 = vsub.s32 6, %v5617
        %v5619 = vrot.slane %v720, %v5618
        %v5620 = vlaneseq
        %v5621 = vshrl.u32 %v5620, 7
        %v5622 = vsub.s32 7, %v5621
        %v5623 = vrot.slane %v720, %v5622
        %v5624 = vlaneseq
        %v5625 = vshrl.u32 %v5624, 7
        %v5626 = vsub.s32 0, %v5625
        %v5627 = vrot.slane %v723, %v5626
        %v5628 = vlaneseq
        %v5629 = vshrl.u32 %v5628, 7
        %v5630 = vsub.s32 1, %v5629
        %v5631 = vrot.slane %v723, %v5630
        %v5632 = vlaneseq
        %v5633 = vshrl.u32 %v5632, 7
        %v5634 = vsub.s32 2, %v5633
        %v5635 = vrot.slane %v723, %v5634
        %v5636 = vlaneseq
        %v5637 = vshrl.u32 %v5636, 7
        %v5638 = vsub.s32 3, %v5637
        %v5639 = vrot.slane %v723, %v5638
        %v5640 = vlaneseq
        %v5641 = vshrl.u32 %v5640, 7
        %v5642 = vsub.s32 4, %v5641
        %v5643 = vrot.slane %v723, %v5642
        %v5644 = vlaneseq
        %v5645 = vshrl.u32 %v5644, 7
        %v5646 = vsub.s32 5, %v5645
        %v5647 = vrot.slane %v723, %v5646
        %v5648 = vlaneseq
        %v5649 = vshrl.u32 %v5648, 7
        %v5650 = vsub.s32 6, %v5649
        %v5651 = vrot.slane %v723, %v5650
        %v5652 = vlaneseq
        %v5653 = vshrl.u32 %v5652, 7
        %v5654 = vsub.s32 7, %v5653
        %v5655 = vrot.slane %v723, %v5654
        %v5656 = vlaneseq
        %v5657 = vshrl.u32 %v5656, 7
        %v5658 = vsub.s32 0, %v5657
        %v5659 = vrot.slane %v726, %v5658
        %v5660 = vlaneseq
        %v5661 = vshrl.u32 %v5660, 7
        %v5662 = vsub.s32 1, %v5661
        %v5663 = vrot.slane %v726, %v5662
        %v5664 = vlaneseq
        %v5665 = vshrl.u32 %v5664, 7
        %v5666 = vsub.s32 2, %v5665
        %v5667 = vrot.slane %v726, %v5666
        %v5668 = vlaneseq
        %v5669 = vshrl.u32 %v5668, 7
        %v5670 = vsub.s32 3, %v5669
        %v5671 = vrot.slane %v726, %v5670
        %v5672 = vlaneseq
        %v5673 = vshrl.u32 %v5672, 7
        %v5674 = vsub.s32 4, %v5673
        %v5675 = vrot.slane %v726, %v5674
        %v5676 = vlaneseq
        %v5677 = vshrl.u32 %v5676, 7
        %v5678 = vsub.s32 5, %v5677
        %v5679 = vrot.slane %v726, %v5678
        %v5680 = vlaneseq
        %v5681 = vshrl.u32 %v5680, 7
        %v5682 = vsub.s32 6, %v5681
        %v5683 = vrot.slane %v726, %v5682
        %v5684 = vlaneseq
        %v5685 = vshrl.u32 %v5684, 7
        %v5686 = vsub.s32 7, %v5685
        %v5687 = vrot.slane %v726, %v5686
        %v5688 = vlaneseq
        %v5689 = vshrl.u32 %v5688, 7
        %v5690 = vsub.s32 0, %v5689
        %v5691 = vrot.slane %v729, %v5690
        %v5692 = vlaneseq
        %v5693 = vshrl.u32 %v5692, 7
        %v5694 = vsub.s32 1, %v5693
        %v5695 = vrot.slane %v729, %v5694
        %v5696 = vlaneseq
        %v5697 = vshrl.u32 %v5696, 7
        %v5698 = vsub.s32 2, %v5697
        %v5699 = vrot.slane %v729, %v5698
        %v5700 = vlaneseq
        %v5701 = vshrl.u32 %v5700, 7
        %v5702 = vsub.s32 3, %v5701
        %v5703 = vrot.slane %v729, %v5702
        %v5704 = vlaneseq
        %v5705 = vshrl.u32 %v5704, 7
        %v5706 = vsub.s32 4, %v5705
        %v5707 = vrot.slane %v729, %v5706
        %v5708 = vlaneseq
        %v5709 = vshrl.u32 %v5708, 7
        %v5710 = vsub.s32 5, %v5709
        %v5711 = vrot.slane %v729, %v5710
        %v5712 = vlaneseq
        %v5713 = vshrl.u32 %v5712, 7
        %v5714 = vsub.s32 6, %v5713
        %v5715 = vrot.slane %v729, %v5714
        %v5716 = vlaneseq
        %v5717 = vshrl.u32 %v5716, 7
        %v5718 = vsub.s32 7, %v5717
        %v5719 = vrot.slane %v729, %v5718
        %v5720 = vlaneseq
        %v5721 = vshrl.u32 %v5720, 7
        %v5722 = vsub.s32 0, %v5721
        %v5723 = vrot.slane %v732, %v5722
        %v5724 = vlaneseq
        %v5725 = vshrl.u32 %v5724, 7
        %v5726 = vsub.s32 1, %v5725
        %v5727 = vrot.slane %v732, %v5726
        %v5728 = vlaneseq
        %v5729 = vshrl.u32 %v5728, 7
        %v5730 = vsub.s32 2, %v5729
        %v5731 = vrot.slane %v732, %v5730
        %v5732 = vlaneseq
        %v5733 = vshrl.u32 %v5732, 7
        %v5734 = vsub.s32 3, %v5733
        %v5735 = vrot.slane %v732, %v5734
        %v5736 = vlaneseq
        %v5737 = vshrl.u32 %v5736, 7
        %v5738 = vsub.s32 4, %v5737
        %v5739 = vrot.slane %v732, %v5738
        %v5740 = vlaneseq
        %v5741 = vshrl.u32 %v5740, 7
        %v5742 = vsub.s32 5, %v5741
        %v5743 = vrot.slane %v732, %v5742
        %v5744 = vlaneseq
        %v5745 = vshrl.u32 %v5744, 7
        %v5746 = vsub.s32 6, %v5745
        %v5747 = vrot.slane %v732, %v5746
        %v5748 = vlaneseq
        %v5749 = vshrl.u32 %v5748, 7
        %v5750 = vsub.s32 7, %v5749
        %v5751 = vrot.slane %v732, %v5750
        %v5752 = vlaneseq
        %v5753 = vshrl.u32 %v5752, 7
        %v5754 = vsub.s32 0, %v5753
        %v5755 = vrot.slane %v735, %v5754
        %v5756 = vlaneseq
        %v5757 = vshrl.u32 %v5756, 7
        %v5758 = vsub.s32 1, %v5757
        %v5759 = vrot.slane %v735, %v5758
        %v5760 = vlaneseq
        %v5761 = vshrl.u32 %v5760, 7
        %v5762 = vsub.s32 2, %v5761
        %v5763 = vrot.slane %v735, %v5762
        %v5764 = vlaneseq
        %v5765 = vshrl.u32 %v5764, 7
        %v5766 = vsub.s32 3, %v5765
        %v5767 = vrot.slane %v735, %v5766
        %v5768 = vlaneseq
        %v5769 = vshrl.u32 %v5768, 7
        %v5770 = vsub.s32 4, %v5769
        %v5771 = vrot.slane %v735, %v5770
        %v5772 = vlaneseq
        %v5773 = vshrl.u32 %v5772, 7
        %v5774 = vsub.s32 5, %v5773
        %v5775 = vrot.slane %v735, %v5774
        %v5776 = vlaneseq
        %v5777 = vshrl.u32 %v5776, 7
        %v5778 = vsub.s32 6, %v5777
        %v5779 = vrot.slane %v735, %v5778
        %v5780 = vlaneseq
        %v5781 = vshrl.u32 %v5780, 7
        %v5782 = vsub.s32 7, %v5781
        %v5783 = vrot.slane %v735, %v5782
        %v5784 = vlaneseq
        %v5785 = vshrl.u32 %v5784, 7
        %v5786 = vsub.s32 0, %v5785
        %v5787 = vrot.slane %v738, %v5786
        %v5788 = vlaneseq
        %v5789 = vshrl.u32 %v5788, 7
        %v5790 = vsub.s32 1, %v5789
        %v5791 = vrot.slane %v738, %v5790
        %v5792 = vlaneseq
        %v5793 = vshrl.u32 %v5792, 7
        %v5794 = vsub.s32 2, %v5793
        %v5795 = vrot.slane %v738, %v5794
        %v5796 = vlaneseq
        %v5797 = vshrl.u32 %v5796, 7
        %v5798 = vsub.s32 3, %v5797
        %v5799 = vrot.slane %v738, %v5798
        %v5800 = vlaneseq
        %v5801 = vshrl.u32 %v5800, 7
        %v5802 = vsub.s32 4, %v5801
        %v5803 = vrot.slane %v738, %v5802
        %v5804 = vlaneseq
        %v5805 = vshrl.u32 %v5804, 7
        %v5806 = vsub.s32 5, %v5805
        %v5807 = vrot.slane %v738, %v5806
        %v5808 = vlaneseq
        %v5809 = vshrl.u32 %v5808, 7
        %v5810 = vsub.s32 6, %v5809
        %v5811 = vrot.slane %v738, %v5810
        %v5812 = vlaneseq
        %v5813 = vshrl.u32 %v5812, 7
        %v5814 = vsub.s32 7, %v5813
        %v5815 = vrot.slane %v738, %v5814
        %v5816 = vcombine.low %v4795, %v4799
        %v5817 = vcombine.low %v4803, %v4807
        %v5818 = vcombine.low %v4811, %v4815
        %v5819 = vcombine.low %v4819, %v4823
        %v5821 = vunpack.c.l.s4 1966171168
        %v5822 = vunpack.c.0.s8 %v5821
        %v5823 = vlaneseq
        %v5824 = vshrl.u32 %v5823, 7
        %v5825 = vsub.s32 %v5822, %v5824
        %v5826 = vrot.slane %v5816, %v5825
        %v5828 = vunpack.c.l.s4 1966171168
        %v5829 = vunpack.c.0.s8 %v5828
        %v5830 = vlaneseq
        %v5831 = vshrl.u32 %v5830, 7
        %v5832 = vsub.s32 %v5829, %v5831
        %v5833 = vrot.slane %v5817, %v5832
        %v5835 = vunpack.c.l.s4 1966171168
        %v5836 = vunpack.c.0.s8 %v5835
        %v5837 = vlaneseq
        %v5838 = vshrl.u32 %v5837, 7
        %v5839 = vsub.s32 %v5836, %v5838
        %v5840 = vrot.slane %v5818, %v5839
        %v5842 = vunpack.c.l.s4 1966171168
        %v5843 = vunpack.c.0.s8 %v5842
        %v5844 = vlaneseq
        %v5845 = vshrl.u32 %v5844, 7
        %v5846 = vsub.s32 %v5843, %v5845
        %v5847 = vrot.slane %v5819, %v5846
        %v5848 = vcombine.low %v5826, %v5833
        %v5849 = vcombine.low %v5840, %v5847
        %v5851 = vunpack.c.l.s4 1966171168
        %v5852 = vunpack.c.0.s8 %v5851
        %v5853 = vlaneseq
        %v5854 = vshrl.u32 %v5853, 7
        %v5855 = vsub.s32 %v5852, %v5854
        %v5856 = vrot.slane %v5848, %v5855
        %v5858 = vunpack.c.l.s4 1966171168
        %v5859 = vunpack.c.0.s8 %v5858
        %v5860 = vlaneseq
        %v5861 = vshrl.u32 %v5860, 7
        %v5862 = vsub.s32 %v5859, %v5861
        %v5863 = vrot.slane %v5849, %v5862
        %v5864 = vcombine.low %v5856, %v5863
        %v5865 = vcombine.low %v4827, %v4831
        %v5866 = vcombine.low %v4835, %v4839
        %v5867 = vcombine.low %v4843, %v4847
        %v5868 = vcombine.low %v4851, %v4855
        %v5870 = vunpack.c.l.s4 1966171168
        %v5871 = vunpack.c.0.s8 %v5870
        %v5872 = vlaneseq
        %v5873 = vshrl.u32 %v5872, 7
        %v5874 = vsub.s32 %v5871, %v5873
        %v5875 = vrot.slane %v5865, %v5874
        %v5877 = vunpack.c.l.s4 1966171168
        %v5878 = vunpack.c.0.s8 %v5877
        %v5879 = vlaneseq
        %v5880 = vshrl.u32 %v5879, 7
        %v5881 = vsub.s32 %v5878, %v5880
        %v5882 = vrot.slane %v5866, %v5881
        %v5884 = vunpack.c.l.s4 1966171168
        %v5885 = vunpack.c.0.s8 %v5884
        %v5886 = vlaneseq
        %v5887 = vshrl.u32 %v5886, 7
        %v5888 = vsub.s32 %v5885, %v5887
        %v5889 = vrot.slane %v5867, %v5888
        %v5891 = vunpack.c.l.s4 1966171168
        %v5892 = vunpack.c.0.s8 %v5891
        %v5893 = vlaneseq
        %v5894 = vshrl.u32 %v5893, 7
        %v5895 = vsub.s32 %v5892, %v5894
        %v5896 = vrot.slane %v5868, %v5895
        %v5897 = vcombine.low %v5875, %v5882
        %v5898 = vcombine.low %v5889, %v5896
        %v5900 = vunpack.c.l.s4 1966171168
        %v5901 = vunpack.c.0.s8 %v5900
        %v5902 = vlaneseq
        %v5903 = vshrl.u32 %v5902, 7
        %v5904 = vsub.s32 %v5901, %v5903
        %v5905 = vrot.slane %v5897, %v5904
        %v5907 = vunpack.c.l.s4 1966171168
        %v5908 = vunpack.c.0.s8 %v5907
        %v5909 = vlaneseq
        %v5910 = vshrl.u32 %v5909, 7
        %v5911 = vsub.s32 %v5908, %v5910
        %v5912 = vrot.slane %v5898, %v5911
        %v5913 = vcombine.low %v5905, %v5912
        %v5914 = vcombine.low %v4859, %v4863
        %v5915 = vcombine.low %v4867, %v4871
        %v5916 = vcombine.low %v4875, %v4879
        %v5917 = vcombine.low %v4883, %v4887
        %v5919 = vunpack.c.l.s4 1966171168
        %v5920 = vunpack.c.0.s8 %v5919
        %v5921 = vlaneseq
        %v5922 = vshrl.u32 %v5921, 7
        %v5923 = vsub.s32 %v5920, %v5922
        %v5924 = vrot.slane %v5914, %v5923
        %v5926 = vunpack.c.l.s4 1966171168
        %v5927 = vunpack.c.0.s8 %v5926
        %v5928 = vlaneseq
        %v5929 = vshrl.u32 %v5928, 7
        %v5930 = vsub.s32 %v5927, %v5929
        %v5931 = vrot.slane %v5915, %v5930
        %v5933 = vunpack.c.l.s4 1966171168
        %v5934 = vunpack.c.0.s8 %v5933
        %v5935 = vlaneseq
        %v5936 = vshrl.u32 %v5935, 7
        %v5937 = vsub.s32 %v5934, %v5936
        %v5938 = vrot.slane %v5916, %v5937
        %v5940 = vunpack.c.l.s4 1966171168
        %v5941 = vunpack.c.0.s8 %v5940
        %v5942 = vlaneseq
        %v5943 = vshrl.u32 %v5942, 7
        %v5944 = vsub.s32 %v5941, %v5943
        %v5945 = vrot.slane %v5917, %v5944
        %v5946 = vcombine.low %v5924, %v5931
        %v5947 = vcombine.low %v5938, %v5945
        %v5949 = vunpack.c.l.s4 1966171168
        %v5950 = vunpack.c.0.s8 %v5949
        %v5951 = vlaneseq
        %v5952 = vshrl.u32 %v5951, 7
        %v5953 = vsub.s32 %v5950, %v5952
        %v5954 = vrot.slane %v5946, %v5953
        %v5956 = vunpack.c.l.s4 1966171168
        %v5957 = vunpack.c.0.s8 %v5956
        %v5958 = vlaneseq
        %v5959 = vshrl.u32 %v5958, 7
        %v5960 = vsub.s32 %v5957, %v5959
        %v5961 = vrot.slane %v5947, %v5960
        %v5962 = vcombine.low %v5954, %v5961
        %v5963 = vcombine.low %v4891, %v4895
        %v5964 = vcombine.low %v4899, %v4903
        %v5965 = vcombine.low %v4907, %v4911
        %v5966 = vcombine.low %v4915, %v4919
        %v5968 = vunpack.c.l.s4 1966171168
        %v5969 = vunpack.c.0.s8 %v5968
        %v5970 = vlaneseq
        %v5971 = vshrl.u32 %v5970, 7
        %v5972 = vsub.s32 %v5969, %v5971
        %v5973 = vrot.slane %v5963, %v5972
        %v5975 = vunpack.c.l.s4 1966171168
        %v5976 = vunpack.c.0.s8 %v5975
        %v5977 = vlaneseq
        %v5978 = vshrl.u32 %v5977, 7
        %v5979 = vsub.s32 %v5976, %v5978
        %v5980 = vrot.slane %v5964, %v5979
        %v5982 = vunpack.c.l.s4 1966171168
        %v5983 = vunpack.c.0.s8 %v5982
        %v5984 = vlaneseq
        %v5985 = vshrl.u32 %v5984, 7
        %v5986 = vsub.s32 %v5983, %v5985
        %v5987 = vrot.slane %v5965, %v5986
        %v5989 = vunpack.c.l.s4 1966171168
        %v5990 = vunpack.c.0.s8 %v5989
        %v5991 = vlaneseq
        %v5992 = vshrl.u32 %v5991, 7
        %v5993 = vsub.s32 %v5990, %v5992
        %v5994 = vrot.slane %v5966, %v5993
        %v5995 = vcombine.low %v5973, %v5980
        %v5996 = vcombine.low %v5987, %v5994
        %v5998 = vunpack.c.l.s4 1966171168
        %v5999 = vunpack.c.0.s8 %v5998
        %v6000 = vlaneseq
        %v6001 = vshrl.u32 %v6000, 7
        %v6002 = vsub.s32 %v5999, %v6001
        %v6003 = vrot.slane %v5995, %v6002
        %v6005 = vunpack.c.l.s4 1966171168
        %v6006 = vunpack.c.0.s8 %v6005
        %v6007 = vlaneseq
        %v6008 = vshrl.u32 %v6007, 7
        %v6009 = vsub.s32 %v6006, %v6008
        %v6010 = vrot.slane %v5996, %v6009
        %v6011 = vcombine.low %v6003, %v6010
        %v6012 = vcombine.low %v4923, %v4927
        %v6013 = vcombine.low %v4931, %v4935
        %v6014 = vcombine.low %v4939, %v4943
        %v6015 = vcombine.low %v4947, %v4951
        %v6017 = vunpack.c.l.s4 1966171168
        %v6018 = vunpack.c.0.s8 %v6017
        %v6019 = vlaneseq
        %v6020 = vshrl.u32 %v6019, 7
        %v6021 = vsub.s32 %v6018, %v6020
        %v6022 = vrot.slane %v6012, %v6021
        %v6024 = vunpack.c.l.s4 1966171168
        %v6025 = vunpack.c.0.s8 %v6024
        %v6026 = vlaneseq
        %v6027 = vshrl.u32 %v6026, 7
        %v6028 = vsub.s32 %v6025, %v6027
        %v6029 = vrot.slane %v6013, %v6028
        %v6031 = vunpack.c.l.s4 1966171168
        %v6032 = vunpack.c.0.s8 %v6031
        %v6033 = vlaneseq
        %v6034 = vshrl.u32 %v6033, 7
        %v6035 = vsub.s32 %v6032, %v6034
        %v6036 = vrot.slane %v6014, %v6035
        %v6038 = vunpack.c.l.s4 1966171168
        %v6039 = vunpack.c.0.s8 %v6038
        %v6040 = vlaneseq
        %v6041 = vshrl.u32 %v6040, 7
        %v6042 = vsub.s32 %v6039, %v6041
        %v6043 = vrot.slane %v6015, %v6042
        %v6044 = vcombine.low %v6022, %v6029
        %v6045 = vcombine.low %v6036, %v6043
        %v6047 = vunpack.c.l.s4 1966171168
        %v6048 = vunpack.c.0.s8 %v6047
        %v6049 = vlaneseq
        %v6050 = vshrl.u32 %v6049, 7
        %v6051 = vsub.s32 %v6048, %v6050
        %v6052 = vrot.slane %v6044, %v6051
        %v6054 = vunpack.c.l.s4 1966171168
        %v6055 = vunpack.c.0.s8 %v6054
        %v6056 = vlaneseq
        %v6057 = vshrl.u32 %v6056, 7
        %v6058 = vsub.s32 %v6055, %v6057
        %v6059 = vrot.slane %v6045, %v6058
        %v6060 = vcombine.low %v6052, %v6059
        %v6061 = vcombine.low %v4955, %v4959
        %v6062 = vcombine.low %v4963, %v4967
        %v6063 = vcombine.low %v4971, %v4975
        %v6064 = vcombine.low %v4979, %v4983
        %v6066 = vunpack.c.l.s4 1966171168
        %v6067 = vunpack.c.0.s8 %v6066
        %v6068 = vlaneseq
        %v6069 = vshrl.u32 %v6068, 7
        %v6070 = vsub.s32 %v6067, %v6069
        %v6071 = vrot.slane %v6061, %v6070
        %v6073 = vunpack.c.l.s4 1966171168
        %v6074 = vunpack.c.0.s8 %v6073
        %v6075 = vlaneseq
        %v6076 = vshrl.u32 %v6075, 7
        %v6077 = vsub.s32 %v6074, %v6076
        %v6078 = vrot.slane %v6062, %v6077
        %v6080 = vunpack.c.l.s4 1966171168
        %v6081 = vunpack.c.0.s8 %v6080
        %v6082 = vlaneseq
        %v6083 = vshrl.u32 %v6082, 7
        %v6084 = vsub.s32 %v6081, %v6083
        %v6085 = vrot.slane %v6063, %v6084
        %v6087 = vunpack.c.l.s4 1966171168
        %v6088 = vunpack.c.0.s8 %v6087
        %v6089 = vlaneseq
        %v6090 = vshrl.u32 %v6089, 7
        %v6091 = vsub.s32 %v6088, %v6090
        %v6092 = vrot.slane %v6064, %v6091
        %v6093 = vcombine.low %v6071, %v6078
        %v6094 = vcombine.low %v6085, %v6092
        %v6096 = vunpack.c.l.s4 1966171168
        %v6097 = vunpack.c.0.s8 %v6096
        %v6098 = vlaneseq
        %v6099 = vshrl.u32 %v6098, 7
        %v6100 = vsub.s32 %v6097, %v6099
        %v6101 = vrot.slane %v6093, %v6100
        %v6103 = vunpack.c.l.s4 1966171168
        %v6104 = vunpack.c.0.s8 %v6103
        %v6105 = vlaneseq
        %v6106 = vshrl.u32 %v6105, 7
        %v6107 = vsub.s32 %v6104, %v6106
        %v6108 = vrot.slane %v6094, %v6107
        %v6109 = vcombine.low %v6101, %v6108
        %v6110 = vcombine.low %v4987, %v4991
        %v6111 = vcombine.low %v4995, %v4999
        %v6112 = vcombine.low %v5003, %v5007
        %v6113 = vcombine.low %v5011, %v5015
        %v6115 = vunpack.c.l.s4 1966171168
        %v6116 = vunpack.c.0.s8 %v6115
        %v6117 = vlaneseq
        %v6118 = vshrl.u32 %v6117, 7
        %v6119 = vsub.s32 %v6116, %v6118
        %v6120 = vrot.slane %v6110, %v6119
        %v6122 = vunpack.c.l.s4 1966171168
        %v6123 = vunpack.c.0.s8 %v6122
        %v6124 = vlaneseq
        %v6125 = vshrl.u32 %v6124, 7
        %v6126 = vsub.s32 %v6123, %v6125
        %v6127 = vrot.slane %v6111, %v6126
        %v6129 = vunpack.c.l.s4 1966171168
        %v6130 = vunpack.c.0.s8 %v6129
        %v6131 = vlaneseq
        %v6132 = vshrl.u32 %v6131, 7
        %v6133 = vsub.s32 %v6130, %v6132
        %v6134 = vrot.slane %v6112, %v6133
        %v6136 = vunpack.c.l.s4 1966171168
        %v6137 = vunpack.c.0.s8 %v6136
        %v6138 = vlaneseq
        %v6139 = vshrl.u32 %v6138, 7
        %v6140 = vsub.s32 %v6137, %v6139
        %v6141 = vrot.slane %v6113, %v6140
        %v6142 = vcombine.low %v6120, %v6127
        %v6143 = vcombine.low %v6134, %v6141
        %v6145 = vunpack.c.l.s4 1966171168
        %v6146 = vunpack.c.0.s8 %v6145
        %v6147 = vlaneseq
        %v6148 = vshrl.u32 %v6147, 7
        %v6149 = vsub.s32 %v6146, %v6148
        %v6150 = vrot.slane %v6142, %v6149
        %v6152 = vunpack.c.l.s4 1966171168
        %v6153 = vunpack.c.0.s8 %v6152
        %v6154 = vlaneseq
        %v6155 = vshrl.u32 %v6154, 7
        %v6156 = vsub.s32 %v6153, %v6155
        %v6157 = vrot.slane %v6143, %v6156
        %v6158 = vcombine.low %v6150, %v6157
        %v6159 = vcombine.low %v5019, %v5023
        %v6160 = vcombine.low %v5027, %v5031
        %v6161 = vcombine.low %v5035, %v5039
        %v6162 = vcombine.low %v5043, %v5047
        %v6164 = vunpack.c.l.s4 1966171168
        %v6165 = vunpack.c.0.s8 %v6164
        %v6166 = vlaneseq
        %v6167 = vshrl.u32 %v6166, 7
        %v6168 = vsub.s32 %v6165, %v6167
        %v6169 = vrot.slane %v6159, %v6168
        %v6171 = vunpack.c.l.s4 1966171168
        %v6172 = vunpack.c.0.s8 %v6171
        %v6173 = vlaneseq
        %v6174 = vshrl.u32 %v6173, 7
        %v6175 = vsub.s32 %v6172, %v6174
        %v6176 = vrot.slane %v6160, %v6175
        %v6178 = vunpack.c.l.s4 1966171168
        %v6179 = vunpack.c.0.s8 %v6178
        %v6180 = vlaneseq
        %v6181 = vshrl.u32 %v6180, 7
        %v6182 = vsub.s32 %v6179, %v6181
        %v6183 = vrot.slane %v6161, %v6182
        %v6185 = vunpack.c.l.s4 1966171168
        %v6186 = vunpack.c.0.s8 %v6185
        %v6187 = vlaneseq
        %v6188 = vshrl.u32 %v6187, 7
        %v6189 = vsub.s32 %v6186, %v6188
        %v6190 = vrot.slane %v6162, %v6189
        %v6191 = vcombine.low %v6169, %v6176
        %v6192 = vcombine.low %v6183, %v6190
        %v6194 = vunpack.c.l.s4 1966171168
        %v6195 = vunpack.c.0.s8 %v6194
        %v6196 = vlaneseq
        %v6197 = vshrl.u32 %v6196, 7
        %v6198 = vsub.s32 %v6195, %v6197
        %v6199 = vrot.slane %v6191, %v6198
        %v6201 = vunpack.c.l.s4 1966171168
        %v6202 = vunpack.c.0.s8 %v6201
        %v6203 = vlaneseq
        %v6204 = vshrl.u32 %v6203, 7
        %v6205 = vsub.s32 %v6202, %v6204
        %v6206 = vrot.slane %v6192, %v6205
        %v6207 = vcombine.low %v6199, %v6206
        %v6208 = vcombine.low %v5051, %v5055
        %v6209 = vcombine.low %v5059, %v5063
        %v6210 = vcombine.low %v5067, %v5071
        %v6211 = vcombine.low %v5075, %v5079
        %v6213 = vunpack.c.l.s4 1966171168
        %v6214 = vunpack.c.0.s8 %v6213
        %v6215 = vlaneseq
        %v6216 = vshrl.u32 %v6215, 7
        %v6217 = vsub.s32 %v6214, %v6216
        %v6218 = vrot.slane %v6208, %v6217
        %v6220 = vunpack.c.l.s4 1966171168
        %v6221 = vunpack.c.0.s8 %v6220
        %v6222 = vlaneseq
        %v6223 = vshrl.u32 %v6222, 7
        %v6224 = vsub.s32 %v6221, %v6223
        %v6225 = vrot.slane %v6209, %v6224
        %v6227 = vunpack.c.l.s4 1966171168
        %v6228 = vunpack.c.0.s8 %v6227
        %v6229 = vlaneseq
        %v6230 = vshrl.u32 %v6229, 7
        %v6231 = vsub.s32 %v6228, %v6230
        %v6232 = vrot.slane %v6210, %v6231
        %v6234 = vunpack.c.l.s4 1966171168
        %v6235 = vunpack.c.0.s8 %v6234
        %v6236 = vlaneseq
        %v6237 = vshrl.u32 %v6236, 7
        %v6238 = vsub.s32 %v6235, %v6237
        %v6239 = vrot.slane %v6211, %v6238
        %v6240 = vcombine.low %v6218, %v6225
        %v6241 = vcombine.low %v6232, %v6239
        %v6243 = vunpack.c.l.s4 1966171168
        %v6244 = vunpack.c.0.s8 %v6243
        %v6245 = vlaneseq
        %v6246 = vshrl.u32 %v6245, 7
        %v6247 = vsub.s32 %v6244, %v6246
        %v6248 = vrot.slane %v6240, %v6247
        %v6250 = vunpack.c.l.s4 1966171168
        %v6251 = vunpack.c.0.s8 %v6250
        %v6252 = vlaneseq
        %v6253 = vshrl.u32 %v6252, 7
        %v6254 = vsub.s32 %v6251, %v6253
        %v6255 = vrot.slane %v6241, %v6254
        %v6256 = vcombine.low %v6248, %v6255
        %v6257 = vcombine.low %v5083, %v5087
        %v6258 = vcombine.low %v5091, %v5095
        %v6259 = vcombine.low %v5099, %v5103
        %v6260 = vcombine.low %v5107, %v5111
        %v6262 = vunpack.c.l.s4 1966171168
        %v6263 = vunpack.c.0.s8 %v6262
        %v6264 = vlaneseq
        %v6265 = vshrl.u32 %v6264, 7
        %v6266 = vsub.s32 %v6263, %v6265
        %v6267 = vrot.slane %v6257, %v6266
        %v6269 = vunpack.c.l.s4 1966171168
        %v6270 = vunpack.c.0.s8 %v6269
        %v6271 = vlaneseq
        %v6272 = vshrl.u32 %v6271, 7
        %v6273 = vsub.s32 %v6270, %v6272
        %v6274 = vrot.slane %v6258, %v6273
        %v6276 = vunpack.c.l.s4 1966171168
        %v6277 = vunpack.c.0.s8 %v6276
        %v6278 = vlaneseq
        %v6279 = vshrl.u32 %v6278, 7
        %v6280 = vsub.s32 %v6277, %v6279
        %v6281 = vrot.slane %v6259, %v6280
        %v6283 = vunpack.c.l.s4 1966171168
        %v6284 = vunpack.c.0.s8 %v6283
        %v6285 = vlaneseq
        %v6286 = vshrl.u32 %v6285, 7
        %v6287 = vsub.s32 %v6284, %v6286
        %v6288 = vrot.slane %v6260, %v6287
        %v6289 = vcombine.low %v6267, %v6274
        %v6290 = vcombine.low %v6281, %v6288
        %v6292 = vunpack.c.l.s4 1966171168
        %v6293 = vunpack.c.0.s8 %v6292
        %v6294 = vlaneseq
        %v6295 = vshrl.u32 %v6294, 7
        %v6296 = vsub.s32 %v6293, %v6295
        %v6297 = vrot.slane %v6289, %v6296
        %v6299 = vunpack.c.l.s4 1966171168
        %v6300 = vunpack.c.0.s8 %v6299
        %v6301 = vlaneseq
        %v6302 = vshrl.u32 %v6301, 7
        %v6303 = vsub.s32 %v6300, %v6302
        %v6304 = vrot.slane %v6290, %v6303
        %v6305 = vcombine.low %v6297, %v6304
        %v6306 = vcombine.low %v5115, %v5119
        %v6307 = vcombine.low %v5123, %v5127
        %v6308 = vcombine.low %v5131, %v5135
        %v6309 = vcombine.low %v5139, %v5143
        %v6311 = vunpack.c.l.s4 1966171168
        %v6312 = vunpack.c.0.s8 %v6311
        %v6313 = vlaneseq
        %v6314 = vshrl.u32 %v6313, 7
        %v6315 = vsub.s32 %v6312, %v6314
        %v6316 = vrot.slane %v6306, %v6315
        %v6318 = vunpack.c.l.s4 1966171168
        %v6319 = vunpack.c.0.s8 %v6318
        %v6320 = vlaneseq
        %v6321 = vshrl.u32 %v6320, 7
        %v6322 = vsub.s32 %v6319, %v6321
        %v6323 = vrot.slane %v6307, %v6322
        %v6325 = vunpack.c.l.s4 1966171168
        %v6326 = vunpack.c.0.s8 %v6325
        %v6327 = vlaneseq
        %v6328 = vshrl.u32 %v6327, 7
        %v6329 = vsub.s32 %v6326, %v6328
        %v6330 = vrot.slane %v6308, %v6329
        %v6332 = vunpack.c.l.s4 1966171168
        %v6333 = vunpack.c.0.s8 %v6332
        %v6334 = vlaneseq
        %v6335 = vshrl.u32 %v6334, 7
        %v6336 = vsub.s32 %v6333, %v6335
        %v6337 = vrot.slane %v6309, %v6336
        %v6338 = vcombine.low %v6316, %v6323
        %v6339 = vcombine.low %v6330, %v6337
        %v6341 = vunpack.c.l.s4 1966171168
        %v6342 = vunpack.c.0.s8 %v6341
        %v6343 = vlaneseq
        %v6344 = vshrl.u32 %v6343, 7
        %v6345 = vsub.s32 %v6342, %v6344
        %v6346 = vrot.slane %v6338, %v6345
        %v6348 = vunpack.c.l.s4 1966171168
        %v6349 = vunpack.c.0.s8 %v6348
        %v6350 = vlaneseq
        %v6351 = vshrl.u32 %v6350, 7
        %v6352 = vsub.s32 %v6349, %v6351
        %v6353 = vrot.slane %v6339, %v6352
        %v6354 = vcombine.low %v6346, %v6353
        %v6355 = vcombine.low %v5147, %v5151
        %v6356 = vcombine.low %v5155, %v5159
        %v6357 = vcombine.low %v5163, %v5167
        %v6358 = vcombine.low %v5171, %v5175
        %v6360 = vunpack.c.l.s4 1966171168
        %v6361 = vunpack.c.0.s8 %v6360
        %v6362 = vlaneseq
        %v6363 = vshrl.u32 %v6362, 7
        %v6364 = vsub.s32 %v6361, %v6363
        %v6365 = vrot.slane %v6355, %v6364
        %v6367 = vunpack.c.l.s4 1966171168
        %v6368 = vunpack.c.0.s8 %v6367
        %v6369 = vlaneseq
        %v6370 = vshrl.u32 %v6369, 7
        %v6371 = vsub.s32 %v6368, %v6370
        %v6372 = vrot.slane %v6356, %v6371
        %v6374 = vunpack.c.l.s4 1966171168
        %v6375 = vunpack.c.0.s8 %v6374
        %v6376 = vlaneseq
        %v6377 = vshrl.u32 %v6376, 7
        %v6378 = vsub.s32 %v6375, %v6377
        %v6379 = vrot.slane %v6357, %v6378
        %v6381 = vunpack.c.l.s4 1966171168
        %v6382 = vunpack.c.0.s8 %v6381
        %v6383 = vlaneseq
        %v6384 = vshrl.u32 %v6383, 7
        %v6385 = vsub.s32 %v6382, %v6384
        %v6386 = vrot.slane %v6358, %v6385
        %v6387 = vcombine.low %v6365, %v6372
        %v6388 = vcombine.low %v6379, %v6386
        %v6390 = vunpack.c.l.s4 1966171168
        %v6391 = vunpack.c.0.s8 %v6390
        %v6392 = vlaneseq
        %v6393 = vshrl.u32 %v6392, 7
        %v6394 = vsub.s32 %v6391, %v6393
        %v6395 = vrot.slane %v6387, %v6394
        %v6397 = vunpack.c.l.s4 1966171168
        %v6398 = vunpack.c.0.s8 %v6397
        %v6399 = vlaneseq
        %v6400 = vshrl.u32 %v6399, 7
        %v6401 = vsub.s32 %v6398, %v6400
        %v6402 = vrot.slane %v6388, %v6401
        %v6403 = vcombine.low %v6395, %v6402
        %v6404 = vcombine.low %v5179, %v5183
        %v6405 = vcombine.low %v5187, %v5191
        %v6406 = vcombine.low %v5195, %v5199
        %v6407 = vcombine.low %v5203, %v5207
        %v6409 = vunpack.c.l.s4 1966171168
        %v6410 = vunpack.c.0.s8 %v6409
        %v6411 = vlaneseq
        %v6412 = vshrl.u32 %v6411, 7
        %v6413 = vsub.s32 %v6410, %v6412
        %v6414 = vrot.slane %v6404, %v6413
        %v6416 = vunpack.c.l.s4 1966171168
        %v6417 = vunpack.c.0.s8 %v6416
        %v6418 = vlaneseq
        %v6419 = vshrl.u32 %v6418, 7
        %v6420 = vsub.s32 %v6417, %v6419
        %v6421 = vrot.slane %v6405, %v6420
        %v6423 = vunpack.c.l.s4 1966171168
        %v6424 = vunpack.c.0.s8 %v6423
        %v6425 = vlaneseq
        %v6426 = vshrl.u32 %v6425, 7
        %v6427 = vsub.s32 %v6424, %v6426
        %v6428 = vrot.slane %v6406, %v6427
        %v6430 = vunpack.c.l.s4 1966171168
        %v6431 = vunpack.c.0.s8 %v6430
        %v6432 = vlaneseq
        %v6433 = vshrl.u32 %v6432, 7
        %v6434 = vsub.s32 %v6431, %v6433
        %v6435 = vrot.slane %v6407, %v6434
        %v6436 = vcombine.low %v6414, %v6421
        %v6437 = vcombine.low %v6428, %v6435
        %v6439 = vunpack.c.l.s4 1966171168
        %v6440 = vunpack.c.0.s8 %v6439
        %v6441 = vlaneseq
        %v6442 = vshrl.u32 %v6441, 7
        %v6443 = vsub.s32 %v6440, %v6442
        %v6444 = vrot.slane %v6436, %v6443
        %v6446 = vunpack.c.l.s4 1966171168
        %v6447 = vunpack.c.0.s8 %v6446
        %v6448 = vlaneseq
        %v6449 = vshrl.u32 %v6448, 7
        %v6450 = vsub.s32 %v6447, %v6449
        %v6451 = vrot.slane %v6437, %v6450
        %v6452 = vcombine.low %v6444, %v6451
        %v6453 = vcombine.low %v5211, %v5215
        %v6454 = vcombine.low %v5219, %v5223
        %v6455 = vcombine.low %v5227, %v5231
        %v6456 = vcombine.low %v5235, %v5239
        %v6458 = vunpack.c.l.s4 1966171168
        %v6459 = vunpack.c.0.s8 %v6458
        %v6460 = vlaneseq
        %v6461 = vshrl.u32 %v6460, 7
        %v6462 = vsub.s32 %v6459, %v6461
        %v6463 = vrot.slane %v6453, %v6462
        %v6465 = vunpack.c.l.s4 1966171168
        %v6466 = vunpack.c.0.s8 %v6465
        %v6467 = vlaneseq
        %v6468 = vshrl.u32 %v6467, 7
        %v6469 = vsub.s32 %v6466, %v6468
        %v6470 = vrot.slane %v6454, %v6469
        %v6472 = vunpack.c.l.s4 1966171168
        %v6473 = vunpack.c.0.s8 %v6472
        %v6474 = vlaneseq
        %v6475 = vshrl.u32 %v6474, 7
        %v6476 = vsub.s32 %v6473, %v6475
        %v6477 = vrot.slane %v6455, %v6476
        %v6479 = vunpack.c.l.s4 1966171168
        %v6480 = vunpack.c.0.s8 %v6479
        %v6481 = vlaneseq
        %v6482 = vshrl.u32 %v6481, 7
        %v6483 = vsub.s32 %v6480, %v6482
        %v6484 = vrot.slane %v6456, %v6483
        %v6485 = vcombine.low %v6463, %v6470
        %v6486 = vcombine.low %v6477, %v6484
        %v6488 = vunpack.c.l.s4 1966171168
        %v6489 = vunpack.c.0.s8 %v6488
        %v6490 = vlaneseq
        %v6491 = vshrl.u32 %v6490, 7
        %v6492 = vsub.s32 %v6489, %v6491
        %v6493 = vrot.slane %v6485, %v6492
        %v6495 = vunpack.c.l.s4 1966171168
        %v6496 = vunpack.c.0.s8 %v6495
        %v6497 = vlaneseq
        %v6498 = vshrl.u32 %v6497, 7
        %v6499 = vsub.s32 %v6496, %v6498
        %v6500 = vrot.slane %v6486, %v6499
        %v6501 = vcombine.low %v6493, %v6500
        %v6502 = vcombine.low %v5243, %v5247
        %v6503 = vcombine.low %v5251, %v5255
        %v6504 = vcombine.low %v5259, %v5263
        %v6505 = vcombine.low %v5267, %v5271
        %v6507 = vunpack.c.l.s4 1966171168
        %v6508 = vunpack.c.0.s8 %v6507
        %v6509 = vlaneseq
        %v6510 = vshrl.u32 %v6509, 7
        %v6511 = vsub.s32 %v6508, %v6510
        %v6512 = vrot.slane %v6502, %v6511
        %v6514 = vunpack.c.l.s4 1966171168
        %v6515 = vunpack.c.0.s8 %v6514
        %v6516 = vlaneseq
        %v6517 = vshrl.u32 %v6516, 7
        %v6518 = vsub.s32 %v6515, %v6517
        %v6519 = vrot.slane %v6503, %v6518
        %v6521 = vunpack.c.l.s4 1966171168
        %v6522 = vunpack.c.0.s8 %v6521
        %v6523 = vlaneseq
        %v6524 = vshrl.u32 %v6523, 7
        %v6525 = vsub.s32 %v6522, %v6524
        %v6526 = vrot.slane %v6504, %v6525
        %v6528 = vunpack.c.l.s4 1966171168
        %v6529 = vunpack.c.0.s8 %v6528
        %v6530 = vlaneseq
        %v6531 = vshrl.u32 %v6530, 7
        %v6532 = vsub.s32 %v6529, %v6531
        %v6533 = vrot.slane %v6505, %v6532
        %v6534 = vcombine.low %v6512, %v6519
        %v6535 = vcombine.low %v6526, %v6533
        %v6537 = vunpack.c.l.s4 1966171168
        %v6538 = vunpack.c.0.s8 %v6537
        %v6539 = vlaneseq
        %v6540 = vshrl.u32 %v6539, 7
        %v6541 = vsub.s32 %v6538, %v6540
        %v6542 = vrot.slane %v6534, %v6541
        %v6544 = vunpack.c.l.s4 1966171168
        %v6545 = vunpack.c.0.s8 %v6544
        %v6546 = vlaneseq
        %v6547 = vshrl.u32 %v6546, 7
        %v6548 = vsub.s32 %v6545, %v6547
        %v6549 = vrot.slane %v6535, %v6548
        %v6550 = vcombine.low %v6542, %v6549
        %v6551 = vcombine.low %v5275, %v5279
        %v6552 = vcombine.low %v5283, %v5287
        %v6553 = vcombine.low %v5291, %v5295
        %v6554 = vcombine.low %v5299, %v5303
        %v6556 = vunpack.c.l.s4 1966171168
        %v6557 = vunpack.c.0.s8 %v6556
        %v6558 = vlaneseq
        %v6559 = vshrl.u32 %v6558, 7
        %v6560 = vsub.s32 %v6557, %v6559
        %v6561 = vrot.slane %v6551, %v6560
        %v6563 = vunpack.c.l.s4 1966171168
        %v6564 = vunpack.c.0.s8 %v6563
        %v6565 = vlaneseq
        %v6566 = vshrl.u32 %v6565, 7
        %v6567 = vsub.s32 %v6564, %v6566
        %v6568 = vrot.slane %v6552, %v6567
        %v6570 = vunpack.c.l.s4 1966171168
        %v6571 = vunpack.c.0.s8 %v6570
        %v6572 = vlaneseq
        %v6573 = vshrl.u32 %v6572, 7
        %v6574 = vsub.s32 %v6571, %v6573
        %v6575 = vrot.slane %v6553, %v6574
        %v6577 = vunpack.c.l.s4 1966171168
        %v6578 = vunpack.c.0.s8 %v6577
        %v6579 = vlaneseq
        %v6580 = vshrl.u32 %v6579, 7
        %v6581 = vsub.s32 %v6578, %v6580
        %v6582 = vrot.slane %v6554, %v6581
        %v6583 = vcombine.low %v6561, %v6568
        %v6584 = vcombine.low %v6575, %v6582
        %v6586 = vunpack.c.l.s4 1966171168
        %v6587 = vunpack.c.0.s8 %v6586
        %v6588 = vlaneseq
        %v6589 = vshrl.u32 %v6588, 7
        %v6590 = vsub.s32 %v6587, %v6589
        %v6591 = vrot.slane %v6583, %v6590
        %v6593 = vunpack.c.l.s4 1966171168
        %v6594 = vunpack.c.0.s8 %v6593
        %v6595 = vlaneseq
        %v6596 = vshrl.u32 %v6595, 7
        %v6597 = vsub.s32 %v6594, %v6596
        %v6598 = vrot.slane %v6584, %v6597
        %v6599 = vcombine.low %v6591, %v6598
        %v6600 = vcombine.low %v5307, %v5311
        %v6601 = vcombine.low %v5315, %v5319
        %v6602 = vcombine.low %v5323, %v5327
        %v6603 = vcombine.low %v5331, %v5335
        %v6605 = vunpack.c.l.s4 1966171168
        %v6606 = vunpack.c.0.s8 %v6605
        %v6607 = vlaneseq
        %v6608 = vshrl.u32 %v6607, 7
        %v6609 = vsub.s32 %v6606, %v6608
        %v6610 = vrot.slane %v6600, %v6609
        %v6612 = vunpack.c.l.s4 1966171168
        %v6613 = vunpack.c.0.s8 %v6612
        %v6614 = vlaneseq
        %v6615 = vshrl.u32 %v6614, 7
        %v6616 = vsub.s32 %v6613, %v6615
        %v6617 = vrot.slane %v6601, %v6616
        %v6619 = vunpack.c.l.s4 1966171168
        %v6620 = vunpack.c.0.s8 %v6619
        %v6621 = vlaneseq
        %v6622 = vshrl.u32 %v6621, 7
        %v6623 = vsub.s32 %v6620, %v6622
        %v6624 = vrot.slane %v6602, %v6623
        %v6626 = vunpack.c.l.s4 1966171168
        %v6627 = vunpack.c.0.s8 %v6626
        %v6628 = vlaneseq
        %v6629 = vshrl.u32 %v6628, 7
        %v6630 = vsub.s32 %v6627, %v6629
        %v6631 = vrot.slane %v6603, %v6630
        %v6632 = vcombine.low %v6610, %v6617
        %v6633 = vcombine.low %v6624, %v6631
        %v6635 = vunpack.c.l.s4 1966171168
        %v6636 = vunpack.c.0.s8 %v6635
        %v6637 = vlaneseq
        %v6638 = vshrl.u32 %v6637, 7
        %v6639 = vsub.s32 %v6636, %v6638
        %v6640 = vrot.slane %v6632, %v6639
        %v6642 = vunpack.c.l.s4 1966171168
        %v6643 = vunpack.c.0.s8 %v6642
        %v6644 = vlaneseq
        %v6645 = vshrl.u32 %v6644, 7
        %v6646 = vsub.s32 %v6643, %v6645
        %v6647 = vrot.slane %v6633, %v6646
        %v6648 = vcombine.low %v6640, %v6647
        %v6649 = vcombine.low %v5339, %v5343
        %v6650 = vcombine.low %v5347, %v5351
        %v6651 = vcombine.low %v5355, %v5359
        %v6652 = vcombine.low %v5363, %v5367
        %v6654 = vunpack.c.l.s4 1966171168
        %v6655 = vunpack.c.0.s8 %v6654
        %v6656 = vlaneseq
        %v6657 = vshrl.u32 %v6656, 7
        %v6658 = vsub.s32 %v6655, %v6657
        %v6659 = vrot.slane %v6649, %v6658
        %v6661 = vunpack.c.l.s4 1966171168
        %v6662 = vunpack.c.0.s8 %v6661
        %v6663 = vlaneseq
        %v6664 = vshrl.u32 %v6663, 7
        %v6665 = vsub.s32 %v6662, %v6664
        %v6666 = vrot.slane %v6650, %v6665
        %v6668 = vunpack.c.l.s4 1966171168
        %v6669 = vunpack.c.0.s8 %v6668
        %v6670 = vlaneseq
        %v6671 = vshrl.u32 %v6670, 7
        %v6672 = vsub.s32 %v6669, %v6671
        %v6673 = vrot.slane %v6651, %v6672
        %v6675 = vunpack.c.l.s4 1966171168
        %v6676 = vunpack.c.0.s8 %v6675
        %v6677 = vlaneseq
        %v6678 = vshrl.u32 %v6677, 7
        %v6679 = vsub.s32 %v6676, %v6678
        %v6680 = vrot.slane %v6652, %v6679
        %v6681 = vcombine.low %v6659, %v6666
        %v6682 = vcombine.low %v6673, %v6680
        %v6684 = vunpack.c.l.s4 1966171168
        %v6685 = vunpack.c.0.s8 %v6684
        %v6686 = vlaneseq
        %v6687 = vshrl.u32 %v6686, 7
        %v6688 = vsub.s32 %v6685, %v6687
        %v6689 = vrot.slane %v6681, %v6688
        %v6691 = vunpack.c.l.s4 1966171168
        %v6692 = vunpack.c.0.s8 %v6691
        %v6693 = vlaneseq
        %v6694 = vshrl.u32 %v6693, 7
        %v6695 = vsub.s32 %v6692, %v6694
        %v6696 = vrot.slane %v6682, %v6695
        %v6697 = vcombine.low %v6689, %v6696
        %v6698 = vcombine.low %v5371, %v5375
        %v6699 = vcombine.low %v5379, %v5383
        %v6700 = vcombine.low %v5387, %v5391
        %v6701 = vcombine.low %v5395, %v5399
        %v6703 = vunpack.c.l.s4 1966171168
        %v6704 = vunpack.c.0.s8 %v6703
        %v6705 = vlaneseq
        %v6706 = vshrl.u32 %v6705, 7
        %v6707 = vsub.s32 %v6704, %v6706
        %v6708 = vrot.slane %v6698, %v6707
        %v6710 = vunpack.c.l.s4 1966171168
        %v6711 = vunpack.c.0.s8 %v6710
        %v6712 = vlaneseq
        %v6713 = vshrl.u32 %v6712, 7
        %v6714 = vsub.s32 %v6711, %v6713
        %v6715 = vrot.slane %v6699, %v6714
        %v6717 = vunpack.c.l.s4 1966171168
        %v6718 = vunpack.c.0.s8 %v6717
        %v6719 = vlaneseq
        %v6720 = vshrl.u32 %v6719, 7
        %v6721 = vsub.s32 %v6718, %v6720
        %v6722 = vrot.slane %v6700, %v6721
        %v6724 = vunpack.c.l.s4 1966171168
        %v6725 = vunpack.c.0.s8 %v6724
        %v6726 = vlaneseq
        %v6727 = vshrl.u32 %v6726, 7
        %v6728 = vsub.s32 %v6725, %v6727
        %v6729 = vrot.slane %v6701, %v6728
        %v6730 = vcombine.low %v6708, %v6715
        %v6731 = vcombine.low %v6722, %v6729
        %v6733 = vunpack.c.l.s4 1966171168
        %v6734 = vunpack.c.0.s8 %v6733
        %v6735 = vlaneseq
        %v6736 = vshrl.u32 %v6735, 7
        %v6737 = vsub.s32 %v6734, %v6736
        %v6738 = vrot.slane %v6730, %v6737
        %v6740 = vunpack.c.l.s4 1966171168
        %v6741 = vunpack.c.0.s8 %v6740
        %v6742 = vlaneseq
        %v6743 = vshrl.u32 %v6742, 7
        %v6744 = vsub.s32 %v6741, %v6743
        %v6745 = vrot.slane %v6731, %v6744
        %v6746 = vcombine.low %v6738, %v6745
        %v6747 = vcombine.low %v5403, %v5407
        %v6748 = vcombine.low %v5411, %v5415
        %v6749 = vcombine.low %v5419, %v5423
        %v6750 = vcombine.low %v5427, %v5431
        %v6752 = vunpack.c.l.s4 1966171168
        %v6753 = vunpack.c.0.s8 %v6752
        %v6754 = vlaneseq
        %v6755 = vshrl.u32 %v6754, 7
        %v6756 = vsub.s32 %v6753, %v6755
        %v6757 = vrot.slane %v6747, %v6756
        %v6759 = vunpack.c.l.s4 1966171168
        %v6760 = vunpack.c.0.s8 %v6759
        %v6761 = vlaneseq
        %v6762 = vshrl.u32 %v6761, 7
        %v6763 = vsub.s32 %v6760, %v6762
        %v6764 = vrot.slane %v6748, %v6763
        %v6766 = vunpack.c.l.s4 1966171168
        %v6767 = vunpack.c.0.s8 %v6766
        %v6768 = vlaneseq
        %v6769 = vshrl.u32 %v6768, 7
        %v6770 = vsub.s32 %v6767, %v6769
        %v6771 = vrot.slane %v6749, %v6770
        %v6773 = vunpack.c.l.s4 1966171168
        %v6774 = vunpack.c.0.s8 %v6773
        %v6775 = vlaneseq
        %v6776 = vshrl.u32 %v6775, 7
        %v6777 = vsub.s32 %v6774, %v6776
        %v6778 = vrot.slane %v6750, %v6777
        %v6779 = vcombine.low %v6757, %v6764
        %v6780 = vcombine.low %v6771, %v6778
        %v6782 = vunpack.c.l.s4 1966171168
        %v6783 = vunpack.c.0.s8 %v6782
        %v6784 = vlaneseq
        %v6785 = vshrl.u32 %v6784, 7
        %v6786 = vsub.s32 %v6783, %v6785
        %v6787 = vrot.slane %v6779, %v6786
        %v6789 = vunpack.c.l.s4 1966171168
        %v6790 = vunpack.c.0.s8 %v6789
        %v6791 = vlaneseq
        %v6792 = vshrl.u32 %v6791, 7
        %v6793 = vsub.s32 %v6790, %v6792
        %v6794 = vrot.slane %v6780, %v6793
        %v6795 = vcombine.low %v6787, %v6794
        %v6796 = vcombine.low %v5435, %v5439
        %v6797 = vcombine.low %v5443, %v5447
        %v6798 = vcombine.low %v5451, %v5455
        %v6799 = vcombine.low %v5459, %v5463
        %v6801 = vunpack.c.l.s4 1966171168
        %v6802 = vunpack.c.0.s8 %v6801
        %v6803 = vlaneseq
        %v6804 = vshrl.u32 %v6803, 7
        %v6805 = vsub.s32 %v6802, %v6804
        %v6806 = vrot.slane %v6796, %v6805
        %v6808 = vunpack.c.l.s4 1966171168
        %v6809 = vunpack.c.0.s8 %v6808
        %v6810 = vlaneseq
        %v6811 = vshrl.u32 %v6810, 7
        %v6812 = vsub.s32 %v6809, %v6811
        %v6813 = vrot.slane %v6797, %v6812
        %v6815 = vunpack.c.l.s4 1966171168
        %v6816 = vunpack.c.0.s8 %v6815
        %v6817 = vlaneseq
        %v6818 = vshrl.u32 %v6817, 7
        %v6819 = vsub.s32 %v6816, %v6818
        %v6820 = vrot.slane %v6798, %v6819
        %v6822 = vunpack.c.l.s4 1966171168
        %v6823 = vunpack.c.0.s8 %v6822
        %v6824 = vlaneseq
        %v6825 = vshrl.u32 %v6824, 7
        %v6826 = vsub.s32 %v6823, %v6825
        %v6827 = vrot.slane %v6799, %v6826
        %v6828 = vcombine.low %v6806, %v6813
        %v6829 = vcombine.low %v6820, %v6827
        %v6831 = vunpack.c.l.s4 1966171168
        %v6832 = vunpack.c.0.s8 %v6831
        %v6833 = vlaneseq
        %v6834 = vshrl.u32 %v6833, 7
        %v6835 = vsub.s32 %v6832, %v6834
        %v6836 = vrot.slane %v6828, %v6835
        %v6838 = vunpack.c.l.s4 1966171168
        %v6839 = vunpack.c.0.s8 %v6838
        %v6840 = vlaneseq
        %v6841 = vshrl.u32 %v6840, 7
        %v6842 = vsub.s32 %v6839, %v6841
        %v6843 = vrot.slane %v6829, %v6842
        %v6844 = vcombine.low %v6836, %v6843
        %v6845 = vcombine.low %v5467, %v5471
        %v6846 = vcombine.low %v5475, %v5479
        %v6847 = vcombine.low %v5483, %v5487
        %v6848 = vcombine.low %v5491, %v5495
        %v6850 = vunpack.c.l.s4 1966171168
        %v6851 = vunpack.c.0.s8 %v6850
        %v6852 = vlaneseq
        %v6853 = vshrl.u32 %v6852, 7
        %v6854 = vsub.s32 %v6851, %v6853
        %v6855 = vrot.slane %v6845, %v6854
        %v6857 = vunpack.c.l.s4 1966171168
        %v6858 = vunpack.c.0.s8 %v6857
        %v6859 = vlaneseq
        %v6860 = vshrl.u32 %v6859, 7
        %v6861 = vsub.s32 %v6858, %v6860
        %v6862 = vrot.slane %v6846, %v6861
        %v6864 = vunpack.c.l.s4 1966171168
        %v6865 = vunpack.c.0.s8 %v6864
        %v6866 = vlaneseq
        %v6867 = vshrl.u32 %v6866, 7
        %v6868 = vsub.s32 %v6865, %v6867
        %v6869 = vrot.slane %v6847, %v6868
        %v6871 = vunpack.c.l.s4 1966171168
        %v6872 = vunpack.c.0.s8 %v6871
        %v6873 = vlaneseq
        %v6874 = vshrl.u32 %v6873, 7
        %v6875 = vsub.s32 %v6872, %v6874
        %v6876 = vrot.slane %v6848, %v6875
        %v6877 = vcombine.low %v6855, %v6862
        %v6878 = vcombine.low %v6869, %v6876
        %v6880 = vunpack.c.l.s4 1966171168
        %v6881 = vunpack.c.0.s8 %v6880
        %v6882 = vlaneseq
        %v6883 = vshrl.u32 %v6882, 7
        %v6884 = vsub.s32 %v6881, %v6883
        %v6885 = vrot.slane %v6877, %v6884
        %v6887 = vunpack.c.l.s4 1966171168
        %v6888 = vunpack.c.0.s8 %v6887
        %v6889 = vlaneseq
        %v6890 = vshrl.u32 %v6889, 7
        %v6891 = vsub.s32 %v6888, %v6890
        %v6892 = vrot.slane %v6878, %v6891
        %v6893 = vcombine.low %v6885, %v6892
        %v6894 = vcombine.low %v5499, %v5503
        %v6895 = vcombine.low %v5507, %v5511
        %v6896 = vcombine.low %v5515, %v5519
        %v6897 = vcombine.low %v5523, %v5527
        %v6899 = vunpack.c.l.s4 1966171168
        %v6900 = vunpack.c.0.s8 %v6899
        %v6901 = vlaneseq
        %v6902 = vshrl.u32 %v6901, 7
        %v6903 = vsub.s32 %v6900, %v6902
        %v6904 = vrot.slane %v6894, %v6903
        %v6906 = vunpack.c.l.s4 1966171168
        %v6907 = vunpack.c.0.s8 %v6906
        %v6908 = vlaneseq
        %v6909 = vshrl.u32 %v6908, 7
        %v6910 = vsub.s32 %v6907, %v6909
        %v6911 = vrot.slane %v6895, %v6910
        %v6913 = vunpack.c.l.s4 1966171168
        %v6914 = vunpack.c.0.s8 %v6913
        %v6915 = vlaneseq
        %v6916 = vshrl.u32 %v6915, 7
        %v6917 = vsub.s32 %v6914, %v6916
        %v6918 = vrot.slane %v6896, %v6917
        %v6920 = vunpack.c.l.s4 1966171168
        %v6921 = vunpack.c.0.s8 %v6920
        %v6922 = vlaneseq
        %v6923 = vshrl.u32 %v6922, 7
        %v6924 = vsub.s32 %v6921, %v6923
        %v6925 = vrot.slane %v6897, %v6924
        %v6926 = vcombine.low %v6904, %v6911
        %v6927 = vcombine.low %v6918, %v6925
        %v6929 = vunpack.c.l.s4 1966171168
        %v6930 = vunpack.c.0.s8 %v6929
        %v6931 = vlaneseq
        %v6932 = vshrl.u32 %v6931, 7
        %v6933 = vsub.s32 %v6930, %v6932
        %v6934 = vrot.slane %v6926, %v6933
        %v6936 = vunpack.c.l.s4 1966171168
        %v6937 = vunpack.c.0.s8 %v6936
        %v6938 = vlaneseq
        %v6939 = vshrl.u32 %v6938, 7
        %v6940 = vsub.s32 %v6937, %v6939
        %v6941 = vrot.slane %v6927, %v6940
        %v6942 = vcombine.low %v6934, %v6941
        %v6943 = vcombine.low %v5531, %v5535
        %v6944 = vcombine.low %v5539, %v5543
        %v6945 = vcombine.low %v5547, %v5551
        %v6946 = vcombine.low %v5555, %v5559
        %v6948 = vunpack.c.l.s4 1966171168
        %v6949 = vunpack.c.0.s8 %v6948
        %v6950 = vlaneseq
        %v6951 = vshrl.u32 %v6950, 7
        %v6952 = vsub.s32 %v6949, %v6951
        %v6953 = vrot.slane %v6943, %v6952
        %v6955 = vunpack.c.l.s4 1966171168
        %v6956 = vunpack.c.0.s8 %v6955
        %v6957 = vlaneseq
        %v6958 = vshrl.u32 %v6957, 7
        %v6959 = vsub.s32 %v6956, %v6958
        %v6960 = vrot.slane %v6944, %v6959
        %v6962 = vunpack.c.l.s4 1966171168
        %v6963 = vunpack.c.0.s8 %v6962
        %v6964 = vlaneseq
        %v6965 = vshrl.u32 %v6964, 7
        %v6966 = vsub.s32 %v6963, %v6965
        %v6967 = vrot.slane %v6945, %v6966
        %v6969 = vunpack.c.l.s4 1966171168
        %v6970 = vunpack.c.0.s8 %v6969
        %v6971 = vlaneseq
        %v6972 = vshrl.u32 %v6971, 7
        %v6973 = vsub.s32 %v6970, %v6972
        %v6974 = vrot.slane %v6946, %v6973
        %v6975 = vcombine.low %v6953, %v6960
        %v6976 = vcombine.low %v6967, %v6974
        %v6978 = vunpack.c.l.s4 1966171168
        %v6979 = vunpack.c.0.s8 %v6978
        %v6980 = vlaneseq
        %v6981 = vshrl.u32 %v6980, 7
        %v6982 = vsub.s32 %v6979, %v6981
        %v6983 = vrot.slane %v6975, %v6982
        %v6985 = vunpack.c.l.s4 1966171168
        %v6986 = vunpack.c.0.s8 %v6985
        %v6987 = vlaneseq
        %v6988 = vshrl.u32 %v6987, 7
        %v6989 = vsub.s32 %v6986, %v6988
        %v6990 = vrot.slane %v6976, %v6989
        %v6991 = vcombine.low %v6983, %v6990
        %v6992 = vcombine.low %v5563, %v5567
        %v6993 = vcombine.low %v5571, %v5575
        %v6994 = vcombine.low %v5579, %v5583
        %v6995 = vcombine.low %v5587, %v5591
        %v6997 = vunpack.c.l.s4 1966171168
        %v6998 = vunpack.c.0.s8 %v6997
        %v6999 = vlaneseq
        %v7000 = vshrl.u32 %v6999, 7
        %v7001 = vsub.s32 %v6998, %v7000
        %v7002 = vrot.slane %v6992, %v7001
        %v7004 = vunpack.c.l.s4 1966171168
        %v7005 = vunpack.c.0.s8 %v7004
        %v7006 = vlaneseq
        %v7007 = vshrl.u32 %v7006, 7
        %v7008 = vsub.s32 %v7005, %v7007
        %v7009 = vrot.slane %v6993, %v7008
        %v7011 = vunpack.c.l.s4 1966171168
        %v7012 = vunpack.c.0.s8 %v7011
        %v7013 = vlaneseq
        %v7014 = vshrl.u32 %v7013, 7
        %v7015 = vsub.s32 %v7012, %v7014
        %v7016 = vrot.slane %v6994, %v7015
        %v7018 = vunpack.c.l.s4 1966171168
        %v7019 = vunpack.c.0.s8 %v7018
        %v7020 = vlaneseq
        %v7021 = vshrl.u32 %v7020, 7
        %v7022 = vsub.s32 %v7019, %v7021
        %v7023 = vrot.slane %v6995, %v7022
        %v7024 = vcombine.low %v7002, %v7009
        %v7025 = vcombine.low %v7016, %v7023
        %v7027 = vunpack.c.l.s4 1966171168
        %v7028 = vunpack.c.0.s8 %v7027
        %v7029 = vlaneseq
        %v7030 = vshrl.u32 %v7029, 7
        %v7031 = vsub.s32 %v7028, %v7030
        %v7032 = vrot.slane %v7024, %v7031
        %v7034 = vunpack.c.l.s4 1966171168
        %v7035 = vunpack.c.0.s8 %v7034
        %v7036 = vlaneseq
        %v7037 = vshrl.u32 %v7036, 7
        %v7038 = vsub.s32 %v7035, %v7037
        %v7039 = vrot.slane %v7025, %v7038
        %v7040 = vcombine.low %v7032, %v7039
        %v7041 = vcombine.low %v5595, %v5599
        %v7042 = vcombine.low %v5603, %v5607
        %v7043 = vcombine.low %v5611, %v5615
        %v7044 = vcombine.low %v5619, %v5623
        %v7046 = vunpack.c.l.s4 1966171168
        %v7047 = vunpack.c.0.s8 %v7046
        %v7048 = vlaneseq
        %v7049 = vshrl.u32 %v7048, 7
        %v7050 = vsub.s32 %v7047, %v7049
        %v7051 = vrot.slane %v7041, %v7050
        %v7053 = vunpack.c.l.s4 1966171168
        %v7054 = vunpack.c.0.s8 %v7053
        %v7055 = vlaneseq
        %v7056 = vshrl.u32 %v7055, 7
        %v7057 = vsub.s32 %v7054, %v7056
        %v7058 = vrot.slane %v7042, %v7057
        %v7060 = vunpack.c.l.s4 1966171168
        %v7061 = vunpack.c.0.s8 %v7060
        %v7062 = vlaneseq
        %v7063 = vshrl.u32 %v7062, 7
        %v7064 = vsub.s32 %v7061, %v7063
        %v7065 = vrot.slane %v7043, %v7064
        %v7067 = vunpack.c.l.s4 1966171168
        %v7068 = vunpack.c.0.s8 %v7067
        %v7069 = vlaneseq
        %v7070 = vshrl.u32 %v7069, 7
        %v7071 = vsub.s32 %v7068, %v7070
        %v7072 = vrot.slane %v7044, %v7071
        %v7073 = vcombine.low %v7051, %v7058
        %v7074 = vcombine.low %v7065, %v7072
        %v7076 = vunpack.c.l.s4 1966171168
        %v7077 = vunpack.c.0.s8 %v7076
        %v7078 = vlaneseq
        %v7079 = vshrl.u32 %v7078, 7
        %v7080 = vsub.s32 %v7077, %v7079
        %v7081 = vrot.slane %v7073, %v7080
        %v7083 = vunpack.c.l.s4 1966171168
        %v7084 = vunpack.c.0.s8 %v7083
        %v7085 = vlaneseq
        %v7086 = vshrl.u32 %v7085, 7
        %v7087 = vsub.s32 %v7084, %v7086
        %v7088 = vrot.slane %v7074, %v7087
        %v7089 = vcombine.low %v7081, %v7088
        %v7090 = vcombine.low %v5627, %v5631
        %v7091 = vcombine.low %v5635, %v5639
        %v7092 = vcombine.low %v5643, %v5647
        %v7093 = vcombine.low %v5651, %v5655
        %v7095 = vunpack.c.l.s4 1966171168
        %v7096 = vunpack.c.0.s8 %v7095
        %v7097 = vlaneseq
        %v7098 = vshrl.u32 %v7097, 7
        %v7099 = vsub.s32 %v7096, %v7098
        %v7100 = vrot.slane %v7090, %v7099
        %v7102 = vunpack.c.l.s4 1966171168
        %v7103 = vunpack.c.0.s8 %v7102
        %v7104 = vlaneseq
        %v7105 = vshrl.u32 %v7104, 7
        %v7106 = vsub.s32 %v7103, %v7105
        %v7107 = vrot.slane %v7091, %v7106
        %v7109 = vunpack.c.l.s4 1966171168
        %v7110 = vunpack.c.0.s8 %v7109
        %v7111 = vlaneseq
        %v7112 = vshrl.u32 %v7111, 7
        %v7113 = vsub.s32 %v7110, %v7112
        %v7114 = vrot.slane %v7092, %v7113
        %v7116 = vunpack.c.l.s4 1966171168
        %v7117 = vunpack.c.0.s8 %v7116
        %v7118 = vlaneseq
        %v7119 = vshrl.u32 %v7118, 7
        %v7120 = vsub.s32 %v7117, %v7119
        %v7121 = vrot.slane %v7093, %v7120
        %v7122 = vcombine.low %v7100, %v7107
        %v7123 = vcombine.low %v7114, %v7121
        %v7125 = vunpack.c.l.s4 1966171168
        %v7126 = vunpack.c.0.s8 %v7125
        %v7127 = vlaneseq
        %v7128 = vshrl.u32 %v7127, 7
        %v7129 = vsub.s32 %v7126, %v7128
        %v7130 = vrot.slane %v7122, %v7129
        %v7132 = vunpack.c.l.s4 1966171168
        %v7133 = vunpack.c.0.s8 %v7132
        %v7134 = vlaneseq
        %v7135 = vshrl.u32 %v7134, 7
        %v7136 = vsub.s32 %v7133, %v7135
        %v7137 = vrot.slane %v7123, %v7136
        %v7138 = vcombine.low %v7130, %v7137
        %v7139 = vcombine.low %v5659, %v5663
        %v7140 = vcombine.low %v5667, %v5671
        %v7141 = vcombine.low %v5675, %v5679
        %v7142 = vcombine.low %v5683, %v5687
        %v7144 = vunpack.c.l.s4 1966171168
        %v7145 = vunpack.c.0.s8 %v7144
        %v7146 = vlaneseq
        %v7147 = vshrl.u32 %v7146, 7
        %v7148 = vsub.s32 %v7145, %v7147
        %v7149 = vrot.slane %v7139, %v7148
        %v7151 = vunpack.c.l.s4 1966171168
        %v7152 = vunpack.c.0.s8 %v7151
        %v7153 = vlaneseq
        %v7154 = vshrl.u32 %v7153, 7
        %v7155 = vsub.s32 %v7152, %v7154
        %v7156 = vrot.slane %v7140, %v7155
        %v7158 = vunpack.c.l.s4 1966171168
        %v7159 = vunpack.c.0.s8 %v7158
        %v7160 = vlaneseq
        %v7161 = vshrl.u32 %v7160, 7
        %v7162 = vsub.s32 %v7159, %v7161
        %v7163 = vrot.slane %v7141, %v7162
        %v7165 = vunpack.c.l.s4 1966171168
        %v7166 = vunpack.c.0.s8 %v7165
        %v7167 = vlaneseq
        %v7168 = vshrl.u32 %v7167, 7
        %v7169 = vsub.s32 %v7166, %v7168
        %v7170 = vrot.slane %v7142, %v7169
        %v7171 = vcombine.low %v7149, %v7156
        %v7172 = vcombine.low %v7163, %v7170
        %v7174 = vunpack.c.l.s4 1966171168
        %v7175 = vunpack.c.0.s8 %v7174
        %v7176 = vlaneseq
        %v7177 = vshrl.u32 %v7176, 7
        %v7178 = vsub.s32 %v7175, %v7177
        %v7179 = vrot.slane %v7171, %v7178
        %v7181 = vunpack.c.l.s4 1966171168
        %v7182 = vunpack.c.0.s8 %v7181
        %v7183 = vlaneseq
        %v7184 = vshrl.u32 %v7183, 7
        %v7185 = vsub.s32 %v7182, %v7184
        %v7186 = vrot.slane %v7172, %v7185
        %v7187 = vcombine.low %v7179, %v7186
        %v7188 = vcombine.low %v5691, %v5695
        %v7189 = vcombine.low %v5699, %v5703
        %v7190 = vcombine.low %v5707, %v5711
        %v7191 = vcombine.low %v5715, %v5719
        %v7193 = vunpack.c.l.s4 1966171168
        %v7194 = vunpack.c.0.s8 %v7193
        %v7195 = vlaneseq
        %v7196 = vshrl.u32 %v7195, 7
        %v7197 = vsub.s32 %v7194, %v7196
        %v7198 = vrot.slane %v7188, %v7197
        %v7200 = vunpack.c.l.s4 1966171168
        %v7201 = vunpack.c.0.s8 %v7200
        %v7202 = vlaneseq
        %v7203 = vshrl.u32 %v7202, 7
        %v7204 = vsub.s32 %v7201, %v7203
        %v7205 = vrot.slane %v7189, %v7204
        %v7207 = vunpack.c.l.s4 1966171168
        %v7208 = vunpack.c.0.s8 %v7207
        %v7209 = vlaneseq
        %v7210 = vshrl.u32 %v7209, 7
        %v7211 = vsub.s32 %v7208, %v7210
        %v7212 = vrot.slane %v7190, %v7211
        %v7214 = vunpack.c.l.s4 1966171168
        %v7215 = vunpack.c.0.s8 %v7214
        %v7216 = vlaneseq
        %v7217 = vshrl.u32 %v7216, 7
        %v7218 = vsub.s32 %v7215, %v7217
        %v7219 = vrot.slane %v7191, %v7218
        %v7220 = vcombine.low %v7198, %v7205
        %v7221 = vcombine.low %v7212, %v7219
        %v7223 = vunpack.c.l.s4 1966171168
        %v7224 = vunpack.c.0.s8 %v7223
        %v7225 = vlaneseq
        %v7226 = vshrl.u32 %v7225, 7
        %v7227 = vsub.s32 %v7224, %v7226
        %v7228 = vrot.slane %v7220, %v7227
        %v7230 = vunpack.c.l.s4 1966171168
        %v7231 = vunpack.c.0.s8 %v7230
        %v7232 = vlaneseq
        %v7233 = vshrl.u32 %v7232, 7
        %v7234 = vsub.s32 %v7231, %v7233
        %v7235 = vrot.slane %v7221, %v7234
        %v7236 = vcombine.low %v7228, %v7235
        %v7237 = vcombine.low %v5723, %v5727
        %v7238 = vcombine.low %v5731, %v5735
        %v7239 = vcombine.low %v5739, %v5743
        %v7240 = vcombine.low %v5747, %v5751
        %v7242 = vunpack.c.l.s4 1966171168
        %v7243 = vunpack.c.0.s8 %v7242
        %v7244 = vlaneseq
        %v7245 = vshrl.u32 %v7244, 7
        %v7246 = vsub.s32 %v7243, %v7245
        %v7247 = vrot.slane %v7237, %v7246
        %v7249 = vunpack.c.l.s4 1966171168
        %v7250 = vunpack.c.0.s8 %v7249
        %v7251 = vlaneseq
        %v7252 = vshrl.u32 %v7251, 7
        %v7253 = vsub.s32 %v7250, %v7252
        %v7254 = vrot.slane %v7238, %v7253
        %v7256 = vunpack.c.l.s4 1966171168
        %v7257 = vunpack.c.0.s8 %v7256
        %v7258 = vlaneseq
        %v7259 = vshrl.u32 %v7258, 7
        %v7260 = vsub.s32 %v7257, %v7259
        %v7261 = vrot.slane %v7239, %v7260
        %v7263 = vunpack.c.l.s4 1966171168
        %v7264 = vunpack.c.0.s8 %v7263
        %v7265 = vlaneseq
        %v7266 = vshrl.u32 %v7265, 7
        %v7267 = vsub.s32 %v7264, %v7266
        %v7268 = vrot.slane %v7240, %v7267
        %v7269 = vcombine.low %v7247, %v7254
        %v7270 = vcombine.low %v7261, %v7268
        %v7272 = vunpack.c.l.s4 1966171168
        %v7273 = vunpack.c.0.s8 %v7272
        %v7274 = vlaneseq
        %v7275 = vshrl.u32 %v7274, 7
        %v7276 = vsub.s32 %v7273, %v7275
        %v7277 = vrot.slane %v7269, %v7276
        %v7279 = vunpack.c.l.s4 1966171168
        %v7280 = vunpack.c.0.s8 %v7279
        %v7281 = vlaneseq
        %v7282 = vshrl.u32 %v7281, 7
        %v7283 = vsub.s32 %v7280, %v7282
        %v7284 = vrot.slane %v7270, %v7283
        %v7285 = vcombine.low %v7277, %v7284
        %v7286 = vcombine.low %v5755, %v5759
        %v7287 = vcombine.low %v5763, %v5767
        %v7288 = vcombine.low %v5771, %v5775
        %v7289 = vcombine.low %v5779, %v5783
        %v7291 = vunpack.c.l.s4 1966171168
        %v7292 = vunpack.c.0.s8 %v7291
        %v7293 = vlaneseq
        %v7294 = vshrl.u32 %v7293, 7
        %v7295 = vsub.s32 %v7292, %v7294
        %v7296 = vrot.slane %v7286, %v7295
        %v7298 = vunpack.c.l.s4 1966171168
        %v7299 = vunpack.c.0.s8 %v7298
        %v7300 = vlaneseq
        %v7301 = vshrl.u32 %v7300, 7
        %v7302 = vsub.s32 %v7299, %v7301
        %v7303 = vrot.slane %v7287, %v7302
        %v7305 = vunpack.c.l.s4 1966171168
        %v7306 = vunpack.c.0.s8 %v7305
        %v7307 = vlaneseq
        %v7308 = vshrl.u32 %v7307, 7
        %v7309 = vsub.s32 %v7306, %v7308
        %v7310 = vrot.slane %v7288, %v7309
        %v7312 = vunpack.c.l.s4 1966171168
        %v7313 = vunpack.c.0.s8 %v7312
        %v7314 = vlaneseq
        %v7315 = vshrl.u32 %v7314, 7
        %v7316 = vsub.s32 %v7313, %v7315
        %v7317 = vrot.slane %v7289, %v7316
        %v7318 = vcombine.low %v7296, %v7303
        %v7319 = vcombine.low %v7310, %v7317
        %v7321 = vunpack.c.l.s4 1966171168
        %v7322 = vunpack.c.0.s8 %v7321
        %v7323 = vlaneseq
        %v7324 = vshrl.u32 %v7323, 7
        %v7325 = vsub.s32 %v7322, %v7324
        %v7326 = vrot.slane %v7318, %v7325
        %v7328 = vunpack.c.l.s4 1966171168
        %v7329 = vunpack.c.0.s8 %v7328
        %v7330 = vlaneseq
        %v7331 = vshrl.u32 %v7330, 7
        %v7332 = vsub.s32 %v7329, %v7331
        %v7333 = vrot.slane %v7319, %v7332
        %v7334 = vcombine.low %v7326, %v7333
        %v7335 = vcombine.low %v5787, %v5791
        %v7336 = vcombine.low %v5795, %v5799
        %v7337 = vcombine.low %v5803, %v5807
        %v7338 = vcombine.low %v5811, %v5815
        %v7340 = vunpack.c.l.s4 1966171168
        %v7341 = vunpack.c.0.s8 %v7340
        %v7342 = vlaneseq
        %v7343 = vshrl.u32 %v7342, 7
        %v7344 = vsub.s32 %v7341, %v7343
        %v7345 = vrot.slane %v7335, %v7344
        %v7347 = vunpack.c.l.s4 1966171168
        %v7348 = vunpack.c.0.s8 %v7347
        %v7349 = vlaneseq
        %v7350 = vshrl.u32 %v7349, 7
        %v7351 = vsub.s32 %v7348, %v7350
        %v7352 = vrot.slane %v7336, %v7351
        %v7354 = vunpack.c.l.s4 1966171168
        %v7355 = vunpack.c.0.s8 %v7354
        %v7356 = vlaneseq
        %v7357 = vshrl.u32 %v7356, 7
        %v7358 = vsub.s32 %v7355, %v7357
        %v7359 = vrot.slane %v7337, %v7358
        %v7361 = vunpack.c.l.s4 1966171168
        %v7362 = vunpack.c.0.s8 %v7361
        %v7363 = vlaneseq
        %v7364 = vshrl.u32 %v7363, 7
        %v7365 = vsub.s32 %v7362, %v7364
        %v7366 = vrot.slane %v7338, %v7365
        %v7367 = vcombine.low %v7345, %v7352
        %v7368 = vcombine.low %v7359, %v7366
        %v7370 = vunpack.c.l.s4 1966171168
        %v7371 = vunpack.c.0.s8 %v7370
        %v7372 = vlaneseq
        %v7373 = vshrl.u32 %v7372, 7
        %v7374 = vsub.s32 %v7371, %v7373
        %v7375 = vrot.slane %v7367, %v7374
        %v7377 = vunpack.c.l.s4 1966171168
        %v7378 = vunpack.c.0.s8 %v7377
        %v7379 = vlaneseq
        %v7380 = vshrl.u32 %v7379, 7
        %v7381 = vsub.s32 %v7378, %v7380
        %v7382 = vrot.slane %v7368, %v7381
        %v7383 = vcombine.low %v7375, %v7382
        %7384 = vset.pattern.permute.xlu0 0
        %7385 = vperm.xlu0 %7384, %v5864
        %v7386 = vpop.permute.xlu0 %7385
        %7387 = vset.pattern.permute.xlu0 0
        %7388 = vperm.xlu0 %7387, %v5913
        %v7389 = vpop.permute.xlu0 %7388
        %7390 = vset.pattern.permute.xlu0 0
        %7391 = vperm.xlu0 %7390, %v5962
        %v7392 = vpop.permute.xlu0 %7391
        %7393 = vset.pattern.permute.xlu0 0
        %7394 = vperm.xlu0 %7393, %v6011
        %v7395 = vpop.permute.xlu0 %7394
        %7396 = vset.pattern.permute.xlu0 0
        %7397 = vperm.xlu0 %7396, %v6060
        %v7398 = vpop.permute.xlu0 %7397
        %7399 = vset.pattern.permute.xlu0 0
        %7400 = vperm.xlu0 %7399, %v6109
        %v7401 = vpop.permute.xlu0 %7400
        %7402 = vset.pattern.permute.xlu0 0
        %7403 = vperm.xlu0 %7402, %v6158
        %v7404 = vpop.permute.xlu0 %7403
        %7405 = vset.pattern.permute.xlu0 0
        %7406 = vperm.xlu0 %7405, %v6207
        %v7407 = vpop.permute.xlu0 %7406
        %7408 = vset.pattern.permute.xlu0 0
        %7409 = vperm.xlu0 %7408, %v6256
        %v7410 = vpop.permute.xlu0 %7409
        %7411 = vset.pattern.permute.xlu0 0
        %7412 = vperm.xlu0 %7411, %v6305
        %v7413 = vpop.permute.xlu0 %7412
        %7414 = vset.pattern.permute.xlu0 0
        %7415 = vperm.xlu0 %7414, %v6354
        %v7416 = vpop.permute.xlu0 %7415
        %7417 = vset.pattern.permute.xlu0 0
        %7418 = vperm.xlu0 %7417, %v6403
        %v7419 = vpop.permute.xlu0 %7418
        %7420 = vset.pattern.permute.xlu0 0
        %7421 = vperm.xlu0 %7420, %v6452
        %v7422 = vpop.permute.xlu0 %7421
        %7423 = vset.pattern.permute.xlu0 0
        %7424 = vperm.xlu0 %7423, %v6501
        %v7425 = vpop.permute.xlu0 %7424
        %7426 = vset.pattern.permute.xlu0 0
        %7427 = vperm.xlu0 %7426, %v6550
        %v7428 = vpop.permute.xlu0 %7427
        %7429 = vset.pattern.permute.xlu0 0
        %7430 = vperm.xlu0 %7429, %v6599
        %v7431 = vpop.permute.xlu0 %7430
        %7432 = vset.pattern.permute.xlu0 0
        %7433 = vperm.xlu0 %7432, %v6648
        %v7434 = vpop.permute.xlu0 %7433
        %7435 = vset.pattern.permute.xlu0 0
        %7436 = vperm.xlu0 %7435, %v6697
        %v7437 = vpop.permute.xlu0 %7436
        %7438 = vset.pattern.permute.xlu0 0
        %7439 = vperm.xlu0 %7438, %v6746
        %v7440 = vpop.permute.xlu0 %7439
        %7441 = vset.pattern.permute.xlu0 0
        %7442 = vperm.xlu0 %7441, %v6795
        %v7443 = vpop.permute.xlu0 %7442
        %7444 = vset.pattern.permute.xlu0 0
        %7445 = vperm.xlu0 %7444, %v6844
        %v7446 = vpop.permute.xlu0 %7445
        %7447 = vset.pattern.permute.xlu0 0
        %7448 = vperm.xlu0 %7447, %v6893
        %v7449 = vpop.permute.xlu0 %7448
        %7450 = vset.pattern.permute.xlu0 0
        %7451 = vperm.xlu0 %7450, %v6942
        %v7452 = vpop.permute.xlu0 %7451
        %7453 = vset.pattern.permute.xlu0 0
        %7454 = vperm.xlu0 %7453, %v6991
        %v7455 = vpop.permute.xlu0 %7454
        %7456 = vset.pattern.permute.xlu0 0
        %7457 = vperm.xlu0 %7456, %v7040
        %v7458 = vpop.permute.xlu0 %7457
        %7459 = vset.pattern.permute.xlu0 0
        %7460 = vperm.xlu0 %7459, %v7089
        %v7461 = vpop.permute.xlu0 %7460
        %7462 = vset.pattern.permute.xlu0 0
        %7463 = vperm.xlu0 %7462, %v7138
        %v7464 = vpop.permute.xlu0 %7463
        %7465 = vset.pattern.permute.xlu0 0
        %7466 = vperm.xlu0 %7465, %v7187
        %v7467 = vpop.permute.xlu0 %7466
        %7468 = vset.pattern.permute.xlu0 0
        %7469 = vperm.xlu0 %7468, %v7236
        %v7470 = vpop.permute.xlu0 %7469
        %7471 = vset.pattern.permute.xlu0 0
        %7472 = vperm.xlu0 %7471, %v7285
        %v7473 = vpop.permute.xlu0 %7472
        %7474 = vset.pattern.permute.xlu0 0
        %7475 = vperm.xlu0 %7474, %v7334
        %v7476 = vpop.permute.xlu0 %7475
        %7477 = vset.pattern.permute.xlu0 0
        %7478 = vperm.xlu0 %7477, %v7383
        %v7479 = vpop.permute.xlu0 %7478
        %v7480 = vlaneseq
        %v7481 = vshrl.u32 %v7480, 7
        %v7482 = vsub.s32 %v740, %v7481
        %v7483 = vrot.slane %v7386, %v7482
        %v7484 = vlaneseq
        %v7485 = vshrl.u32 %v7484, 7
        %v7486 = vsub.s32 %v4556, %v7485
        %v7487 = vrot.slane %v7389, %v7486
        %v7488 = vsel %vm4561, %v7487, %v7483
        %v7489 = vlaneseq
        %v7490 = vshrl.u32 %v7489, 7
        %v7491 = vsub.s32 %v4563, %v7490
        %v7492 = vrot.slane %v7392, %v7491
        %v7493 = vsel %vm4568, %v7492, %v7488
        %v7494 = vlaneseq
        %v7495 = vshrl.u32 %v7494, 7
        %v7496 = vsub.s32 %v4570, %v7495
        %v7497 = vrot.slane %v7395, %v7496
        %v7498 = vsel %vm4575, %v7497, %v7493
        %v7499 = vlaneseq
        %v7500 = vshrl.u32 %v7499, 7
        %v7501 = vsub.s32 %v4577, %v7500
        %v7502 = vrot.slane %v7398, %v7501
        %v7503 = vsel %vm4582, %v7502, %v7498
        %v7504 = vlaneseq
        %v7505 = vshrl.u32 %v7504, 7
        %v7506 = vsub.s32 %v4584, %v7505
        %v7507 = vrot.slane %v7401, %v7506
        %v7508 = vsel %vm4589, %v7507, %v7503
        %v7509 = vlaneseq
        %v7510 = vshrl.u32 %v7509, 7
        %v7511 = vsub.s32 %v4591, %v7510
        %v7512 = vrot.slane %v7404, %v7511
        %v7513 = vsel %vm4596, %v7512, %v7508
        %v7514 = vlaneseq
        %v7515 = vshrl.u32 %v7514, 7
        %v7516 = vsub.s32 %v4598, %v7515
        %v7517 = vrot.slane %v7407, %v7516
        %v7518 = vsel %vm4603, %v7517, %v7513
        %v7519 = vlaneseq
        %v7520 = vshrl.u32 %v7519, 7
        %v7521 = vsub.s32 %v4605, %v7520
        %v7522 = vrot.slane %v7410, %v7521
        %v7523 = vsel %vm4610, %v7522, %v7518
        %v7524 = vlaneseq
        %v7525 = vshrl.u32 %v7524, 7
        %v7526 = vsub.s32 %v4612, %v7525
        %v7527 = vrot.slane %v7413, %v7526
        %v7528 = vsel %vm4617, %v7527, %v7523
        %v7529 = vlaneseq
        %v7530 = vshrl.u32 %v7529, 7
        %v7531 = vsub.s32 %v4619, %v7530
        %v7532 = vrot.slane %v7416, %v7531
        %v7533 = vsel %vm4624, %v7532, %v7528
        %v7534 = vlaneseq
        %v7535 = vshrl.u32 %v7534, 7
        %v7536 = vsub.s32 %v4626, %v7535
        %v7537 = vrot.slane %v7419, %v7536
        %v7538 = vsel %vm4631, %v7537, %v7533
        %v7539 = vlaneseq
        %v7540 = vshrl.u32 %v7539, 7
        %v7541 = vsub.s32 %v4633, %v7540
        %v7542 = vrot.slane %v7422, %v7541
        %v7543 = vsel %vm4638, %v7542, %v7538
        %v7544 = vlaneseq
        %v7545 = vshrl.u32 %v7544, 7
        %v7546 = vsub.s32 %v4640, %v7545
        %v7547 = vrot.slane %v7425, %v7546
        %v7548 = vsel %vm4645, %v7547, %v7543
        %v7549 = vlaneseq
        %v7550 = vshrl.u32 %v7549, 7
        %v7551 = vsub.s32 %v4647, %v7550
        %v7552 = vrot.slane %v7428, %v7551
        %v7553 = vsel %vm4652, %v7552, %v7548
        %v7554 = vlaneseq
        %v7555 = vshrl.u32 %v7554, 7
        %v7556 = vsub.s32 %v4654, %v7555
        %v7557 = vrot.slane %v7431, %v7556
        %v7558 = vsel %vm4659, %v7557, %v7553
        %v7559 = vlaneseq
        %v7560 = vshrl.u32 %v7559, 7
        %v7561 = vsub.s32 %v740, %v7560
        %v7562 = vrot.slane %v7434, %v7561
        %v7563 = vlaneseq
        %v7564 = vshrl.u32 %v7563, 7
        %v7565 = vsub.s32 %v4556, %v7564
        %v7566 = vrot.slane %v7437, %v7565
        %v7567 = vsel %vm4561, %v7566, %v7562
        %v7568 = vlaneseq
        %v7569 = vshrl.u32 %v7568, 7
        %v7570 = vsub.s32 %v4563, %v7569
        %v7571 = vrot.slane %v7440, %v7570
        %v7572 = vsel %vm4568, %v7571, %v7567
        %v7573 = vlaneseq
        %v7574 = vshrl.u32 %v7573, 7
        %v7575 = vsub.s32 %v4570, %v7574
        %v7576 = vrot.slane %v7443, %v7575
        %v7577 = vsel %vm4575, %v7576, %v7572
        %v7578 = vlaneseq
        %v7579 = vshrl.u32 %v7578, 7
        %v7580 = vsub.s32 %v4577, %v7579
        %v7581 = vrot.slane %v7446, %v7580
        %v7582 = vsel %vm4582, %v7581, %v7577
        %v7583 = vlaneseq
        %v7584 = vshrl.u32 %v7583, 7
        %v7585 = vsub.s32 %v4584, %v7584
        %v7586 = vrot.slane %v7449, %v7585
        %v7587 = vsel %vm4589, %v7586, %v7582
        %v7588 = vlaneseq
        %v7589 = vshrl.u32 %v7588, 7
        %v7590 = vsub.s32 %v4591, %v7589
        %v7591 = vrot.slane %v7452, %v7590
        %v7592 = vsel %vm4596, %v7591, %v7587
        %v7593 = vlaneseq
        %v7594 = vshrl.u32 %v7593, 7
        %v7595 = vsub.s32 %v4598, %v7594
        %v7596 = vrot.slane %v7455, %v7595
        %v7597 = vsel %vm4603, %v7596, %v7592
        %v7598 = vlaneseq
        %v7599 = vshrl.u32 %v7598, 7
        %v7600 = vsub.s32 %v4605, %v7599
        %v7601 = vrot.slane %v7458, %v7600
        %v7602 = vsel %vm4610, %v7601, %v7597
        %v7603 = vlaneseq
        %v7604 = vshrl.u32 %v7603, 7
        %v7605 = vsub.s32 %v4612, %v7604
        %v7606 = vrot.slane %v7461, %v7605
        %v7607 = vsel %vm4617, %v7606, %v7602
        %v7608 = vlaneseq
        %v7609 = vshrl.u32 %v7608, 7
        %v7610 = vsub.s32 %v4619, %v7609
        %v7611 = vrot.slane %v7464, %v7610
        %v7612 = vsel %vm4624, %v7611, %v7607
        %v7613 = vlaneseq
        %v7614 = vshrl.u32 %v7613, 7
        %v7615 = vsub.s32 %v4626, %v7614
        %v7616 = vrot.slane %v7467, %v7615
        %v7617 = vsel %vm4631, %v7616, %v7612
        %v7618 = vlaneseq
        %v7619 = vshrl.u32 %v7618, 7
        %v7620 = vsub.s32 %v4633, %v7619
        %v7621 = vrot.slane %v7470, %v7620
        %v7622 = vsel %vm4638, %v7621, %v7617
        %v7623 = vlaneseq
        %v7624 = vshrl.u32 %v7623, 7
        %v7625 = vsub.s32 %v4640, %v7624
        %v7626 = vrot.slane %v7473, %v7625
        %v7627 = vsel %vm4645, %v7626, %v7622
        %v7628 = vlaneseq
        %v7629 = vshrl.u32 %v7628, 7
        %v7630 = vsub.s32 %v4647, %v7629
        %v7631 = vrot.slane %v7476, %v7630
        %v7632 = vsel %vm4652, %v7631, %v7627
        %v7633 = vlaneseq
        %v7634 = vshrl.u32 %v7633, 7
        %v7635 = vsub.s32 %v4654, %v7634
        %v7636 = vrot.slane %v7479, %v7635
        %v7637 = vsel %vm4659, %v7636, %v7632
        %v7638 = vcombine.low %v7558, %v7637
        %v7640 = vunpack.c.l.s4 1966171168
        %v7641 = vunpack.c.0.s8 %v7640
        %v7642 = vlaneseq
        %v7643 = vshrl.u32 %v7642, 7
        %v7644 = vsub.s32 %v7641, %v7643
        %v7645 = vrot.slane %v7638, %v7644
        %v7647 = vunpack.c.l.s4 1966171168
        %v7648 = vunpack.c.0.s8 %v7647
        %v7649 = vlaneseq
        %v7650 = vshrl.u32 %v7649, 7
        %v7651 = vsub.s32 %v7648, %v7650
        %v7652 = vrot.slane %v7645, %v7651
        %7654 = vst.msk [vmem:[%s246] sm:$0x3] %vm4758, %v7652
        %s7655 = sand.u32 %s99, 1
        %s7656 = scalar_lea.sflag [#allocation3], %s7655
        %s7657 = sand.u32 %s99, 1
        %s7658 = smul.addr %s7657, 256
        %s7659 = scalar_lea.vmem [#allocation2], %s7658
        %s7660 = sand.u32 %s125, 1
        %s7661 = scalar_lea.sflag [#allocation5], %s7660
        %s7662 = sand.u32 %s125, 1
        %s7663 = smul.addr %s7662, 2
        %s7664 = scalar_lea.vmem [#allocation4], %s7663
        %p7665 = scmp.lt.s32.totalorder %s23, 1
        %s7666 = scalar_select %p7665, %s23, 1
        %s7667 = smul.addr %s7666, 2
        %s7668 = scalar_lea.vmem %s5, %s7667
        // Predicated region
        $region33: #{ema_vq_forward.1} parent=31 // pred_check
          %p7669 = pneg %p109
        $region34: #{ema_vq_forward.1} parent=31 // pred_check_branch
          %7671 = sbr.rel (%p7669) target = $region36
        $region35: #{ema_vq_forward.1} parent=31 // pred_region
          %s7672 = smul.u32 32, %s23
          %s7674 = ssub.s32 4096, 4096
          %7675 = vsyncadd %s7656, %s7674
          %s7676 = smul.addr %s7672, 128
          %s7677 = scalar_lea.hbm %s3, %s7676
          %s7678 = sshll.u32 %s7659, 4
          %s7679 = int_to_ptr.vmem [resolvable:$true] %s7678
          %7684 = dma.vmem_to_hbm [thread:$0]  %s7679, 4096, %s7677, %s7656, 128, 128, 8
        $region36: #{ema_vq_forward.1} parent=31 // pred_fallthru
          _
        // Predicated region
        $region37: #{ema_vq_forward.1} parent=31 // pred_check
          %p7685 = pneg %p135
        $region38: #{ema_vq_forward.1} parent=31 // pred_check_branch
          %7687 = sbr.rel (%p7685) target = $region40
        $region39: #{ema_vq_forward.1} parent=31 // pred_region
          %s7689 = ssub.s32 32, 32
          %7690 = vsyncadd %s7661, %s7689
          %s7691 = smul.addr %s23, 2
          %s7692 = smul.addr %s7691, 16
          %s7693 = scalar_lea.hbm %s4, %s7692
          %s7695 = sshll.u32 %s7664, 4
          %s7696 = int_to_ptr.vmem [resolvable:$true] %s7695
          %7698 = dma.vmem_to_hbm [thread:$0]  %s7696, 32, %s7693, %s7661
        $region40: #{ema_vq_forward.1} parent=31 // pred_fallthru
          _
        // Predicated region
        $region41: #{ema_vq_forward.1} parent=31 // pred_check
          %p7699 = pneg %p161
        $region42: #{ema_vq_forward.1} parent=31 // pred_check_branch
          %7701 = sbr.rel (%p7699) target = $region44
        $region43: #{ema_vq_forward.1} parent=31 // pred_region
          _
        $region44: #{ema_vq_forward.1} parent=31 // pred_fallthru
          _
      $region32: #{ema_vq_forward.1} parent=5 // pred_fallthru
        _
      %p7702 = scmp.le.s32.totalorder 2, %s18
      // Predicated region
      $region45: #{ema_vq_forward.1} parent=5 // pred_check
        %p7703 = pneg %p7702
      $region46: #{ema_vq_forward.1} parent=5 // pred_check_branch
        %7705 = sbr.rel (%p7703) target = $region48
      $region47: #{ema_vq_forward.1} parent=5 // pred_region
        %s7706 = ssub.s32 %s18, 2
        // Predicated region
        $region49: #{ema_vq_forward.1} parent=47 // pred_check
          %p7707 = pneg %p115
        $region50: #{ema_vq_forward.1} parent=47 // pred_check_branch
          %7709 = sbr.rel (%p7707) target = $region52
        $region51: #{ema_vq_forward.1} parent=47 // pred_region
          %s7710 = sand.u32 %s100, 1
          %s7711 = scalar_lea.sflag [#allocation3], %s7710
          %s7712 = sand.u32 %s100, 1
          %s7713 = smul.addr %s7712, 256
          %s7714 = scalar_lea.vmem [#allocation2], %s7713
          %7715 = dma.done %s7711, 4096
        $region52: #{ema_vq_forward.1} parent=47 // pred_fallthru
          _
        // Predicated region
        $region53: #{ema_vq_forward.1} parent=47 // pred_check
          %p7716 = pneg %p141
        $region54: #{ema_vq_forward.1} parent=47 // pred_check_branch
          %7718 = sbr.rel (%p7716) target = $region56
        $region55: #{ema_vq_forward.1} parent=47 // pred_region
          %s7719 = sand.u32 %s126, 1
          %s7720 = scalar_lea.sflag [#allocation5], %s7719
          %s7721 = sand.u32 %s126, 1
          %s7722 = smul.addr %s7721, 2
          %s7723 = scalar_lea.vmem [#allocation4], %s7722
          %7724 = dma.done %s7720, 32
        $region56: #{ema_vq_forward.1} parent=47 // pred_fallthru
          _
        // Predicated region
        $region57: #{ema_vq_forward.1} parent=47 // pred_check
          %p7725 = pneg %p167
        $region58: #{ema_vq_forward.1} parent=47 // pred_check_branch
          %7727 = sbr.rel (%p7725) target = $region60
        $region59: #{ema_vq_forward.1} parent=47 // pred_region
          %p7728 = scmp.lt.s32.totalorder %s24, 1
          %s7729 = scalar_select %p7728, %s24, 1
          %s7730 = smul.addr %s7729, 2
          %s7731 = scalar_lea.vmem %s5, %s7730
        $region60: #{ema_vq_forward.1} parent=47 // pred_fallthru
          _
      $region48: #{ema_vq_forward.1} parent=5 // pred_fallthru
        _
    $region6: #{ema_vq_forward.1} parent=1 // loop_footer
      %s22 = sadd.s32 1, %s18
    $region7: #{ema_vq_forward.1} parent=1 // loop_footer_branch
      %17 = sbr.rel target = $region3
    $region8: #{ema_vq_forward.1} parent=1 // loop_exit
      _
    %7732 = vsyncpa [#allocation3], 1
    %s7733 = scalar_lea.sflag [#allocation3], 1
    %7734 = vsyncpa %s7733, 1
    %7735 = vsyncpa [#allocation5], 1
    %s7736 = scalar_lea.sflag [#allocation5], 1
    %7737 = vsyncpa %s7736, 1

</llo_original>
